<compile_context>
chip_gen: v5e
topology: v5e:2x2
jax: 0.10.0
libtpu: 0.0.40
codegen_flags: <defaults>
</compile_context>

<pallas_src>
import jax
import jax.numpy as jnp
from jax.experimental import pallas as pl
from jax.experimental.pallas import tpu as pltpu


def _round_up(x, m):
    return ((x + m - 1) // m) * m


# ----------------------------------------------------------------------------
# Pallas kernels
# ----------------------------------------------------------------------------
def _conv_bn_relu_pool_kernel(p_ref, w_ref, s_ref, o_ref):
    """Fused conv-as-matmul + folded BN + ReLU + 2x2 maxpool.

    p_ref : [4, tm, K] bf16  im2col patches, tap t = one position of the 2x2
                             pooling window (rows of each tap are (b, ho, wo)).
    w_ref : [K, N]     bf16  conv weight with BN scale folded in.
    s_ref : [1, N]     f32   folded bias/BN shift.
    o_ref : [tm, N]    f32   pooled activations.
    """
    w = w_ref[...]
    acc = jnp.dot(p_ref[0], w, preferred_element_type=jnp.float32)
    for t in range(1, 4):
        acc = jnp.maximum(acc,
                          jnp.dot(p_ref[t], w, preferred_element_type=jnp.float32))
    # Same shift for every tap, so it commutes with the max; ReLU commutes too.
    acc = acc + s_ref[...]
    o_ref[...] = jnp.maximum(acc, 0.0).astype(o_ref.dtype)


def _fc_head_kernel(x_ref, w1_ref, b1_ref, w2_ref, b2_ref, w3_ref, b3_ref, o_ref):
    """fc1 -> (Dropout2d = identity at inference) -> fc2 -> fc3, fused."""
    h = jnp.dot(x_ref[...], w1_ref[...], preferred_element_type=jnp.float32)
    h = h + b1_ref[...]
    h = jnp.dot(h.astype(jnp.bfloat16), w2_ref[...],
                preferred_element_type=jnp.float32)
    h = h + b2_ref[...]
    o = jnp.dot(h.astype(jnp.bfloat16), w3_ref[...],
                preferred_element_type=jnp.float32)
    o = o + b3_ref[...]
    o_ref[...] = o.astype(o_ref.dtype)


# ----------------------------------------------------------------------------
# Wrappers (host-side layout plumbing + pallas_call setup)
# ----------------------------------------------------------------------------
def _im2col_pool_taps(x, pad):
    """x: [B,H,W,C] NHWC -> patches grouped by 2x2-pool tap.

    Returns taps [4, B*Ho*Wo, 9*C] (bf16), where tap (di,dj) holds the im2col
    patch (kh,kw,C order) of conv output position (2*ho+di, 2*wo+dj).
    """
    x = x.astype(jnp.bfloat16)
    if pad:
        x = jnp.pad(x, ((0, 0), (pad, pad), (pad, pad), (0, 0)))
    B, Hp, Wp, C = x.shape
    Hc, Wc = Hp - 2, Wp - 2          # 3x3 conv output extent
    Ho, Wo = Hc // 2, Wc // 2        # after 2x2/stride-2 pool
    cols = [x[:, i:i + Hc, j:j + Wc, :] for i in range(3) for j in range(3)]
    p = jnp.stack(cols, axis=3)                       # [B,Hc,Wc,9,C]
    taps = [p[:, di::2, dj::2] for di in (0, 1) for dj in (0, 1)]
    t = jnp.stack(taps, axis=0)                       # [4,B,Ho,Wo,9,C]
    return t.reshape(4, B * Ho * Wo, 9 * C), (B, Ho, Wo)


def conv_bn_relu_pool(x_nhwc, w_ochw, bias, gamma, beta, mean, var, *,
                      pad, eps=1e-5, max_rows=512):
    """One FashionCNN 'layer': Conv2d(3x3) + BatchNorm + ReLU + MaxPool2d(2)."""
    taps, (B, Ho, Wo) = _im2col_pool_taps(x_nhwc, pad)
    M, K = taps.shape[1], taps.shape[2]
    Cout = w_ochw.shape[0]

    # Fold bias + BN into the weights / a single shift.
    scale = gamma * jax.lax.rsqrt(var + eps)                       # [Cout]
    wmat = jnp.transpose(w_ochw, (2, 3, 1, 0)).reshape(K, Cout)    # (kh,kw,Ci)->Co
    wmat = (wmat * scale[None, :]).astype(jnp.bfloat16)
    shift = ((bias - mean) * scale + beta).reshape(1, Cout).astype(jnp.float32)

    tm = min(max_rows, _round_up(M, 16))
    M_pad = _round_up(M, tm)
    if M_pad != M:
        taps = jnp.pad(taps, ((0, 0), (0, M_pad - M), (0, 0)))

    out = pl.pallas_call(
        _conv_bn_relu_pool_kernel,
        out_shape=jax.ShapeDtypeStruct((M_pad, Cout), jnp.float32),
        grid=(M_pad // tm,),
        in_specs=[
            pl.BlockSpec((4, tm, K), lambda i: (0, i, 0)),   # patch row tile
            pl.BlockSpec((K, Cout), lambda i: (0, 0)),       # weight (resident)
            pl.BlockSpec((1, Cout), lambda i: (0, 0)),       # shift  (resident)
        ],
        out_specs=pl.BlockSpec((tm, Cout), lambda i: (i, 0)),
        compiler_params=pltpu.CompilerParams(dimension_semantics=("parallel",)),
    )(taps, wmat, shift)
    # TODO(synk): for large batch, build conv2 patch tiles in-kernel from a
    # VMEM-resident feature-map block (avoids the 9x im2col expansion in HBM)
    # and lay conv outputs out lane-dense ([B*Ho, Wo*C]).
    return out[:M].reshape(B, Ho, Wo, Cout)


def fc_head(flat, p, *, max_rows=256):
    """Fused fc1 -> fc2 -> fc3 (Dropout2d is identity at inference)."""
    M, K = flat.shape
    tm = min(max_rows, _round_up(M, 16))
    M_pad = _round_up(M, tm)
    x = flat.astype(jnp.bfloat16)
    if M_pad != M:
        x = jnp.pad(x, ((0, M_pad - M), (0, 0)))

    w1 = p["fc1_w"].astype(jnp.bfloat16)
    w2 = p["fc2_w"].astype(jnp.bfloat16)
    w3 = p["fc3_w"].astype(jnp.bfloat16)
    b1 = p["fc1_b"].reshape(1, -1).astype(jnp.float32)
    b2 = p["fc2_b"].reshape(1, -1).astype(jnp.float32)
    b3 = p["fc3_b"].reshape(1, -1).astype(jnp.float32)
    N1, N2, N3 = w1.shape[1], w2.shape[1], w3.shape[1]

    out = pl.pallas_call(
        _fc_head_kernel,
        out_shape=jax.ShapeDtypeStruct((M_pad, N3), jnp.float32),
        grid=(M_pad // tm,),
        in_specs=[
            pl.BlockSpec((tm, K), lambda i: (i, 0)),
            pl.BlockSpec((K, N1), lambda i: (0, 0)),
            pl.BlockSpec((1, N1), lambda i: (0, 0)),
            pl.BlockSpec((N1, N2), lambda i: (0, 0)),
            pl.BlockSpec((1, N2), lambda i: (0, 0)),
            pl.BlockSpec((N2, N3), lambda i: (0, 0)),
            pl.BlockSpec((1, N3), lambda i: (0, 0)),
        ],
        out_specs=pl.BlockSpec((tm, N3), lambda i: (i, 0)),
        compiler_params=pltpu.CompilerParams(dimension_semantics=("parallel",)),
    )(x, w1, b1, w2, b2, w3, b3)
    return out[:M]


# ----------------------------------------------------------------------------
# Parameters (deterministic) and forward pass
# ----------------------------------------------------------------------------
def init_params(key):
    ks = iter(jax.random.split(key, 32))
    n = lambda shape, s=0.1: s * jax.random.normal(next(ks), shape, jnp.float32)
    p = {}
    # layer1: Conv2d(1,32,3,pad=1) + BatchNorm2d(32)
    p["w1"], p["b1"] = n((32, 1, 3, 3)), n((32,))
    p["bn1_g"] = 1.0 + n((32,))
    p["bn1_b"] = n((32,))
    p["bn1_m"] = n((32,))
    p["bn1_v"] = 1.0 + jnp.abs(n((32,)))
    # layer2: Conv2d(32,64,3) + BatchNorm2d(64)
    p["w2"], p["b2"] = n((64, 32, 3, 3), 0.05), n((64,))
    p["bn2_g"] = 1.0 + n((64,))
    p["bn2_b"] = n((64,))
    p["bn2_m"] = n((64,))
    p["bn2_v"] = 1.0 + jnp.abs(n((64,)))
    # FC layers (stored as [in, out])
    p["fc1_w"], p["fc1_b"] = n((64 * 6 * 6, 600), 0.02), n((600,))
    p["fc2_w"], p["fc2_b"] = n((600, 120), 0.05), n((120,))
    p["fc3_w"], p["fc3_b"] = n((120, 10), 0.05), n((10,))
    return p


def fashion_cnn_forward(x_nchw, p):
    x = jnp.transpose(x_nchw, (0, 2, 3, 1)).astype(jnp.float32)   # NCHW -> NHWC

    # layer1: conv(1->32, k3, pad1) + BN + ReLU + maxpool2  -> [B,14,14,32]
    y = conv_bn_relu_pool(x, p["w1"], p["b1"],
                          p["bn1_g"], p["bn1_b"], p["bn1_m"], p["bn1_v"], pad=1)
    # layer2: conv(32->64, k3) + BN + ReLU + maxpool2       -> [B,6,6,64]
    y = conv_bn_relu_pool(y, p["w2"], p["b2"],
                          p["bn2_g"], p["bn2_b"], p["bn2_m"], p["bn2_v"], pad=0)

    # flatten in PyTorch NCHW order: [B, 64*6*6]
    B = y.shape[0]
    flat = jnp.transpose(y, (0, 3, 1, 2)).reshape(B, 64 * 6 * 6)

    # fc1 -> (dropout = identity) -> fc2 -> fc3, one fused kernel.
    return fc_head(flat, p)                                        # [B, 10]


if __name__ == "__main__":
    key = jax.random.PRNGKey(0)
    k_param, k_input = jax.random.split(key)
    params = init_params(k_param)
    # FashionCNN requires 28x28 single-channel input (fc1 expects 64*6*6).
    x = jax.random.normal(k_input, (2, 1, 28, 28), jnp.float32)

    fwd = jax.jit(fashion_cnn_forward)
    logits = fwd(x, params)
    jax.block_until_ready(logits)
    assert logits.shape == (2, 10) and logits.dtype == jnp.float32
    print("KERNEL_OK")
</pallas_src>

<mosaic_0001>
module attributes {stable_mosaic.version = 11 : i64} {
  func.func @_conv_bn_relu_pool_kernel(%arg0: i32, %arg1: memref<4x400x9xbf16, #tpu.memory_space<vmem>>, %arg2: memref<9x32xbf16, #tpu.memory_space<vmem>>, %arg3: memref<1x32xf32, #tpu.memory_space<vmem>>, %arg4: memref<400x32xf32, #tpu.memory_space<vmem>>) attributes {dimension_semantics = [#tpu.dimension_semantics<parallel>], iteration_bounds = array<i64: 1>, scalar_prefetch = 0 : i64, scratch_operands = 0 : i64, tpu.core_type = #tpu.core_type<tc>, window_params = [{transform_indices = @transform_0, window_bounds = array<i64: 4, 400, 9>}, {pipeline_mode = #tpu.pipeline_mode<synchronous>, transform_indices = @transform_1, window_bounds = array<i64: 9, 32>}, {pipeline_mode = #tpu.pipeline_mode<synchronous>, transform_indices = @transform_2, window_bounds = array<i64: 1, 32>}, {transform_indices = @transform_3, window_bounds = array<i64: 400, 32>}]} {
    %c0 = arith.constant 0 : index
    %c0_0 = arith.constant 0 : index
    %0 = vector.load %arg2[%c0, %c0_0] : memref<9x32xbf16, #tpu.memory_space<vmem>>, vector<9x32xbf16>
    %c0_1 = arith.constant 0 : index
    %c0_2 = arith.constant 0 : index
    %c0_3 = arith.constant 0 : index
    %1 = vector.load %arg1[%c0_1, %c0_2, %c0_3] : memref<4x400x9xbf16, #tpu.memory_space<vmem>>, vector<1x400x9xbf16>
    %2 = vector.shape_cast %1 : vector<1x400x9xbf16> to vector<400x9xbf16>
    %cst = arith.constant dense<0.000000e+00> : vector<400x32xf32>
    %3 = tpu.matmul %2, %0, %cst {dimension_numbers = #tpu.dot_dimension_numbers<[1], [0], [0], [1], [0, 0, 1, 1], [], []>} : vector<400x9xbf16>, vector<9x32xbf16>, vector<400x32xf32> -> vector<400x32xf32>
    %c1 = arith.constant 1 : index
    %c0_4 = arith.constant 0 : index
    %c0_5 = arith.constant 0 : index
    %4 = vector.load %arg1[%c1, %c0_4, %c0_5] : memref<4x400x9xbf16, #tpu.memory_space<vmem>>, vector<1x400x9xbf16>
    %5 = vector.shape_cast %4 : vector<1x400x9xbf16> to vector<400x9xbf16>
    %cst_6 = arith.constant dense<0.000000e+00> : vector<400x32xf32>
    %6 = tpu.matmul %5, %0, %cst_6 {dimension_numbers = #tpu.dot_dimension_numbers<[1], [0], [0], [1], [0, 0, 1, 1], [], []>} : vector<400x9xbf16>, vector<9x32xbf16>, vector<400x32xf32> -> vector<400x32xf32>
    %7 = arith.maximumf %3, %6 : vector<400x32xf32>
    %c2 = arith.constant 2 : index
    %c0_7 = arith.constant 0 : index
    %c0_8 = arith.constant 0 : index
    %8 = vector.load %arg1[%c2, %c0_7, %c0_8] : memref<4x400x9xbf16, #tpu.memory_space<vmem>>, vector<1x400x9xbf16>
    %9 = vector.shape_cast %8 : vector<1x400x9xbf16> to vector<400x9xbf16>
    %cst_9 = arith.constant dense<0.000000e+00> : vector<400x32xf32>
    %10 = tpu.matmul %9, %0, %cst_9 {dimension_numbers = #tpu.dot_dimension_numbers<[1], [0], [0], [1], [0, 0, 1, 1], [], []>} : vector<400x9xbf16>, vector<9x32xbf16>, vector<400x32xf32> -> vector<400x32xf32>
    %11 = arith.maximumf %7, %10 : vector<400x32xf32>
    %c3 = arith.constant 3 : index
    %c0_10 = arith.constant 0 : index
    %c0_11 = arith.constant 0 : index
    %12 = vector.load %arg1[%c3, %c0_10, %c0_11] : memref<4x400x9xbf16, #tpu.memory_space<vmem>>, vector<1x400x9xbf16>
    %13 = vector.shape_cast %12 : vector<1x400x9xbf16> to vector<400x9xbf16>
    %cst_12 = arith.constant dense<0.000000e+00> : vector<400x32xf32>
    %14 = tpu.matmul %13, %0, %cst_12 {dimension_numbers = #tpu.dot_dimension_numbers<[1], [0], [0], [1], [0, 0, 1, 1], [], []>} : vector<400x9xbf16>, vector<9x32xbf16>, vector<400x32xf32> -> vector<400x32xf32>
    %15 = arith.maximumf %11, %14 : vector<400x32xf32>
    %c0_13 = arith.constant 0 : index
    %c0_14 = arith.constant 0 : index
    %16 = vector.load %arg3[%c0_13, %c0_14] : memref<1x32xf32, #tpu.memory_space<vmem>>, vector<1x32xf32>
    %17 = vector.broadcast %16 : vector<1x32xf32> to vector<400x32xf32>
    %18 = arith.addf %15, %17 : vector<400x32xf32>
    %cst_15 = arith.constant 0.000000e+00 : f32
    %19 = vector.broadcast %cst_15 : f32 to vector<400x32xf32>
    %20 = arith.maximumf %18, %19 : vector<400x32xf32>
    %c0_16 = arith.constant 0 : index
    %c0_17 = arith.constant 0 : index
    %21 = vector.load %arg4[%c0_16, %c0_17] : memref<400x32xf32, #tpu.memory_space<vmem>>, vector<400x32xf32>
    tpu.vector_store %arg4[%c0_16, %c0_17], %20 {strides = array<i32>} : memref<400x32xf32, #tpu.memory_space<vmem>>, vector<400x32xf32>,
    return
  }
  func.func @transform_0(%arg0: i32) -> (i32, i32, i32) {
    %c0_i32 = arith.constant 0 : i32
    %c0_i32_0 = arith.constant 0 : i32
    %c0_i32_1 = arith.constant 0 : i32
    return %c0_i32, %arg0, %c0_i32_0 : i32, i32, i32
  }
  func.func @transform_1(%arg0: i32) -> (i32, i32) {
    %c0_i32 = arith.constant 0 : i32
    %c0_i32_0 = arith.constant 0 : i32
    %c0_i32_1 = arith.constant 0 : i32
    return %c0_i32, %c0_i32_0 : i32, i32
  }
  func.func @transform_2(%arg0: i32) -> (i32, i32) {
    %c0_i32 = arith.constant 0 : i32
    %c0_i32_0 = arith.constant 0 : i32
    %c0_i32_1 = arith.constant 0 : i32
    return %c0_i32, %c0_i32_0 : i32, i32
  }
  func.func @transform_3(%arg0: i32) -> (i32, i32) {
    %c0_i32 = arith.constant 0 : i32
    %c0_i32_0 = arith.constant 0 : i32
    return %arg0, %c0_i32 : i32, i32
  }
}

module attributes {stable_mosaic.version = 11 : i64} {
  func.func @_conv_bn_relu_pool_kernel(%arg0: i32, %arg1: memref<4x80x288xbf16, #tpu.memory_space<vmem>>, %arg2: memref<288x64xbf16, #tpu.memory_space<vmem>>, %arg3: memref<1x64xf32, #tpu.memory_space<vmem>>, %arg4: memref<80x64xf32, #tpu.memory_space<vmem>>) attributes {dimension_semantics = [#tpu.dimension_semantics<parallel>], iteration_bounds = array<i64: 1>, scalar_prefetch = 0 : i64, scratch_operands = 0 : i64, tpu.core_type = #tpu.core_type<tc>, window_params = [{transform_indices = @transform_0, window_bounds = array<i64: 4, 80, 288>}, {pipeline_mode = #tpu.pipeline_mode<synchronous>, transform_indices = @transform_1, window_bounds = array<i64: 288, 64>}, {pipeline_mode = #tpu.pipeline_mode<synchronous>, transform_indices = @transform_2, window_bounds = array<i64: 1, 64>}, {transform_indices = @transform_3, window_bounds = array<i64: 80, 64>}]} {
    %c0 = arith.constant 0 : index
    %c0_0 = arith.constant 0 : index
    %0 = vector.load %arg2[%c0, %c0_0] : memref<288x64xbf16, #tpu.memory_space<vmem>>, vector<288x64xbf16>
    %c0_1 = arith.constant 0 : index
    %c0_2 = arith.constant 0 : index
    %c0_3 = arith.constant 0 : index
    %1 = vector.load %arg1[%c0_1, %c0_2, %c0_3] : memref<4x80x288xbf16, #tpu.memory_space<vmem>>, vector<1x80x288xbf16>
    %2 = vector.shape_cast %1 : vector<1x80x288xbf16> to vector<80x288xbf16>
    %cst = arith.constant dense<0.000000e+00> : vector<80x64xf32>
    %3 = tpu.matmul %2, %0, %cst {dimension_numbers = #tpu.dot_dimension_numbers<[1], [0], [0], [1], [0, 0, 1, 1], [], []>} : vector<80x288xbf16>, vector<288x64xbf16>, vector<80x64xf32> -> vector<80x64xf32>
    %c1 = arith.constant 1 : index
    %c0_4 = arith.constant 0 : index
    %c0_5 = arith.constant 0 : index
    %4 = vector.load %arg1[%c1, %c0_4, %c0_5] : memref<4x80x288xbf16, #tpu.memory_space<vmem>>, vector<1x80x288xbf16>
    %5 = vector.shape_cast %4 : vector<1x80x288xbf16> to vector<80x288xbf16>
    %cst_6 = arith.constant dense<0.000000e+00> : vector<80x64xf32>
    %6 = tpu.matmul %5, %0, %cst_6 {dimension_numbers = #tpu.dot_dimension_numbers<[1], [0], [0], [1], [0, 0, 1, 1], [], []>} : vector<80x288xbf16>, vector<288x64xbf16>, vector<80x64xf32> -> vector<80x64xf32>
    %7 = arith.maximumf %3, %6 : vector<80x64xf32>
    %c2 = arith.constant 2 : index
    %c0_7 = arith.constant 0 : index
    %c0_8 = arith.constant 0 : index
    %8 = vector.load %arg1[%c2, %c0_7, %c0_8] : memref<4x80x288xbf16, #tpu.memory_space<vmem>>, vector<1x80x288xbf16>
    %9 = vector.shape_cast %8 : vector<1x80x288xbf16> to vector<80x288xbf16>
    %cst_9 = arith.constant dense<0.000000e+00> : vector<80x64xf32>
    %10 = tpu.matmul %9, %0, %cst_9 {dimension_numbers = #tpu.dot_dimension_numbers<[1], [0], [0], [1], [0, 0, 1, 1], [], []>} : vector<80x288xbf16>, vector<288x64xbf16>, vector<80x64xf32> -> vector<80x64xf32>
    %11 = arith.maximumf %7, %10 : vector<80x64xf32>
    %c3 = arith.constant 3 : index
    %c0_10 = arith.constant 0 : index
    %c0_11 = arith.constant 0 : index
    %12 = vector.load %arg1[%c3, %c0_10, %c0_11] : memref<4x80x288xbf16, #tpu.memory_space<vmem>>, vector<1x80x288xbf16>
    %13 = vector.shape_cast %12 : vector<1x80x288xbf16> to vector<80x288xbf16>
    %cst_12 = arith.constant dense<0.000000e+00> : vector<80x64xf32>
    %14 = tpu.matmul %13, %0, %cst_12 {dimension_numbers = #tpu.dot_dimension_numbers<[1], [0], [0], [1], [0, 0, 1, 1], [], []>} : vector<80x288xbf16>, vector<288x64xbf16>, vector<80x64xf32> -> vector<80x64xf32>
    %15 = arith.maximumf %11, %14 : vector<80x64xf32>
    %c0_13 = arith.constant 0 : index
    %c0_14 = arith.constant 0 : index
    %16 = vector.load %arg3[%c0_13, %c0_14] : memref<1x64xf32, #tpu.memory_space<vmem>>, vector<1x64xf32>
    %17 = vector.broadcast %16 : vector<1x64xf32> to vector<80x64xf32>
    %18 = arith.addf %15, %17 : vector<80x64xf32>
    %cst_15 = arith.constant 0.000000e+00 : f32
    %19 = vector.broadcast %cst_15 : f32 to vector<80x64xf32>
    %20 = arith.maximumf %18, %19 : vector<80x64xf32>
    %c0_16 = arith.constant 0 : index
    %c0_17 = arith.constant 0 : index
    %21 = vector.load %arg4[%c0_16, %c0_17] : memref<80x64xf32, #tpu.memory_space<vmem>>, vector<80x64xf32>
    tpu.vector_store %arg4[%c0_16, %c0_17], %20 {strides = array<i32>} : memref<80x64xf32, #tpu.memory_space<vmem>>, vector<80x64xf32>,
    return
  }
  func.func @transform_0(%arg0: i32) -> (i32, i32, i32) {
    %c0_i32 = arith.constant 0 : i32
    %c0_i32_0 = arith.constant 0 : i32
    %c0_i32_1 = arith.constant 0 : i32
    return %c0_i32, %arg0, %c0_i32_0 : i32, i32, i32
  }
  func.func @transform_1(%arg0: i32) -> (i32, i32) {
    %c0_i32 = arith.constant 0 : i32
    %c0_i32_0 = arith.constant 0 : i32
    %c0_i32_1 = arith.constant 0 : i32
    return %c0_i32, %c0_i32_0 : i32, i32
  }
  func.func @transform_2(%arg0: i32) -> (i32, i32) {
    %c0_i32 = arith.constant 0 : i32
    %c0_i32_0 = arith.constant 0 : i32
    %c0_i32_1 = arith.constant 0 : i32
    return %c0_i32, %c0_i32_0 : i32, i32
  }
  func.func @transform_3(%arg0: i32) -> (i32, i32) {
    %c0_i32 = arith.constant 0 : i32
    %c0_i32_0 = arith.constant 0 : i32
    return %arg0, %c0_i32 : i32, i32
  }
}

module attributes {stable_mosaic.version = 11 : i64} {
  func.func @_fc_head_kernel(%arg0: i32, %arg1: memref<16x2304xbf16, #tpu.memory_space<vmem>>, %arg2: memref<2304x600xbf16, #tpu.memory_space<vmem>>, %arg3: memref<1x600xf32, #tpu.memory_space<vmem>>, %arg4: memref<600x120xbf16, #tpu.memory_space<vmem>>, %arg5: memref<1x120xf32, #tpu.memory_space<vmem>>, %arg6: memref<120x10xbf16, #tpu.memory_space<vmem>>, %arg7: memref<1x10xf32, #tpu.memory_space<vmem>>, %arg8: memref<16x10xf32, #tpu.memory_space<vmem>>) attributes {dimension_semantics = [#tpu.dimension_semantics<parallel>], iteration_bounds = array<i64: 1>, scalar_prefetch = 0 : i64, scratch_operands = 0 : i64, tpu.core_type = #tpu.core_type<tc>, window_params = [{transform_indices = @transform_0, window_bounds = array<i64: 16, 2304>}, {pipeline_mode = #tpu.pipeline_mode<synchronous>, transform_indices = @transform_1, window_bounds = array<i64: 2304, 600>}, {pipeline_mode = #tpu.pipeline_mode<synchronous>, transform_indices = @transform_2, window_bounds = array<i64: 1, 600>}, {pipeline_mode = #tpu.pipeline_mode<synchronous>, transform_indices = @transform_3, window_bounds = array<i64: 600, 120>}, {pipeline_mode = #tpu.pipeline_mode<synchronous>, transform_indices = @transform_4, window_bounds = array<i64: 1, 120>}, {pipeline_mode = #tpu.pipeline_mode<synchronous>, transform_indices = @transform_5, window_bounds = array<i64: 120, 10>}, {pipeline_mode = #tpu.pipeline_mode<synchronous>, transform_indices = @transform_6, window_bounds = array<i64: 1, 10>}, {transform_indices = @transform_7, window_bounds = array<i64: 16, 10>}]} {
    %c0 = arith.constant 0 : index
    %c0_0 = arith.constant 0 : index
    %0 = vector.load %arg1[%c0, %c0_0] : memref<16x2304xbf16, #tpu.memory_space<vmem>>, vector<16x2304xbf16>
    %c0_1 = arith.constant 0 : index
    %c0_2 = arith.constant 0 : index
    %1 = vector.load %arg2[%c0_1, %c0_2] : memref<2304x600xbf16, #tpu.memory_space<vmem>>, vector<2304x600xbf16>
    %cst = arith.constant dense<0.000000e+00> : vector<16x600xf32>
    %2 = tpu.matmul %0, %1, %cst {dimension_numbers = #tpu.dot_dimension_numbers<[1], [0], [0], [1], [0, 0, 1, 1], [], []>} : vector<16x2304xbf16>, vector<2304x600xbf16>, vector<16x600xf32> -> vector<16x600xf32>
    %c0_3 = arith.constant 0 : index
    %c0_4 = arith.constant 0 : index
    %3 = vector.load %arg3[%c0_3, %c0_4] : memref<1x600xf32, #tpu.memory_space<vmem>>, vector<1x600xf32>
    %4 = vector.broadcast %3 : vector<1x600xf32> to vector<16x600xf32>
    %5 = arith.addf %2, %4 : vector<16x600xf32>
    %6 = arith.truncf %5 : vector<16x600xf32> to vector<16x600xbf16>
    %c0_5 = arith.constant 0 : index
    %c0_6 = arith.constant 0 : index
    %7 = vector.load %arg4[%c0_5, %c0_6] : memref<600x120xbf16, #tpu.memory_space<vmem>>, vector<600x120xbf16>
    %cst_7 = arith.constant dense<0.000000e+00> : vector<16x120xf32>
    %8 = tpu.matmul %6, %7, %cst_7 {dimension_numbers = #tpu.dot_dimension_numbers<[1], [0], [0], [1], [0, 0, 1, 1], [], []>} : vector<16x600xbf16>, vector<600x120xbf16>, vector<16x120xf32> -> vector<16x120xf32>
    %c0_8 = arith.constant 0 : index
    %c0_9 = arith.constant 0 : index
    %9 = vector.load %arg5[%c0_8, %c0_9] : memref<1x120xf32, #tpu.memory_space<vmem>>, vector<1x120xf32>
    %10 = vector.broadcast %9 : vector<1x120xf32> to vector<16x120xf32>
    %11 = arith.addf %8, %10 : vector<16x120xf32>
    %12 = arith.truncf %11 : vector<16x120xf32> to vector<16x120xbf16>
    %c0_10 = arith.constant 0 : index
    %c0_11 = arith.constant 0 : index
    %13 = vector.load %arg6[%c0_10, %c0_11] : memref<120x10xbf16, #tpu.memory_space<vmem>>, vector<120x10xbf16>
    %cst_12 = arith.constant dense<0.000000e+00> : vector<16x10xf32>
    %14 = tpu.matmul %12, %13, %cst_12 {dimension_numbers = #tpu.dot_dimension_numbers<[1], [0], [0], [1], [0, 0, 1, 1], [], []>} : vector<16x120xbf16>, vector<120x10xbf16>, vector<16x10xf32> -> vector<16x10xf32>
    %c0_13 = arith.constant 0 : index
    %c0_14 = arith.constant 0 : index
    %15 = vector.load %arg7[%c0_13, %c0_14] : memref<1x10xf32, #tpu.memory_space<vmem>>, vector<1x10xf32>
    %16 = vector.broadcast %15 : vector<1x10xf32> to vector<16x10xf32>
    %17 = arith.addf %14, %16 : vector<16x10xf32>
    %c0_15 = arith.constant 0 : index
    %c0_16 = arith.constant 0 : index
    %18 = vector.load %arg8[%c0_15, %c0_16] : memref<16x10xf32, #tpu.memory_space<vmem>>, vector<16x10xf32>
    tpu.vector_store %arg8[%c0_15, %c0_16], %17 {strides = array<i32>} : memref<16x10xf32, #tpu.memory_space<vmem>>, vector<16x10xf32>,
    return
  }
  func.func @transform_0(%arg0: i32) -> (i32, i32) {
    %c0_i32 = arith.constant 0 : i32
    %c0_i32_0 = arith.constant 0 : i32
    return %arg0, %c0_i32 : i32, i32
  }
  func.func @transform_1(%arg0: i32) -> (i32, i32) {
    %c0_i32 = arith.constant 0 : i32
    %c0_i32_0 = arith.constant 0 : i32
    %c0_i32_1 = arith.constant 0 : i32
    return %c0_i32, %c0_i32_0 : i32, i32
  }
  func.func @transform_2(%arg0: i32) -> (i32, i32) {
    %c0_i32 = arith.constant 0 : i32
    %c0_i32_0 = arith.constant 0 : i32
    %c0_i32_1 = arith.constant 0 : i32
    return %c0_i32, %c0_i32_0 : i32, i32
  }
  func.func @transform_3(%arg0: i32) -> (i32, i32) {
    %c0_i32 = arith.constant 0 : i32
    %c0_i32_0 = arith.constant 0 : i32
    %c0_i32_1 = arith.constant 0 : i32
    return %c0_i32, %c0_i32_0 : i32, i32
  }
  func.func @transform_4(%arg0: i32) -> (i32, i32) {
    %c0_i32 = arith.constant 0 : i32
    %c0_i32_0 = arith.constant 0 : i32
    %c0_i32_1 = arith.constant 0 : i32
    return %c0_i32, %c0_i32_0 : i32, i32
  }
  func.func @transform_5(%arg0: i32) -> (i32, i32) {
    %c0_i32 = arith.constant 0 : i32
    %c0_i32_0 = arith.constant 0 : i32
    %c0_i32_1 = arith.constant 0 : i32
    return %c0_i32, %c0_i32_0 : i32, i32
  }
  func.func @transform_6(%arg0: i32) -> (i32, i32) {
    %c0_i32 = arith.constant 0 : i32
    %c0_i32_0 = arith.constant 0 : i32
    %c0_i32_1 = arith.constant 0 : i32
    return %c0_i32, %c0_i32_0 : i32, i32
  }
  func.func @transform_7(%arg0: i32) -> (i32, i32) {
    %c0_i32 = arith.constant 0 : i32
    %c0_i32_0 = arith.constant 0 : i32
    return %arg0, %c0_i32 : i32, i32
  }
}

</mosaic_0001>

<llo_original>
// kernel: fashion_cnn_forward.3
$region0: #{fashion_cnn_forward.3}
  #allocation0 [shape = 'u32[]', space=smem, size = 0x4, offset = 0x4, fixed_abs, tag = 'smem constant byte address 0x4 - core index']
  #allocation1 [shape = 'u32[72,128]{1,0:T(1,128)}', space=vmem, size = 0x9000, scoped, tag = 'internal scratch']
  %s0 = inlined_call_operand.vmem [shape: bf16[4,400,9], index: 0, kind: input, shape index: {}]
  %s1 = inlined_call_operand.vmem [shape: bf16[9,32], index: 1, kind: input, shape index: {}]
  %s2 = inlined_call_operand.vmem [shape: f32[1,32], index: 2, kind: input, shape index: {}]
  %s3 = inlined_call_operand.vmem [shape: f32[400,32], index: 3, kind: output, shape index: {}]
  %s4 = sld [smem:[#allocation0]]
  $region22: #{fashion_cnn_forward.3} parent=0
    _
  %s6 = ssub.s32 1, %s4
  %s7 = scalar_select 0, %s6, %s4
  // Predicated region
  $region2: #{fashion_cnn_forward.3} parent=0 // pred_check
    _
  $region3: #{fashion_cnn_forward.3} parent=0 // pred_check_branch
    %9 = sbr.rel (0) target = $region5
  $region4: #{fashion_cnn_forward.3} parent=0 // pred_region
    _
  $region5: #{fashion_cnn_forward.3} parent=0 // pred_fallthru
    _
  // Predicated region
  $region6: #{fashion_cnn_forward.3} parent=0 // pred_check
    _
  $region7: #{fashion_cnn_forward.3} parent=0 // pred_check_branch
    %11 = sbr.rel (0) target = $region9
  $region8: #{fashion_cnn_forward.3} parent=0 // pred_region
    _
  $region9: #{fashion_cnn_forward.3} parent=0 // pred_fallthru
    _
  // Predicated region
  $region10: #{fashion_cnn_forward.3} parent=0 // pred_check
    _
  $region11: #{fashion_cnn_forward.3} parent=0 // pred_check_branch
    %13 = sbr.rel (0) target = $region13
  $region12: #{fashion_cnn_forward.3} parent=0 // pred_region
    _
  $region13: #{fashion_cnn_forward.3} parent=0 // pred_fallthru
    _
  %v15 = vld [vmem:[%s1] sm:$0xf]
  %v16 = vld [vmem:[%s1 + $0x4] sm:$0x1]
  %v17 = vld [vmem:[%s0] sm:$0xf]
  %v18 = vld [vmem:[%s0 + $0x4] sm:$0xf]
  %v19 = vld [vmem:[%s0 + $0x8] sm:$0xf]
  %v20 = vld [vmem:[%s0 + $0xc] sm:$0xf]
  %v21 = vld [vmem:[%s0 + $0x10] sm:$0xf]
  %v22 = vld [vmem:[%s0 + $0x14] sm:$0xf]
  %v23 = vld [vmem:[%s0 + $0x18] sm:$0xf]
  %v24 = vld [vmem:[%s0 + $0x1c] sm:$0xf]
  %v25 = vld [vmem:[%s0 + $0x20] sm:$0xf]
  %v26 = vld [vmem:[%s0 + $0x24] sm:$0xf]
  %v27 = vld [vmem:[%s0 + $0x28] sm:$0xf]
  %v28 = vld [vmem:[%s0 + $0x2c] sm:$0xf]
  %v29 = vld [vmem:[%s0 + $0x30] sm:$0xf]
  %v30 = vld [vmem:[%s0 + $0x34] sm:$0xf]
  %v31 = vld [vmem:[%s0 + $0x38] sm:$0xf]
  %v32 = vld [vmem:[%s0 + $0x3c] sm:$0xf]
  %v33 = vld [vmem:[%s0 + $0x40] sm:$0xf]
  %v34 = vld [vmem:[%s0 + $0x44] sm:$0xf]
  %v35 = vld [vmem:[%s0 + $0x48] sm:$0xf]
  %v36 = vld [vmem:[%s0 + $0x4c] sm:$0xf]
  %v37 = vld [vmem:[%s0 + $0x50] sm:$0xf]
  %v38 = vld [vmem:[%s0 + $0x54] sm:$0xf]
  %v39 = vld [vmem:[%s0 + $0x58] sm:$0xf]
  %v40 = vld [vmem:[%s0 + $0x5c] sm:$0xf]
  %v41 = vld [vmem:[%s0 + $0x60] sm:$0xf]
  %v42 = vld [vmem:[%s0 + $0x64] sm:$0xf]
  %v43 = vld [vmem:[%s0 + $0x68] sm:$0xf]
  %v44 = vld [vmem:[%s0 + $0x6c] sm:$0xf]
  %v45 = vld [vmem:[%s0 + $0x70] sm:$0xf]
  %v46 = vld [vmem:[%s0 + $0x74] sm:$0xf]
  %v47 = vld [vmem:[%s0 + $0x78] sm:$0xf]
  %v48 = vld [vmem:[%s0 + $0x7c] sm:$0xf]
  %v49 = vld [vmem:[%s0 + $0x80] sm:$0xf]
  %v50 = vld [vmem:[%s0 + $0x84] sm:$0xf]
  %v51 = vld [vmem:[%s0 + $0x88] sm:$0xf]
  %v52 = vld [vmem:[%s0 + $0x8c] sm:$0xf]
  %v53 = vld [vmem:[%s0 + $0x90] sm:$0xf]
  %v54 = vld [vmem:[%s0 + $0x94] sm:$0xf]
  %v55 = vld [vmem:[%s0 + $0x98] sm:$0xf]
  %v56 = vld [vmem:[%s0 + $0x9c] sm:$0xf]
  %v57 = vld [vmem:[%s0 + $0xa0] sm:$0xf]
  %v58 = vld [vmem:[%s0 + $0xa4] sm:$0xf]
  %v59 = vld [vmem:[%s0 + $0xa8] sm:$0xf]
  %v60 = vld [vmem:[%s0 + $0xac] sm:$0xf]
  %v61 = vld [vmem:[%s0 + $0xb0] sm:$0xf]
  %v62 = vld [vmem:[%s0 + $0xb4] sm:$0xf]
  %v63 = vld [vmem:[%s0 + $0xb8] sm:$0xf]
  %v64 = vld [vmem:[%s0 + $0xbc] sm:$0xf]
  %v65 = vld [vmem:[%s0 + $0xc0] sm:$0xf]
  %v66 = vld [vmem:[%s0 + $0xc4] sm:$0xf]
  %v117 = vunpack.c.l.b16 %v17
  %v118 = vunpack.c.l.b16 %v18
  %v119 = vunpack.c.l.b16 %v19
  %v120 = vunpack.c.l.b16 %v20
  %v121 = vunpack.c.l.b16 %v21
  %v122 = vunpack.c.l.b16 %v22
  %v123 = vunpack.c.l.b16 %v23
  %v124 = vunpack.c.l.b16 %v24
  %v125 = vunpack.c.l.b16 %v25
  %v126 = vunpack.c.l.b16 %v26
  %v127 = vunpack.c.l.b16 %v27
  %v128 = vunpack.c.l.b16 %v28
  %v129 = vunpack.c.l.b16 %v29
  %v130 = vunpack.c.l.b16 %v30
  %v131 = vunpack.c.l.b16 %v31
  %v132 = vunpack.c.l.b16 %v32
  %v133 = vunpack.c.l.b16 %v33
  %v134 = vunpack.c.l.b16 %v34
  %v135 = vunpack.c.l.b16 %v35
  %v136 = vunpack.c.l.b16 %v36
  %v137 = vunpack.c.l.b16 %v37
  %v138 = vunpack.c.l.b16 %v38
  %v139 = vunpack.c.l.b16 %v39
  %v140 = vunpack.c.l.b16 %v40
  %v141 = vunpack.c.l.b16 %v41
  %v142 = vunpack.c.l.b16 %v42
  %v143 = vunpack.c.l.b16 %v43
  %v144 = vunpack.c.l.b16 %v44
  %v145 = vunpack.c.l.b16 %v45
  %v146 = vunpack.c.l.b16 %v46
  %v147 = vunpack.c.l.b16 %v47
  %v148 = vunpack.c.l.b16 %v48
  %v149 = vunpack.c.l.b16 %v49
  %v150 = vunpack.c.l.b16 %v50
  %v151 = vunpack.c.l.b16 %v51
  %v152 = vunpack.c.l.b16 %v52
  %v153 = vunpack.c.l.b16 %v53
  %v154 = vunpack.c.l.b16 %v54
  %v155 = vunpack.c.l.b16 %v55
  %v156 = vunpack.c.l.b16 %v56
  %v157 = vunpack.c.l.b16 %v57
  %v158 = vunpack.c.l.b16 %v58
  %v159 = vunpack.c.l.b16 %v59
  %v160 = vunpack.c.l.b16 %v60
  %v161 = vunpack.c.l.b16 %v61
  %v162 = vunpack.c.l.b16 %v62
  %v163 = vunpack.c.l.b16 %v63
  %v164 = vunpack.c.l.b16 %v64
  %v165 = vunpack.c.l.b16 %v65
  %v166 = vunpack.c.l.b16 %v66
  %v167 = vpack.c.b16 %v118, %v117
  %v168 = vpack.c.b16 %v120, %v119
  %v169 = vpack.c.b16 %v122, %v121
  %v170 = vpack.c.b16 %v124, %v123
  %v171 = vpack.c.b16 %v126, %v125
  %v172 = vpack.c.b16 %v128, %v127
  %v173 = vpack.c.b16 %v130, %v129
  %v174 = vpack.c.b16 %v132, %v131
  %v175 = vpack.c.b16 %v134, %v133
  %v176 = vpack.c.b16 %v136, %v135
  %v177 = vpack.c.b16 %v138, %v137
  %v178 = vpack.c.b16 %v140, %v139
  %v179 = vpack.c.b16 %v142, %v141
  %v180 = vpack.c.b16 %v144, %v143
  %v181 = vpack.c.b16 %v146, %v145
  %v182 = vpack.c.b16 %v148, %v147
  %v183 = vpack.c.b16 %v150, %v149
  %v184 = vpack.c.b16 %v152, %v151
  %v185 = vpack.c.b16 %v154, %v153
  %v186 = vpack.c.b16 %v156, %v155
  %v187 = vpack.c.b16 %v158, %v157
  %v188 = vpack.c.b16 %v160, %v159
  %v189 = vpack.c.b16 %v162, %v161
  %v190 = vpack.c.b16 %v164, %v163
  %v191 = vpack.c.b16 %v166, %v165
  %v194 = vunpack.c.l.b16 %v15
  %v195 = vunpack.c.l.b16 %v16
  %v196 = vpack.c.b16 %v195, %v194
  %vm197 = vcmask 72704
  %v199 = vsel %vm197, %v167, 0
  %v202 = vsel %vm197, %v168, 0
  %v205 = vsel %vm197, %v169, 0
  %v208 = vsel %vm197, %v170, 0
  %v211 = vsel %vm197, %v171, 0
  %v214 = vsel %vm197, %v172, 0
  %v217 = vsel %vm197, %v173, 0
  %v220 = vsel %vm197, %v174, 0
  %v223 = vsel %vm197, %v175, 0
  %v226 = vsel %vm197, %v176, 0
  %v229 = vsel %vm197, %v177, 0
  %v232 = vsel %vm197, %v178, 0
  %v235 = vsel %vm197, %v179, 0
  %v238 = vsel %vm197, %v180, 0
  %v241 = vsel %vm197, %v181, 0
  %v244 = vsel %vm197, %v182, 0
  %v247 = vsel %vm197, %v183, 0
  %v250 = vsel %vm197, %v184, 0
  %v253 = vsel %vm197, %v185, 0
  %v256 = vsel %vm197, %v186, 0
  %v259 = vsel %vm197, %v187, 0
  %v262 = vsel %vm197, %v188, 0
  %v265 = vsel %vm197, %v189, 0
  %v268 = vsel %vm197, %v190, 0
  %v271 = vsel %vm197, %v191, 0
  %vm273 = vcmask 1043456
  %vm274 = vcmask 1044480
  %v275 = vsel %vm273, 4294967295, 65535
  %v276 = vsel %vm274, %v275, 0
  %v278 = vand.u32 %v196, %v276
  %280 = vmatpush.bf16.msra.mxu0 0
  %281 = vmatpush.bf16.msra.mxu0 0
  %282 = vmatpush.bf16.msra.mxu0 0
  %283 = vmatpush.bf16.msra.mxu0 0
  %284 = vmatpush.bf16.msra.mxu0 0
  %285 = vmatpush.bf16.msra.mxu0 0
  %286 = vmatpush.bf16.msra.mxu0 0
  %287 = vmatpush.bf16.msra.mxu0 %v278
  %288 = vmatmul.bf16.gmra.mxu0 %v199
  %v289 = vpop.f32.mrf.mxu0
  %v290 = vadd.f32 0.0, %v289
  %v291 = vpop.f32.mrf.mxu0
  %v292 = vadd.f32 0.0, %v291
  %293 = vmatmul.bf16.gmra.mxu0 %v202
  %v294 = vpop.f32.mrf.mxu0
  %v295 = vadd.f32 0.0, %v294
  %v296 = vpop.f32.mrf.mxu0
  %v297 = vadd.f32 0.0, %v296
  %298 = vmatmul.bf16.gmra.mxu0 %v205
  %v299 = vpop.f32.mrf.mxu0
  %v300 = vadd.f32 0.0, %v299
  %v301 = vpop.f32.mrf.mxu0
  %v302 = vadd.f32 0.0, %v301
  %303 = vmatmul.bf16.gmra.mxu0 %v208
  %v304 = vpop.f32.mrf.mxu0
  %v305 = vadd.f32 0.0, %v304
  %v306 = vpop.f32.mrf.mxu0
  %v307 = vadd.f32 0.0, %v306
  %308 = vmatmul.bf16.gmra.mxu0 %v211
  %v309 = vpop.f32.mrf.mxu0
  %v310 = vadd.f32 0.0, %v309
  %v311 = vpop.f32.mrf.mxu0
  %v312 = vadd.f32 0.0, %v311
  %313 = vmatmul.bf16.gmra.mxu0 %v214
  %v314 = vpop.f32.mrf.mxu0
  %v315 = vadd.f32 0.0, %v314
  %v316 = vpop.f32.mrf.mxu0
  %v317 = vadd.f32 0.0, %v316
  %318 = vmatmul.bf16.gmra.mxu0 %v217
  %v319 = vpop.f32.mrf.mxu0
  %v320 = vadd.f32 0.0, %v319
  %v321 = vpop.f32.mrf.mxu0
  %v322 = vadd.f32 0.0, %v321
  %323 = vmatmul.bf16.gmra.mxu0 %v220
  %v324 = vpop.f32.mrf.mxu0
  %v325 = vadd.f32 0.0, %v324
  %v326 = vpop.f32.mrf.mxu0
  %v327 = vadd.f32 0.0, %v326
  %328 = vmatmul.bf16.gmra.mxu0 %v223
  %v329 = vpop.f32.mrf.mxu0
  %v330 = vadd.f32 0.0, %v329
  %v331 = vpop.f32.mrf.mxu0
  %v332 = vadd.f32 0.0, %v331
  %333 = vmatmul.bf16.gmra.mxu0 %v226
  %v334 = vpop.f32.mrf.mxu0
  %v335 = vadd.f32 0.0, %v334
  %v336 = vpop.f32.mrf.mxu0
  %v337 = vadd.f32 0.0, %v336
  %338 = vmatmul.bf16.gmra.mxu0 %v229
  %v339 = vpop.f32.mrf.mxu0
  %v340 = vadd.f32 0.0, %v339
  %v341 = vpop.f32.mrf.mxu0
  %v342 = vadd.f32 0.0, %v341
  %343 = vmatmul.bf16.gmra.mxu0 %v232
  %v344 = vpop.f32.mrf.mxu0
  %v345 = vadd.f32 0.0, %v344
  %v346 = vpop.f32.mrf.mxu0
  %v347 = vadd.f32 0.0, %v346
  %348 = vmatmul.bf16.gmra.mxu0 %v235
  %v349 = vpop.f32.mrf.mxu0
  %v350 = vadd.f32 0.0, %v349
  %v351 = vpop.f32.mrf.mxu0
  %v352 = vadd.f32 0.0, %v351
  %353 = vmatmul.bf16.gmra.mxu0 %v238
  %v354 = vpop.f32.mrf.mxu0
  %v355 = vadd.f32 0.0, %v354
  %v356 = vpop.f32.mrf.mxu0
  %v357 = vadd.f32 0.0, %v356
  %358 = vmatmul.bf16.gmra.mxu0 %v241
  %v359 = vpop.f32.mrf.mxu0
  %v360 = vadd.f32 0.0, %v359
  %v361 = vpop.f32.mrf.mxu0
  %v362 = vadd.f32 0.0, %v361
  %363 = vmatmul.bf16.gmra.mxu0 %v244
  %v364 = vpop.f32.mrf.mxu0
  %v365 = vadd.f32 0.0, %v364
  %v366 = vpop.f32.mrf.mxu0
  %v367 = vadd.f32 0.0, %v366
  %368 = vmatmul.bf16.gmra.mxu0 %v247
  %v369 = vpop.f32.mrf.mxu0
  %v370 = vadd.f32 0.0, %v369
  %v371 = vpop.f32.mrf.mxu0
  %v372 = vadd.f32 0.0, %v371
  %373 = vmatmul.bf16.gmra.mxu0 %v250
  %v374 = vpop.f32.mrf.mxu0
  %v375 = vadd.f32 0.0, %v374
  %v376 = vpop.f32.mrf.mxu0
  %v377 = vadd.f32 0.0, %v376
  %378 = vmatmul.bf16.gmra.mxu0 %v253
  %v379 = vpop.f32.mrf.mxu0
  %v380 = vadd.f32 0.0, %v379
  %v381 = vpop.f32.mrf.mxu0
  %v382 = vadd.f32 0.0, %v381
  %383 = vmatmul.bf16.gmra.mxu0 %v256
  %v384 = vpop.f32.mrf.mxu0
  %v385 = vadd.f32 0.0, %v384
  %v386 = vpop.f32.mrf.mxu0
  %v387 = vadd.f32 0.0, %v386
  %388 = vmatmul.bf16.gmra.mxu0 %v259
  %v389 = vpop.f32.mrf.mxu0
  %v390 = vadd.f32 0.0, %v389
  %v391 = vpop.f32.mrf.mxu0
  %v392 = vadd.f32 0.0, %v391
  %393 = vmatmul.bf16.gmra.mxu0 %v262
  %v394 = vpop.f32.mrf.mxu0
  %v395 = vadd.f32 0.0, %v394
  %v396 = vpop.f32.mrf.mxu0
  %v397 = vadd.f32 0.0, %v396
  %398 = vmatmul.bf16.gmra.mxu0 %v265
  %v399 = vpop.f32.mrf.mxu0
  %v400 = vadd.f32 0.0, %v399
  %v401 = vpop.f32.mrf.mxu0
  %v402 = vadd.f32 0.0, %v401
  %403 = vmatmul.bf16.gmra.mxu0 %v268
  %v404 = vpop.f32.mrf.mxu0
  %v405 = vadd.f32 0.0, %v404
  %v406 = vpop.f32.mrf.mxu0
  %v407 = vadd.f32 0.0, %v406
  %408 = vmatmul.bf16.gmra.mxu0 %v271
  %v409 = vpop.f32.mrf.mxu0
  %v410 = vadd.f32 0.0, %v409
  %v411 = vpop.f32.mrf.mxu0
  %v412 = vadd.f32 0.0, %v411
  %413 = vdwg.mxu0
  %s414 = scalar_lea.vmem %s0, 200
  %v415 = vld [vmem:[%s414] sm:$0xf]
  %v416 = vld [vmem:[%s414 + $0x4] sm:$0xf]
  %v417 = vld [vmem:[%s414 + $0x8] sm:$0xf]
  %v418 = vld [vmem:[%s414 + $0xc] sm:$0xf]
  %v419 = vld [vmem:[%s414 + $0x10] sm:$0xf]
  %v420 = vld [vmem:[%s414 + $0x14] sm:$0xf]
  %v421 = vld [vmem:[%s414 + $0x18] sm:$0xf]
  %v422 = vld [vmem:[%s414 + $0x1c] sm:$0xf]
  %v423 = vld [vmem:[%s414 + $0x20] sm:$0xf]
  %v424 = vld [vmem:[%s414 + $0x24] sm:$0xf]
  %v425 = vld [vmem:[%s414 + $0x28] sm:$0xf]
  %v426 = vld [vmem:[%s414 + $0x2c] sm:$0xf]
  %v427 = vld [vmem:[%s414 + $0x30] sm:$0xf]
  %v428 = vld [vmem:[%s414 + $0x34] sm:$0xf]
  %v429 = vld [vmem:[%s414 + $0x38] sm:$0xf]
  %v430 = vld [vmem:[%s414 + $0x3c] sm:$0xf]
  %v431 = vld [vmem:[%s414 + $0x40] sm:$0xf]
  %v432 = vld [vmem:[%s414 + $0x44] sm:$0xf]
  %v433 = vld [vmem:[%s414 + $0x48] sm:$0xf]
  %v434 = vld [vmem:[%s414 + $0x4c] sm:$0xf]
  %v435 = vld [vmem:[%s414 + $0x50] sm:$0xf]
  %v436 = vld [vmem:[%s414 + $0x54] sm:$0xf]
  %v437 = vld [vmem:[%s414 + $0x58] sm:$0xf]
  %v438 = vld [vmem:[%s414 + $0x5c] sm:$0xf]
  %v439 = vld [vmem:[%s414 + $0x60] sm:$0xf]
  %v440 = vld [vmem:[%s414 + $0x64] sm:$0xf]
  %v441 = vld [vmem:[%s414 + $0x68] sm:$0xf]
  %v442 = vld [vmem:[%s414 + $0x6c] sm:$0xf]
  %v443 = vld [vmem:[%s414 + $0x70] sm:$0xf]
  %v444 = vld [vmem:[%s414 + $0x74] sm:$0xf]
  %v445 = vld [vmem:[%s414 + $0x78] sm:$0xf]
  %v446 = vld [vmem:[%s414 + $0x7c] sm:$0xf]
  %v447 = vld [vmem:[%s414 + $0x80] sm:$0xf]
  %v448 = vld [vmem:[%s414 + $0x84] sm:$0xf]
  %v449 = vld [vmem:[%s414 + $0x88] sm:$0xf]
  %v450 = vld [vmem:[%s414 + $0x8c] sm:$0xf]
  %v451 = vld [vmem:[%s414 + $0x90] sm:$0xf]
  %v452 = vld [vmem:[%s414 + $0x94] sm:$0xf]
  %v453 = vld [vmem:[%s414 + $0x98] sm:$0xf]
  %v454 = vld [vmem:[%s414 + $0x9c] sm:$0xf]
  %v455 = vld [vmem:[%s414 + $0xa0] sm:$0xf]
  %v456 = vld [vmem:[%s414 + $0xa4] sm:$0xf]
  %v457 = vld [vmem:[%s414 + $0xa8] sm:$0xf]
  %v458 = vld [vmem:[%s414 + $0xac] sm:$0xf]
  %v459 = vld [vmem:[%s414 + $0xb0] sm:$0xf]
  %v460 = vld [vmem:[%s414 + $0xb4] sm:$0xf]
  %v461 = vld [vmem:[%s414 + $0xb8] sm:$0xf]
  %v462 = vld [vmem:[%s414 + $0xbc] sm:$0xf]
  %v463 = vld [vmem:[%s414 + $0xc0] sm:$0xf]
  %v464 = vld [vmem:[%s414 + $0xc4] sm:$0xf]
  %v515 = vunpack.c.l.b16 %v415
  %v516 = vunpack.c.l.b16 %v416
  %v517 = vunpack.c.l.b16 %v417
  %v518 = vunpack.c.l.b16 %v418
  %v519 = vunpack.c.l.b16 %v419
  %v520 = vunpack.c.l.b16 %v420
  %v521 = vunpack.c.l.b16 %v421
  %v522 = vunpack.c.l.b16 %v422
  %v523 = vunpack.c.l.b16 %v423
  %v524 = vunpack.c.l.b16 %v424
  %v525 = vunpack.c.l.b16 %v425
  %v526 = vunpack.c.l.b16 %v426
  %v527 = vunpack.c.l.b16 %v427
  %v528 = vunpack.c.l.b16 %v428
  %v529 = vunpack.c.l.b16 %v429
  %v530 = vunpack.c.l.b16 %v430
  %v531 = vunpack.c.l.b16 %v431
  %v532 = vunpack.c.l.b16 %v432
  %v533 = vunpack.c.l.b16 %v433
  %v534 = vunpack.c.l.b16 %v434
  %v535 = vunpack.c.l.b16 %v435
  %v536 = vunpack.c.l.b16 %v436
  %v537 = vunpack.c.l.b16 %v437
  %v538 = vunpack.c.l.b16 %v438
  %v539 = vunpack.c.l.b16 %v439
  %v540 = vunpack.c.l.b16 %v440
  %v541 = vunpack.c.l.b16 %v441
  %v542 = vunpack.c.l.b16 %v442
  %v543 = vunpack.c.l.b16 %v443
  %v544 = vunpack.c.l.b16 %v444
  %v545 = vunpack.c.l.b16 %v445
  %v546 = vunpack.c.l.b16 %v446
  %v547 = vunpack.c.l.b16 %v447
  %v548 = vunpack.c.l.b16 %v448
  %v549 = vunpack.c.l.b16 %v449
  %v550 = vunpack.c.l.b16 %v450
  %v551 = vunpack.c.l.b16 %v451
  %v552 = vunpack.c.l.b16 %v452
  %v553 = vunpack.c.l.b16 %v453
  %v554 = vunpack.c.l.b16 %v454
  %v555 = vunpack.c.l.b16 %v455
  %v556 = vunpack.c.l.b16 %v456
  %v557 = vunpack.c.l.b16 %v457
  %v558 = vunpack.c.l.b16 %v458
  %v559 = vunpack.c.l.b16 %v459
  %v560 = vunpack.c.l.b16 %v460
  %v561 = vunpack.c.l.b16 %v461
  %v562 = vunpack.c.l.b16 %v462
  %v563 = vunpack.c.l.b16 %v463
  %v564 = vunpack.c.l.b16 %v464
  %v565 = vpack.c.b16 %v516, %v515
  %v566 = vpack.c.b16 %v518, %v517
  %v567 = vpack.c.b16 %v520, %v519
  %v568 = vpack.c.b16 %v522, %v521
  %v569 = vpack.c.b16 %v524, %v523
  %v570 = vpack.c.b16 %v526, %v525
  %v571 = vpack.c.b16 %v528, %v527
  %v572 = vpack.c.b16 %v530, %v529
  %v573 = vpack.c.b16 %v532, %v531
  %v574 = vpack.c.b16 %v534, %v533
  %v575 = vpack.c.b16 %v536, %v535
  %v576 = vpack.c.b16 %v538, %v537
  %v577 = vpack.c.b16 %v540, %v539
  %v578 = vpack.c.b16 %v542, %v541
  %v579 = vpack.c.b16 %v544, %v543
  %v580 = vpack.c.b16 %v546, %v545
  %v581 = vpack.c.b16 %v548, %v547
  %v582 = vpack.c.b16 %v550, %v549
  %v583 = vpack.c.b16 %v552, %v551
  %v584 = vpack.c.b16 %v554, %v553
  %v585 = vpack.c.b16 %v556, %v555
  %v586 = vpack.c.b16 %v558, %v557
  %v587 = vpack.c.b16 %v560, %v559
  %v588 = vpack.c.b16 %v562, %v561
  %v589 = vpack.c.b16 %v564, %v563
  %v591 = vsel %vm197, %v565, 0
  %v594 = vsel %vm197, %v566, 0
  %v597 = vsel %vm197, %v567, 0
  %v600 = vsel %vm197, %v568, 0
  %v603 = vsel %vm197, %v569, 0
  %v606 = vsel %vm197, %v570, 0
  %v609 = vsel %vm197, %v571, 0
  %v612 = vsel %vm197, %v572, 0
  %v615 = vsel %vm197, %v573, 0
  %v618 = vsel %vm197, %v574, 0
  %v621 = vsel %vm197, %v575, 0
  %v624 = vsel %vm197, %v576, 0
  %v627 = vsel %vm197, %v577, 0
  %v630 = vsel %vm197, %v578, 0
  %v633 = vsel %vm197, %v579, 0
  %v636 = vsel %vm197, %v580, 0
  %v639 = vsel %vm197, %v581, 0
  %v642 = vsel %vm197, %v582, 0
  %v645 = vsel %vm197, %v583, 0
  %v648 = vsel %vm197, %v584, 0
  %v651 = vsel %vm197, %v585, 0
  %v654 = vsel %vm197, %v586, 0
  %v657 = vsel %vm197, %v587, 0
  %v660 = vsel %vm197, %v588, 0
  %v663 = vsel %vm197, %v589, 0
  %665 = vmatpush.bf16.msra.mxu0 0
  %666 = vmatpush.bf16.msra.mxu0 0
  %667 = vmatpush.bf16.msra.mxu0 0
  %668 = vmatpush.bf16.msra.mxu0 0
  %669 = vmatpush.bf16.msra.mxu0 0
  %670 = vmatpush.bf16.msra.mxu0 0
  %671 = vmatpush.bf16.msra.mxu0 0
  %672 = vmatpush.bf16.msra.mxu0 %v278
  %673 = vmatmul.bf16.gmra.mxu0 %v591
  %v674 = vpop.f32.mrf.mxu0
  %v675 = vadd.f32 0.0, %v674
  %v676 = vpop.f32.mrf.mxu0
  %v677 = vadd.f32 0.0, %v676
  %678 = vmatmul.bf16.gmra.mxu0 %v594
  %v679 = vpop.f32.mrf.mxu0
  %v680 = vadd.f32 0.0, %v679
  %v681 = vpop.f32.mrf.mxu0
  %v682 = vadd.f32 0.0, %v681
  %683 = vmatmul.bf16.gmra.mxu0 %v597
  %v684 = vpop.f32.mrf.mxu0
  %v685 = vadd.f32 0.0, %v684
  %v686 = vpop.f32.mrf.mxu0
  %v687 = vadd.f32 0.0, %v686
  %688 = vmatmul.bf16.gmra.mxu0 %v600
  %v689 = vpop.f32.mrf.mxu0
  %v690 = vadd.f32 0.0, %v689
  %v691 = vpop.f32.mrf.mxu0
  %v692 = vadd.f32 0.0, %v691
  %693 = vmatmul.bf16.gmra.mxu0 %v603
  %v694 = vpop.f32.mrf.mxu0
  %v695 = vadd.f32 0.0, %v694
  %v696 = vpop.f32.mrf.mxu0
  %v697 = vadd.f32 0.0, %v696
  %698 = vmatmul.bf16.gmra.mxu0 %v606
  %v699 = vpop.f32.mrf.mxu0
  %v700 = vadd.f32 0.0, %v699
  %v701 = vpop.f32.mrf.mxu0
  %v702 = vadd.f32 0.0, %v701
  %703 = vmatmul.bf16.gmra.mxu0 %v609
  %v704 = vpop.f32.mrf.mxu0
  %v705 = vadd.f32 0.0, %v704
  %v706 = vpop.f32.mrf.mxu0
  %v707 = vadd.f32 0.0, %v706
  %708 = vmatmul.bf16.gmra.mxu0 %v612
  %v709 = vpop.f32.mrf.mxu0
  %v710 = vadd.f32 0.0, %v709
  %v711 = vpop.f32.mrf.mxu0
  %v712 = vadd.f32 0.0, %v711
  %713 = vmatmul.bf16.gmra.mxu0 %v615
  %v714 = vpop.f32.mrf.mxu0
  %v715 = vadd.f32 0.0, %v714
  %v716 = vpop.f32.mrf.mxu0
  %v717 = vadd.f32 0.0, %v716
  %718 = vmatmul.bf16.gmra.mxu0 %v618
  %v719 = vpop.f32.mrf.mxu0
  %v720 = vadd.f32 0.0, %v719
  %v721 = vpop.f32.mrf.mxu0
  %v722 = vadd.f32 0.0, %v721
  %723 = vmatmul.bf16.gmra.mxu0 %v621
  %v724 = vpop.f32.mrf.mxu0
  %v725 = vadd.f32 0.0, %v724
  %v726 = vpop.f32.mrf.mxu0
  %v727 = vadd.f32 0.0, %v726
  %728 = vmatmul.bf16.gmra.mxu0 %v624
  %v729 = vpop.f32.mrf.mxu0
  %v730 = vadd.f32 0.0, %v729
  %v731 = vpop.f32.mrf.mxu0
  %v732 = vadd.f32 0.0, %v731
  %733 = vmatmul.bf16.gmra.mxu0 %v627
  %v734 = vpop.f32.mrf.mxu0
  %v735 = vadd.f32 0.0, %v734
  %v736 = vpop.f32.mrf.mxu0
  %v737 = vadd.f32 0.0, %v736
  %738 = vmatmul.bf16.gmra.mxu0 %v630
  %v739 = vpop.f32.mrf.mxu0
  %v740 = vadd.f32 0.0, %v739
  %v741 = vpop.f32.mrf.mxu0
  %v742 = vadd.f32 0.0, %v741
  %743 = vmatmul.bf16.gmra.mxu0 %v633
  %v744 = vpop.f32.mrf.mxu0
  %v745 = vadd.f32 0.0, %v744
  %v746 = vpop.f32.mrf.mxu0
  %v747 = vadd.f32 0.0, %v746
  %748 = vmatmul.bf16.gmra.mxu0 %v636
  %v749 = vpop.f32.mrf.mxu0
  %v750 = vadd.f32 0.0, %v749
  %v751 = vpop.f32.mrf.mxu0
  %v752 = vadd.f32 0.0, %v751
  %753 = vmatmul.bf16.gmra.mxu0 %v639
  %v754 = vpop.f32.mrf.mxu0
  %v755 = vadd.f32 0.0, %v754
  %v756 = vpop.f32.mrf.mxu0
  %v757 = vadd.f32 0.0, %v756
  %758 = vmatmul.bf16.gmra.mxu0 %v642
  %v759 = vpop.f32.mrf.mxu0
  %v760 = vadd.f32 0.0, %v759
  %v761 = vpop.f32.mrf.mxu0
  %v762 = vadd.f32 0.0, %v761
  %763 = vmatmul.bf16.gmra.mxu0 %v645
  %v764 = vpop.f32.mrf.mxu0
  %v765 = vadd.f32 0.0, %v764
  %v766 = vpop.f32.mrf.mxu0
  %v767 = vadd.f32 0.0, %v766
  %768 = vmatmul.bf16.gmra.mxu0 %v648
  %v769 = vpop.f32.mrf.mxu0
  %v770 = vadd.f32 0.0, %v769
  %v771 = vpop.f32.mrf.mxu0
  %v772 = vadd.f32 0.0, %v771
  %773 = vmatmul.bf16.gmra.mxu0 %v651
  %v774 = vpop.f32.mrf.mxu0
  %v775 = vadd.f32 0.0, %v774
  %v776 = vpop.f32.mrf.mxu0
  %v777 = vadd.f32 0.0, %v776
  %778 = vmatmul.bf16.gmra.mxu0 %v654
  %v779 = vpop.f32.mrf.mxu0
  %v780 = vadd.f32 0.0, %v779
  %v781 = vpop.f32.mrf.mxu0
  %v782 = vadd.f32 0.0, %v781
  %783 = vmatmul.bf16.gmra.mxu0 %v657
  %v784 = vpop.f32.mrf.mxu0
  %v785 = vadd.f32 0.0, %v784
  %v786 = vpop.f32.mrf.mxu0
  %v787 = vadd.f32 0.0, %v786
  %788 = vmatmul.bf16.gmra.mxu0 %v660
  %v789 = vpop.f32.mrf.mxu0
  %v790 = vadd.f32 0.0, %v789
  %v791 = vpop.f32.mrf.mxu0
  %v792 = vadd.f32 0.0, %v791
  %793 = vmatmul.bf16.gmra.mxu0 %v663
  %v794 = vpop.f32.mrf.mxu0
  %v795 = vadd.f32 0.0, %v794
  %v796 = vpop.f32.mrf.mxu0
  %v797 = vadd.f32 0.0, %v796
  %798 = vdwg.mxu0
  %v799 = vmax.f32 %v290, %v675
  %v800 = vmax.f32 %v292, %v677
  %v801 = vmax.f32 %v295, %v680
  %v802 = vmax.f32 %v297, %v682
  %v803 = vmax.f32 %v300, %v685
  %v804 = vmax.f32 %v302, %v687
  %v805 = vmax.f32 %v305, %v690
  %v806 = vmax.f32 %v307, %v692
  %v807 = vmax.f32 %v310, %v695
  %v808 = vmax.f32 %v312, %v697
  %v809 = vmax.f32 %v315, %v700
  %v810 = vmax.f32 %v317, %v702
  %v811 = vmax.f32 %v320, %v705
  %v812 = vmax.f32 %v322, %v707
  %v813 = vmax.f32 %v325, %v710
  %v814 = vmax.f32 %v327, %v712
  %v815 = vmax.f32 %v330, %v715
  %v816 = vmax.f32 %v332, %v717
  %v817 = vmax.f32 %v335, %v720
  %v818 = vmax.f32 %v337, %v722
  %v819 = vmax.f32 %v340, %v725
  %v820 = vmax.f32 %v342, %v727
  %v821 = vmax.f32 %v345, %v730
  %v822 = vmax.f32 %v347, %v732
  %v823 = vmax.f32 %v350, %v735
  %v824 = vmax.f32 %v352, %v737
  %v825 = vmax.f32 %v355, %v740
  %v826 = vmax.f32 %v357, %v742
  %v827 = vmax.f32 %v360, %v745
  %v828 = vmax.f32 %v362, %v747
  %v829 = vmax.f32 %v365, %v750
  %v830 = vmax.f32 %v367, %v752
  %v831 = vmax.f32 %v370, %v755
  %v832 = vmax.f32 %v372, %v757
  %v833 = vmax.f32 %v375, %v760
  %v834 = vmax.f32 %v377, %v762
  %v835 = vmax.f32 %v380, %v765
  %v836 = vmax.f32 %v382, %v767
  %v837 = vmax.f32 %v385, %v770
  %v838 = vmax.f32 %v387, %v772
  %v839 = vmax.f32 %v390, %v775
  %v840 = vmax.f32 %v392, %v777
  %v841 = vmax.f32 %v395, %v780
  %v842 = vmax.f32 %v397, %v782
  %v843 = vmax.f32 %v400, %v785
  %v844 = vmax.f32 %v402, %v787
  %v845 = vmax.f32 %v405, %v790
  %v846 = vmax.f32 %v407, %v792
  %v847 = vmax.f32 %v410, %v795
  %v848 = vmax.f32 %v412, %v797
  %s849 = scalar_lea.vmem %s0, 400
  %v850 = vld [vmem:[%s849] sm:$0xf]
  %v851 = vld [vmem:[%s849 + $0x4] sm:$0xf]
  %v852 = vld [vmem:[%s849 + $0x8] sm:$0xf]
  %v853 = vld [vmem:[%s849 + $0xc] sm:$0xf]
  %v854 = vld [vmem:[%s849 + $0x10] sm:$0xf]
  %v855 = vld [vmem:[%s849 + $0x14] sm:$0xf]
  %v856 = vld [vmem:[%s849 + $0x18] sm:$0xf]
  %v857 = vld [vmem:[%s849 + $0x1c] sm:$0xf]
  %v858 = vld [vmem:[%s849 + $0x20] sm:$0xf]
  %v859 = vld [vmem:[%s849 + $0x24] sm:$0xf]
  %v860 = vld [vmem:[%s849 + $0x28] sm:$0xf]
  %v861 = vld [vmem:[%s849 + $0x2c] sm:$0xf]
  %v862 = vld [vmem:[%s849 + $0x30] sm:$0xf]
  %v863 = vld [vmem:[%s849 + $0x34] sm:$0xf]
  %v864 = vld [vmem:[%s849 + $0x38] sm:$0xf]
  %v865 = vld [vmem:[%s849 + $0x3c] sm:$0xf]
  %v866 = vld [vmem:[%s849 + $0x40] sm:$0xf]
  %v867 = vld [vmem:[%s849 + $0x44] sm:$0xf]
  %v868 = vld [vmem:[%s849 + $0x48] sm:$0xf]
  %v869 = vld [vmem:[%s849 + $0x4c] sm:$0xf]
  %v870 = vld [vmem:[%s849 + $0x50] sm:$0xf]
  %v871 = vld [vmem:[%s849 + $0x54] sm:$0xf]
  %v872 = vld [vmem:[%s849 + $0x58] sm:$0xf]
  %v873 = vld [vmem:[%s849 + $0x5c] sm:$0xf]
  %v874 = vld [vmem:[%s849 + $0x60] sm:$0xf]
  %v875 = vld [vmem:[%s849 + $0x64] sm:$0xf]
  %v876 = vld [vmem:[%s849 + $0x68] sm:$0xf]
  %v877 = vld [vmem:[%s849 + $0x6c] sm:$0xf]
  %v878 = vld [vmem:[%s849 + $0x70] sm:$0xf]
  %v879 = vld [vmem:[%s849 + $0x74] sm:$0xf]
  %v880 = vld [vmem:[%s849 + $0x78] sm:$0xf]
  %v881 = vld [vmem:[%s849 + $0x7c] sm:$0xf]
  %v882 = vld [vmem:[%s849 + $0x80] sm:$0xf]
  %v883 = vld [vmem:[%s849 + $0x84] sm:$0xf]
  %v884 = vld [vmem:[%s849 + $0x88] sm:$0xf]
  %v885 = vld [vmem:[%s849 + $0x8c] sm:$0xf]
  %v886 = vld [vmem:[%s849 + $0x90] sm:$0xf]
  %v887 = vld [vmem:[%s849 + $0x94] sm:$0xf]
  %v888 = vld [vmem:[%s849 + $0x98] sm:$0xf]
  %v889 = vld [vmem:[%s849 + $0x9c] sm:$0xf]
  %v890 = vld [vmem:[%s849 + $0xa0] sm:$0xf]
  %v891 = vld [vmem:[%s849 + $0xa4] sm:$0xf]
  %v892 = vld [vmem:[%s849 + $0xa8] sm:$0xf]
  %v893 = vld [vmem:[%s849 + $0xac] sm:$0xf]
  %v894 = vld [vmem:[%s849 + $0xb0] sm:$0xf]
  %v895 = vld [vmem:[%s849 + $0xb4] sm:$0xf]
  %v896 = vld [vmem:[%s849 + $0xb8] sm:$0xf]
  %v897 = vld [vmem:[%s849 + $0xbc] sm:$0xf]
  %v898 = vld [vmem:[%s849 + $0xc0] sm:$0xf]
  %v899 = vld [vmem:[%s849 + $0xc4] sm:$0xf]
  %v950 = vunpack.c.l.b16 %v850
  %v951 = vunpack.c.l.b16 %v851
  %v952 = vunpack.c.l.b16 %v852
  %v953 = vunpack.c.l.b16 %v853
  %v954 = vunpack.c.l.b16 %v854
  %v955 = vunpack.c.l.b16 %v855
  %v956 = vunpack.c.l.b16 %v856
  %v957 = vunpack.c.l.b16 %v857
  %v958 = vunpack.c.l.b16 %v858
  %v959 = vunpack.c.l.b16 %v859
  %v960 = vunpack.c.l.b16 %v860
  %v961 = vunpack.c.l.b16 %v861
  %v962 = vunpack.c.l.b16 %v862
  %v963 = vunpack.c.l.b16 %v863
  %v964 = vunpack.c.l.b16 %v864
  %v965 = vunpack.c.l.b16 %v865
  %v966 = vunpack.c.l.b16 %v866
  %v967 = vunpack.c.l.b16 %v867
  %v968 = vunpack.c.l.b16 %v868
  %v969 = vunpack.c.l.b16 %v869
  %v970 = vunpack.c.l.b16 %v870
  %v971 = vunpack.c.l.b16 %v871
  %v972 = vunpack.c.l.b16 %v872
  %v973 = vunpack.c.l.b16 %v873
  %v974 = vunpack.c.l.b16 %v874
  %v975 = vunpack.c.l.b16 %v875
  %v976 = vunpack.c.l.b16 %v876
  %v977 = vunpack.c.l.b16 %v877
  %v978 = vunpack.c.l.b16 %v878
  %v979 = vunpack.c.l.b16 %v879
  %v980 = vunpack.c.l.b16 %v880
  %v981 = vunpack.c.l.b16 %v881
  %v982 = vunpack.c.l.b16 %v882
  %v983 = vunpack.c.l.b16 %v883
  %v984 = vunpack.c.l.b16 %v884
  %v985 = vunpack.c.l.b16 %v885
  %v986 = vunpack.c.l.b16 %v886
  %v987 = vunpack.c.l.b16 %v887
  %v988 = vunpack.c.l.b16 %v888
  %v989 = vunpack.c.l.b16 %v889
  %v990 = vunpack.c.l.b16 %v890
  %v991 = vunpack.c.l.b16 %v891
  %v992 = vunpack.c.l.b16 %v892
  %v993 = vunpack.c.l.b16 %v893
  %v994 = vunpack.c.l.b16 %v894
  %v995 = vunpack.c.l.b16 %v895
  %v996 = vunpack.c.l.b16 %v896
  %v997 = vunpack.c.l.b16 %v897
  %v998 = vunpack.c.l.b16 %v898
  %v999 = vunpack.c.l.b16 %v899
  %v1000 = vpack.c.b16 %v951, %v950
  %v1001 = vpack.c.b16 %v953, %v952
  %v1002 = vpack.c.b16 %v955, %v954
  %v1003 = vpack.c.b16 %v957, %v956
  %v1004 = vpack.c.b16 %v959, %v958
  %v1005 = vpack.c.b16 %v961, %v960
  %v1006 = vpack.c.b16 %v963, %v962
  %v1007 = vpack.c.b16 %v965, %v964
  %v1008 = vpack.c.b16 %v967, %v966
  %v1009 = vpack.c.b16 %v969, %v968
  %v1010 = vpack.c.b16 %v971, %v970
  %v1011 = vpack.c.b16 %v973, %v972
  %v1012 = vpack.c.b16 %v975, %v974
  %v1013 = vpack.c.b16 %v977, %v976
  %v1014 = vpack.c.b16 %v979, %v978
  %v1015 = vpack.c.b16 %v981, %v980
  %v1016 = vpack.c.b16 %v983, %v982
  %v1017 = vpack.c.b16 %v985, %v984
  %v1018 = vpack.c.b16 %v987, %v986
  %v1019 = vpack.c.b16 %v989, %v988
  %v1020 = vpack.c.b16 %v991, %v990
  %v1021 = vpack.c.b16 %v993, %v992
  %v1022 = vpack.c.b16 %v995, %v994
  %v1023 = vpack.c.b16 %v997, %v996
  %v1024 = vpack.c.b16 %v999, %v998
  %v1026 = vsel %vm197, %v1000, 0
  %v1029 = vsel %vm197, %v1001, 0
  %v1032 = vsel %vm197, %v1002, 0
  %v1035 = vsel %vm197, %v1003, 0
  %v1038 = vsel %vm197, %v1004, 0
  %v1041 = vsel %vm197, %v1005, 0
  %v1044 = vsel %vm197, %v1006, 0
  %v1047 = vsel %vm197, %v1007, 0
  %v1050 = vsel %vm197, %v1008, 0
  %v1053 = vsel %vm197, %v1009, 0
  %v1056 = vsel %vm197, %v1010, 0
  %v1059 = vsel %vm197, %v1011, 0
  %v1062 = vsel %vm197, %v1012, 0
  %v1065 = vsel %vm197, %v1013, 0
  %v1068 = vsel %vm197, %v1014, 0
  %v1071 = vsel %vm197, %v1015, 0
  %v1074 = vsel %vm197, %v1016, 0
  %v1077 = vsel %vm197, %v1017, 0
  %v1080 = vsel %vm197, %v1018, 0
  %v1083 = vsel %vm197, %v1019, 0
  %v1086 = vsel %vm197, %v1020, 0
  %v1089 = vsel %vm197, %v1021, 0
  %v1092 = vsel %vm197, %v1022, 0
  %v1095 = vsel %vm197, %v1023, 0
  %v1098 = vsel %vm197, %v1024, 0
  %1100 = vmatpush.bf16.msra.mxu0 0
  %1101 = vmatpush.bf16.msra.mxu0 0
  %1102 = vmatpush.bf16.msra.mxu0 0
  %1103 = vmatpush.bf16.msra.mxu0 0
  %1104 = vmatpush.bf16.msra.mxu0 0
  %1105 = vmatpush.bf16.msra.mxu0 0
  %1106 = vmatpush.bf16.msra.mxu0 0
  %1107 = vmatpush.bf16.msra.mxu0 %v278
  %1108 = vmatmul.bf16.gmra.mxu0 %v1026
  %v1109 = vpop.f32.mrf.mxu0
  %v1110 = vadd.f32 0.0, %v1109
  %v1111 = vpop.f32.mrf.mxu0
  %v1112 = vadd.f32 0.0, %v1111
  %1113 = vmatmul.bf16.gmra.mxu0 %v1029
  %v1114 = vpop.f32.mrf.mxu0
  %v1115 = vadd.f32 0.0, %v1114
  %v1116 = vpop.f32.mrf.mxu0
  %v1117 = vadd.f32 0.0, %v1116
  %1118 = vmatmul.bf16.gmra.mxu0 %v1032
  %v1119 = vpop.f32.mrf.mxu0
  %v1120 = vadd.f32 0.0, %v1119
  %v1121 = vpop.f32.mrf.mxu0
  %v1122 = vadd.f32 0.0, %v1121
  %1123 = vmatmul.bf16.gmra.mxu0 %v1035
  %v1124 = vpop.f32.mrf.mxu0
  %v1125 = vadd.f32 0.0, %v1124
  %v1126 = vpop.f32.mrf.mxu0
  %v1127 = vadd.f32 0.0, %v1126
  %1128 = vmatmul.bf16.gmra.mxu0 %v1038
  %v1129 = vpop.f32.mrf.mxu0
  %v1130 = vadd.f32 0.0, %v1129
  %v1131 = vpop.f32.mrf.mxu0
  %v1132 = vadd.f32 0.0, %v1131
  %1133 = vmatmul.bf16.gmra.mxu0 %v1041
  %v1134 = vpop.f32.mrf.mxu0
  %v1135 = vadd.f32 0.0, %v1134
  %v1136 = vpop.f32.mrf.mxu0
  %v1137 = vadd.f32 0.0, %v1136
  %1138 = vmatmul.bf16.gmra.mxu0 %v1044
  %v1139 = vpop.f32.mrf.mxu0
  %v1140 = vadd.f32 0.0, %v1139
  %v1141 = vpop.f32.mrf.mxu0
  %v1142 = vadd.f32 0.0, %v1141
  %1143 = vmatmul.bf16.gmra.mxu0 %v1047
  %v1144 = vpop.f32.mrf.mxu0
  %v1145 = vadd.f32 0.0, %v1144
  %v1146 = vpop.f32.mrf.mxu0
  %v1147 = vadd.f32 0.0, %v1146
  %1148 = vmatmul.bf16.gmra.mxu0 %v1050
  %v1149 = vpop.f32.mrf.mxu0
  %v1150 = vadd.f32 0.0, %v1149
  %v1151 = vpop.f32.mrf.mxu0
  %v1152 = vadd.f32 0.0, %v1151
  %1153 = vmatmul.bf16.gmra.mxu0 %v1053
  %v1154 = vpop.f32.mrf.mxu0
  %v1155 = vadd.f32 0.0, %v1154
  %v1156 = vpop.f32.mrf.mxu0
  %v1157 = vadd.f32 0.0, %v1156
  %1158 = vmatmul.bf16.gmra.mxu0 %v1056
  %v1159 = vpop.f32.mrf.mxu0
  %v1160 = vadd.f32 0.0, %v1159
  %v1161 = vpop.f32.mrf.mxu0
  %v1162 = vadd.f32 0.0, %v1161
  %1163 = vmatmul.bf16.gmra.mxu0 %v1059
  %v1164 = vpop.f32.mrf.mxu0
  %v1165 = vadd.f32 0.0, %v1164
  %v1166 = vpop.f32.mrf.mxu0
  %v1167 = vadd.f32 0.0, %v1166
  %1168 = vmatmul.bf16.gmra.mxu0 %v1062
  %v1169 = vpop.f32.mrf.mxu0
  %v1170 = vadd.f32 0.0, %v1169
  %v1171 = vpop.f32.mrf.mxu0
  %v1172 = vadd.f32 0.0, %v1171
  %1173 = vmatmul.bf16.gmra.mxu0 %v1065
  %v1174 = vpop.f32.mrf.mxu0
  %v1175 = vadd.f32 0.0, %v1174
  %v1176 = vpop.f32.mrf.mxu0
  %v1177 = vadd.f32 0.0, %v1176
  %1178 = vmatmul.bf16.gmra.mxu0 %v1068
  %v1179 = vpop.f32.mrf.mxu0
  %v1180 = vadd.f32 0.0, %v1179
  %v1181 = vpop.f32.mrf.mxu0
  %v1182 = vadd.f32 0.0, %v1181
  %1183 = vmatmul.bf16.gmra.mxu0 %v1071
  %v1184 = vpop.f32.mrf.mxu0
  %v1185 = vadd.f32 0.0, %v1184
  %v1186 = vpop.f32.mrf.mxu0
  %v1187 = vadd.f32 0.0, %v1186
  %1188 = vmatmul.bf16.gmra.mxu0 %v1074
  %v1189 = vpop.f32.mrf.mxu0
  %v1190 = vadd.f32 0.0, %v1189
  %v1191 = vpop.f32.mrf.mxu0
  %v1192 = vadd.f32 0.0, %v1191
  %1193 = vmatmul.bf16.gmra.mxu0 %v1077
  %v1194 = vpop.f32.mrf.mxu0
  %v1195 = vadd.f32 0.0, %v1194
  %v1196 = vpop.f32.mrf.mxu0
  %v1197 = vadd.f32 0.0, %v1196
  %1198 = vmatmul.bf16.gmra.mxu0 %v1080
  %v1199 = vpop.f32.mrf.mxu0
  %v1200 = vadd.f32 0.0, %v1199
  %v1201 = vpop.f32.mrf.mxu0
  %v1202 = vadd.f32 0.0, %v1201
  %1203 = vmatmul.bf16.gmra.mxu0 %v1083
  %v1204 = vpop.f32.mrf.mxu0
  %v1205 = vadd.f32 0.0, %v1204
  %v1206 = vpop.f32.mrf.mxu0
  %v1207 = vadd.f32 0.0, %v1206
  %1208 = vmatmul.bf16.gmra.mxu0 %v1086
  %v1209 = vpop.f32.mrf.mxu0
  %v1210 = vadd.f32 0.0, %v1209
  %v1211 = vpop.f32.mrf.mxu0
  %v1212 = vadd.f32 0.0, %v1211
  %1213 = vmatmul.bf16.gmra.mxu0 %v1089
  %v1214 = vpop.f32.mrf.mxu0
  %v1215 = vadd.f32 0.0, %v1214
  %v1216 = vpop.f32.mrf.mxu0
  %v1217 = vadd.f32 0.0, %v1216
  %1218 = vmatmul.bf16.gmra.mxu0 %v1092
  %v1219 = vpop.f32.mrf.mxu0
  %v1220 = vadd.f32 0.0, %v1219
  %v1221 = vpop.f32.mrf.mxu0
  %v1222 = vadd.f32 0.0, %v1221
  %1223 = vmatmul.bf16.gmra.mxu0 %v1095
  %v1224 = vpop.f32.mrf.mxu0
  %v1225 = vadd.f32 0.0, %v1224
  %v1226 = vpop.f32.mrf.mxu0
  %v1227 = vadd.f32 0.0, %v1226
  %1228 = vmatmul.bf16.gmra.mxu0 %v1098
  %v1229 = vpop.f32.mrf.mxu0
  %v1230 = vadd.f32 0.0, %v1229
  %v1231 = vpop.f32.mrf.mxu0
  %v1232 = vadd.f32 0.0, %v1231
  %1233 = vdwg.mxu0
  %v1234 = vmax.f32 %v799, %v1110
  %v1235 = vmax.f32 %v800, %v1112
  %v1236 = vmax.f32 %v801, %v1115
  %v1237 = vmax.f32 %v802, %v1117
  %v1238 = vmax.f32 %v803, %v1120
  %v1239 = vmax.f32 %v804, %v1122
  %v1240 = vmax.f32 %v805, %v1125
  %v1241 = vmax.f32 %v806, %v1127
  %v1242 = vmax.f32 %v807, %v1130
  %v1243 = vmax.f32 %v808, %v1132
  %v1244 = vmax.f32 %v809, %v1135
  %v1245 = vmax.f32 %v810, %v1137
  %v1246 = vmax.f32 %v811, %v1140
  %v1247 = vmax.f32 %v812, %v1142
  %v1248 = vmax.f32 %v813, %v1145
  %v1249 = vmax.f32 %v814, %v1147
  %v1250 = vmax.f32 %v815, %v1150
  %v1251 = vmax.f32 %v816, %v1152
  %v1252 = vmax.f32 %v817, %v1155
  %v1253 = vmax.f32 %v818, %v1157
  %v1254 = vmax.f32 %v819, %v1160
  %v1255 = vmax.f32 %v820, %v1162
  %v1256 = vmax.f32 %v821, %v1165
  %v1257 = vmax.f32 %v822, %v1167
  %v1258 = vmax.f32 %v823, %v1170
  %v1259 = vmax.f32 %v824, %v1172
  %v1260 = vmax.f32 %v825, %v1175
  %v1261 = vmax.f32 %v826, %v1177
  %v1262 = vmax.f32 %v827, %v1180
  %v1263 = vmax.f32 %v828, %v1182
  %v1264 = vmax.f32 %v829, %v1185
  %v1265 = vmax.f32 %v830, %v1187
  %v1266 = vmax.f32 %v831, %v1190
  %v1267 = vmax.f32 %v832, %v1192
  %v1268 = vmax.f32 %v833, %v1195
  %v1269 = vmax.f32 %v834, %v1197
  %v1270 = vmax.f32 %v835, %v1200
  %v1271 = vmax.f32 %v836, %v1202
  %v1272 = vmax.f32 %v837, %v1205
  %v1273 = vmax.f32 %v838, %v1207
  %v1274 = vmax.f32 %v839, %v1210
  %v1275 = vmax.f32 %v840, %v1212
  %v1276 = vmax.f32 %v841, %v1215
  %v1277 = vmax.f32 %v842, %v1217
  %v1278 = vmax.f32 %v843, %v1220
  %v1279 = vmax.f32 %v844, %v1222
  %v1280 = vmax.f32 %v845, %v1225
  %v1281 = vmax.f32 %v846, %v1227
  %v1282 = vmax.f32 %v847, %v1230
  %v1283 = vmax.f32 %v848, %v1232
  %s1284 = scalar_lea.vmem %s0, 600
  %v1285 = vld [vmem:[%s1284] sm:$0xf]
  %v1286 = vld [vmem:[%s1284 + $0x4] sm:$0xf]
  %v1287 = vld [vmem:[%s1284 + $0x8] sm:$0xf]
  %v1288 = vld [vmem:[%s1284 + $0xc] sm:$0xf]
  %v1289 = vld [vmem:[%s1284 + $0x10] sm:$0xf]
  %v1290 = vld [vmem:[%s1284 + $0x14] sm:$0xf]
  %v1291 = vld [vmem:[%s1284 + $0x18] sm:$0xf]
  %v1292 = vld [vmem:[%s1284 + $0x1c] sm:$0xf]
  %v1293 = vld [vmem:[%s1284 + $0x20] sm:$0xf]
  %v1294 = vld [vmem:[%s1284 + $0x24] sm:$0xf]
  %v1295 = vld [vmem:[%s1284 + $0x28] sm:$0xf]
  %v1296 = vld [vmem:[%s1284 + $0x2c] sm:$0xf]
  %v1297 = vld [vmem:[%s1284 + $0x30] sm:$0xf]
  %v1298 = vld [vmem:[%s1284 + $0x34] sm:$0xf]
  %v1299 = vld [vmem:[%s1284 + $0x38] sm:$0xf]
  %v1300 = vld [vmem:[%s1284 + $0x3c] sm:$0xf]
  %v1301 = vld [vmem:[%s1284 + $0x40] sm:$0xf]
  %v1302 = vld [vmem:[%s1284 + $0x44] sm:$0xf]
  %v1303 = vld [vmem:[%s1284 + $0x48] sm:$0xf]
  %v1304 = vld [vmem:[%s1284 + $0x4c] sm:$0xf]
  %v1305 = vld [vmem:[%s1284 + $0x50] sm:$0xf]
  %v1306 = vld [vmem:[%s1284 + $0x54] sm:$0xf]
  %v1307 = vld [vmem:[%s1284 + $0x58] sm:$0xf]
  %v1308 = vld [vmem:[%s1284 + $0x5c] sm:$0xf]
  %v1309 = vld [vmem:[%s1284 + $0x60] sm:$0xf]
  %v1310 = vld [vmem:[%s1284 + $0x64] sm:$0xf]
  %v1311 = vld [vmem:[%s1284 + $0x68] sm:$0xf]
  %v1312 = vld [vmem:[%s1284 + $0x6c] sm:$0xf]
  %v1313 = vld [vmem:[%s1284 + $0x70] sm:$0xf]
  %v1314 = vld [vmem:[%s1284 + $0x74] sm:$0xf]
  %v1315 = vld [vmem:[%s1284 + $0x78] sm:$0xf]
  %v1316 = vld [vmem:[%s1284 + $0x7c] sm:$0xf]
  %v1317 = vld [vmem:[%s1284 + $0x80] sm:$0xf]
  %v1318 = vld [vmem:[%s1284 + $0x84] sm:$0xf]
  %v1319 = vld [vmem:[%s1284 + $0x88] sm:$0xf]
  %v1320 = vld [vmem:[%s1284 + $0x8c] sm:$0xf]
  %v1321 = vld [vmem:[%s1284 + $0x90] sm:$0xf]
  %v1322 = vld [vmem:[%s1284 + $0x94] sm:$0xf]
  %v1323 = vld [vmem:[%s1284 + $0x98] sm:$0xf]
  %v1324 = vld [vmem:[%s1284 + $0x9c] sm:$0xf]
  %v1325 = vld [vmem:[%s1284 + $0xa0] sm:$0xf]
  %v1326 = vld [vmem:[%s1284 + $0xa4] sm:$0xf]
  %v1327 = vld [vmem:[%s1284 + $0xa8] sm:$0xf]
  %v1328 = vld [vmem:[%s1284 + $0xac] sm:$0xf]
  %v1329 = vld [vmem:[%s1284 + $0xb0] sm:$0xf]
  %v1330 = vld [vmem:[%s1284 + $0xb4] sm:$0xf]
  %v1331 = vld [vmem:[%s1284 + $0xb8] sm:$0xf]
  %v1332 = vld [vmem:[%s1284 + $0xbc] sm:$0xf]
  %v1333 = vld [vmem:[%s1284 + $0xc0] sm:$0xf]
  %v1334 = vld [vmem:[%s1284 + $0xc4] sm:$0xf]
  %v1385 = vunpack.c.l.b16 %v1285
  %v1386 = vunpack.c.l.b16 %v1286
  %v1387 = vunpack.c.l.b16 %v1287
  %v1388 = vunpack.c.l.b16 %v1288
  %v1389 = vunpack.c.l.b16 %v1289
  %v1390 = vunpack.c.l.b16 %v1290
  %v1391 = vunpack.c.l.b16 %v1291
  %v1392 = vunpack.c.l.b16 %v1292
  %v1393 = vunpack.c.l.b16 %v1293
  %v1394 = vunpack.c.l.b16 %v1294
  %v1395 = vunpack.c.l.b16 %v1295
  %v1396 = vunpack.c.l.b16 %v1296
  %v1397 = vunpack.c.l.b16 %v1297
  %v1398 = vunpack.c.l.b16 %v1298
  %v1399 = vunpack.c.l.b16 %v1299
  %v1400 = vunpack.c.l.b16 %v1300
  %v1401 = vunpack.c.l.b16 %v1301
  %v1402 = vunpack.c.l.b16 %v1302
  %v1403 = vunpack.c.l.b16 %v1303
  %v1404 = vunpack.c.l.b16 %v1304
  %v1405 = vunpack.c.l.b16 %v1305
  %v1406 = vunpack.c.l.b16 %v1306
  %v1407 = vunpack.c.l.b16 %v1307
  %v1408 = vunpack.c.l.b16 %v1308
  %v1409 = vunpack.c.l.b16 %v1309
  %v1410 = vunpack.c.l.b16 %v1310
  %v1411 = vunpack.c.l.b16 %v1311
  %v1412 = vunpack.c.l.b16 %v1312
  %v1413 = vunpack.c.l.b16 %v1313
  %v1414 = vunpack.c.l.b16 %v1314
  %v1415 = vunpack.c.l.b16 %v1315
  %v1416 = vunpack.c.l.b16 %v1316
  %v1417 = vunpack.c.l.b16 %v1317
  %v1418 = vunpack.c.l.b16 %v1318
  %v1419 = vunpack.c.l.b16 %v1319
  %v1420 = vunpack.c.l.b16 %v1320
  %v1421 = vunpack.c.l.b16 %v1321
  %v1422 = vunpack.c.l.b16 %v1322
  %v1423 = vunpack.c.l.b16 %v1323
  %v1424 = vunpack.c.l.b16 %v1324
  %v1425 = vunpack.c.l.b16 %v1325
  %v1426 = vunpack.c.l.b16 %v1326
  %v1427 = vunpack.c.l.b16 %v1327
  %v1428 = vunpack.c.l.b16 %v1328
  %v1429 = vunpack.c.l.b16 %v1329
  %v1430 = vunpack.c.l.b16 %v1330
  %v1431 = vunpack.c.l.b16 %v1331
  %v1432 = vunpack.c.l.b16 %v1332
  %v1433 = vunpack.c.l.b16 %v1333
  %v1434 = vunpack.c.l.b16 %v1334
  %v1435 = vpack.c.b16 %v1386, %v1385
  %v1436 = vpack.c.b16 %v1388, %v1387
  %v1437 = vpack.c.b16 %v1390, %v1389
  %v1438 = vpack.c.b16 %v1392, %v1391
  %v1439 = vpack.c.b16 %v1394, %v1393
  %v1440 = vpack.c.b16 %v1396, %v1395
  %v1441 = vpack.c.b16 %v1398, %v1397
  %v1442 = vpack.c.b16 %v1400, %v1399
  %v1443 = vpack.c.b16 %v1402, %v1401
  %v1444 = vpack.c.b16 %v1404, %v1403
  %v1445 = vpack.c.b16 %v1406, %v1405
  %v1446 = vpack.c.b16 %v1408, %v1407
  %v1447 = vpack.c.b16 %v1410, %v1409
  %v1448 = vpack.c.b16 %v1412, %v1411
  %v1449 = vpack.c.b16 %v1414, %v1413
  %v1450 = vpack.c.b16 %v1416, %v1415
  %v1451 = vpack.c.b16 %v1418, %v1417
  %v1452 = vpack.c.b16 %v1420, %v1419
  %v1453 = vpack.c.b16 %v1422, %v1421
  %v1454 = vpack.c.b16 %v1424, %v1423
  %v1455 = vpack.c.b16 %v1426, %v1425
  %v1456 = vpack.c.b16 %v1428, %v1427
  %v1457 = vpack.c.b16 %v1430, %v1429
  %v1458 = vpack.c.b16 %v1432, %v1431
  %v1459 = vpack.c.b16 %v1434, %v1433
  %v1461 = vsel %vm197, %v1435, 0
  %v1464 = vsel %vm197, %v1436, 0
  %v1467 = vsel %vm197, %v1437, 0
  %v1470 = vsel %vm197, %v1438, 0
  %v1473 = vsel %vm197, %v1439, 0
  %v1476 = vsel %vm197, %v1440, 0
  %v1479 = vsel %vm197, %v1441, 0
  %v1482 = vsel %vm197, %v1442, 0
  %v1485 = vsel %vm197, %v1443, 0
  %v1488 = vsel %vm197, %v1444, 0
  %v1491 = vsel %vm197, %v1445, 0
  %v1494 = vsel %vm197, %v1446, 0
  %v1497 = vsel %vm197, %v1447, 0
  %v1500 = vsel %vm197, %v1448, 0
  %v1503 = vsel %vm197, %v1449, 0
  %v1506 = vsel %vm197, %v1450, 0
  %v1509 = vsel %vm197, %v1451, 0
  %v1512 = vsel %vm197, %v1452, 0
  %v1515 = vsel %vm197, %v1453, 0
  %v1518 = vsel %vm197, %v1454, 0
  %v1521 = vsel %vm197, %v1455, 0
  %v1524 = vsel %vm197, %v1456, 0
  %v1527 = vsel %vm197, %v1457, 0
  %v1530 = vsel %vm197, %v1458, 0
  %v1533 = vsel %vm197, %v1459, 0
  %1535 = vmatpush.bf16.msra.mxu0 0
  %1536 = vmatpush.bf16.msra.mxu0 0
  %1537 = vmatpush.bf16.msra.mxu0 0
  %1538 = vmatpush.bf16.msra.mxu0 0
  %1539 = vmatpush.bf16.msra.mxu0 0
  %1540 = vmatpush.bf16.msra.mxu0 0
  %1541 = vmatpush.bf16.msra.mxu0 0
  %1542 = vmatpush.bf16.msra.mxu0 %v278
  %1543 = vmatmul.bf16.gmra.mxu0 %v1461
  %v1544 = vpop.f32.mrf.mxu0
  %v1545 = vadd.f32 0.0, %v1544
  %v1546 = vpop.f32.mrf.mxu0
  %v1547 = vadd.f32 0.0, %v1546
  %1548 = vmatmul.bf16.gmra.mxu0 %v1464
  %v1549 = vpop.f32.mrf.mxu0
  %v1550 = vadd.f32 0.0, %v1549
  %v1551 = vpop.f32.mrf.mxu0
  %v1552 = vadd.f32 0.0, %v1551
  %1553 = vmatmul.bf16.gmra.mxu0 %v1467
  %v1554 = vpop.f32.mrf.mxu0
  %v1555 = vadd.f32 0.0, %v1554
  %v1556 = vpop.f32.mrf.mxu0
  %v1557 = vadd.f32 0.0, %v1556
  %1558 = vmatmul.bf16.gmra.mxu0 %v1470
  %v1559 = vpop.f32.mrf.mxu0
  %v1560 = vadd.f32 0.0, %v1559
  %v1561 = vpop.f32.mrf.mxu0
  %v1562 = vadd.f32 0.0, %v1561
  %1563 = vmatmul.bf16.gmra.mxu0 %v1473
  %v1564 = vpop.f32.mrf.mxu0
  %v1565 = vadd.f32 0.0, %v1564
  %v1566 = vpop.f32.mrf.mxu0
  %v1567 = vadd.f32 0.0, %v1566
  %1568 = vmatmul.bf16.gmra.mxu0 %v1476
  %v1569 = vpop.f32.mrf.mxu0
  %v1570 = vadd.f32 0.0, %v1569
  %v1571 = vpop.f32.mrf.mxu0
  %v1572 = vadd.f32 0.0, %v1571
  %1573 = vmatmul.bf16.gmra.mxu0 %v1479
  %v1574 = vpop.f32.mrf.mxu0
  %v1575 = vadd.f32 0.0, %v1574
  %v1576 = vpop.f32.mrf.mxu0
  %v1577 = vadd.f32 0.0, %v1576
  %1578 = vmatmul.bf16.gmra.mxu0 %v1482
  %v1579 = vpop.f32.mrf.mxu0
  %v1580 = vadd.f32 0.0, %v1579
  %v1581 = vpop.f32.mrf.mxu0
  %v1582 = vadd.f32 0.0, %v1581
  %1583 = vmatmul.bf16.gmra.mxu0 %v1485
  %v1584 = vpop.f32.mrf.mxu0
  %v1585 = vadd.f32 0.0, %v1584
  %v1586 = vpop.f32.mrf.mxu0
  %v1587 = vadd.f32 0.0, %v1586
  %1588 = vmatmul.bf16.gmra.mxu0 %v1488
  %v1589 = vpop.f32.mrf.mxu0
  %v1590 = vadd.f32 0.0, %v1589
  %v1591 = vpop.f32.mrf.mxu0
  %v1592 = vadd.f32 0.0, %v1591
  %1593 = vmatmul.bf16.gmra.mxu0 %v1491
  %v1594 = vpop.f32.mrf.mxu0
  %v1595 = vadd.f32 0.0, %v1594
  %v1596 = vpop.f32.mrf.mxu0
  %v1597 = vadd.f32 0.0, %v1596
  %1598 = vmatmul.bf16.gmra.mxu0 %v1494
  %v1599 = vpop.f32.mrf.mxu0
  %v1600 = vadd.f32 0.0, %v1599
  %v1601 = vpop.f32.mrf.mxu0
  %v1602 = vadd.f32 0.0, %v1601
  %1603 = vmatmul.bf16.gmra.mxu0 %v1497
  %v1604 = vpop.f32.mrf.mxu0
  %v1605 = vadd.f32 0.0, %v1604
  %v1606 = vpop.f32.mrf.mxu0
  %v1607 = vadd.f32 0.0, %v1606
  %1608 = vmatmul.bf16.gmra.mxu0 %v1500
  %v1609 = vpop.f32.mrf.mxu0
  %v1610 = vadd.f32 0.0, %v1609
  %v1611 = vpop.f32.mrf.mxu0
  %v1612 = vadd.f32 0.0, %v1611
  %1613 = vmatmul.bf16.gmra.mxu0 %v1503
  %v1614 = vpop.f32.mrf.mxu0
  %v1615 = vadd.f32 0.0, %v1614
  %v1616 = vpop.f32.mrf.mxu0
  %v1617 = vadd.f32 0.0, %v1616
  %1618 = vmatmul.bf16.gmra.mxu0 %v1506
  %v1619 = vpop.f32.mrf.mxu0
  %v1620 = vadd.f32 0.0, %v1619
  %v1621 = vpop.f32.mrf.mxu0
  %v1622 = vadd.f32 0.0, %v1621
  %1623 = vmatmul.bf16.gmra.mxu0 %v1509
  %v1624 = vpop.f32.mrf.mxu0
  %v1625 = vadd.f32 0.0, %v1624
  %v1626 = vpop.f32.mrf.mxu0
  %v1627 = vadd.f32 0.0, %v1626
  %1628 = vmatmul.bf16.gmra.mxu0 %v1512
  %v1629 = vpop.f32.mrf.mxu0
  %v1630 = vadd.f32 0.0, %v1629
  %v1631 = vpop.f32.mrf.mxu0
  %v1632 = vadd.f32 0.0, %v1631
  %1633 = vmatmul.bf16.gmra.mxu0 %v1515
  %v1634 = vpop.f32.mrf.mxu0
  %v1635 = vadd.f32 0.0, %v1634
  %v1636 = vpop.f32.mrf.mxu0
  %v1637 = vadd.f32 0.0, %v1636
  %1638 = vmatmul.bf16.gmra.mxu0 %v1518
  %v1639 = vpop.f32.mrf.mxu0
  %v1640 = vadd.f32 0.0, %v1639
  %v1641 = vpop.f32.mrf.mxu0
  %v1642 = vadd.f32 0.0, %v1641
  %1643 = vmatmul.bf16.gmra.mxu0 %v1521
  %v1644 = vpop.f32.mrf.mxu0
  %v1645 = vadd.f32 0.0, %v1644
  %v1646 = vpop.f32.mrf.mxu0
  %v1647 = vadd.f32 0.0, %v1646
  %1648 = vmatmul.bf16.gmra.mxu0 %v1524
  %v1649 = vpop.f32.mrf.mxu0
  %v1650 = vadd.f32 0.0, %v1649
  %v1651 = vpop.f32.mrf.mxu0
  %v1652 = vadd.f32 0.0, %v1651
  %1653 = vmatmul.bf16.gmra.mxu0 %v1527
  %v1654 = vpop.f32.mrf.mxu0
  %v1655 = vadd.f32 0.0, %v1654
  %v1656 = vpop.f32.mrf.mxu0
  %v1657 = vadd.f32 0.0, %v1656
  %1658 = vmatmul.bf16.gmra.mxu0 %v1530
  %v1659 = vpop.f32.mrf.mxu0
  %v1660 = vadd.f32 0.0, %v1659
  %v1661 = vpop.f32.mrf.mxu0
  %v1662 = vadd.f32 0.0, %v1661
  %1663 = vmatmul.bf16.gmra.mxu0 %v1533
  %v1664 = vpop.f32.mrf.mxu0
  %v1665 = vadd.f32 0.0, %v1664
  %v1666 = vpop.f32.mrf.mxu0
  %v1667 = vadd.f32 0.0, %v1666
  %1668 = vdwg.mxu0
  %v1669 = vmax.f32 %v1234, %v1545
  %v1670 = vmax.f32 %v1235, %v1547
  %v1671 = vmax.f32 %v1236, %v1550
  %v1672 = vmax.f32 %v1237, %v1552
  %v1673 = vmax.f32 %v1238, %v1555
  %v1674 = vmax.f32 %v1239, %v1557
  %v1675 = vmax.f32 %v1240, %v1560
  %v1676 = vmax.f32 %v1241, %v1562
  %v1677 = vmax.f32 %v1242, %v1565
  %v1678 = vmax.f32 %v1243, %v1567
  %v1679 = vmax.f32 %v1244, %v1570
  %v1680 = vmax.f32 %v1245, %v1572
  %v1681 = vmax.f32 %v1246, %v1575
  %v1682 = vmax.f32 %v1247, %v1577
  %v1683 = vmax.f32 %v1248, %v1580
  %v1684 = vmax.f32 %v1249, %v1582
  %v1685 = vmax.f32 %v1250, %v1585
  %v1686 = vmax.f32 %v1251, %v1587
  %v1687 = vmax.f32 %v1252, %v1590
  %v1688 = vmax.f32 %v1253, %v1592
  %v1689 = vmax.f32 %v1254, %v1595
  %v1690 = vmax.f32 %v1255, %v1597
  %v1691 = vmax.f32 %v1256, %v1600
  %v1692 = vmax.f32 %v1257, %v1602
  %v1693 = vmax.f32 %v1258, %v1605
  %v1694 = vmax.f32 %v1259, %v1607
  %v1695 = vmax.f32 %v1260, %v1610
  %v1696 = vmax.f32 %v1261, %v1612
  %v1697 = vmax.f32 %v1262, %v1615
  %v1698 = vmax.f32 %v1263, %v1617
  %v1699 = vmax.f32 %v1264, %v1620
  %v1700 = vmax.f32 %v1265, %v1622
  %v1701 = vmax.f32 %v1266, %v1625
  %v1702 = vmax.f32 %v1267, %v1627
  %v1703 = vmax.f32 %v1268, %v1630
  %v1704 = vmax.f32 %v1269, %v1632
  %v1705 = vmax.f32 %v1270, %v1635
  %v1706 = vmax.f32 %v1271, %v1637
  %v1707 = vmax.f32 %v1272, %v1640
  %v1708 = vmax.f32 %v1273, %v1642
  %v1709 = vmax.f32 %v1274, %v1645
  %v1710 = vmax.f32 %v1275, %v1647
  %v1711 = vmax.f32 %v1276, %v1650
  %v1712 = vmax.f32 %v1277, %v1652
  %v1713 = vmax.f32 %v1278, %v1655
  %v1714 = vmax.f32 %v1279, %v1657
  %v1715 = vmax.f32 %v1280, %v1660
  %v1716 = vmax.f32 %v1281, %v1662
  %v1717 = vmax.f32 %v1282, %v1665
  %v1718 = vmax.f32 %v1283, %v1667
  %v1719 = vld [vmem:[%s2] sm:$0x1]
  %v1721 = vperm.slane %v1719, 0
  %v1723 = vadd.f32 %v1669, %v1721
  %v1724 = vadd.f32 %v1670, %v1721
  %v1725 = vadd.f32 %v1671, %v1721
  %v1726 = vadd.f32 %v1672, %v1721
  %v1727 = vadd.f32 %v1673, %v1721
  %v1728 = vadd.f32 %v1674, %v1721
  %v1729 = vadd.f32 %v1675, %v1721
  %v1730 = vadd.f32 %v1676, %v1721
  %v1731 = vadd.f32 %v1677, %v1721
  %v1732 = vadd.f32 %v1678, %v1721
  %v1733 = vadd.f32 %v1679, %v1721
  %v1734 = vadd.f32 %v1680, %v1721
  %v1735 = vadd.f32 %v1681, %v1721
  %v1736 = vadd.f32 %v1682, %v1721
  %v1737 = vadd.f32 %v1683, %v1721
  %v1738 = vadd.f32 %v1684, %v1721
  %v1739 = vadd.f32 %v1685, %v1721
  %v1740 = vadd.f32 %v1686, %v1721
  %v1741 = vadd.f32 %v1687, %v1721
  %v1742 = vadd.f32 %v1688, %v1721
  %v1743 = vadd.f32 %v1689, %v1721
  %v1744 = vadd.f32 %v1690, %v1721
  %v1745 = vadd.f32 %v1691, %v1721
  %v1746 = vadd.f32 %v1692, %v1721
  %v1747 = vadd.f32 %v1693, %v1721
  %v1748 = vadd.f32 %v1694, %v1721
  %v1749 = vadd.f32 %v1695, %v1721
  %v1750 = vadd.f32 %v1696, %v1721
  %v1751 = vadd.f32 %v1697, %v1721
  %v1752 = vadd.f32 %v1698, %v1721
  %v1753 = vadd.f32 %v1699, %v1721
  %v1754 = vadd.f32 %v1700, %v1721
  %v1755 = vadd.f32 %v1701, %v1721
  %v1756 = vadd.f32 %v1702, %v1721
  %v1757 = vadd.f32 %v1703, %v1721
  %v1758 = vadd.f32 %v1704, %v1721
  %v1759 = vadd.f32 %v1705, %v1721
  %v1760 = vadd.f32 %v1706, %v1721
  %v1761 = vadd.f32 %v1707, %v1721
  %v1762 = vadd.f32 %v1708, %v1721
  %v1763 = vadd.f32 %v1709, %v1721
  %v1764 = vadd.f32 %v1710, %v1721
  %v1765 = vadd.f32 %v1711, %v1721
  %v1766 = vadd.f32 %v1712, %v1721
  %v1767 = vadd.f32 %v1713, %v1721
  %v1768 = vadd.f32 %v1714, %v1721
  %v1769 = vadd.f32 %v1715, %v1721
  %v1770 = vadd.f32 %v1716, %v1721
  %v1771 = vadd.f32 %v1717, %v1721
  %v1772 = vadd.f32 %v1718, %v1721
  %v1773 = vmax.f32 %v1723, 0.0
  %v1774 = vmax.f32 %v1724, 0.0
  %v1775 = vmax.f32 %v1725, 0.0
  %v1776 = vmax.f32 %v1726, 0.0
  %v1777 = vmax.f32 %v1727, 0.0
  %v1778 = vmax.f32 %v1728, 0.0
  %v1779 = vmax.f32 %v1729, 0.0
  %v1780 = vmax.f32 %v1730, 0.0
  %v1781 = vmax.f32 %v1731, 0.0
  %v1782 = vmax.f32 %v1732, 0.0
  %v1783 = vmax.f32 %v1733, 0.0
  %v1784 = vmax.f32 %v1734, 0.0
  %v1785 = vmax.f32 %v1735, 0.0
  %v1786 = vmax.f32 %v1736, 0.0
  %v1787 = vmax.f32 %v1737, 0.0
  %v1788 = vmax.f32 %v1738, 0.0
  %v1789 = vmax.f32 %v1739, 0.0
  %v1790 = vmax.f32 %v1740, 0.0
  %v1791 = vmax.f32 %v1741, 0.0
  %v1792 = vmax.f32 %v1742, 0.0
  %v1793 = vmax.f32 %v1743, 0.0
  %v1794 = vmax.f32 %v1744, 0.0
  %v1795 = vmax.f32 %v1745, 0.0
  %v1796 = vmax.f32 %v1746, 0.0
  %v1797 = vmax.f32 %v1747, 0.0
  %v1798 = vmax.f32 %v1748, 0.0
  %v1799 = vmax.f32 %v1749, 0.0
  %v1800 = vmax.f32 %v1750, 0.0
  %v1801 = vmax.f32 %v1751, 0.0
  %v1802 = vmax.f32 %v1752, 0.0
  %v1803 = vmax.f32 %v1753, 0.0
  %v1804 = vmax.f32 %v1754, 0.0
  %v1805 = vmax.f32 %v1755, 0.0
  %v1806 = vmax.f32 %v1756, 0.0
  %v1807 = vmax.f32 %v1757, 0.0
  %v1808 = vmax.f32 %v1758, 0.0
  %v1809 = vmax.f32 %v1759, 0.0
  %v1810 = vmax.f32 %v1760, 0.0
  %v1811 = vmax.f32 %v1761, 0.0
  %v1812 = vmax.f32 %v1762, 0.0
  %v1813 = vmax.f32 %v1763, 0.0
  %v1814 = vmax.f32 %v1764, 0.0
  %v1815 = vmax.f32 %v1765, 0.0
  %v1816 = vmax.f32 %v1766, 0.0
  %v1817 = vmax.f32 %v1767, 0.0
  %v1818 = vmax.f32 %v1768, 0.0
  %v1819 = vmax.f32 %v1769, 0.0
  %v1820 = vmax.f32 %v1770, 0.0
  %v1821 = vmax.f32 %v1771, 0.0
  %v1822 = vmax.f32 %v1772, 0.0
  %vm1823 = vcmask 261120
  %1824 = vst.msk [vmem:[%s3] sm:$0xff] %vm1823, %v1773
  %1825 = vst.msk [vmem:[%s3 + $0x8] sm:$0xff] %vm1823, %v1774
  %1826 = vst.msk [vmem:[%s3 + $0x10] sm:$0xff] %vm1823, %v1775
  %1827 = vst.msk [vmem:[%s3 + $0x18] sm:$0xff] %vm1823, %v1776
  %1828 = vst.msk [vmem:[%s3 + $0x20] sm:$0xff] %vm1823, %v1777
  %1829 = vst.msk [vmem:[%s3 + $0x28] sm:$0xff] %vm1823, %v1778
  %1830 = vst.msk [vmem:[%s3 + $0x30] sm:$0xff] %vm1823, %v1779
  %1831 = vst.msk [vmem:[%s3 + $0x38] sm:$0xff] %vm1823, %v1780
  %1832 = vst.msk [vmem:[%s3 + $0x40] sm:$0xff] %vm1823, %v1781
  %1833 = vst.msk [vmem:[%s3 + $0x48] sm:$0xff] %vm1823, %v1782
  %1834 = vst.msk [vmem:[%s3 + $0x50] sm:$0xff] %vm1823, %v1783
  %1835 = vst.msk [vmem:[%s3 + $0x58] sm:$0xff] %vm1823, %v1784
  %1836 = vst.msk [vmem:[%s3 + $0x60] sm:$0xff] %vm1823, %v1785
  %1837 = vst.msk [vmem:[%s3 + $0x68] sm:$0xff] %vm1823, %v1786
  %1838 = vst.msk [vmem:[%s3 + $0x70] sm:$0xff] %vm1823, %v1787
  %1839 = vst.msk [vmem:[%s3 + $0x78] sm:$0xff] %vm1823, %v1788
  %1840 = vst.msk [vmem:[%s3 + $0x80] sm:$0xff] %vm1823, %v1789
  %1841 = vst.msk [vmem:[%s3 + $0x88] sm:$0xff] %vm1823, %v1790
  %1842 = vst.msk [vmem:[%s3 + $0x90] sm:$0xff] %vm1823, %v1791
  %1843 = vst.msk [vmem:[%s3 + $0x98] sm:$0xff] %vm1823, %v1792
  %1844 = vst.msk [vmem:[%s3 + $0xa0] sm:$0xff] %vm1823, %v1793
  %1845 = vst.msk [vmem:[%s3 + $0xa8] sm:$0xff] %vm1823, %v1794
  %1846 = vst.msk [vmem:[%s3 + $0xb0] sm:$0xff] %vm1823, %v1795
  %1847 = vst.msk [vmem:[%s3 + $0xb8] sm:$0xff] %vm1823, %v1796
  %1848 = vst.msk [vmem:[%s3 + $0xc0] sm:$0xff] %vm1823, %v1797
  %1849 = vst.msk [vmem:[%s3 + $0xc8] sm:$0xff] %vm1823, %v1798
  %1850 = vst.msk [vmem:[%s3 + $0xd0] sm:$0xff] %vm1823, %v1799
  %1851 = vst.msk [vmem:[%s3 + $0xd8] sm:$0xff] %vm1823, %v1800
  %1852 = vst.msk [vmem:[%s3 + $0xe0] sm:$0xff] %vm1823, %v1801
  %1853 = vst.msk [vmem:[%s3 + $0xe8] sm:$0xff] %vm1823, %v1802
  %1854 = vst.msk [vmem:[%s3 + $0xf0] sm:$0xff] %vm1823, %v1803
  %1855 = vst.msk [vmem:[%s3 + $0xf8] sm:$0xff] %vm1823, %v1804
  %1856 = vst.msk [vmem:[%s3 + $0x100] sm:$0xff] %vm1823, %v1805
  %1857 = vst.msk [vmem:[%s3 + $0x108] sm:$0xff] %vm1823, %v1806
  %1858 = vst.msk [vmem:[%s3 + $0x110] sm:$0xff] %vm1823, %v1807
  %1859 = vst.msk [vmem:[%s3 + $0x118] sm:$0xff] %vm1823, %v1808
  %1860 = vst.msk [vmem:[%s3 + $0x120] sm:$0xff] %vm1823, %v1809
  %1861 = vst.msk [vmem:[%s3 + $0x128] sm:$0xff] %vm1823, %v1810
  %1862 = vst.msk [vmem:[%s3 + $0x130] sm:$0xff] %vm1823, %v1811
  %1863 = vst.msk [vmem:[%s3 + $0x138] sm:$0xff] %vm1823, %v1812
  %1864 = vst.msk [vmem:[%s3 + $0x140] sm:$0xff] %vm1823, %v1813
  %1865 = vst.msk [vmem:[%s3 + $0x148] sm:$0xff] %vm1823, %v1814
  %1866 = vst.msk [vmem:[%s3 + $0x150] sm:$0xff] %vm1823, %v1815
  %1867 = vst.msk [vmem:[%s3 + $0x158] sm:$0xff] %vm1823, %v1816
  %1868 = vst.msk [vmem:[%s3 + $0x160] sm:$0xff] %vm1823, %v1817
  %1869 = vst.msk [vmem:[%s3 + $0x168] sm:$0xff] %vm1823, %v1818
  %1870 = vst.msk [vmem:[%s3 + $0x170] sm:$0xff] %vm1823, %v1819
  %1871 = vst.msk [vmem:[%s3 + $0x178] sm:$0xff] %vm1823, %v1820
  %1872 = vst.msk [vmem:[%s3 + $0x180] sm:$0xff] %vm1823, %v1821
  %1873 = vst.msk [vmem:[%s3 + $0x188] sm:$0xff] %vm1823, %v1822
  // Predicated region
  $region14: #{fashion_cnn_forward.3} parent=0 // pred_check
    _
  $region15: #{fashion_cnn_forward.3} parent=0 // pred_check_branch
    %1875 = sbr.rel (0) target = $region17
  $region16: #{fashion_cnn_forward.3} parent=0 // pred_region
    _
  $region17: #{fashion_cnn_forward.3} parent=0 // pred_fallthru
    _
  // Predicated region
  $region18: #{fashion_cnn_forward.3} parent=0 // pred_check
    _
  $region19: #{fashion_cnn_forward.3} parent=0 // pred_check_branch
    %1877 = sbr.rel (0) target = $region21
  $region20: #{fashion_cnn_forward.3} parent=0 // pred_region
    _
  $region21: #{fashion_cnn_forward.3} parent=0 // pred_fallthru
    _

// kernel: fashion_cnn_forward.4
$region0: #{fashion_cnn_forward.4}
  #allocation0 [shape = 'u32[]', space=smem, size = 0x4, offset = 0x4, fixed_abs, tag = 'smem constant byte address 0x4 - core index']
  #allocation1 [shape = 'u32[72,128]{1,0:T(1,128)}', space=vmem, size = 0x9000, scoped, tag = 'internal scratch']
  %s0 = inlined_call_operand.vmem [shape: bf16[4,80,288], index: 0, kind: input, shape index: {}]
  %s1 = inlined_call_operand.vmem [shape: bf16[288,64], index: 1, kind: input, shape index: {}]
  %s2 = inlined_call_operand.vmem [shape: f32[1,64], index: 2, kind: input, shape index: {}]
  %s3 = inlined_call_operand.vmem [shape: f32[80,64], index: 3, kind: output, shape index: {}]
  %s4 = sld [smem:[#allocation0]]
  $region22: #{fashion_cnn_forward.4} parent=0
    _
  %s6 = ssub.s32 1, %s4
  %s7 = scalar_select 0, %s6, %s4
  // Predicated region
  $region2: #{fashion_cnn_forward.4} parent=0 // pred_check
    _
  $region3: #{fashion_cnn_forward.4} parent=0 // pred_check_branch
    %9 = sbr.rel (0) target = $region5
  $region4: #{fashion_cnn_forward.4} parent=0 // pred_region
    _
  $region5: #{fashion_cnn_forward.4} parent=0 // pred_fallthru
    _
  // Predicated region
  $region6: #{fashion_cnn_forward.4} parent=0 // pred_check
    _
  $region7: #{fashion_cnn_forward.4} parent=0 // pred_check_branch
    %11 = sbr.rel (0) target = $region9
  $region8: #{fashion_cnn_forward.4} parent=0 // pred_region
    _
  $region9: #{fashion_cnn_forward.4} parent=0 // pred_fallthru
    _
  // Predicated region
  $region10: #{fashion_cnn_forward.4} parent=0 // pred_check
    _
  $region11: #{fashion_cnn_forward.4} parent=0 // pred_check_branch
    %13 = sbr.rel (0) target = $region13
  $region12: #{fashion_cnn_forward.4} parent=0 // pred_region
    _
  $region13: #{fashion_cnn_forward.4} parent=0 // pred_fallthru
    _
  %v15 = vld [vmem:[%s1] sm:$0xf]
  %v16 = vld [vmem:[%s1 + $0x4] sm:$0xf]
  %v17 = vld [vmem:[%s1 + $0x8] sm:$0xf]
  %v18 = vld [vmem:[%s1 + $0xc] sm:$0xf]
  %v19 = vld [vmem:[%s1 + $0x10] sm:$0xf]
  %v20 = vld [vmem:[%s1 + $0x14] sm:$0xf]
  %v21 = vld [vmem:[%s1 + $0x18] sm:$0xf]
  %v22 = vld [vmem:[%s1 + $0x1c] sm:$0xf]
  %v23 = vld [vmem:[%s1 + $0x20] sm:$0xf]
  %v24 = vld [vmem:[%s1 + $0x24] sm:$0xf]
  %v25 = vld [vmem:[%s1 + $0x28] sm:$0xf]
  %v26 = vld [vmem:[%s1 + $0x2c] sm:$0xf]
  %v27 = vld [vmem:[%s1 + $0x30] sm:$0xf]
  %v28 = vld [vmem:[%s1 + $0x34] sm:$0xf]
  %v29 = vld [vmem:[%s1 + $0x38] sm:$0xf]
  %v30 = vld [vmem:[%s1 + $0x3c] sm:$0xf]
  %v31 = vld [vmem:[%s1 + $0x40] sm:$0xf]
  %v32 = vld [vmem:[%s1 + $0x44] sm:$0xf]
  %v33 = vld [vmem:[%s1 + $0x48] sm:$0xf]
  %v34 = vld [vmem:[%s1 + $0x4c] sm:$0xf]
  %v35 = vld [vmem:[%s1 + $0x50] sm:$0xf]
  %v36 = vld [vmem:[%s1 + $0x54] sm:$0xf]
  %v37 = vld [vmem:[%s1 + $0x58] sm:$0xf]
  %v38 = vld [vmem:[%s1 + $0x5c] sm:$0xf]
  %v39 = vld [vmem:[%s1 + $0x60] sm:$0xf]
  %v40 = vld [vmem:[%s1 + $0x64] sm:$0xf]
  %v41 = vld [vmem:[%s1 + $0x68] sm:$0xf]
  %v42 = vld [vmem:[%s1 + $0x6c] sm:$0xf]
  %v43 = vld [vmem:[%s1 + $0x70] sm:$0xf]
  %v44 = vld [vmem:[%s1 + $0x74] sm:$0xf]
  %v45 = vld [vmem:[%s1 + $0x78] sm:$0xf]
  %v46 = vld [vmem:[%s1 + $0x7c] sm:$0xf]
  %v47 = vld [vmem:[%s1 + $0x80] sm:$0xf]
  %v48 = vld [vmem:[%s1 + $0x84] sm:$0xf]
  %v49 = vld [vmem:[%s1 + $0x88] sm:$0xf]
  %v50 = vld [vmem:[%s1 + $0x8c] sm:$0xf]
  %v51 = vld [vmem:[%s0] sm:$0xff]
  %v52 = vld [vmem:[%s0 + $0x8] sm:$0xf]
  %v53 = vld [vmem:[%s0 + $0xc] sm:$0xff]
  %v54 = vld [vmem:[%s0 + $0x14] sm:$0xf]
  %v55 = vld [vmem:[%s0 + $0x18] sm:$0xff]
  %v56 = vld [vmem:[%s0 + $0x20] sm:$0xf]
  %v57 = vld [vmem:[%s0 + $0x24] sm:$0xff]
  %v58 = vld [vmem:[%s0 + $0x2c] sm:$0xf]
  %v59 = vld [vmem:[%s0 + $0x30] sm:$0xff]
  %v60 = vld [vmem:[%s0 + $0x38] sm:$0xf]
  %v61 = vld [vmem:[%s0 + $0x3c] sm:$0xff]
  %v62 = vld [vmem:[%s0 + $0x44] sm:$0xf]
  %v63 = vld [vmem:[%s0 + $0x48] sm:$0xff]
  %v64 = vld [vmem:[%s0 + $0x50] sm:$0xf]
  %v65 = vld [vmem:[%s0 + $0x54] sm:$0xff]
  %v66 = vld [vmem:[%s0 + $0x5c] sm:$0xf]
  %v67 = vld [vmem:[%s0 + $0x60] sm:$0xff]
  %v68 = vld [vmem:[%s0 + $0x68] sm:$0xf]
  %v69 = vld [vmem:[%s0 + $0x6c] sm:$0xff]
  %v70 = vld [vmem:[%s0 + $0x74] sm:$0xf]
  %v91 = vunpack.c.l.b16 %v51
  %v92 = vunpack.c.h.b16 %v51
  %v93 = vunpack.c.l.b16 %v52
  %v94 = vunpack.c.l.b16 %v53
  %v95 = vunpack.c.h.b16 %v53
  %v96 = vunpack.c.l.b16 %v54
  %v97 = vunpack.c.l.b16 %v55
  %v98 = vunpack.c.h.b16 %v55
  %v99 = vunpack.c.l.b16 %v56
  %v100 = vunpack.c.l.b16 %v57
  %v101 = vunpack.c.h.b16 %v57
  %v102 = vunpack.c.l.b16 %v58
  %v103 = vunpack.c.l.b16 %v59
  %v104 = vunpack.c.h.b16 %v59
  %v105 = vunpack.c.l.b16 %v60
  %v106 = vunpack.c.l.b16 %v61
  %v107 = vunpack.c.h.b16 %v61
  %v108 = vunpack.c.l.b16 %v62
  %v109 = vunpack.c.l.b16 %v63
  %v110 = vunpack.c.h.b16 %v63
  %v111 = vunpack.c.l.b16 %v64
  %v112 = vunpack.c.l.b16 %v65
  %v113 = vunpack.c.h.b16 %v65
  %v114 = vunpack.c.l.b16 %v66
  %v115 = vunpack.c.l.b16 %v67
  %v116 = vunpack.c.h.b16 %v67
  %v117 = vunpack.c.l.b16 %v68
  %v118 = vunpack.c.l.b16 %v69
  %v119 = vunpack.c.h.b16 %v69
  %v120 = vunpack.c.l.b16 %v70
  %v121 = vpack.c.b16 %v94, %v91
  %v122 = vpack.c.b16 %v95, %v92
  %v123 = vpack.c.b16 %v96, %v93
  %v124 = vpack.c.b16 %v100, %v97
  %v125 = vpack.c.b16 %v101, %v98
  %v126 = vpack.c.b16 %v102, %v99
  %v127 = vpack.c.b16 %v106, %v103
  %v128 = vpack.c.b16 %v107, %v104
  %v129 = vpack.c.b16 %v108, %v105
  %v130 = vpack.c.b16 %v112, %v109
  %v131 = vpack.c.b16 %v113, %v110
  %v132 = vpack.c.b16 %v114, %v111
  %v133 = vpack.c.b16 %v118, %v115
  %v134 = vpack.c.b16 %v119, %v116
  %v135 = vpack.c.b16 %v120, %v117
  %v182 = vunpack.c.l.b16 %v15
  %v183 = vunpack.c.l.b16 %v16
  %v184 = vunpack.c.l.b16 %v17
  %v185 = vunpack.c.l.b16 %v18
  %v186 = vunpack.c.l.b16 %v19
  %v187 = vunpack.c.l.b16 %v20
  %v188 = vunpack.c.l.b16 %v21
  %v189 = vunpack.c.l.b16 %v22
  %v190 = vunpack.c.l.b16 %v23
  %v191 = vunpack.c.l.b16 %v24
  %v192 = vunpack.c.l.b16 %v25
  %v193 = vunpack.c.l.b16 %v26
  %v194 = vunpack.c.l.b16 %v27
  %v195 = vunpack.c.l.b16 %v28
  %v196 = vunpack.c.l.b16 %v29
  %v197 = vunpack.c.l.b16 %v30
  %v198 = vunpack.c.l.b16 %v31
  %v199 = vunpack.c.l.b16 %v32
  %v200 = vunpack.c.l.b16 %v33
  %v201 = vunpack.c.l.b16 %v34
  %v202 = vunpack.c.l.b16 %v35
  %v203 = vunpack.c.l.b16 %v36
  %v204 = vunpack.c.l.b16 %v37
  %v205 = vunpack.c.l.b16 %v38
  %v206 = vunpack.c.l.b16 %v39
  %v207 = vunpack.c.l.b16 %v40
  %v208 = vunpack.c.l.b16 %v41
  %v209 = vunpack.c.l.b16 %v42
  %v210 = vunpack.c.l.b16 %v43
  %v211 = vunpack.c.l.b16 %v44
  %v212 = vunpack.c.l.b16 %v45
  %v213 = vunpack.c.l.b16 %v46
  %v214 = vunpack.c.l.b16 %v47
  %v215 = vunpack.c.l.b16 %v48
  %v216 = vunpack.c.l.b16 %v49
  %v217 = vunpack.c.l.b16 %v50
  %v218 = vpack.c.b16 %v183, %v182
  %v219 = vpack.c.b16 %v185, %v184
  %v220 = vpack.c.b16 %v187, %v186
  %v221 = vpack.c.b16 %v189, %v188
  %v222 = vpack.c.b16 %v191, %v190
  %v223 = vpack.c.b16 %v193, %v192
  %v224 = vpack.c.b16 %v195, %v194
  %v225 = vpack.c.b16 %v197, %v196
  %v226 = vpack.c.b16 %v199, %v198
  %v227 = vpack.c.b16 %v201, %v200
  %v228 = vpack.c.b16 %v203, %v202
  %v229 = vpack.c.b16 %v205, %v204
  %v230 = vpack.c.b16 %v207, %v206
  %v231 = vpack.c.b16 %v209, %v208
  %v232 = vpack.c.b16 %v211, %v210
  %v233 = vpack.c.b16 %v213, %v212
  %v234 = vpack.c.b16 %v215, %v214
  %v235 = vpack.c.b16 %v217, %v216
  %vm254 = vcmask 261120
  %v256 = vsel %vm254, %v123, 0
  %v259 = vsel %vm254, %v126, 0
  %v262 = vsel %vm254, %v129, 0
  %v265 = vsel %vm254, %v132, 0
  %v268 = vsel %vm254, %v135, 0
  %270 = vmatpush.bf16.msra.mxu0 %v225
  %271 = vmatpush.bf16.msra.mxu0 %v224
  %272 = vmatpush.bf16.msra.mxu0 %v223
  %273 = vmatpush.bf16.msra.mxu0 %v222
  %274 = vmatpush.bf16.msra.mxu0 %v221
  %275 = vmatpush.bf16.msra.mxu0 %v220
  %276 = vmatpush.bf16.msra.mxu0 %v219
  %277 = vmatpush.bf16.msra.mxu0 %v218
  %278 = vmatmul.bf16.gmra.mxu0 %v121
  %v279 = vpop.f32.mrf.mxu0
  %v280 = vadd.f32 0.0, %v279
  %v281 = vpop.f32.mrf.mxu0
  %v282 = vadd.f32 0.0, %v281
  %283 = vmatmul.bf16.gmra.mxu0 %v124
  %v284 = vpop.f32.mrf.mxu0
  %v285 = vadd.f32 0.0, %v284
  %v286 = vpop.f32.mrf.mxu0
  %v287 = vadd.f32 0.0, %v286
  %288 = vmatmul.bf16.gmra.mxu0 %v127
  %v289 = vpop.f32.mrf.mxu0
  %v290 = vadd.f32 0.0, %v289
  %v291 = vpop.f32.mrf.mxu0
  %v292 = vadd.f32 0.0, %v291
  %293 = vmatmul.bf16.gmra.mxu0 %v130
  %v294 = vpop.f32.mrf.mxu0
  %v295 = vadd.f32 0.0, %v294
  %v296 = vpop.f32.mrf.mxu0
  %v297 = vadd.f32 0.0, %v296
  %298 = vmatmul.bf16.gmra.mxu0 %v133
  %v299 = vpop.f32.mrf.mxu0
  %v300 = vadd.f32 0.0, %v299
  %v301 = vpop.f32.mrf.mxu0
  %v302 = vadd.f32 0.0, %v301
  %303 = vdwg.mxu0
  %304 = vmatpush.bf16.msra.mxu0 %v233
  %305 = vmatpush.bf16.msra.mxu0 %v232
  %306 = vmatpush.bf16.msra.mxu0 %v231
  %307 = vmatpush.bf16.msra.mxu0 %v230
  %308 = vmatpush.bf16.msra.mxu0 %v229
  %309 = vmatpush.bf16.msra.mxu0 %v228
  %310 = vmatpush.bf16.msra.mxu0 %v227
  %311 = vmatpush.bf16.msra.mxu0 %v226
  %312 = vmatmul.bf16.gmra.mxu0 %v122
  %v313 = vpop.f32.mrf.mxu0
  %v314 = vadd.f32 %v280, %v313
  %v315 = vpop.f32.mrf.mxu0
  %v316 = vadd.f32 %v282, %v315
  %317 = vmatmul.bf16.gmra.mxu0 %v125
  %v318 = vpop.f32.mrf.mxu0
  %v319 = vadd.f32 %v285, %v318
  %v320 = vpop.f32.mrf.mxu0
  %v321 = vadd.f32 %v287, %v320
  %322 = vmatmul.bf16.gmra.mxu0 %v128
  %v323 = vpop.f32.mrf.mxu0
  %v324 = vadd.f32 %v290, %v323
  %v325 = vpop.f32.mrf.mxu0
  %v326 = vadd.f32 %v292, %v325
  %327 = vmatmul.bf16.gmra.mxu0 %v131
  %v328 = vpop.f32.mrf.mxu0
  %v329 = vadd.f32 %v295, %v328
  %v330 = vpop.f32.mrf.mxu0
  %v331 = vadd.f32 %v297, %v330
  %332 = vmatmul.bf16.gmra.mxu0 %v134
  %v333 = vpop.f32.mrf.mxu0
  %v334 = vadd.f32 %v300, %v333
  %v335 = vpop.f32.mrf.mxu0
  %v336 = vadd.f32 %v302, %v335
  %337 = vdwg.mxu0
  %338 = vmatpush.bf16.msra.mxu0 0
  %339 = vmatpush.bf16.msra.mxu0 0
  %340 = vmatpush.bf16.msra.mxu0 0
  %341 = vmatpush.bf16.msra.mxu0 0
  %342 = vmatpush.bf16.msra.mxu0 0
  %343 = vmatpush.bf16.msra.mxu0 0
  %344 = vmatpush.bf16.msra.mxu0 %v235
  %345 = vmatpush.bf16.msra.mxu0 %v234
  %346 = vmatmul.bf16.gmra.mxu0 %v256
  %v347 = vpop.f32.mrf.mxu0
  %v348 = vadd.f32 %v314, %v347
  %v349 = vpop.f32.mrf.mxu0
  %v350 = vadd.f32 %v316, %v349
  %351 = vmatmul.bf16.gmra.mxu0 %v259
  %v352 = vpop.f32.mrf.mxu0
  %v353 = vadd.f32 %v319, %v352
  %v354 = vpop.f32.mrf.mxu0
  %v355 = vadd.f32 %v321, %v354
  %356 = vmatmul.bf16.gmra.mxu0 %v262
  %v357 = vpop.f32.mrf.mxu0
  %v358 = vadd.f32 %v324, %v357
  %v359 = vpop.f32.mrf.mxu0
  %v360 = vadd.f32 %v326, %v359
  %361 = vmatmul.bf16.gmra.mxu0 %v265
  %v362 = vpop.f32.mrf.mxu0
  %v363 = vadd.f32 %v329, %v362
  %v364 = vpop.f32.mrf.mxu0
  %v365 = vadd.f32 %v331, %v364
  %366 = vmatmul.bf16.gmra.mxu0 %v268
  %v367 = vpop.f32.mrf.mxu0
  %v368 = vadd.f32 %v334, %v367
  %v369 = vpop.f32.mrf.mxu0
  %v370 = vadd.f32 %v336, %v369
  %371 = vdwg.mxu0
  %s372 = scalar_lea.vmem %s0, 120
  %v373 = vld [vmem:[%s372] sm:$0xff]
  %v374 = vld [vmem:[%s372 + $0x8] sm:$0xf]
  %v375 = vld [vmem:[%s372 + $0xc] sm:$0xff]
  %v376 = vld [vmem:[%s372 + $0x14] sm:$0xf]
  %v377 = vld [vmem:[%s372 + $0x18] sm:$0xff]
  %v378 = vld [vmem:[%s372 + $0x20] sm:$0xf]
  %v379 = vld [vmem:[%s372 + $0x24] sm:$0xff]
  %v380 = vld [vmem:[%s372 + $0x2c] sm:$0xf]
  %v381 = vld [vmem:[%s372 + $0x30] sm:$0xff]
  %v382 = vld [vmem:[%s372 + $0x38] sm:$0xf]
  %v383 = vld [vmem:[%s372 + $0x3c] sm:$0xff]
  %v384 = vld [vmem:[%s372 + $0x44] sm:$0xf]
  %v385 = vld [vmem:[%s372 + $0x48] sm:$0xff]
  %v386 = vld [vmem:[%s372 + $0x50] sm:$0xf]
  %v387 = vld [vmem:[%s372 + $0x54] sm:$0xff]
  %v388 = vld [vmem:[%s372 + $0x5c] sm:$0xf]
  %v389 = vld [vmem:[%s372 + $0x60] sm:$0xff]
  %v390 = vld [vmem:[%s372 + $0x68] sm:$0xf]
  %v391 = vld [vmem:[%s372 + $0x6c] sm:$0xff]
  %v392 = vld [vmem:[%s372 + $0x74] sm:$0xf]
  %v413 = vunpack.c.l.b16 %v373
  %v414 = vunpack.c.h.b16 %v373
  %v415 = vunpack.c.l.b16 %v374
  %v416 = vunpack.c.l.b16 %v375
  %v417 = vunpack.c.h.b16 %v375
  %v418 = vunpack.c.l.b16 %v376
  %v419 = vunpack.c.l.b16 %v377
  %v420 = vunpack.c.h.b16 %v377
  %v421 = vunpack.c.l.b16 %v378
  %v422 = vunpack.c.l.b16 %v379
  %v423 = vunpack.c.h.b16 %v379
  %v424 = vunpack.c.l.b16 %v380
  %v425 = vunpack.c.l.b16 %v381
  %v426 = vunpack.c.h.b16 %v381
  %v427 = vunpack.c.l.b16 %v382
  %v428 = vunpack.c.l.b16 %v383
  %v429 = vunpack.c.h.b16 %v383
  %v430 = vunpack.c.l.b16 %v384
  %v431 = vunpack.c.l.b16 %v385
  %v432 = vunpack.c.h.b16 %v385
  %v433 = vunpack.c.l.b16 %v386
  %v434 = vunpack.c.l.b16 %v387
  %v435 = vunpack.c.h.b16 %v387
  %v436 = vunpack.c.l.b16 %v388
  %v437 = vunpack.c.l.b16 %v389
  %v438 = vunpack.c.h.b16 %v389
  %v439 = vunpack.c.l.b16 %v390
  %v440 = vunpack.c.l.b16 %v391
  %v441 = vunpack.c.h.b16 %v391
  %v442 = vunpack.c.l.b16 %v392
  %v443 = vpack.c.b16 %v416, %v413
  %v444 = vpack.c.b16 %v417, %v414
  %v445 = vpack.c.b16 %v418, %v415
  %v446 = vpack.c.b16 %v422, %v419
  %v447 = vpack.c.b16 %v423, %v420
  %v448 = vpack.c.b16 %v424, %v421
  %v449 = vpack.c.b16 %v428, %v425
  %v450 = vpack.c.b16 %v429, %v426
  %v451 = vpack.c.b16 %v430, %v427
  %v452 = vpack.c.b16 %v434, %v431
  %v453 = vpack.c.b16 %v435, %v432
  %v454 = vpack.c.b16 %v436, %v433
  %v455 = vpack.c.b16 %v440, %v437
  %v456 = vpack.c.b16 %v441, %v438
  %v457 = vpack.c.b16 %v442, %v439
  %v469 = vsel %vm254, %v445, 0
  %v472 = vsel %vm254, %v448, 0
  %v475 = vsel %vm254, %v451, 0
  %v478 = vsel %vm254, %v454, 0
  %v481 = vsel %vm254, %v457, 0
  %483 = vmatpush.bf16.msra.mxu0 %v225
  %484 = vmatpush.bf16.msra.mxu0 %v224
  %485 = vmatpush.bf16.msra.mxu0 %v223
  %486 = vmatpush.bf16.msra.mxu0 %v222
  %487 = vmatpush.bf16.msra.mxu0 %v221
  %488 = vmatpush.bf16.msra.mxu0 %v220
  %489 = vmatpush.bf16.msra.mxu0 %v219
  %490 = vmatpush.bf16.msra.mxu0 %v218
  %491 = vmatmul.bf16.gmra.mxu0 %v443
  %v492 = vpop.f32.mrf.mxu0
  %v493 = vadd.f32 0.0, %v492
  %v494 = vpop.f32.mrf.mxu0
  %v495 = vadd.f32 0.0, %v494
  %496 = vmatmul.bf16.gmra.mxu0 %v446
  %v497 = vpop.f32.mrf.mxu0
  %v498 = vadd.f32 0.0, %v497
  %v499 = vpop.f32.mrf.mxu0
  %v500 = vadd.f32 0.0, %v499
  %501 = vmatmul.bf16.gmra.mxu0 %v449
  %v502 = vpop.f32.mrf.mxu0
  %v503 = vadd.f32 0.0, %v502
  %v504 = vpop.f32.mrf.mxu0
  %v505 = vadd.f32 0.0, %v504
  %506 = vmatmul.bf16.gmra.mxu0 %v452
  %v507 = vpop.f32.mrf.mxu0
  %v508 = vadd.f32 0.0, %v507
  %v509 = vpop.f32.mrf.mxu0
  %v510 = vadd.f32 0.0, %v509
  %511 = vmatmul.bf16.gmra.mxu0 %v455
  %v512 = vpop.f32.mrf.mxu0
  %v513 = vadd.f32 0.0, %v512
  %v514 = vpop.f32.mrf.mxu0
  %v515 = vadd.f32 0.0, %v514
  %516 = vdwg.mxu0
  %517 = vmatpush.bf16.msra.mxu0 %v233
  %518 = vmatpush.bf16.msra.mxu0 %v232
  %519 = vmatpush.bf16.msra.mxu0 %v231
  %520 = vmatpush.bf16.msra.mxu0 %v230
  %521 = vmatpush.bf16.msra.mxu0 %v229
  %522 = vmatpush.bf16.msra.mxu0 %v228
  %523 = vmatpush.bf16.msra.mxu0 %v227
  %524 = vmatpush.bf16.msra.mxu0 %v226
  %525 = vmatmul.bf16.gmra.mxu0 %v444
  %v526 = vpop.f32.mrf.mxu0
  %v527 = vadd.f32 %v493, %v526
  %v528 = vpop.f32.mrf.mxu0
  %v529 = vadd.f32 %v495, %v528
  %530 = vmatmul.bf16.gmra.mxu0 %v447
  %v531 = vpop.f32.mrf.mxu0
  %v532 = vadd.f32 %v498, %v531
  %v533 = vpop.f32.mrf.mxu0
  %v534 = vadd.f32 %v500, %v533
  %535 = vmatmul.bf16.gmra.mxu0 %v450
  %v536 = vpop.f32.mrf.mxu0
  %v537 = vadd.f32 %v503, %v536
  %v538 = vpop.f32.mrf.mxu0
  %v539 = vadd.f32 %v505, %v538
  %540 = vmatmul.bf16.gmra.mxu0 %v453
  %v541 = vpop.f32.mrf.mxu0
  %v542 = vadd.f32 %v508, %v541
  %v543 = vpop.f32.mrf.mxu0
  %v544 = vadd.f32 %v510, %v543
  %545 = vmatmul.bf16.gmra.mxu0 %v456
  %v546 = vpop.f32.mrf.mxu0
  %v547 = vadd.f32 %v513, %v546
  %v548 = vpop.f32.mrf.mxu0
  %v549 = vadd.f32 %v515, %v548
  %550 = vdwg.mxu0
  %551 = vmatpush.bf16.msra.mxu0 0
  %552 = vmatpush.bf16.msra.mxu0 0
  %553 = vmatpush.bf16.msra.mxu0 0
  %554 = vmatpush.bf16.msra.mxu0 0
  %555 = vmatpush.bf16.msra.mxu0 0
  %556 = vmatpush.bf16.msra.mxu0 0
  %557 = vmatpush.bf16.msra.mxu0 %v235
  %558 = vmatpush.bf16.msra.mxu0 %v234
  %559 = vmatmul.bf16.gmra.mxu0 %v469
  %v560 = vpop.f32.mrf.mxu0
  %v561 = vadd.f32 %v527, %v560
  %v562 = vpop.f32.mrf.mxu0
  %v563 = vadd.f32 %v529, %v562
  %564 = vmatmul.bf16.gmra.mxu0 %v472
  %v565 = vpop.f32.mrf.mxu0
  %v566 = vadd.f32 %v532, %v565
  %v567 = vpop.f32.mrf.mxu0
  %v568 = vadd.f32 %v534, %v567
  %569 = vmatmul.bf16.gmra.mxu0 %v475
  %v570 = vpop.f32.mrf.mxu0
  %v571 = vadd.f32 %v537, %v570
  %v572 = vpop.f32.mrf.mxu0
  %v573 = vadd.f32 %v539, %v572
  %574 = vmatmul.bf16.gmra.mxu0 %v478
  %v575 = vpop.f32.mrf.mxu0
  %v576 = vadd.f32 %v542, %v575
  %v577 = vpop.f32.mrf.mxu0
  %v578 = vadd.f32 %v544, %v577
  %579 = vmatmul.bf16.gmra.mxu0 %v481
  %v580 = vpop.f32.mrf.mxu0
  %v581 = vadd.f32 %v547, %v580
  %v582 = vpop.f32.mrf.mxu0
  %v583 = vadd.f32 %v549, %v582
  %584 = vdwg.mxu0
  %v585 = vmax.f32 %v348, %v561
  %v586 = vmax.f32 %v350, %v563
  %v587 = vmax.f32 %v353, %v566
  %v588 = vmax.f32 %v355, %v568
  %v589 = vmax.f32 %v358, %v571
  %v590 = vmax.f32 %v360, %v573
  %v591 = vmax.f32 %v363, %v576
  %v592 = vmax.f32 %v365, %v578
  %v593 = vmax.f32 %v368, %v581
  %v594 = vmax.f32 %v370, %v583
  %s595 = scalar_lea.vmem %s0, 240
  %v596 = vld [vmem:[%s595] sm:$0xff]
  %v597 = vld [vmem:[%s595 + $0x8] sm:$0xf]
  %v598 = vld [vmem:[%s595 + $0xc] sm:$0xff]
  %v599 = vld [vmem:[%s595 + $0x14] sm:$0xf]
  %v600 = vld [vmem:[%s595 + $0x18] sm:$0xff]
  %v601 = vld [vmem:[%s595 + $0x20] sm:$0xf]
  %v602 = vld [vmem:[%s595 + $0x24] sm:$0xff]
  %v603 = vld [vmem:[%s595 + $0x2c] sm:$0xf]
  %v604 = vld [vmem:[%s595 + $0x30] sm:$0xff]
  %v605 = vld [vmem:[%s595 + $0x38] sm:$0xf]
  %v606 = vld [vmem:[%s595 + $0x3c] sm:$0xff]
  %v607 = vld [vmem:[%s595 + $0x44] sm:$0xf]
  %v608 = vld [vmem:[%s595 + $0x48] sm:$0xff]
  %v609 = vld [vmem:[%s595 + $0x50] sm:$0xf]
  %v610 = vld [vmem:[%s595 + $0x54] sm:$0xff]
  %v611 = vld [vmem:[%s595 + $0x5c] sm:$0xf]
  %v612 = vld [vmem:[%s595 + $0x60] sm:$0xff]
  %v613 = vld [vmem:[%s595 + $0x68] sm:$0xf]
  %v614 = vld [vmem:[%s595 + $0x6c] sm:$0xff]
  %v615 = vld [vmem:[%s595 + $0x74] sm:$0xf]
  %v636 = vunpack.c.l.b16 %v596
  %v637 = vunpack.c.h.b16 %v596
  %v638 = vunpack.c.l.b16 %v597
  %v639 = vunpack.c.l.b16 %v598
  %v640 = vunpack.c.h.b16 %v598
  %v641 = vunpack.c.l.b16 %v599
  %v642 = vunpack.c.l.b16 %v600
  %v643 = vunpack.c.h.b16 %v600
  %v644 = vunpack.c.l.b16 %v601
  %v645 = vunpack.c.l.b16 %v602
  %v646 = vunpack.c.h.b16 %v602
  %v647 = vunpack.c.l.b16 %v603
  %v648 = vunpack.c.l.b16 %v604
  %v649 = vunpack.c.h.b16 %v604
  %v650 = vunpack.c.l.b16 %v605
  %v651 = vunpack.c.l.b16 %v606
  %v652 = vunpack.c.h.b16 %v606
  %v653 = vunpack.c.l.b16 %v607
  %v654 = vunpack.c.l.b16 %v608
  %v655 = vunpack.c.h.b16 %v608
  %v656 = vunpack.c.l.b16 %v609
  %v657 = vunpack.c.l.b16 %v610
  %v658 = vunpack.c.h.b16 %v610
  %v659 = vunpack.c.l.b16 %v611
  %v660 = vunpack.c.l.b16 %v612
  %v661 = vunpack.c.h.b16 %v612
  %v662 = vunpack.c.l.b16 %v613
  %v663 = vunpack.c.l.b16 %v614
  %v664 = vunpack.c.h.b16 %v614
  %v665 = vunpack.c.l.b16 %v615
  %v666 = vpack.c.b16 %v639, %v636
  %v667 = vpack.c.b16 %v640, %v637
  %v668 = vpack.c.b16 %v641, %v638
  %v669 = vpack.c.b16 %v645, %v642
  %v670 = vpack.c.b16 %v646, %v643
  %v671 = vpack.c.b16 %v647, %v644
  %v672 = vpack.c.b16 %v651, %v648
  %v673 = vpack.c.b16 %v652, %v649
  %v674 = vpack.c.b16 %v653, %v650
  %v675 = vpack.c.b16 %v657, %v654
  %v676 = vpack.c.b16 %v658, %v655
  %v677 = vpack.c.b16 %v659, %v656
  %v678 = vpack.c.b16 %v663, %v660
  %v679 = vpack.c.b16 %v664, %v661
  %v680 = vpack.c.b16 %v665, %v662
  %v692 = vsel %vm254, %v668, 0
  %v695 = vsel %vm254, %v671, 0
  %v698 = vsel %vm254, %v674, 0
  %v701 = vsel %vm254, %v677, 0
  %v704 = vsel %vm254, %v680, 0
  %706 = vmatpush.bf16.msra.mxu0 %v225
  %707 = vmatpush.bf16.msra.mxu0 %v224
  %708 = vmatpush.bf16.msra.mxu0 %v223
  %709 = vmatpush.bf16.msra.mxu0 %v222
  %710 = vmatpush.bf16.msra.mxu0 %v221
  %711 = vmatpush.bf16.msra.mxu0 %v220
  %712 = vmatpush.bf16.msra.mxu0 %v219
  %713 = vmatpush.bf16.msra.mxu0 %v218
  %714 = vmatmul.bf16.gmra.mxu0 %v666
  %v715 = vpop.f32.mrf.mxu0
  %v716 = vadd.f32 0.0, %v715
  %v717 = vpop.f32.mrf.mxu0
  %v718 = vadd.f32 0.0, %v717
  %719 = vmatmul.bf16.gmra.mxu0 %v669
  %v720 = vpop.f32.mrf.mxu0
  %v721 = vadd.f32 0.0, %v720
  %v722 = vpop.f32.mrf.mxu0
  %v723 = vadd.f32 0.0, %v722
  %724 = vmatmul.bf16.gmra.mxu0 %v672
  %v725 = vpop.f32.mrf.mxu0
  %v726 = vadd.f32 0.0, %v725
  %v727 = vpop.f32.mrf.mxu0
  %v728 = vadd.f32 0.0, %v727
  %729 = vmatmul.bf16.gmra.mxu0 %v675
  %v730 = vpop.f32.mrf.mxu0
  %v731 = vadd.f32 0.0, %v730
  %v732 = vpop.f32.mrf.mxu0
  %v733 = vadd.f32 0.0, %v732
  %734 = vmatmul.bf16.gmra.mxu0 %v678
  %v735 = vpop.f32.mrf.mxu0
  %v736 = vadd.f32 0.0, %v735
  %v737 = vpop.f32.mrf.mxu0
  %v738 = vadd.f32 0.0, %v737
  %739 = vdwg.mxu0
  %740 = vmatpush.bf16.msra.mxu0 %v233
  %741 = vmatpush.bf16.msra.mxu0 %v232
  %742 = vmatpush.bf16.msra.mxu0 %v231
  %743 = vmatpush.bf16.msra.mxu0 %v230
  %744 = vmatpush.bf16.msra.mxu0 %v229
  %745 = vmatpush.bf16.msra.mxu0 %v228
  %746 = vmatpush.bf16.msra.mxu0 %v227
  %747 = vmatpush.bf16.msra.mxu0 %v226
  %748 = vmatmul.bf16.gmra.mxu0 %v667
  %v749 = vpop.f32.mrf.mxu0
  %v750 = vadd.f32 %v716, %v749
  %v751 = vpop.f32.mrf.mxu0
  %v752 = vadd.f32 %v718, %v751
  %753 = vmatmul.bf16.gmra.mxu0 %v670
  %v754 = vpop.f32.mrf.mxu0
  %v755 = vadd.f32 %v721, %v754
  %v756 = vpop.f32.mrf.mxu0
  %v757 = vadd.f32 %v723, %v756
  %758 = vmatmul.bf16.gmra.mxu0 %v673
  %v759 = vpop.f32.mrf.mxu0
  %v760 = vadd.f32 %v726, %v759
  %v761 = vpop.f32.mrf.mxu0
  %v762 = vadd.f32 %v728, %v761
  %763 = vmatmul.bf16.gmra.mxu0 %v676
  %v764 = vpop.f32.mrf.mxu0
  %v765 = vadd.f32 %v731, %v764
  %v766 = vpop.f32.mrf.mxu0
  %v767 = vadd.f32 %v733, %v766
  %768 = vmatmul.bf16.gmra.mxu0 %v679
  %v769 = vpop.f32.mrf.mxu0
  %v770 = vadd.f32 %v736, %v769
  %v771 = vpop.f32.mrf.mxu0
  %v772 = vadd.f32 %v738, %v771
  %773 = vdwg.mxu0
  %774 = vmatpush.bf16.msra.mxu0 0
  %775 = vmatpush.bf16.msra.mxu0 0
  %776 = vmatpush.bf16.msra.mxu0 0
  %777 = vmatpush.bf16.msra.mxu0 0
  %778 = vmatpush.bf16.msra.mxu0 0
  %779 = vmatpush.bf16.msra.mxu0 0
  %780 = vmatpush.bf16.msra.mxu0 %v235
  %781 = vmatpush.bf16.msra.mxu0 %v234
  %782 = vmatmul.bf16.gmra.mxu0 %v692
  %v783 = vpop.f32.mrf.mxu0
  %v784 = vadd.f32 %v750, %v783
  %v785 = vpop.f32.mrf.mxu0
  %v786 = vadd.f32 %v752, %v785
  %787 = vmatmul.bf16.gmra.mxu0 %v695
  %v788 = vpop.f32.mrf.mxu0
  %v789 = vadd.f32 %v755, %v788
  %v790 = vpop.f32.mrf.mxu0
  %v791 = vadd.f32 %v757, %v790
  %792 = vmatmul.bf16.gmra.mxu0 %v698
  %v793 = vpop.f32.mrf.mxu0
  %v794 = vadd.f32 %v760, %v793
  %v795 = vpop.f32.mrf.mxu0
  %v796 = vadd.f32 %v762, %v795
  %797 = vmatmul.bf16.gmra.mxu0 %v701
  %v798 = vpop.f32.mrf.mxu0
  %v799 = vadd.f32 %v765, %v798
  %v800 = vpop.f32.mrf.mxu0
  %v801 = vadd.f32 %v767, %v800
  %802 = vmatmul.bf16.gmra.mxu0 %v704
  %v803 = vpop.f32.mrf.mxu0
  %v804 = vadd.f32 %v770, %v803
  %v805 = vpop.f32.mrf.mxu0
  %v806 = vadd.f32 %v772, %v805
  %807 = vdwg.mxu0
  %v808 = vmax.f32 %v585, %v784
  %v809 = vmax.f32 %v586, %v786
  %v810 = vmax.f32 %v587, %v789
  %v811 = vmax.f32 %v588, %v791
  %v812 = vmax.f32 %v589, %v794
  %v813 = vmax.f32 %v590, %v796
  %v814 = vmax.f32 %v591, %v799
  %v815 = vmax.f32 %v592, %v801
  %v816 = vmax.f32 %v593, %v804
  %v817 = vmax.f32 %v594, %v806
  %s818 = scalar_lea.vmem %s0, 360
  %v819 = vld [vmem:[%s818] sm:$0xff]
  %v820 = vld [vmem:[%s818 + $0x8] sm:$0xf]
  %v821 = vld [vmem:[%s818 + $0xc] sm:$0xff]
  %v822 = vld [vmem:[%s818 + $0x14] sm:$0xf]
  %v823 = vld [vmem:[%s818 + $0x18] sm:$0xff]
  %v824 = vld [vmem:[%s818 + $0x20] sm:$0xf]
  %v825 = vld [vmem:[%s818 + $0x24] sm:$0xff]
  %v826 = vld [vmem:[%s818 + $0x2c] sm:$0xf]
  %v827 = vld [vmem:[%s818 + $0x30] sm:$0xff]
  %v828 = vld [vmem:[%s818 + $0x38] sm:$0xf]
  %v829 = vld [vmem:[%s818 + $0x3c] sm:$0xff]
  %v830 = vld [vmem:[%s818 + $0x44] sm:$0xf]
  %v831 = vld [vmem:[%s818 + $0x48] sm:$0xff]
  %v832 = vld [vmem:[%s818 + $0x50] sm:$0xf]
  %v833 = vld [vmem:[%s818 + $0x54] sm:$0xff]
  %v834 = vld [vmem:[%s818 + $0x5c] sm:$0xf]
  %v835 = vld [vmem:[%s818 + $0x60] sm:$0xff]
  %v836 = vld [vmem:[%s818 + $0x68] sm:$0xf]
  %v837 = vld [vmem:[%s818 + $0x6c] sm:$0xff]
  %v838 = vld [vmem:[%s818 + $0x74] sm:$0xf]
  %v859 = vunpack.c.l.b16 %v819
  %v860 = vunpack.c.h.b16 %v819
  %v861 = vunpack.c.l.b16 %v820
  %v862 = vunpack.c.l.b16 %v821
  %v863 = vunpack.c.h.b16 %v821
  %v864 = vunpack.c.l.b16 %v822
  %v865 = vunpack.c.l.b16 %v823
  %v866 = vunpack.c.h.b16 %v823
  %v867 = vunpack.c.l.b16 %v824
  %v868 = vunpack.c.l.b16 %v825
  %v869 = vunpack.c.h.b16 %v825
  %v870 = vunpack.c.l.b16 %v826
  %v871 = vunpack.c.l.b16 %v827
  %v872 = vunpack.c.h.b16 %v827
  %v873 = vunpack.c.l.b16 %v828
  %v874 = vunpack.c.l.b16 %v829
  %v875 = vunpack.c.h.b16 %v829
  %v876 = vunpack.c.l.b16 %v830
  %v877 = vunpack.c.l.b16 %v831
  %v878 = vunpack.c.h.b16 %v831
  %v879 = vunpack.c.l.b16 %v832
  %v880 = vunpack.c.l.b16 %v833
  %v881 = vunpack.c.h.b16 %v833
  %v882 = vunpack.c.l.b16 %v834
  %v883 = vunpack.c.l.b16 %v835
  %v884 = vunpack.c.h.b16 %v835
  %v885 = vunpack.c.l.b16 %v836
  %v886 = vunpack.c.l.b16 %v837
  %v887 = vunpack.c.h.b16 %v837
  %v888 = vunpack.c.l.b16 %v838
  %v889 = vpack.c.b16 %v862, %v859
  %v890 = vpack.c.b16 %v863, %v860
  %v891 = vpack.c.b16 %v864, %v861
  %v892 = vpack.c.b16 %v868, %v865
  %v893 = vpack.c.b16 %v869, %v866
  %v894 = vpack.c.b16 %v870, %v867
  %v895 = vpack.c.b16 %v874, %v871
  %v896 = vpack.c.b16 %v875, %v872
  %v897 = vpack.c.b16 %v876, %v873
  %v898 = vpack.c.b16 %v880, %v877
  %v899 = vpack.c.b16 %v881, %v878
  %v900 = vpack.c.b16 %v882, %v879
  %v901 = vpack.c.b16 %v886, %v883
  %v902 = vpack.c.b16 %v887, %v884
  %v903 = vpack.c.b16 %v888, %v885
  %v915 = vsel %vm254, %v891, 0
  %v918 = vsel %vm254, %v894, 0
  %v921 = vsel %vm254, %v897, 0
  %v924 = vsel %vm254, %v900, 0
  %v927 = vsel %vm254, %v903, 0
  %929 = vmatpush.bf16.msra.mxu0 %v225
  %930 = vmatpush.bf16.msra.mxu0 %v224
  %931 = vmatpush.bf16.msra.mxu0 %v223
  %932 = vmatpush.bf16.msra.mxu0 %v222
  %933 = vmatpush.bf16.msra.mxu0 %v221
  %934 = vmatpush.bf16.msra.mxu0 %v220
  %935 = vmatpush.bf16.msra.mxu0 %v219
  %936 = vmatpush.bf16.msra.mxu0 %v218
  %937 = vmatmul.bf16.gmra.mxu0 %v889
  %v938 = vpop.f32.mrf.mxu0
  %v939 = vadd.f32 0.0, %v938
  %v940 = vpop.f32.mrf.mxu0
  %v941 = vadd.f32 0.0, %v940
  %942 = vmatmul.bf16.gmra.mxu0 %v892
  %v943 = vpop.f32.mrf.mxu0
  %v944 = vadd.f32 0.0, %v943
  %v945 = vpop.f32.mrf.mxu0
  %v946 = vadd.f32 0.0, %v945
  %947 = vmatmul.bf16.gmra.mxu0 %v895
  %v948 = vpop.f32.mrf.mxu0
  %v949 = vadd.f32 0.0, %v948
  %v950 = vpop.f32.mrf.mxu0
  %v951 = vadd.f32 0.0, %v950
  %952 = vmatmul.bf16.gmra.mxu0 %v898
  %v953 = vpop.f32.mrf.mxu0
  %v954 = vadd.f32 0.0, %v953
  %v955 = vpop.f32.mrf.mxu0
  %v956 = vadd.f32 0.0, %v955
  %957 = vmatmul.bf16.gmra.mxu0 %v901
  %v958 = vpop.f32.mrf.mxu0
  %v959 = vadd.f32 0.0, %v958
  %v960 = vpop.f32.mrf.mxu0
  %v961 = vadd.f32 0.0, %v960
  %962 = vdwg.mxu0
  %963 = vmatpush.bf16.msra.mxu0 %v233
  %964 = vmatpush.bf16.msra.mxu0 %v232
  %965 = vmatpush.bf16.msra.mxu0 %v231
  %966 = vmatpush.bf16.msra.mxu0 %v230
  %967 = vmatpush.bf16.msra.mxu0 %v229
  %968 = vmatpush.bf16.msra.mxu0 %v228
  %969 = vmatpush.bf16.msra.mxu0 %v227
  %970 = vmatpush.bf16.msra.mxu0 %v226
  %971 = vmatmul.bf16.gmra.mxu0 %v890
  %v972 = vpop.f32.mrf.mxu0
  %v973 = vadd.f32 %v939, %v972
  %v974 = vpop.f32.mrf.mxu0
  %v975 = vadd.f32 %v941, %v974
  %976 = vmatmul.bf16.gmra.mxu0 %v893
  %v977 = vpop.f32.mrf.mxu0
  %v978 = vadd.f32 %v944, %v977
  %v979 = vpop.f32.mrf.mxu0
  %v980 = vadd.f32 %v946, %v979
  %981 = vmatmul.bf16.gmra.mxu0 %v896
  %v982 = vpop.f32.mrf.mxu0
  %v983 = vadd.f32 %v949, %v982
  %v984 = vpop.f32.mrf.mxu0
  %v985 = vadd.f32 %v951, %v984
  %986 = vmatmul.bf16.gmra.mxu0 %v899
  %v987 = vpop.f32.mrf.mxu0
  %v988 = vadd.f32 %v954, %v987
  %v989 = vpop.f32.mrf.mxu0
  %v990 = vadd.f32 %v956, %v989
  %991 = vmatmul.bf16.gmra.mxu0 %v902
  %v992 = vpop.f32.mrf.mxu0
  %v993 = vadd.f32 %v959, %v992
  %v994 = vpop.f32.mrf.mxu0
  %v995 = vadd.f32 %v961, %v994
  %996 = vdwg.mxu0
  %997 = vmatpush.bf16.msra.mxu0 0
  %998 = vmatpush.bf16.msra.mxu0 0
  %999 = vmatpush.bf16.msra.mxu0 0
  %1000 = vmatpush.bf16.msra.mxu0 0
  %1001 = vmatpush.bf16.msra.mxu0 0
  %1002 = vmatpush.bf16.msra.mxu0 0
  %1003 = vmatpush.bf16.msra.mxu0 %v235
  %1004 = vmatpush.bf16.msra.mxu0 %v234
  %1005 = vmatmul.bf16.gmra.mxu0 %v915
  %v1006 = vpop.f32.mrf.mxu0
  %v1007 = vadd.f32 %v973, %v1006
  %v1008 = vpop.f32.mrf.mxu0
  %v1009 = vadd.f32 %v975, %v1008
  %1010 = vmatmul.bf16.gmra.mxu0 %v918
  %v1011 = vpop.f32.mrf.mxu0
  %v1012 = vadd.f32 %v978, %v1011
  %v1013 = vpop.f32.mrf.mxu0
  %v1014 = vadd.f32 %v980, %v1013
  %1015 = vmatmul.bf16.gmra.mxu0 %v921
  %v1016 = vpop.f32.mrf.mxu0
  %v1017 = vadd.f32 %v983, %v1016
  %v1018 = vpop.f32.mrf.mxu0
  %v1019 = vadd.f32 %v985, %v1018
  %1020 = vmatmul.bf16.gmra.mxu0 %v924
  %v1021 = vpop.f32.mrf.mxu0
  %v1022 = vadd.f32 %v988, %v1021
  %v1023 = vpop.f32.mrf.mxu0
  %v1024 = vadd.f32 %v990, %v1023
  %1025 = vmatmul.bf16.gmra.mxu0 %v927
  %v1026 = vpop.f32.mrf.mxu0
  %v1027 = vadd.f32 %v993, %v1026
  %v1028 = vpop.f32.mrf.mxu0
  %v1029 = vadd.f32 %v995, %v1028
  %1030 = vdwg.mxu0
  %v1031 = vmax.f32 %v808, %v1007
  %v1032 = vmax.f32 %v809, %v1009
  %v1033 = vmax.f32 %v810, %v1012
  %v1034 = vmax.f32 %v811, %v1014
  %v1035 = vmax.f32 %v812, %v1017
  %v1036 = vmax.f32 %v813, %v1019
  %v1037 = vmax.f32 %v814, %v1022
  %v1038 = vmax.f32 %v815, %v1024
  %v1039 = vmax.f32 %v816, %v1027
  %v1040 = vmax.f32 %v817, %v1029
  %v1041 = vld [vmem:[%s2] sm:$0x1]
  %v1043 = vperm.slane %v1041, 0
  %v1045 = vadd.f32 %v1031, %v1043
  %v1046 = vadd.f32 %v1032, %v1043
  %v1047 = vadd.f32 %v1033, %v1043
  %v1048 = vadd.f32 %v1034, %v1043
  %v1049 = vadd.f32 %v1035, %v1043
  %v1050 = vadd.f32 %v1036, %v1043
  %v1051 = vadd.f32 %v1037, %v1043
  %v1052 = vadd.f32 %v1038, %v1043
  %v1053 = vadd.f32 %v1039, %v1043
  %v1054 = vadd.f32 %v1040, %v1043
  %v1055 = vmax.f32 %v1045, 0.0
  %v1056 = vmax.f32 %v1046, 0.0
  %v1057 = vmax.f32 %v1047, 0.0
  %v1058 = vmax.f32 %v1048, 0.0
  %v1059 = vmax.f32 %v1049, 0.0
  %v1060 = vmax.f32 %v1050, 0.0
  %v1061 = vmax.f32 %v1051, 0.0
  %v1062 = vmax.f32 %v1052, 0.0
  %v1063 = vmax.f32 %v1053, 0.0
  %v1064 = vmax.f32 %v1054, 0.0
  %vm1065 = vcmask 523264
  %1066 = vst.msk [vmem:[%s3] sm:$0xff] %vm1065, %v1055
  %1067 = vst.msk [vmem:[%s3 + $0x8] sm:$0xff] %vm1065, %v1056
  %1068 = vst.msk [vmem:[%s3 + $0x10] sm:$0xff] %vm1065, %v1057
  %1069 = vst.msk [vmem:[%s3 + $0x18] sm:$0xff] %vm1065, %v1058
  %1070 = vst.msk [vmem:[%s3 + $0x20] sm:$0xff] %vm1065, %v1059
  %1071 = vst.msk [vmem:[%s3 + $0x28] sm:$0xff] %vm1065, %v1060
  %1072 = vst.msk [vmem:[%s3 + $0x30] sm:$0xff] %vm1065, %v1061
  %1073 = vst.msk [vmem:[%s3 + $0x38] sm:$0xff] %vm1065, %v1062
  %1074 = vst.msk [vmem:[%s3 + $0x40] sm:$0xff] %vm1065, %v1063
  %1075 = vst.msk [vmem:[%s3 + $0x48] sm:$0xff] %vm1065, %v1064
  // Predicated region
  $region14: #{fashion_cnn_forward.4} parent=0 // pred_check
    _
  $region15: #{fashion_cnn_forward.4} parent=0 // pred_check_branch
    %1077 = sbr.rel (0) target = $region17
  $region16: #{fashion_cnn_forward.4} parent=0 // pred_region
    _
  $region17: #{fashion_cnn_forward.4} parent=0 // pred_fallthru
    _
  // Predicated region
  $region18: #{fashion_cnn_forward.4} parent=0 // pred_check
    _
  $region19: #{fashion_cnn_forward.4} parent=0 // pred_check_branch
    %1079 = sbr.rel (0) target = $region21
  $region20: #{fashion_cnn_forward.4} parent=0 // pred_region
    _
  $region21: #{fashion_cnn_forward.4} parent=0 // pred_fallthru
    _

// kernel: fashion_cnn_forward.5
$region0: #{fashion_cnn_forward.5}
  #allocation0 [shape = 'u32[]', space=smem, size = 0x4, offset = 0x4, fixed_abs, tag = 'smem constant byte address 0x4 - core index']
  #allocation1 [shape = 'u32[72,128]{1,0:T(1,128)}', space=vmem, size = 0x9000, scoped, tag = 'internal scratch']
  %s0 = inlined_call_operand.vmem [shape: bf16[16,2304], index: 0, kind: input, shape index: {}]
  %s1 = inlined_call_operand.vmem [shape: bf16[2304,600], index: 1, kind: input, shape index: {}]
  %s2 = inlined_call_operand.vmem [shape: f32[1,600], index: 2, kind: input, shape index: {}]
  %s3 = inlined_call_operand.vmem [shape: bf16[600,120], index: 3, kind: input, shape index: {}]
  %s4 = inlined_call_operand.vmem [shape: f32[1,120], index: 4, kind: input, shape index: {}]
  %s5 = inlined_call_operand.vmem [shape: bf16[120,10], index: 5, kind: input, shape index: {}]
  %s6 = inlined_call_operand.vmem [shape: f32[1,10], index: 6, kind: input, shape index: {}]
  %s7 = inlined_call_operand.vmem [shape: f32[16,10], index: 7, kind: output, shape index: {}]
  %s8 = sld [smem:[#allocation0]]
  $region38: #{fashion_cnn_forward.5} parent=0
    _
  %s10 = ssub.s32 1, %s8
  %s11 = scalar_select 0, %s10, %s8
  // Predicated region
  $region2: #{fashion_cnn_forward.5} parent=0 // pred_check
    _
  $region3: #{fashion_cnn_forward.5} parent=0 // pred_check_branch
    %13 = sbr.rel (0) target = $region5
  $region4: #{fashion_cnn_forward.5} parent=0 // pred_region
    _
  $region5: #{fashion_cnn_forward.5} parent=0 // pred_fallthru
    _
  // Predicated region
  $region6: #{fashion_cnn_forward.5} parent=0 // pred_check
    _
  $region7: #{fashion_cnn_forward.5} parent=0 // pred_check_branch
    %15 = sbr.rel (0) target = $region9
  $region8: #{fashion_cnn_forward.5} parent=0 // pred_region
    _
  $region9: #{fashion_cnn_forward.5} parent=0 // pred_fallthru
    _
  // Predicated region
  $region10: #{fashion_cnn_forward.5} parent=0 // pred_check
    _
  $region11: #{fashion_cnn_forward.5} parent=0 // pred_check_branch
    %17 = sbr.rel (0) target = $region13
  $region12: #{fashion_cnn_forward.5} parent=0 // pred_region
    _
  $region13: #{fashion_cnn_forward.5} parent=0 // pred_fallthru
    _
  // Predicated region
  $region14: #{fashion_cnn_forward.5} parent=0 // pred_check
    _
  $region15: #{fashion_cnn_forward.5} parent=0 // pred_check_branch
    %19 = sbr.rel (0) target = $region17
  $region16: #{fashion_cnn_forward.5} parent=0 // pred_region
    _
  $region17: #{fashion_cnn_forward.5} parent=0 // pred_fallthru
    _
  // Predicated region
  $region18: #{fashion_cnn_forward.5} parent=0 // pred_check
    _
  $region19: #{fashion_cnn_forward.5} parent=0 // pred_check_branch
    %21 = sbr.rel (0) target = $region21
  $region20: #{fashion_cnn_forward.5} parent=0 // pred_region
    _
  $region21: #{fashion_cnn_forward.5} parent=0 // pred_fallthru
    _
  // Predicated region
  $region22: #{fashion_cnn_forward.5} parent=0 // pred_check
    _
  $region23: #{fashion_cnn_forward.5} parent=0 // pred_check_branch
    %23 = sbr.rel (0) target = $region25
  $region24: #{fashion_cnn_forward.5} parent=0 // pred_region
    _
  $region25: #{fashion_cnn_forward.5} parent=0 // pred_fallthru
    _
  // Predicated region
  $region26: #{fashion_cnn_forward.5} parent=0 // pred_check
    _
  $region27: #{fashion_cnn_forward.5} parent=0 // pred_check_branch
    %25 = sbr.rel (0) target = $region29
  $region28: #{fashion_cnn_forward.5} parent=0 // pred_region
    _
  $region29: #{fashion_cnn_forward.5} parent=0 // pred_fallthru
    _
  %v27 = vld [vmem:[%s0] sm:$0xff]
  %v28 = vld [vmem:[%s0 + $0x8] sm:$0xff]
  %v29 = vld [vmem:[%s0 + $0x10] sm:$0xff]
  %v30 = vld [vmem:[%s0 + $0x18] sm:$0xff]
  %v31 = vld [vmem:[%s0 + $0x20] sm:$0xff]
  %v32 = vld [vmem:[%s0 + $0x28] sm:$0xff]
  %v33 = vld [vmem:[%s0 + $0x30] sm:$0xff]
  %v34 = vld [vmem:[%s0 + $0x38] sm:$0xff]
  %v35 = vld [vmem:[%s0 + $0x40] sm:$0xff]
  %v36 = vld [vmem:[%s0 + $0x48] sm:$0xff]
  %v37 = vld [vmem:[%s0 + $0x50] sm:$0xff]
  %v38 = vld [vmem:[%s0 + $0x58] sm:$0xff]
  %v39 = vld [vmem:[%s0 + $0x60] sm:$0xff]
  %v40 = vld [vmem:[%s0 + $0x68] sm:$0xff]
  %v41 = vld [vmem:[%s0 + $0x70] sm:$0xff]
  %v42 = vld [vmem:[%s0 + $0x78] sm:$0xff]
  %v43 = vld [vmem:[%s0 + $0x80] sm:$0xff]
  %v44 = vld [vmem:[%s0 + $0x88] sm:$0xff]
  %v45 = vld [vmem:[%s1] sm:$0xff]
  %v46 = vld [vmem:[%s1 + $0x8] sm:$0xff]
  %v47 = vld [vmem:[%s1 + $0x10] sm:$0xf]
  %v48 = vld [vmem:[%s1 + $0x14] sm:$0xff]
  %v49 = vld [vmem:[%s1 + $0x1c] sm:$0xff]
  %v50 = vld [vmem:[%s1 + $0x24] sm:$0xf]
  %v51 = vld [vmem:[%s1 + $0x28] sm:$0xff]
  %v52 = vld [vmem:[%s1 + $0x30] sm:$0xff]
  %v53 = vld [vmem:[%s1 + $0x38] sm:$0xf]
  %v54 = vld [vmem:[%s1 + $0x3c] sm:$0xff]
  %v55 = vld [vmem:[%s1 + $0x44] sm:$0xff]
  %v56 = vld [vmem:[%s1 + $0x4c] sm:$0xf]
  %v57 = vld [vmem:[%s1 + $0x50] sm:$0xff]
  %v58 = vld [vmem:[%s1 + $0x58] sm:$0xff]
  %v59 = vld [vmem:[%s1 + $0x60] sm:$0xf]
  %v60 = vld [vmem:[%s1 + $0x64] sm:$0xff]
  %v61 = vld [vmem:[%s1 + $0x6c] sm:$0xff]
  %v62 = vld [vmem:[%s1 + $0x74] sm:$0xf]
  %v63 = vld [vmem:[%s1 + $0x78] sm:$0xff]
  %v64 = vld [vmem:[%s1 + $0x80] sm:$0xff]
  %v65 = vld [vmem:[%s1 + $0x88] sm:$0xf]
  %v66 = vld [vmem:[%s1 + $0x8c] sm:$0xff]
  %v67 = vld [vmem:[%s1 + $0x94] sm:$0xff]
  %v68 = vld [vmem:[%s1 + $0x9c] sm:$0xf]
  %v69 = vld [vmem:[%s1 + $0xa0] sm:$0xff]
  %v70 = vld [vmem:[%s1 + $0xa8] sm:$0xff]
  %v71 = vld [vmem:[%s1 + $0xb0] sm:$0xf]
  %v72 = vld [vmem:[%s1 + $0xb4] sm:$0xff]
  %v73 = vld [vmem:[%s1 + $0xbc] sm:$0xff]
  %v74 = vld [vmem:[%s1 + $0xc4] sm:$0xf]
  %v75 = vld [vmem:[%s1 + $0xc8] sm:$0xff]
  %v76 = vld [vmem:[%s1 + $0xd0] sm:$0xff]
  %v77 = vld [vmem:[%s1 + $0xd8] sm:$0xf]
  %v78 = vld [vmem:[%s1 + $0xdc] sm:$0xff]
  %v79 = vld [vmem:[%s1 + $0xe4] sm:$0xff]
  %v80 = vld [vmem:[%s1 + $0xec] sm:$0xf]
  %v81 = vld [vmem:[%s1 + $0xf0] sm:$0xff]
  %v82 = vld [vmem:[%s1 + $0xf8] sm:$0xff]
  %v83 = vld [vmem:[%s1 + $0x100] sm:$0xf]
  %v84 = vld [vmem:[%s1 + $0x104] sm:$0xff]
  %v85 = vld [vmem:[%s1 + $0x10c] sm:$0xff]
  %v86 = vld [vmem:[%s1 + $0x114] sm:$0xf]
  %v87 = vld [vmem:[%s1 + $0x118] sm:$0xff]
  %v88 = vld [vmem:[%s1 + $0x120] sm:$0xff]
  %v89 = vld [vmem:[%s1 + $0x128] sm:$0xf]
  %v90 = vld [vmem:[%s1 + $0x12c] sm:$0xff]
  %v91 = vld [vmem:[%s1 + $0x134] sm:$0xff]
  %v92 = vld [vmem:[%s1 + $0x13c] sm:$0xf]
  %v93 = vld [vmem:[%s1 + $0x140] sm:$0xff]
  %v94 = vld [vmem:[%s1 + $0x148] sm:$0xff]
  %v95 = vld [vmem:[%s1 + $0x150] sm:$0xf]
  %v96 = vld [vmem:[%s1 + $0x154] sm:$0xff]
  %v97 = vld [vmem:[%s1 + $0x15c] sm:$0xff]
  %v98 = vld [vmem:[%s1 + $0x164] sm:$0xf]
  %v99 = vld [vmem:[%s1 + $0x168] sm:$0xff]
  %v100 = vld [vmem:[%s1 + $0x170] sm:$0xff]
  %v101 = vld [vmem:[%s1 + $0x178] sm:$0xf]
  %v102 = vld [vmem:[%s1 + $0x17c] sm:$0xff]
  %v103 = vld [vmem:[%s1 + $0x184] sm:$0xff]
  %v104 = vld [vmem:[%s1 + $0x18c] sm:$0xf]
  %v105 = vld [vmem:[%s1 + $0x190] sm:$0xff]
  %v106 = vld [vmem:[%s1 + $0x198] sm:$0xff]
  %v107 = vld [vmem:[%s1 + $0x1a0] sm:$0xf]
  %v108 = vld [vmem:[%s1 + $0x1a4] sm:$0xff]
  %v109 = vld [vmem:[%s1 + $0x1ac] sm:$0xff]
  %v110 = vld [vmem:[%s1 + $0x1b4] sm:$0xf]
  %v111 = vld [vmem:[%s1 + $0x1b8] sm:$0xff]
  %v112 = vld [vmem:[%s1 + $0x1c0] sm:$0xff]
  %v113 = vld [vmem:[%s1 + $0x1c8] sm:$0xf]
  %v114 = vld [vmem:[%s1 + $0x1cc] sm:$0xff]
  %v115 = vld [vmem:[%s1 + $0x1d4] sm:$0xff]
  %v116 = vld [vmem:[%s1 + $0x1dc] sm:$0xf]
  %v117 = vld [vmem:[%s1 + $0x1e0] sm:$0xff]
  %v118 = vld [vmem:[%s1 + $0x1e8] sm:$0xff]
  %v119 = vld [vmem:[%s1 + $0x1f0] sm:$0xf]
  %v120 = vld [vmem:[%s1 + $0x1f4] sm:$0xff]
  %v121 = vld [vmem:[%s1 + $0x1fc] sm:$0xff]
  %v122 = vld [vmem:[%s1 + $0x204] sm:$0xf]
  %v123 = vld [vmem:[%s1 + $0x208] sm:$0xff]
  %v124 = vld [vmem:[%s1 + $0x210] sm:$0xff]
  %v125 = vld [vmem:[%s1 + $0x218] sm:$0xf]
  %v126 = vld [vmem:[%s1 + $0x21c] sm:$0xff]
  %v127 = vld [vmem:[%s1 + $0x224] sm:$0xff]
  %v128 = vld [vmem:[%s1 + $0x22c] sm:$0xf]
  %v129 = vld [vmem:[%s1 + $0x230] sm:$0xff]
  %v130 = vld [vmem:[%s1 + $0x238] sm:$0xff]
  %v131 = vld [vmem:[%s1 + $0x240] sm:$0xf]
  %v132 = vld [vmem:[%s1 + $0x244] sm:$0xff]
  %v133 = vld [vmem:[%s1 + $0x24c] sm:$0xff]
  %v134 = vld [vmem:[%s1 + $0x254] sm:$0xf]
  %v135 = vld [vmem:[%s1 + $0x258] sm:$0xff]
  %v136 = vld [vmem:[%s1 + $0x260] sm:$0xff]
  %v137 = vld [vmem:[%s1 + $0x268] sm:$0xf]
  %v138 = vld [vmem:[%s1 + $0x26c] sm:$0xff]
  %v139 = vld [vmem:[%s1 + $0x274] sm:$0xff]
  %v140 = vld [vmem:[%s1 + $0x27c] sm:$0xf]
  %v141 = vld [vmem:[%s1 + $0x280] sm:$0xff]
  %v142 = vld [vmem:[%s1 + $0x288] sm:$0xff]
  %v143 = vld [vmem:[%s1 + $0x290] sm:$0xf]
  %v144 = vld [vmem:[%s1 + $0x294] sm:$0xff]
  %v145 = vld [vmem:[%s1 + $0x29c] sm:$0xff]
  %v146 = vld [vmem:[%s1 + $0x2a4] sm:$0xf]
  %v147 = vld [vmem:[%s1 + $0x2a8] sm:$0xff]
  %v148 = vld [vmem:[%s1 + $0x2b0] sm:$0xff]
  %v149 = vld [vmem:[%s1 + $0x2b8] sm:$0xf]
  %v150 = vld [vmem:[%s1 + $0x2bc] sm:$0xff]
  %v151 = vld [vmem:[%s1 + $0x2c4] sm:$0xff]
  %v152 = vld [vmem:[%s1 + $0x2cc] sm:$0xf]
  %v153 = vld [vmem:[%s1 + $0x2d0] sm:$0xff]
  %v154 = vld [vmem:[%s1 + $0x2d8] sm:$0xff]
  %v155 = vld [vmem:[%s1 + $0x2e0] sm:$0xf]
  %v156 = vld [vmem:[%s1 + $0x2e4] sm:$0xff]
  %v157 = vld [vmem:[%s1 + $0x2ec] sm:$0xff]
  %v158 = vld [vmem:[%s1 + $0x2f4] sm:$0xf]
  %v159 = vld [vmem:[%s1 + $0x2f8] sm:$0xff]
  %v160 = vld [vmem:[%s1 + $0x300] sm:$0xff]
  %v161 = vld [vmem:[%s1 + $0x308] sm:$0xf]
  %v162 = vld [vmem:[%s1 + $0x30c] sm:$0xff]
  %v163 = vld [vmem:[%s1 + $0x314] sm:$0xff]
  %v164 = vld [vmem:[%s1 + $0x31c] sm:$0xf]
  %v165 = vld [vmem:[%s1 + $0x320] sm:$0xff]
  %v166 = vld [vmem:[%s1 + $0x328] sm:$0xff]
  %v167 = vld [vmem:[%s1 + $0x330] sm:$0xf]
  %v168 = vld [vmem:[%s1 + $0x334] sm:$0xff]
  %v169 = vld [vmem:[%s1 + $0x33c] sm:$0xff]
  %v170 = vld [vmem:[%s1 + $0x344] sm:$0xf]
  %v171 = vld [vmem:[%s1 + $0x348] sm:$0xff]
  %v172 = vld [vmem:[%s1 + $0x350] sm:$0xff]
  %v173 = vld [vmem:[%s1 + $0x358] sm:$0xf]
  %v174 = vld [vmem:[%s1 + $0x35c] sm:$0xff]
  %v175 = vld [vmem:[%s1 + $0x364] sm:$0xff]
  %v176 = vld [vmem:[%s1 + $0x36c] sm:$0xf]
  %v177 = vld [vmem:[%s1 + $0x370] sm:$0xff]
  %v178 = vld [vmem:[%s1 + $0x378] sm:$0xff]
  %v179 = vld [vmem:[%s1 + $0x380] sm:$0xf]
  %v180 = vld [vmem:[%s1 + $0x384] sm:$0xff]
  %v181 = vld [vmem:[%s1 + $0x38c] sm:$0xff]
  %v182 = vld [vmem:[%s1 + $0x394] sm:$0xf]
  %v183 = vld [vmem:[%s1 + $0x398] sm:$0xff]
  %v184 = vld [vmem:[%s1 + $0x3a0] sm:$0xff]
  %v185 = vld [vmem:[%s1 + $0x3a8] sm:$0xf]
  %v186 = vld [vmem:[%s1 + $0x3ac] sm:$0xff]
  %v187 = vld [vmem:[%s1 + $0x3b4] sm:$0xff]
  %v188 = vld [vmem:[%s1 + $0x3bc] sm:$0xf]
  %v189 = vld [vmem:[%s1 + $0x3c0] sm:$0xff]
  %v190 = vld [vmem:[%s1 + $0x3c8] sm:$0xff]
  %v191 = vld [vmem:[%s1 + $0x3d0] sm:$0xf]
  %v192 = vld [vmem:[%s1 + $0x3d4] sm:$0xff]
  %v193 = vld [vmem:[%s1 + $0x3dc] sm:$0xff]
  %v194 = vld [vmem:[%s1 + $0x3e4] sm:$0xf]
  %v195 = vld [vmem:[%s1 + $0x3e8] sm:$0xff]
  %v196 = vld [vmem:[%s1 + $0x3f0] sm:$0xff]
  %v197 = vld [vmem:[%s1 + $0x3f8] sm:$0xf]
  %v198 = vld [vmem:[%s1 + $0x3fc] sm:$0xff]
  %v199 = vld [vmem:[%s1 + $0x404] sm:$0xff]
  %v200 = vld [vmem:[%s1 + $0x40c] sm:$0xf]
  %v201 = vld [vmem:[%s1 + $0x410] sm:$0xff]
  %v202 = vld [vmem:[%s1 + $0x418] sm:$0xff]
  %v203 = vld [vmem:[%s1 + $0x420] sm:$0xf]
  %v204 = vld [vmem:[%s1 + $0x424] sm:$0xff]
  %v205 = vld [vmem:[%s1 + $0x42c] sm:$0xff]
  %v206 = vld [vmem:[%s1 + $0x434] sm:$0xf]
  %v207 = vld [vmem:[%s1 + $0x438] sm:$0xff]
  %v208 = vld [vmem:[%s1 + $0x440] sm:$0xff]
  %v209 = vld [vmem:[%s1 + $0x448] sm:$0xf]
  %v210 = vld [vmem:[%s1 + $0x44c] sm:$0xff]
  %v211 = vld [vmem:[%s1 + $0x454] sm:$0xff]
  %v212 = vld [vmem:[%s1 + $0x45c] sm:$0xf]
  %v213 = vld [vmem:[%s1 + $0x460] sm:$0xff]
  %v214 = vld [vmem:[%s1 + $0x468] sm:$0xff]
  %v215 = vld [vmem:[%s1 + $0x470] sm:$0xf]
  %v216 = vld [vmem:[%s1 + $0x474] sm:$0xff]
  %v217 = vld [vmem:[%s1 + $0x47c] sm:$0xff]
  %v218 = vld [vmem:[%s1 + $0x484] sm:$0xf]
  %v219 = vld [vmem:[%s1 + $0x488] sm:$0xff]
  %v220 = vld [vmem:[%s1 + $0x490] sm:$0xff]
  %v221 = vld [vmem:[%s1 + $0x498] sm:$0xf]
  %v222 = vld [vmem:[%s1 + $0x49c] sm:$0xff]
  %v223 = vld [vmem:[%s1 + $0x4a4] sm:$0xff]
  %v224 = vld [vmem:[%s1 + $0x4ac] sm:$0xf]
  %v225 = vld [vmem:[%s1 + $0x4b0] sm:$0xff]
  %v226 = vld [vmem:[%s1 + $0x4b8] sm:$0xff]
  %v227 = vld [vmem:[%s1 + $0x4c0] sm:$0xf]
  %v228 = vld [vmem:[%s1 + $0x4c4] sm:$0xff]
  %v229 = vld [vmem:[%s1 + $0x4cc] sm:$0xff]
  %v230 = vld [vmem:[%s1 + $0x4d4] sm:$0xf]
  %v231 = vld [vmem:[%s1 + $0x4d8] sm:$0xff]
  %v232 = vld [vmem:[%s1 + $0x4e0] sm:$0xff]
  %v233 = vld [vmem:[%s1 + $0x4e8] sm:$0xf]
  %v234 = vld [vmem:[%s1 + $0x4ec] sm:$0xff]
  %v235 = vld [vmem:[%s1 + $0x4f4] sm:$0xff]
  %v236 = vld [vmem:[%s1 + $0x4fc] sm:$0xf]
  %v237 = vld [vmem:[%s1 + $0x500] sm:$0xff]
  %v238 = vld [vmem:[%s1 + $0x508] sm:$0xff]
  %v239 = vld [vmem:[%s1 + $0x510] sm:$0xf]
  %v240 = vld [vmem:[%s1 + $0x514] sm:$0xff]
  %v241 = vld [vmem:[%s1 + $0x51c] sm:$0xff]
  %v242 = vld [vmem:[%s1 + $0x524] sm:$0xf]
  %v243 = vld [vmem:[%s1 + $0x528] sm:$0xff]
  %v244 = vld [vmem:[%s1 + $0x530] sm:$0xff]
  %v245 = vld [vmem:[%s1 + $0x538] sm:$0xf]
  %v246 = vld [vmem:[%s1 + $0x53c] sm:$0xff]
  %v247 = vld [vmem:[%s1 + $0x544] sm:$0xff]
  %v248 = vld [vmem:[%s1 + $0x54c] sm:$0xf]
  %v249 = vld [vmem:[%s1 + $0x550] sm:$0xff]
  %v250 = vld [vmem:[%s1 + $0x558] sm:$0xff]
  %v251 = vld [vmem:[%s1 + $0x560] sm:$0xf]
  %v252 = vld [vmem:[%s1 + $0x564] sm:$0xff]
  %v253 = vld [vmem:[%s1 + $0x56c] sm:$0xff]
  %v254 = vld [vmem:[%s1 + $0x574] sm:$0xf]
  %v255 = vld [vmem:[%s1 + $0x578] sm:$0xff]
  %v256 = vld [vmem:[%s1 + $0x580] sm:$0xff]
  %v257 = vld [vmem:[%s1 + $0x588] sm:$0xf]
  %v258 = vld [vmem:[%s1 + $0x58c] sm:$0xff]
  %v259 = vld [vmem:[%s1 + $0x594] sm:$0xff]
  %v260 = vld [vmem:[%s1 + $0x59c] sm:$0xf]
  %v261 = vld [vmem:[%s1 + $0x5a0] sm:$0xff]
  %v262 = vld [vmem:[%s1 + $0x5a8] sm:$0xff]
  %v263 = vld [vmem:[%s1 + $0x5b0] sm:$0xf]
  %v264 = vld [vmem:[%s1 + $0x5b4] sm:$0xff]
  %v265 = vld [vmem:[%s1 + $0x5bc] sm:$0xff]
  %v266 = vld [vmem:[%s1 + $0x5c4] sm:$0xf]
  %v267 = vld [vmem:[%s1 + $0x5c8] sm:$0xff]
  %v268 = vld [vmem:[%s1 + $0x5d0] sm:$0xff]
  %v269 = vld [vmem:[%s1 + $0x5d8] sm:$0xf]
  %v270 = vld [vmem:[%s1 + $0x5dc] sm:$0xff]
  %v271 = vld [vmem:[%s1 + $0x5e4] sm:$0xff]
  %v272 = vld [vmem:[%s1 + $0x5ec] sm:$0xf]
  %v273 = vld [vmem:[%s1 + $0x5f0] sm:$0xff]
  %v274 = vld [vmem:[%s1 + $0x5f8] sm:$0xff]
  %v275 = vld [vmem:[%s1 + $0x600] sm:$0xf]
  %v276 = vld [vmem:[%s1 + $0x604] sm:$0xff]
  %v277 = vld [vmem:[%s1 + $0x60c] sm:$0xff]
  %v278 = vld [vmem:[%s1 + $0x614] sm:$0xf]
  %v279 = vld [vmem:[%s1 + $0x618] sm:$0xff]
  %v280 = vld [vmem:[%s1 + $0x620] sm:$0xff]
  %v281 = vld [vmem:[%s1 + $0x628] sm:$0xf]
  %v282 = vld [vmem:[%s1 + $0x62c] sm:$0xff]
  %v283 = vld [vmem:[%s1 + $0x634] sm:$0xff]
  %v284 = vld [vmem:[%s1 + $0x63c] sm:$0xf]
  %v285 = vld [vmem:[%s1 + $0x640] sm:$0xff]
  %v286 = vld [vmem:[%s1 + $0x648] sm:$0xff]
  %v287 = vld [vmem:[%s1 + $0x650] sm:$0xf]
  %v288 = vld [vmem:[%s1 + $0x654] sm:$0xff]
  %v289 = vld [vmem:[%s1 + $0x65c] sm:$0xff]
  %v290 = vld [vmem:[%s1 + $0x664] sm:$0xf]
  %v291 = vld [vmem:[%s1 + $0x668] sm:$0xff]
  %v292 = vld [vmem:[%s1 + $0x670] sm:$0xff]
  %v293 = vld [vmem:[%s1 + $0x678] sm:$0xf]
  %v294 = vld [vmem:[%s1 + $0x67c] sm:$0xff]
  %v295 = vld [vmem:[%s1 + $0x684] sm:$0xff]
  %v296 = vld [vmem:[%s1 + $0x68c] sm:$0xf]
  %v297 = vld [vmem:[%s1 + $0x690] sm:$0xff]
  %v298 = vld [vmem:[%s1 + $0x698] sm:$0xff]
  %v299 = vld [vmem:[%s1 + $0x6a0] sm:$0xf]
  %v300 = vld [vmem:[%s1 + $0x6a4] sm:$0xff]
  %v301 = vld [vmem:[%s1 + $0x6ac] sm:$0xff]
  %v302 = vld [vmem:[%s1 + $0x6b4] sm:$0xf]
  %v303 = vld [vmem:[%s1 + $0x6b8] sm:$0xff]
  %v304 = vld [vmem:[%s1 + $0x6c0] sm:$0xff]
  %v305 = vld [vmem:[%s1 + $0x6c8] sm:$0xf]
  %v306 = vld [vmem:[%s1 + $0x6cc] sm:$0xff]
  %v307 = vld [vmem:[%s1 + $0x6d4] sm:$0xff]
  %v308 = vld [vmem:[%s1 + $0x6dc] sm:$0xf]
  %v309 = vld [vmem:[%s1 + $0x6e0] sm:$0xff]
  %v310 = vld [vmem:[%s1 + $0x6e8] sm:$0xff]
  %v311 = vld [vmem:[%s1 + $0x6f0] sm:$0xf]
  %v312 = vld [vmem:[%s1 + $0x6f4] sm:$0xff]
  %v313 = vld [vmem:[%s1 + $0x6fc] sm:$0xff]
  %v314 = vld [vmem:[%s1 + $0x704] sm:$0xf]
  %v315 = vld [vmem:[%s1 + $0x708] sm:$0xff]
  %v316 = vld [vmem:[%s1 + $0x710] sm:$0xff]
  %v317 = vld [vmem:[%s1 + $0x718] sm:$0xf]
  %v318 = vld [vmem:[%s1 + $0x71c] sm:$0xff]
  %v319 = vld [vmem:[%s1 + $0x724] sm:$0xff]
  %v320 = vld [vmem:[%s1 + $0x72c] sm:$0xf]
  %v321 = vld [vmem:[%s1 + $0x730] sm:$0xff]
  %v322 = vld [vmem:[%s1 + $0x738] sm:$0xff]
  %v323 = vld [vmem:[%s1 + $0x740] sm:$0xf]
  %v324 = vld [vmem:[%s1 + $0x744] sm:$0xff]
  %v325 = vld [vmem:[%s1 + $0x74c] sm:$0xff]
  %v326 = vld [vmem:[%s1 + $0x754] sm:$0xf]
  %v327 = vld [vmem:[%s1 + $0x758] sm:$0xff]
  %v328 = vld [vmem:[%s1 + $0x760] sm:$0xff]
  %v329 = vld [vmem:[%s1 + $0x768] sm:$0xf]
  %v330 = vld [vmem:[%s1 + $0x76c] sm:$0xff]
  %v331 = vld [vmem:[%s1 + $0x774] sm:$0xff]
  %v332 = vld [vmem:[%s1 + $0x77c] sm:$0xf]
  %v333 = vld [vmem:[%s1 + $0x780] sm:$0xff]
  %v334 = vld [vmem:[%s1 + $0x788] sm:$0xff]
  %v335 = vld [vmem:[%s1 + $0x790] sm:$0xf]
  %v336 = vld [vmem:[%s1 + $0x794] sm:$0xff]
  %v337 = vld [vmem:[%s1 + $0x79c] sm:$0xff]
  %v338 = vld [vmem:[%s1 + $0x7a4] sm:$0xf]
  %v339 = vld [vmem:[%s1 + $0x7a8] sm:$0xff]
  %v340 = vld [vmem:[%s1 + $0x7b0] sm:$0xff]
  %v341 = vld [vmem:[%s1 + $0x7b8] sm:$0xf]
  %v342 = vld [vmem:[%s1 + $0x7bc] sm:$0xff]
  %v343 = vld [vmem:[%s1 + $0x7c4] sm:$0xff]
  %v344 = vld [vmem:[%s1 + $0x7cc] sm:$0xf]
  %v345 = vld [vmem:[%s1 + $0x7d0] sm:$0xff]
  %v346 = vld [vmem:[%s1 + $0x7d8] sm:$0xff]
  %v347 = vld [vmem:[%s1 + $0x7e0] sm:$0xf]
  %v348 = vld [vmem:[%s1 + $0x7e4] sm:$0xff]
  %v349 = vld [vmem:[%s1 + $0x7ec] sm:$0xff]
  %v350 = vld [vmem:[%s1 + $0x7f4] sm:$0xf]
  %v351 = vld [vmem:[%s1 + $0x7f8] sm:$0xff]
  %v352 = vld [vmem:[%s1 + $0x800] sm:$0xff]
  %v353 = vld [vmem:[%s1 + $0x808] sm:$0xf]
  %v354 = vld [vmem:[%s1 + $0x80c] sm:$0xff]
  %v355 = vld [vmem:[%s1 + $0x814] sm:$0xff]
  %v356 = vld [vmem:[%s1 + $0x81c] sm:$0xf]
  %v357 = vld [vmem:[%s1 + $0x820] sm:$0xff]
  %v358 = vld [vmem:[%s1 + $0x828] sm:$0xff]
  %v359 = vld [vmem:[%s1 + $0x830] sm:$0xf]
  %v360 = vld [vmem:[%s1 + $0x834] sm:$0xff]
  %v361 = vld [vmem:[%s1 + $0x83c] sm:$0xff]
  %v362 = vld [vmem:[%s1 + $0x844] sm:$0xf]
  %v363 = vld [vmem:[%s1 + $0x848] sm:$0xff]
  %v364 = vld [vmem:[%s1 + $0x850] sm:$0xff]
  %v365 = vld [vmem:[%s1 + $0x858] sm:$0xf]
  %v366 = vld [vmem:[%s1 + $0x85c] sm:$0xff]
  %v367 = vld [vmem:[%s1 + $0x864] sm:$0xff]
  %v368 = vld [vmem:[%s1 + $0x86c] sm:$0xf]
  %v369 = vld [vmem:[%s1 + $0x870] sm:$0xff]
  %v370 = vld [vmem:[%s1 + $0x878] sm:$0xff]
  %v371 = vld [vmem:[%s1 + $0x880] sm:$0xf]
  %v372 = vld [vmem:[%s1 + $0x884] sm:$0xff]
  %v373 = vld [vmem:[%s1 + $0x88c] sm:$0xff]
  %v374 = vld [vmem:[%s1 + $0x894] sm:$0xf]
  %v375 = vld [vmem:[%s1 + $0x898] sm:$0xff]
  %v376 = vld [vmem:[%s1 + $0x8a0] sm:$0xff]
  %v377 = vld [vmem:[%s1 + $0x8a8] sm:$0xf]
  %v378 = vld [vmem:[%s1 + $0x8ac] sm:$0xff]
  %v379 = vld [vmem:[%s1 + $0x8b4] sm:$0xff]
  %v380 = vld [vmem:[%s1 + $0x8bc] sm:$0xf]
  %v381 = vld [vmem:[%s1 + $0x8c0] sm:$0xff]
  %v382 = vld [vmem:[%s1 + $0x8c8] sm:$0xff]
  %v383 = vld [vmem:[%s1 + $0x8d0] sm:$0xf]
  %v384 = vld [vmem:[%s1 + $0x8d4] sm:$0xff]
  %v385 = vld [vmem:[%s1 + $0x8dc] sm:$0xff]
  %v386 = vld [vmem:[%s1 + $0x8e4] sm:$0xf]
  %v387 = vld [vmem:[%s1 + $0x8e8] sm:$0xff]
  %v388 = vld [vmem:[%s1 + $0x8f0] sm:$0xff]
  %v389 = vld [vmem:[%s1 + $0x8f8] sm:$0xf]
  %v390 = vld [vmem:[%s1 + $0x8fc] sm:$0xff]
  %v391 = vld [vmem:[%s1 + $0x904] sm:$0xff]
  %v392 = vld [vmem:[%s1 + $0x90c] sm:$0xf]
  %v393 = vld [vmem:[%s1 + $0x910] sm:$0xff]
  %v394 = vld [vmem:[%s1 + $0x918] sm:$0xff]
  %v395 = vld [vmem:[%s1 + $0x920] sm:$0xf]
  %v396 = vld [vmem:[%s1 + $0x924] sm:$0xff]
  %v397 = vld [vmem:[%s1 + $0x92c] sm:$0xff]
  %v398 = vld [vmem:[%s1 + $0x934] sm:$0xf]
  %v399 = vld [vmem:[%s1 + $0x938] sm:$0xff]
  %v400 = vld [vmem:[%s1 + $0x940] sm:$0xff]
  %v401 = vld [vmem:[%s1 + $0x948] sm:$0xf]
  %v402 = vld [vmem:[%s1 + $0x94c] sm:$0xff]
  %v403 = vld [vmem:[%s1 + $0x954] sm:$0xff]
  %v404 = vld [vmem:[%s1 + $0x95c] sm:$0xf]
  %v405 = vld [vmem:[%s1 + $0x960] sm:$0xff]
  %v406 = vld [vmem:[%s1 + $0x968] sm:$0xff]
  %v407 = vld [vmem:[%s1 + $0x970] sm:$0xf]
  %v408 = vld [vmem:[%s1 + $0x974] sm:$0xff]
  %v409 = vld [vmem:[%s1 + $0x97c] sm:$0xff]
  %v410 = vld [vmem:[%s1 + $0x984] sm:$0xf]
  %v411 = vld [vmem:[%s1 + $0x988] sm:$0xff]
  %v412 = vld [vmem:[%s1 + $0x990] sm:$0xff]
  %v413 = vld [vmem:[%s1 + $0x998] sm:$0xf]
  %v414 = vld [vmem:[%s1 + $0x99c] sm:$0xff]
  %v415 = vld [vmem:[%s1 + $0x9a4] sm:$0xff]
  %v416 = vld [vmem:[%s1 + $0x9ac] sm:$0xf]
  %v417 = vld [vmem:[%s1 + $0x9b0] sm:$0xff]
  %v418 = vld [vmem:[%s1 + $0x9b8] sm:$0xff]
  %v419 = vld [vmem:[%s1 + $0x9c0] sm:$0xf]
  %v420 = vld [vmem:[%s1 + $0x9c4] sm:$0xff]
  %v421 = vld [vmem:[%s1 + $0x9cc] sm:$0xff]
  %v422 = vld [vmem:[%s1 + $0x9d4] sm:$0xf]
  %v423 = vld [vmem:[%s1 + $0x9d8] sm:$0xff]
  %v424 = vld [vmem:[%s1 + $0x9e0] sm:$0xff]
  %v425 = vld [vmem:[%s1 + $0x9e8] sm:$0xf]
  %v426 = vld [vmem:[%s1 + $0x9ec] sm:$0xff]
  %v427 = vld [vmem:[%s1 + $0x9f4] sm:$0xff]
  %v428 = vld [vmem:[%s1 + $0x9fc] sm:$0xf]
  %v429 = vld [vmem:[%s1 + $0xa00] sm:$0xff]
  %v430 = vld [vmem:[%s1 + $0xa08] sm:$0xff]
  %v431 = vld [vmem:[%s1 + $0xa10] sm:$0xf]
  %v432 = vld [vmem:[%s1 + $0xa14] sm:$0xff]
  %v433 = vld [vmem:[%s1 + $0xa1c] sm:$0xff]
  %v434 = vld [vmem:[%s1 + $0xa24] sm:$0xf]
  %v435 = vld [vmem:[%s1 + $0xa28] sm:$0xff]
  %v436 = vld [vmem:[%s1 + $0xa30] sm:$0xff]
  %v437 = vld [vmem:[%s1 + $0xa38] sm:$0xf]
  %v438 = vld [vmem:[%s1 + $0xa3c] sm:$0xff]
  %v439 = vld [vmem:[%s1 + $0xa44] sm:$0xff]
  %v440 = vld [vmem:[%s1 + $0xa4c] sm:$0xf]
  %v441 = vld [vmem:[%s1 + $0xa50] sm:$0xff]
  %v442 = vld [vmem:[%s1 + $0xa58] sm:$0xff]
  %v443 = vld [vmem:[%s1 + $0xa60] sm:$0xf]
  %v444 = vld [vmem:[%s1 + $0xa64] sm:$0xff]
  %v445 = vld [vmem:[%s1 + $0xa6c] sm:$0xff]
  %v446 = vld [vmem:[%s1 + $0xa74] sm:$0xf]
  %v447 = vld [vmem:[%s1 + $0xa78] sm:$0xff]
  %v448 = vld [vmem:[%s1 + $0xa80] sm:$0xff]
  %v449 = vld [vmem:[%s1 + $0xa88] sm:$0xf]
  %v450 = vld [vmem:[%s1 + $0xa8c] sm:$0xff]
  %v451 = vld [vmem:[%s1 + $0xa94] sm:$0xff]
  %v452 = vld [vmem:[%s1 + $0xa9c] sm:$0xf]
  %v453 = vld [vmem:[%s1 + $0xaa0] sm:$0xff]
  %v454 = vld [vmem:[%s1 + $0xaa8] sm:$0xff]
  %v455 = vld [vmem:[%s1 + $0xab0] sm:$0xf]
  %v456 = vld [vmem:[%s1 + $0xab4] sm:$0xff]
  %v457 = vld [vmem:[%s1 + $0xabc] sm:$0xff]
  %v458 = vld [vmem:[%s1 + $0xac4] sm:$0xf]
  %v459 = vld [vmem:[%s1 + $0xac8] sm:$0xff]
  %v460 = vld [vmem:[%s1 + $0xad0] sm:$0xff]
  %v461 = vld [vmem:[%s1 + $0xad8] sm:$0xf]
  %v462 = vld [vmem:[%s1 + $0xadc] sm:$0xff]
  %v463 = vld [vmem:[%s1 + $0xae4] sm:$0xff]
  %v464 = vld [vmem:[%s1 + $0xaec] sm:$0xf]
  %v465 = vld [vmem:[%s1 + $0xaf0] sm:$0xff]
  %v466 = vld [vmem:[%s1 + $0xaf8] sm:$0xff]
  %v467 = vld [vmem:[%s1 + $0xb00] sm:$0xf]
  %v468 = vld [vmem:[%s1 + $0xb04] sm:$0xff]
  %v469 = vld [vmem:[%s1 + $0xb0c] sm:$0xff]
  %v470 = vld [vmem:[%s1 + $0xb14] sm:$0xf]
  %v471 = vld [vmem:[%s1 + $0xb18] sm:$0xff]
  %v472 = vld [vmem:[%s1 + $0xb20] sm:$0xff]
  %v473 = vld [vmem:[%s1 + $0xb28] sm:$0xf]
  %v474 = vld [vmem:[%s1 + $0xb2c] sm:$0xff]
  %v475 = vld [vmem:[%s1 + $0xb34] sm:$0xff]
  %v476 = vld [vmem:[%s1 + $0xb3c] sm:$0xf]
  %v477 = vld [vmem:[%s1 + $0xb40] sm:$0xff]
  %v478 = vld [vmem:[%s1 + $0xb48] sm:$0xff]
  %v479 = vld [vmem:[%s1 + $0xb50] sm:$0xf]
  %v480 = vld [vmem:[%s1 + $0xb54] sm:$0xff]
  %v481 = vld [vmem:[%s1 + $0xb5c] sm:$0xff]
  %v482 = vld [vmem:[%s1 + $0xb64] sm:$0xf]
  %v483 = vld [vmem:[%s1 + $0xb68] sm:$0xff]
  %v484 = vld [vmem:[%s1 + $0xb70] sm:$0xff]
  %v485 = vld [vmem:[%s1 + $0xb78] sm:$0xf]
  %v486 = vld [vmem:[%s1 + $0xb7c] sm:$0xff]
  %v487 = vld [vmem:[%s1 + $0xb84] sm:$0xff]
  %v488 = vld [vmem:[%s1 + $0xb8c] sm:$0xf]
  %v489 = vld [vmem:[%s1 + $0xb90] sm:$0xff]
  %v490 = vld [vmem:[%s1 + $0xb98] sm:$0xff]
  %v491 = vld [vmem:[%s1 + $0xba0] sm:$0xf]
  %v492 = vld [vmem:[%s1 + $0xba4] sm:$0xff]
  %v493 = vld [vmem:[%s1 + $0xbac] sm:$0xff]
  %v494 = vld [vmem:[%s1 + $0xbb4] sm:$0xf]
  %v495 = vld [vmem:[%s1 + $0xbb8] sm:$0xff]
  %v496 = vld [vmem:[%s1 + $0xbc0] sm:$0xff]
  %v497 = vld [vmem:[%s1 + $0xbc8] sm:$0xf]
  %v498 = vld [vmem:[%s1 + $0xbcc] sm:$0xff]
  %v499 = vld [vmem:[%s1 + $0xbd4] sm:$0xff]
  %v500 = vld [vmem:[%s1 + $0xbdc] sm:$0xf]
  %v501 = vld [vmem:[%s1 + $0xbe0] sm:$0xff]
  %v502 = vld [vmem:[%s1 + $0xbe8] sm:$0xff]
  %v503 = vld [vmem:[%s1 + $0xbf0] sm:$0xf]
  %v504 = vld [vmem:[%s1 + $0xbf4] sm:$0xff]
  %v505 = vld [vmem:[%s1 + $0xbfc] sm:$0xff]
  %v506 = vld [vmem:[%s1 + $0xc04] sm:$0xf]
  %v507 = vld [vmem:[%s1 + $0xc08] sm:$0xff]
  %v508 = vld [vmem:[%s1 + $0xc10] sm:$0xff]
  %v509 = vld [vmem:[%s1 + $0xc18] sm:$0xf]
  %v510 = vld [vmem:[%s1 + $0xc1c] sm:$0xff]
  %v511 = vld [vmem:[%s1 + $0xc24] sm:$0xff]
  %v512 = vld [vmem:[%s1 + $0xc2c] sm:$0xf]
  %v513 = vld [vmem:[%s1 + $0xc30] sm:$0xff]
  %v514 = vld [vmem:[%s1 + $0xc38] sm:$0xff]
  %v515 = vld [vmem:[%s1 + $0xc40] sm:$0xf]
  %v516 = vld [vmem:[%s1 + $0xc44] sm:$0xff]
  %v517 = vld [vmem:[%s1 + $0xc4c] sm:$0xff]
  %v518 = vld [vmem:[%s1 + $0xc54] sm:$0xf]
  %v519 = vld [vmem:[%s1 + $0xc58] sm:$0xff]
  %v520 = vld [vmem:[%s1 + $0xc60] sm:$0xff]
  %v521 = vld [vmem:[%s1 + $0xc68] sm:$0xf]
  %v522 = vld [vmem:[%s1 + $0xc6c] sm:$0xff]
  %v523 = vld [vmem:[%s1 + $0xc74] sm:$0xff]
  %v524 = vld [vmem:[%s1 + $0xc7c] sm:$0xf]
  %v525 = vld [vmem:[%s1 + $0xc80] sm:$0xff]
  %v526 = vld [vmem:[%s1 + $0xc88] sm:$0xff]
  %v527 = vld [vmem:[%s1 + $0xc90] sm:$0xf]
  %v528 = vld [vmem:[%s1 + $0xc94] sm:$0xff]
  %v529 = vld [vmem:[%s1 + $0xc9c] sm:$0xff]
  %v530 = vld [vmem:[%s1 + $0xca4] sm:$0xf]
  %v531 = vld [vmem:[%s1 + $0xca8] sm:$0xff]
  %v532 = vld [vmem:[%s1 + $0xcb0] sm:$0xff]
  %v533 = vld [vmem:[%s1 + $0xcb8] sm:$0xf]
  %v534 = vld [vmem:[%s1 + $0xcbc] sm:$0xff]
  %v535 = vld [vmem:[%s1 + $0xcc4] sm:$0xff]
  %v536 = vld [vmem:[%s1 + $0xccc] sm:$0xf]
  %v537 = vld [vmem:[%s1 + $0xcd0] sm:$0xff]
  %v538 = vld [vmem:[%s1 + $0xcd8] sm:$0xff]
  %v539 = vld [vmem:[%s1 + $0xce0] sm:$0xf]
  %v540 = vld [vmem:[%s1 + $0xce4] sm:$0xff]
  %v541 = vld [vmem:[%s1 + $0xcec] sm:$0xff]
  %v542 = vld [vmem:[%s1 + $0xcf4] sm:$0xf]
  %v543 = vld [vmem:[%s1 + $0xcf8] sm:$0xff]
  %v544 = vld [vmem:[%s1 + $0xd00] sm:$0xff]
  %v545 = vld [vmem:[%s1 + $0xd08] sm:$0xf]
  %v546 = vld [vmem:[%s1 + $0xd0c] sm:$0xff]
  %v547 = vld [vmem:[%s1 + $0xd14] sm:$0xff]
  %v548 = vld [vmem:[%s1 + $0xd1c] sm:$0xf]
  %v549 = vld [vmem:[%s1 + $0xd20] sm:$0xff]
  %v550 = vld [vmem:[%s1 + $0xd28] sm:$0xff]
  %v551 = vld [vmem:[%s1 + $0xd30] sm:$0xf]
  %v552 = vld [vmem:[%s1 + $0xd34] sm:$0xff]
  %v553 = vld [vmem:[%s1 + $0xd3c] sm:$0xff]
  %v554 = vld [vmem:[%s1 + $0xd44] sm:$0xf]
  %v555 = vld [vmem:[%s1 + $0xd48] sm:$0xff]
  %v556 = vld [vmem:[%s1 + $0xd50] sm:$0xff]
  %v557 = vld [vmem:[%s1 + $0xd58] sm:$0xf]
  %v558 = vld [vmem:[%s1 + $0xd5c] sm:$0xff]
  %v559 = vld [vmem:[%s1 + $0xd64] sm:$0xff]
  %v560 = vld [vmem:[%s1 + $0xd6c] sm:$0xf]
  %v561 = vld [vmem:[%s1 + $0xd70] sm:$0xff]
  %v562 = vld [vmem:[%s1 + $0xd78] sm:$0xff]
  %v563 = vld [vmem:[%s1 + $0xd80] sm:$0xf]
  %v564 = vld [vmem:[%s1 + $0xd84] sm:$0xff]
  %v565 = vld [vmem:[%s1 + $0xd8c] sm:$0xff]
  %v566 = vld [vmem:[%s1 + $0xd94] sm:$0xf]
  %v567 = vld [vmem:[%s1 + $0xd98] sm:$0xff]
  %v568 = vld [vmem:[%s1 + $0xda0] sm:$0xff]
  %v569 = vld [vmem:[%s1 + $0xda8] sm:$0xf]
  %v570 = vld [vmem:[%s1 + $0xdac] sm:$0xff]
  %v571 = vld [vmem:[%s1 + $0xdb4] sm:$0xff]
  %v572 = vld [vmem:[%s1 + $0xdbc] sm:$0xf]
  %v573 = vld [vmem:[%s1 + $0xdc0] sm:$0xff]
  %v574 = vld [vmem:[%s1 + $0xdc8] sm:$0xff]
  %v575 = vld [vmem:[%s1 + $0xdd0] sm:$0xf]
  %v576 = vld [vmem:[%s1 + $0xdd4] sm:$0xff]
  %v577 = vld [vmem:[%s1 + $0xddc] sm:$0xff]
  %v578 = vld [vmem:[%s1 + $0xde4] sm:$0xf]
  %v579 = vld [vmem:[%s1 + $0xde8] sm:$0xff]
  %v580 = vld [vmem:[%s1 + $0xdf0] sm:$0xff]
  %v581 = vld [vmem:[%s1 + $0xdf8] sm:$0xf]
  %v582 = vld [vmem:[%s1 + $0xdfc] sm:$0xff]
  %v583 = vld [vmem:[%s1 + $0xe04] sm:$0xff]
  %v584 = vld [vmem:[%s1 + $0xe0c] sm:$0xf]
  %v585 = vld [vmem:[%s1 + $0xe10] sm:$0xff]
  %v586 = vld [vmem:[%s1 + $0xe18] sm:$0xff]
  %v587 = vld [vmem:[%s1 + $0xe20] sm:$0xf]
  %v588 = vld [vmem:[%s1 + $0xe24] sm:$0xff]
  %v589 = vld [vmem:[%s1 + $0xe2c] sm:$0xff]
  %v590 = vld [vmem:[%s1 + $0xe34] sm:$0xf]
  %v591 = vld [vmem:[%s1 + $0xe38] sm:$0xff]
  %v592 = vld [vmem:[%s1 + $0xe40] sm:$0xff]
  %v593 = vld [vmem:[%s1 + $0xe48] sm:$0xf]
  %v594 = vld [vmem:[%s1 + $0xe4c] sm:$0xff]
  %v595 = vld [vmem:[%s1 + $0xe54] sm:$0xff]
  %v596 = vld [vmem:[%s1 + $0xe5c] sm:$0xf]
  %v597 = vld [vmem:[%s1 + $0xe60] sm:$0xff]
  %v598 = vld [vmem:[%s1 + $0xe68] sm:$0xff]
  %v599 = vld [vmem:[%s1 + $0xe70] sm:$0xf]
  %v600 = vld [vmem:[%s1 + $0xe74] sm:$0xff]
  %v601 = vld [vmem:[%s1 + $0xe7c] sm:$0xff]
  %v602 = vld [vmem:[%s1 + $0xe84] sm:$0xf]
  %v603 = vld [vmem:[%s1 + $0xe88] sm:$0xff]
  %v604 = vld [vmem:[%s1 + $0xe90] sm:$0xff]
  %v605 = vld [vmem:[%s1 + $0xe98] sm:$0xf]
  %v606 = vld [vmem:[%s1 + $0xe9c] sm:$0xff]
  %v607 = vld [vmem:[%s1 + $0xea4] sm:$0xff]
  %v608 = vld [vmem:[%s1 + $0xeac] sm:$0xf]
  %v609 = vld [vmem:[%s1 + $0xeb0] sm:$0xff]
  %v610 = vld [vmem:[%s1 + $0xeb8] sm:$0xff]
  %v611 = vld [vmem:[%s1 + $0xec0] sm:$0xf]
  %v612 = vld [vmem:[%s1 + $0xec4] sm:$0xff]
  %v613 = vld [vmem:[%s1 + $0xecc] sm:$0xff]
  %v614 = vld [vmem:[%s1 + $0xed4] sm:$0xf]
  %v615 = vld [vmem:[%s1 + $0xed8] sm:$0xff]
  %v616 = vld [vmem:[%s1 + $0xee0] sm:$0xff]
  %v617 = vld [vmem:[%s1 + $0xee8] sm:$0xf]
  %v618 = vld [vmem:[%s1 + $0xeec] sm:$0xff]
  %v619 = vld [vmem:[%s1 + $0xef4] sm:$0xff]
  %v620 = vld [vmem:[%s1 + $0xefc] sm:$0xf]
  %v621 = vld [vmem:[%s1 + $0xf00] sm:$0xff]
  %v622 = vld [vmem:[%s1 + $0xf08] sm:$0xff]
  %v623 = vld [vmem:[%s1 + $0xf10] sm:$0xf]
  %v624 = vld [vmem:[%s1 + $0xf14] sm:$0xff]
  %v625 = vld [vmem:[%s1 + $0xf1c] sm:$0xff]
  %v626 = vld [vmem:[%s1 + $0xf24] sm:$0xf]
  %v627 = vld [vmem:[%s1 + $0xf28] sm:$0xff]
  %v628 = vld [vmem:[%s1 + $0xf30] sm:$0xff]
  %v629 = vld [vmem:[%s1 + $0xf38] sm:$0xf]
  %v630 = vld [vmem:[%s1 + $0xf3c] sm:$0xff]
  %v631 = vld [vmem:[%s1 + $0xf44] sm:$0xff]
  %v632 = vld [vmem:[%s1 + $0xf4c] sm:$0xf]
  %v633 = vld [vmem:[%s1 + $0xf50] sm:$0xff]
  %v634 = vld [vmem:[%s1 + $0xf58] sm:$0xff]
  %v635 = vld [vmem:[%s1 + $0xf60] sm:$0xf]
  %v636 = vld [vmem:[%s1 + $0xf64] sm:$0xff]
  %v637 = vld [vmem:[%s1 + $0xf6c] sm:$0xff]
  %v638 = vld [vmem:[%s1 + $0xf74] sm:$0xf]
  %v639 = vld [vmem:[%s1 + $0xf78] sm:$0xff]
  %v640 = vld [vmem:[%s1 + $0xf80] sm:$0xff]
  %v641 = vld [vmem:[%s1 + $0xf88] sm:$0xf]
  %v642 = vld [vmem:[%s1 + $0xf8c] sm:$0xff]
  %v643 = vld [vmem:[%s1 + $0xf94] sm:$0xff]
  %v644 = vld [vmem:[%s1 + $0xf9c] sm:$0xf]
  %v645 = vld [vmem:[%s1 + $0xfa0] sm:$0xff]
  %v646 = vld [vmem:[%s1 + $0xfa8] sm:$0xff]
  %v647 = vld [vmem:[%s1 + $0xfb0] sm:$0xf]
  %v648 = vld [vmem:[%s1 + $0xfb4] sm:$0xff]
  %v649 = vld [vmem:[%s1 + $0xfbc] sm:$0xff]
  %v650 = vld [vmem:[%s1 + $0xfc4] sm:$0xf]
  %v651 = vld [vmem:[%s1 + $0xfc8] sm:$0xff]
  %v652 = vld [vmem:[%s1 + $0xfd0] sm:$0xff]
  %v653 = vld [vmem:[%s1 + $0xfd8] sm:$0xf]
  %v654 = vld [vmem:[%s1 + $0xfdc] sm:$0xff]
  %v655 = vld [vmem:[%s1 + $0xfe4] sm:$0xff]
  %v656 = vld [vmem:[%s1 + $0xfec] sm:$0xf]
  %v657 = vld [vmem:[%s1 + $0xff0] sm:$0xff]
  %v658 = vld [vmem:[%s1 + $0xff8] sm:$0xff]
  %v659 = vld [vmem:[%s1 + $0x1000] sm:$0xf]
  %v660 = vld [vmem:[%s1 + $0x1004] sm:$0xff]
  %v661 = vld [vmem:[%s1 + $0x100c] sm:$0xff]
  %v662 = vld [vmem:[%s1 + $0x1014] sm:$0xf]
  %v663 = vld [vmem:[%s1 + $0x1018] sm:$0xff]
  %v664 = vld [vmem:[%s1 + $0x1020] sm:$0xff]
  %v665 = vld [vmem:[%s1 + $0x1028] sm:$0xf]
  %v666 = vld [vmem:[%s1 + $0x102c] sm:$0xff]
  %v667 = vld [vmem:[%s1 + $0x1034] sm:$0xff]
  %v668 = vld [vmem:[%s1 + $0x103c] sm:$0xf]
  %v669 = vld [vmem:[%s1 + $0x1040] sm:$0xff]
  %v670 = vld [vmem:[%s1 + $0x1048] sm:$0xff]
  %v671 = vld [vmem:[%s1 + $0x1050] sm:$0xf]
  %v672 = vld [vmem:[%s1 + $0x1054] sm:$0xff]
  %v673 = vld [vmem:[%s1 + $0x105c] sm:$0xff]
  %v674 = vld [vmem:[%s1 + $0x1064] sm:$0xf]
  %v675 = vld [vmem:[%s1 + $0x1068] sm:$0xff]
  %v676 = vld [vmem:[%s1 + $0x1070] sm:$0xff]
  %v677 = vld [vmem:[%s1 + $0x1078] sm:$0xf]
  %v678 = vld [vmem:[%s1 + $0x107c] sm:$0xff]
  %v679 = vld [vmem:[%s1 + $0x1084] sm:$0xff]
  %v680 = vld [vmem:[%s1 + $0x108c] sm:$0xf]
  %v681 = vld [vmem:[%s1 + $0x1090] sm:$0xff]
  %v682 = vld [vmem:[%s1 + $0x1098] sm:$0xff]
  %v683 = vld [vmem:[%s1 + $0x10a0] sm:$0xf]
  %v684 = vld [vmem:[%s1 + $0x10a4] sm:$0xff]
  %v685 = vld [vmem:[%s1 + $0x10ac] sm:$0xff]
  %v686 = vld [vmem:[%s1 + $0x10b4] sm:$0xf]
  %v687 = vld [vmem:[%s1 + $0x10b8] sm:$0xff]
  %v688 = vld [vmem:[%s1 + $0x10c0] sm:$0xff]
  %v689 = vld [vmem:[%s1 + $0x10c8] sm:$0xf]
  %v690 = vld [vmem:[%s1 + $0x10cc] sm:$0xff]
  %v691 = vld [vmem:[%s1 + $0x10d4] sm:$0xff]
  %v692 = vld [vmem:[%s1 + $0x10dc] sm:$0xf]
  %v693 = vld [vmem:[%s1 + $0x10e0] sm:$0xff]
  %v694 = vld [vmem:[%s1 + $0x10e8] sm:$0xff]
  %v695 = vld [vmem:[%s1 + $0x10f0] sm:$0xf]
  %v696 = vld [vmem:[%s1 + $0x10f4] sm:$0xff]
  %v697 = vld [vmem:[%s1 + $0x10fc] sm:$0xff]
  %v698 = vld [vmem:[%s1 + $0x1104] sm:$0xf]
  %v699 = vld [vmem:[%s1 + $0x1108] sm:$0xff]
  %v700 = vld [vmem:[%s1 + $0x1110] sm:$0xff]
  %v701 = vld [vmem:[%s1 + $0x1118] sm:$0xf]
  %v702 = vld [vmem:[%s1 + $0x111c] sm:$0xff]
  %v703 = vld [vmem:[%s1 + $0x1124] sm:$0xff]
  %v704 = vld [vmem:[%s1 + $0x112c] sm:$0xf]
  %v705 = vld [vmem:[%s1 + $0x1130] sm:$0xff]
  %v706 = vld [vmem:[%s1 + $0x1138] sm:$0xff]
  %v707 = vld [vmem:[%s1 + $0x1140] sm:$0xf]
  %v708 = vld [vmem:[%s1 + $0x1144] sm:$0xff]
  %v709 = vld [vmem:[%s1 + $0x114c] sm:$0xff]
  %v710 = vld [vmem:[%s1 + $0x1154] sm:$0xf]
  %v711 = vld [vmem:[%s1 + $0x1158] sm:$0xff]
  %v712 = vld [vmem:[%s1 + $0x1160] sm:$0xff]
  %v713 = vld [vmem:[%s1 + $0x1168] sm:$0xf]
  %v714 = vld [vmem:[%s1 + $0x116c] sm:$0xff]
  %v715 = vld [vmem:[%s1 + $0x1174] sm:$0xff]
  %v716 = vld [vmem:[%s1 + $0x117c] sm:$0xf]
  %v717 = vld [vmem:[%s1 + $0x1180] sm:$0xff]
  %v718 = vld [vmem:[%s1 + $0x1188] sm:$0xff]
  %v719 = vld [vmem:[%s1 + $0x1190] sm:$0xf]
  %v720 = vld [vmem:[%s1 + $0x1194] sm:$0xff]
  %v721 = vld [vmem:[%s1 + $0x119c] sm:$0xff]
  %v722 = vld [vmem:[%s1 + $0x11a4] sm:$0xf]
  %v723 = vld [vmem:[%s1 + $0x11a8] sm:$0xff]
  %v724 = vld [vmem:[%s1 + $0x11b0] sm:$0xff]
  %v725 = vld [vmem:[%s1 + $0x11b8] sm:$0xf]
  %v726 = vld [vmem:[%s1 + $0x11bc] sm:$0xff]
  %v727 = vld [vmem:[%s1 + $0x11c4] sm:$0xff]
  %v728 = vld [vmem:[%s1 + $0x11cc] sm:$0xf]
  %v729 = vld [vmem:[%s1 + $0x11d0] sm:$0xff]
  %v730 = vld [vmem:[%s1 + $0x11d8] sm:$0xff]
  %v731 = vld [vmem:[%s1 + $0x11e0] sm:$0xf]
  %v732 = vld [vmem:[%s1 + $0x11e4] sm:$0xff]
  %v733 = vld [vmem:[%s1 + $0x11ec] sm:$0xff]
  %v734 = vld [vmem:[%s1 + $0x11f4] sm:$0xf]
  %v735 = vld [vmem:[%s1 + $0x11f8] sm:$0xff]
  %v736 = vld [vmem:[%s1 + $0x1200] sm:$0xff]
  %v737 = vld [vmem:[%s1 + $0x1208] sm:$0xf]
  %v738 = vld [vmem:[%s1 + $0x120c] sm:$0xff]
  %v739 = vld [vmem:[%s1 + $0x1214] sm:$0xff]
  %v740 = vld [vmem:[%s1 + $0x121c] sm:$0xf]
  %v741 = vld [vmem:[%s1 + $0x1220] sm:$0xff]
  %v742 = vld [vmem:[%s1 + $0x1228] sm:$0xff]
  %v743 = vld [vmem:[%s1 + $0x1230] sm:$0xf]
  %v744 = vld [vmem:[%s1 + $0x1234] sm:$0xff]
  %v745 = vld [vmem:[%s1 + $0x123c] sm:$0xff]
  %v746 = vld [vmem:[%s1 + $0x1244] sm:$0xf]
  %v747 = vld [vmem:[%s1 + $0x1248] sm:$0xff]
  %v748 = vld [vmem:[%s1 + $0x1250] sm:$0xff]
  %v749 = vld [vmem:[%s1 + $0x1258] sm:$0xf]
  %v750 = vld [vmem:[%s1 + $0x125c] sm:$0xff]
  %v751 = vld [vmem:[%s1 + $0x1264] sm:$0xff]
  %v752 = vld [vmem:[%s1 + $0x126c] sm:$0xf]
  %v753 = vld [vmem:[%s1 + $0x1270] sm:$0xff]
  %v754 = vld [vmem:[%s1 + $0x1278] sm:$0xff]
  %v755 = vld [vmem:[%s1 + $0x1280] sm:$0xf]
  %v756 = vld [vmem:[%s1 + $0x1284] sm:$0xff]
  %v757 = vld [vmem:[%s1 + $0x128c] sm:$0xff]
  %v758 = vld [vmem:[%s1 + $0x1294] sm:$0xf]
  %v759 = vld [vmem:[%s1 + $0x1298] sm:$0xff]
  %v760 = vld [vmem:[%s1 + $0x12a0] sm:$0xff]
  %v761 = vld [vmem:[%s1 + $0x12a8] sm:$0xf]
  %v762 = vld [vmem:[%s1 + $0x12ac] sm:$0xff]
  %v763 = vld [vmem:[%s1 + $0x12b4] sm:$0xff]
  %v764 = vld [vmem:[%s1 + $0x12bc] sm:$0xf]
  %v765 = vld [vmem:[%s1 + $0x12c0] sm:$0xff]
  %v766 = vld [vmem:[%s1 + $0x12c8] sm:$0xff]
  %v767 = vld [vmem:[%s1 + $0x12d0] sm:$0xf]
  %v768 = vld [vmem:[%s1 + $0x12d4] sm:$0xff]
  %v769 = vld [vmem:[%s1 + $0x12dc] sm:$0xff]
  %v770 = vld [vmem:[%s1 + $0x12e4] sm:$0xf]
  %v771 = vld [vmem:[%s1 + $0x12e8] sm:$0xff]
  %v772 = vld [vmem:[%s1 + $0x12f0] sm:$0xff]
  %v773 = vld [vmem:[%s1 + $0x12f8] sm:$0xf]
  %v774 = vld [vmem:[%s1 + $0x12fc] sm:$0xff]
  %v775 = vld [vmem:[%s1 + $0x1304] sm:$0xff]
  %v776 = vld [vmem:[%s1 + $0x130c] sm:$0xf]
  %v777 = vld [vmem:[%s1 + $0x1310] sm:$0xff]
  %v778 = vld [vmem:[%s1 + $0x1318] sm:$0xff]
  %v779 = vld [vmem:[%s1 + $0x1320] sm:$0xf]
  %v780 = vld [vmem:[%s1 + $0x1324] sm:$0xff]
  %v781 = vld [vmem:[%s1 + $0x132c] sm:$0xff]
  %v782 = vld [vmem:[%s1 + $0x1334] sm:$0xf]
  %v783 = vld [vmem:[%s1 + $0x1338] sm:$0xff]
  %v784 = vld [vmem:[%s1 + $0x1340] sm:$0xff]
  %v785 = vld [vmem:[%s1 + $0x1348] sm:$0xf]
  %v786 = vld [vmem:[%s1 + $0x134c] sm:$0xff]
  %v787 = vld [vmem:[%s1 + $0x1354] sm:$0xff]
  %v788 = vld [vmem:[%s1 + $0x135c] sm:$0xf]
  %v789 = vld [vmem:[%s1 + $0x1360] sm:$0xff]
  %v790 = vld [vmem:[%s1 + $0x1368] sm:$0xff]
  %v791 = vld [vmem:[%s1 + $0x1370] sm:$0xf]
  %v792 = vld [vmem:[%s1 + $0x1374] sm:$0xff]
  %v793 = vld [vmem:[%s1 + $0x137c] sm:$0xff]
  %v794 = vld [vmem:[%s1 + $0x1384] sm:$0xf]
  %v795 = vld [vmem:[%s1 + $0x1388] sm:$0xff]
  %v796 = vld [vmem:[%s1 + $0x1390] sm:$0xff]
  %v797 = vld [vmem:[%s1 + $0x1398] sm:$0xf]
  %v798 = vld [vmem:[%s1 + $0x139c] sm:$0xff]
  %v799 = vld [vmem:[%s1 + $0x13a4] sm:$0xff]
  %v800 = vld [vmem:[%s1 + $0x13ac] sm:$0xf]
  %v801 = vld [vmem:[%s1 + $0x13b0] sm:$0xff]
  %v802 = vld [vmem:[%s1 + $0x13b8] sm:$0xff]
  %v803 = vld [vmem:[%s1 + $0x13c0] sm:$0xf]
  %v804 = vld [vmem:[%s1 + $0x13c4] sm:$0xff]
  %v805 = vld [vmem:[%s1 + $0x13cc] sm:$0xff]
  %v806 = vld [vmem:[%s1 + $0x13d4] sm:$0xf]
  %v807 = vld [vmem:[%s1 + $0x13d8] sm:$0xff]
  %v808 = vld [vmem:[%s1 + $0x13e0] sm:$0xff]
  %v809 = vld [vmem:[%s1 + $0x13e8] sm:$0xf]
  %v810 = vld [vmem:[%s1 + $0x13ec] sm:$0xff]
  %v811 = vld [vmem:[%s1 + $0x13f4] sm:$0xff]
  %v812 = vld [vmem:[%s1 + $0x13fc] sm:$0xf]
  %v813 = vld [vmem:[%s1 + $0x1400] sm:$0xff]
  %v814 = vld [vmem:[%s1 + $0x1408] sm:$0xff]
  %v815 = vld [vmem:[%s1 + $0x1410] sm:$0xf]
  %v816 = vld [vmem:[%s1 + $0x1414] sm:$0xff]
  %v817 = vld [vmem:[%s1 + $0x141c] sm:$0xff]
  %v818 = vld [vmem:[%s1 + $0x1424] sm:$0xf]
  %v819 = vld [vmem:[%s1 + $0x1428] sm:$0xff]
  %v820 = vld [vmem:[%s1 + $0x1430] sm:$0xff]
  %v821 = vld [vmem:[%s1 + $0x1438] sm:$0xf]
  %v822 = vld [vmem:[%s1 + $0x143c] sm:$0xff]
  %v823 = vld [vmem:[%s1 + $0x1444] sm:$0xff]
  %v824 = vld [vmem:[%s1 + $0x144c] sm:$0xf]
  %v825 = vld [vmem:[%s1 + $0x1450] sm:$0xff]
  %v826 = vld [vmem:[%s1 + $0x1458] sm:$0xff]
  %v827 = vld [vmem:[%s1 + $0x1460] sm:$0xf]
  %v828 = vld [vmem:[%s1 + $0x1464] sm:$0xff]
  %v829 = vld [vmem:[%s1 + $0x146c] sm:$0xff]
  %v830 = vld [vmem:[%s1 + $0x1474] sm:$0xf]
  %v831 = vld [vmem:[%s1 + $0x1478] sm:$0xff]
  %v832 = vld [vmem:[%s1 + $0x1480] sm:$0xff]
  %v833 = vld [vmem:[%s1 + $0x1488] sm:$0xf]
  %v834 = vld [vmem:[%s1 + $0x148c] sm:$0xff]
  %v835 = vld [vmem:[%s1 + $0x1494] sm:$0xff]
  %v836 = vld [vmem:[%s1 + $0x149c] sm:$0xf]
  %v837 = vld [vmem:[%s1 + $0x14a0] sm:$0xff]
  %v838 = vld [vmem:[%s1 + $0x14a8] sm:$0xff]
  %v839 = vld [vmem:[%s1 + $0x14b0] sm:$0xf]
  %v840 = vld [vmem:[%s1 + $0x14b4] sm:$0xff]
  %v841 = vld [vmem:[%s1 + $0x14bc] sm:$0xff]
  %v842 = vld [vmem:[%s1 + $0x14c4] sm:$0xf]
  %v843 = vld [vmem:[%s1 + $0x14c8] sm:$0xff]
  %v844 = vld [vmem:[%s1 + $0x14d0] sm:$0xff]
  %v845 = vld [vmem:[%s1 + $0x14d8] sm:$0xf]
  %v846 = vld [vmem:[%s1 + $0x14dc] sm:$0xff]
  %v847 = vld [vmem:[%s1 + $0x14e4] sm:$0xff]
  %v848 = vld [vmem:[%s1 + $0x14ec] sm:$0xf]
  %v849 = vld [vmem:[%s1 + $0x14f0] sm:$0xff]
  %v850 = vld [vmem:[%s1 + $0x14f8] sm:$0xff]
  %v851 = vld [vmem:[%s1 + $0x1500] sm:$0xf]
  %v852 = vld [vmem:[%s1 + $0x1504] sm:$0xff]
  %v853 = vld [vmem:[%s1 + $0x150c] sm:$0xff]
  %v854 = vld [vmem:[%s1 + $0x1514] sm:$0xf]
  %v855 = vld [vmem:[%s1 + $0x1518] sm:$0xff]
  %v856 = vld [vmem:[%s1 + $0x1520] sm:$0xff]
  %v857 = vld [vmem:[%s1 + $0x1528] sm:$0xf]
  %v858 = vld [vmem:[%s1 + $0x152c] sm:$0xff]
  %v859 = vld [vmem:[%s1 + $0x1534] sm:$0xff]
  %v860 = vld [vmem:[%s1 + $0x153c] sm:$0xf]
  %v861 = vld [vmem:[%s1 + $0x1540] sm:$0xff]
  %v862 = vld [vmem:[%s1 + $0x1548] sm:$0xff]
  %v863 = vld [vmem:[%s1 + $0x1550] sm:$0xf]
  %v864 = vld [vmem:[%s1 + $0x1554] sm:$0xff]
  %v865 = vld [vmem:[%s1 + $0x155c] sm:$0xff]
  %v866 = vld [vmem:[%s1 + $0x1564] sm:$0xf]
  %v867 = vld [vmem:[%s1 + $0x1568] sm:$0xff]
  %v868 = vld [vmem:[%s1 + $0x1570] sm:$0xff]
  %v869 = vld [vmem:[%s1 + $0x1578] sm:$0xf]
  %v870 = vld [vmem:[%s1 + $0x157c] sm:$0xff]
  %v871 = vld [vmem:[%s1 + $0x1584] sm:$0xff]
  %v872 = vld [vmem:[%s1 + $0x158c] sm:$0xf]
  %v873 = vld [vmem:[%s1 + $0x1590] sm:$0xff]
  %v874 = vld [vmem:[%s1 + $0x1598] sm:$0xff]
  %v875 = vld [vmem:[%s1 + $0x15a0] sm:$0xf]
  %v876 = vld [vmem:[%s1 + $0x15a4] sm:$0xff]
  %v877 = vld [vmem:[%s1 + $0x15ac] sm:$0xff]
  %v878 = vld [vmem:[%s1 + $0x15b4] sm:$0xf]
  %v879 = vld [vmem:[%s1 + $0x15b8] sm:$0xff]
  %v880 = vld [vmem:[%s1 + $0x15c0] sm:$0xff]
  %v881 = vld [vmem:[%s1 + $0x15c8] sm:$0xf]
  %v882 = vld [vmem:[%s1 + $0x15cc] sm:$0xff]
  %v883 = vld [vmem:[%s1 + $0x15d4] sm:$0xff]
  %v884 = vld [vmem:[%s1 + $0x15dc] sm:$0xf]
  %v885 = vld [vmem:[%s1 + $0x15e0] sm:$0xff]
  %v886 = vld [vmem:[%s1 + $0x15e8] sm:$0xff]
  %v887 = vld [vmem:[%s1 + $0x15f0] sm:$0xf]
  %v888 = vld [vmem:[%s1 + $0x15f4] sm:$0xff]
  %v889 = vld [vmem:[%s1 + $0x15fc] sm:$0xff]
  %v890 = vld [vmem:[%s1 + $0x1604] sm:$0xf]
  %v891 = vld [vmem:[%s1 + $0x1608] sm:$0xff]
  %v892 = vld [vmem:[%s1 + $0x1610] sm:$0xff]
  %v893 = vld [vmem:[%s1 + $0x1618] sm:$0xf]
  %v894 = vld [vmem:[%s1 + $0x161c] sm:$0xff]
  %v895 = vld [vmem:[%s1 + $0x1624] sm:$0xff]
  %v896 = vld [vmem:[%s1 + $0x162c] sm:$0xf]
  %v897 = vld [vmem:[%s1 + $0x1630] sm:$0xff]
  %v898 = vld [vmem:[%s1 + $0x1638] sm:$0xff]
  %v899 = vld [vmem:[%s1 + $0x1640] sm:$0xf]
  %v900 = vld [vmem:[%s1 + $0x1644] sm:$0xff]
  %v901 = vld [vmem:[%s1 + $0x164c] sm:$0xff]
  %v902 = vld [vmem:[%s1 + $0x1654] sm:$0xf]
  %v903 = vld [vmem:[%s1 + $0x1658] sm:$0xff]
  %v904 = vld [vmem:[%s1 + $0x1660] sm:$0xff]
  %v905 = vld [vmem:[%s1 + $0x1668] sm:$0xf]
  %v906 = vld [vmem:[%s1 + $0x166c] sm:$0xff]
  %v907 = vld [vmem:[%s1 + $0x1674] sm:$0xff]
  %v908 = vld [vmem:[%s1 + $0x167c] sm:$0xf]
  %v909 = vld [vmem:[%s2] sm:$0x1f]
  %v911 = vperm.slane %v909, 0
  %v912 = vperm.slane %v909, 1
  %v913 = vperm.slane %v909, 2
  %v914 = vperm.slane %v909, 3
  %v915 = vperm.slane %v909, 4
  %v939 = vunpack.c.l.b16 %v27
  %v940 = vunpack.c.h.b16 %v27
  %v941 = vunpack.c.l.b16 %v28
  %v942 = vunpack.c.h.b16 %v28
  %v943 = vunpack.c.l.b16 %v29
  %v944 = vunpack.c.h.b16 %v29
  %v945 = vunpack.c.l.b16 %v30
  %v946 = vunpack.c.h.b16 %v30
  %v947 = vunpack.c.l.b16 %v31
  %v948 = vunpack.c.h.b16 %v31
  %v949 = vunpack.c.l.b16 %v32
  %v950 = vunpack.c.h.b16 %v32
  %v951 = vunpack.c.l.b16 %v33
  %v952 = vunpack.c.h.b16 %v33
  %v953 = vunpack.c.l.b16 %v34
  %v954 = vunpack.c.h.b16 %v34
  %v955 = vunpack.c.l.b16 %v35
  %v956 = vunpack.c.h.b16 %v35
  %v957 = vunpack.c.l.b16 %v36
  %v958 = vunpack.c.h.b16 %v36
  %v959 = vunpack.c.l.b16 %v37
  %v960 = vunpack.c.h.b16 %v37
  %v961 = vunpack.c.l.b16 %v38
  %v962 = vunpack.c.h.b16 %v38
  %v963 = vunpack.c.l.b16 %v39
  %v964 = vunpack.c.h.b16 %v39
  %v965 = vunpack.c.l.b16 %v40
  %v966 = vunpack.c.h.b16 %v40
  %v967 = vunpack.c.l.b16 %v41
  %v968 = vunpack.c.h.b16 %v41
  %v969 = vunpack.c.l.b16 %v42
  %v970 = vunpack.c.h.b16 %v42
  %v971 = vunpack.c.l.b16 %v43
  %v972 = vunpack.c.h.b16 %v43
  %v973 = vunpack.c.l.b16 %v44
  %v974 = vunpack.c.h.b16 %v44
  %v975 = vpack.c.b16 %v957, %v939
  %v976 = vpack.c.b16 %v958, %v940
  %v977 = vpack.c.b16 %v959, %v941
  %v978 = vpack.c.b16 %v960, %v942
  %v979 = vpack.c.b16 %v961, %v943
  %v980 = vpack.c.b16 %v962, %v944
  %v981 = vpack.c.b16 %v963, %v945
  %v982 = vpack.c.b16 %v964, %v946
  %v983 = vpack.c.b16 %v965, %v947
  %v984 = vpack.c.b16 %v966, %v948
  %v985 = vpack.c.b16 %v967, %v949
  %v986 = vpack.c.b16 %v968, %v950
  %v987 = vpack.c.b16 %v969, %v951
  %v988 = vpack.c.b16 %v970, %v952
  %v989 = vpack.c.b16 %v971, %v953
  %v990 = vpack.c.b16 %v972, %v954
  %v991 = vpack.c.b16 %v973, %v955
  %v992 = vpack.c.b16 %v974, %v956
  %v1875 = vunpack.c.l.b16 %v45
  %v1876 = vunpack.c.h.b16 %v45
  %v1877 = vunpack.c.l.b16 %v46
  %v1878 = vunpack.c.h.b16 %v46
  %v1879 = vunpack.c.l.b16 %v47
  %v1880 = vunpack.c.l.b16 %v48
  %v1881 = vunpack.c.h.b16 %v48
  %v1882 = vunpack.c.l.b16 %v49
  %v1883 = vunpack.c.h.b16 %v49
  %v1884 = vunpack.c.l.b16 %v50
  %v1885 = vunpack.c.l.b16 %v51
  %v1886 = vunpack.c.h.b16 %v51
  %v1887 = vunpack.c.l.b16 %v52
  %v1888 = vunpack.c.h.b16 %v52
  %v1889 = vunpack.c.l.b16 %v53
  %v1890 = vunpack.c.l.b16 %v54
  %v1891 = vunpack.c.h.b16 %v54
  %v1892 = vunpack.c.l.b16 %v55
  %v1893 = vunpack.c.h.b16 %v55
  %v1894 = vunpack.c.l.b16 %v56
  %v1895 = vunpack.c.l.b16 %v57
  %v1896 = vunpack.c.h.b16 %v57
  %v1897 = vunpack.c.l.b16 %v58
  %v1898 = vunpack.c.h.b16 %v58
  %v1899 = vunpack.c.l.b16 %v59
  %v1900 = vunpack.c.l.b16 %v60
  %v1901 = vunpack.c.h.b16 %v60
  %v1902 = vunpack.c.l.b16 %v61
  %v1903 = vunpack.c.h.b16 %v61
  %v1904 = vunpack.c.l.b16 %v62
  %v1905 = vunpack.c.l.b16 %v63
  %v1906 = vunpack.c.h.b16 %v63
  %v1907 = vunpack.c.l.b16 %v64
  %v1908 = vunpack.c.h.b16 %v64
  %v1909 = vunpack.c.l.b16 %v65
  %v1910 = vunpack.c.l.b16 %v66
  %v1911 = vunpack.c.h.b16 %v66
  %v1912 = vunpack.c.l.b16 %v67
  %v1913 = vunpack.c.h.b16 %v67
  %v1914 = vunpack.c.l.b16 %v68
  %v1915 = vunpack.c.l.b16 %v69
  %v1916 = vunpack.c.h.b16 %v69
  %v1917 = vunpack.c.l.b16 %v70
  %v1918 = vunpack.c.h.b16 %v70
  %v1919 = vunpack.c.l.b16 %v71
  %v1920 = vunpack.c.l.b16 %v72
  %v1921 = vunpack.c.h.b16 %v72
  %v1922 = vunpack.c.l.b16 %v73
  %v1923 = vunpack.c.h.b16 %v73
  %v1924 = vunpack.c.l.b16 %v74
  %v1925 = vunpack.c.l.b16 %v75
  %v1926 = vunpack.c.h.b16 %v75
  %v1927 = vunpack.c.l.b16 %v76
  %v1928 = vunpack.c.h.b16 %v76
  %v1929 = vunpack.c.l.b16 %v77
  %v1930 = vunpack.c.l.b16 %v78
  %v1931 = vunpack.c.h.b16 %v78
  %v1932 = vunpack.c.l.b16 %v79
  %v1933 = vunpack.c.h.b16 %v79
  %v1934 = vunpack.c.l.b16 %v80
  %v1935 = vunpack.c.l.b16 %v81
  %v1936 = vunpack.c.h.b16 %v81
  %v1937 = vunpack.c.l.b16 %v82
  %v1938 = vunpack.c.h.b16 %v82
  %v1939 = vunpack.c.l.b16 %v83
  %v1940 = vunpack.c.l.b16 %v84
  %v1941 = vunpack.c.h.b16 %v84
  %v1942 = vunpack.c.l.b16 %v85
  %v1943 = vunpack.c.h.b16 %v85
  %v1944 = vunpack.c.l.b16 %v86
  %v1945 = vunpack.c.l.b16 %v87
  %v1946 = vunpack.c.h.b16 %v87
  %v1947 = vunpack.c.l.b16 %v88
  %v1948 = vunpack.c.h.b16 %v88
  %v1949 = vunpack.c.l.b16 %v89
  %v1950 = vunpack.c.l.b16 %v90
  %v1951 = vunpack.c.h.b16 %v90
  %v1952 = vunpack.c.l.b16 %v91
  %v1953 = vunpack.c.h.b16 %v91
  %v1954 = vunpack.c.l.b16 %v92
  %v1955 = vunpack.c.l.b16 %v93
  %v1956 = vunpack.c.h.b16 %v93
  %v1957 = vunpack.c.l.b16 %v94
  %v1958 = vunpack.c.h.b16 %v94
  %v1959 = vunpack.c.l.b16 %v95
  %v1960 = vunpack.c.l.b16 %v96
  %v1961 = vunpack.c.h.b16 %v96
  %v1962 = vunpack.c.l.b16 %v97
  %v1963 = vunpack.c.h.b16 %v97
  %v1964 = vunpack.c.l.b16 %v98
  %v1965 = vunpack.c.l.b16 %v99
  %v1966 = vunpack.c.h.b16 %v99
  %v1967 = vunpack.c.l.b16 %v100
  %v1968 = vunpack.c.h.b16 %v100
  %v1969 = vunpack.c.l.b16 %v101
  %v1970 = vunpack.c.l.b16 %v102
  %v1971 = vunpack.c.h.b16 %v102
  %v1972 = vunpack.c.l.b16 %v103
  %v1973 = vunpack.c.h.b16 %v103
  %v1974 = vunpack.c.l.b16 %v104
  %v1975 = vunpack.c.l.b16 %v105
  %v1976 = vunpack.c.h.b16 %v105
  %v1977 = vunpack.c.l.b16 %v106
  %v1978 = vunpack.c.h.b16 %v106
  %v1979 = vunpack.c.l.b16 %v107
  %v1980 = vunpack.c.l.b16 %v108
  %v1981 = vunpack.c.h.b16 %v108
  %v1982 = vunpack.c.l.b16 %v109
  %v1983 = vunpack.c.h.b16 %v109
  %v1984 = vunpack.c.l.b16 %v110
  %v1985 = vunpack.c.l.b16 %v111
  %v1986 = vunpack.c.h.b16 %v111
  %v1987 = vunpack.c.l.b16 %v112
  %v1988 = vunpack.c.h.b16 %v112
  %v1989 = vunpack.c.l.b16 %v113
  %v1990 = vunpack.c.l.b16 %v114
  %v1991 = vunpack.c.h.b16 %v114
  %v1992 = vunpack.c.l.b16 %v115
  %v1993 = vunpack.c.h.b16 %v115
  %v1994 = vunpack.c.l.b16 %v116
  %v1995 = vunpack.c.l.b16 %v117
  %v1996 = vunpack.c.h.b16 %v117
  %v1997 = vunpack.c.l.b16 %v118
  %v1998 = vunpack.c.h.b16 %v118
  %v1999 = vunpack.c.l.b16 %v119
  %v2000 = vunpack.c.l.b16 %v120
  %v2001 = vunpack.c.h.b16 %v120
  %v2002 = vunpack.c.l.b16 %v121
  %v2003 = vunpack.c.h.b16 %v121
  %v2004 = vunpack.c.l.b16 %v122
  %v2005 = vunpack.c.l.b16 %v123
  %v2006 = vunpack.c.h.b16 %v123
  %v2007 = vunpack.c.l.b16 %v124
  %v2008 = vunpack.c.h.b16 %v124
  %v2009 = vunpack.c.l.b16 %v125
  %v2010 = vunpack.c.l.b16 %v126
  %v2011 = vunpack.c.h.b16 %v126
  %v2012 = vunpack.c.l.b16 %v127
  %v2013 = vunpack.c.h.b16 %v127
  %v2014 = vunpack.c.l.b16 %v128
  %v2015 = vunpack.c.l.b16 %v129
  %v2016 = vunpack.c.h.b16 %v129
  %v2017 = vunpack.c.l.b16 %v130
  %v2018 = vunpack.c.h.b16 %v130
  %v2019 = vunpack.c.l.b16 %v131
  %v2020 = vunpack.c.l.b16 %v132
  %v2021 = vunpack.c.h.b16 %v132
  %v2022 = vunpack.c.l.b16 %v133
  %v2023 = vunpack.c.h.b16 %v133
  %v2024 = vunpack.c.l.b16 %v134
  %v2025 = vunpack.c.l.b16 %v135
  %v2026 = vunpack.c.h.b16 %v135
  %v2027 = vunpack.c.l.b16 %v136
  %v2028 = vunpack.c.h.b16 %v136
  %v2029 = vunpack.c.l.b16 %v137
  %v2030 = vunpack.c.l.b16 %v138
  %v2031 = vunpack.c.h.b16 %v138
  %v2032 = vunpack.c.l.b16 %v139
  %v2033 = vunpack.c.h.b16 %v139
  %v2034 = vunpack.c.l.b16 %v140
  %v2035 = vunpack.c.l.b16 %v141
  %v2036 = vunpack.c.h.b16 %v141
  %v2037 = vunpack.c.l.b16 %v142
  %v2038 = vunpack.c.h.b16 %v142
  %v2039 = vunpack.c.l.b16 %v143
  %v2040 = vunpack.c.l.b16 %v144
  %v2041 = vunpack.c.h.b16 %v144
  %v2042 = vunpack.c.l.b16 %v145
  %v2043 = vunpack.c.h.b16 %v145
  %v2044 = vunpack.c.l.b16 %v146
  %v2045 = vunpack.c.l.b16 %v147
  %v2046 = vunpack.c.h.b16 %v147
  %v2047 = vunpack.c.l.b16 %v148
  %v2048 = vunpack.c.h.b16 %v148
  %v2049 = vunpack.c.l.b16 %v149
  %v2050 = vunpack.c.l.b16 %v150
  %v2051 = vunpack.c.h.b16 %v150
  %v2052 = vunpack.c.l.b16 %v151
  %v2053 = vunpack.c.h.b16 %v151
  %v2054 = vunpack.c.l.b16 %v152
  %v2055 = vunpack.c.l.b16 %v153
  %v2056 = vunpack.c.h.b16 %v153
  %v2057 = vunpack.c.l.b16 %v154
  %v2058 = vunpack.c.h.b16 %v154
  %v2059 = vunpack.c.l.b16 %v155
  %v2060 = vunpack.c.l.b16 %v156
  %v2061 = vunpack.c.h.b16 %v156
  %v2062 = vunpack.c.l.b16 %v157
  %v2063 = vunpack.c.h.b16 %v157
  %v2064 = vunpack.c.l.b16 %v158
  %v2065 = vunpack.c.l.b16 %v159
  %v2066 = vunpack.c.h.b16 %v159
  %v2067 = vunpack.c.l.b16 %v160
  %v2068 = vunpack.c.h.b16 %v160
  %v2069 = vunpack.c.l.b16 %v161
  %v2070 = vunpack.c.l.b16 %v162
  %v2071 = vunpack.c.h.b16 %v162
  %v2072 = vunpack.c.l.b16 %v163
  %v2073 = vunpack.c.h.b16 %v163
  %v2074 = vunpack.c.l.b16 %v164
  %v2075 = vunpack.c.l.b16 %v165
  %v2076 = vunpack.c.h.b16 %v165
  %v2077 = vunpack.c.l.b16 %v166
  %v2078 = vunpack.c.h.b16 %v166
  %v2079 = vunpack.c.l.b16 %v167
  %v2080 = vunpack.c.l.b16 %v168
  %v2081 = vunpack.c.h.b16 %v168
  %v2082 = vunpack.c.l.b16 %v169
  %v2083 = vunpack.c.h.b16 %v169
  %v2084 = vunpack.c.l.b16 %v170
  %v2085 = vunpack.c.l.b16 %v171
  %v2086 = vunpack.c.h.b16 %v171
  %v2087 = vunpack.c.l.b16 %v172
  %v2088 = vunpack.c.h.b16 %v172
  %v2089 = vunpack.c.l.b16 %v173
  %v2090 = vunpack.c.l.b16 %v174
  %v2091 = vunpack.c.h.b16 %v174
  %v2092 = vunpack.c.l.b16 %v175
  %v2093 = vunpack.c.h.b16 %v175
  %v2094 = vunpack.c.l.b16 %v176
  %v2095 = vunpack.c.l.b16 %v177
  %v2096 = vunpack.c.h.b16 %v177
  %v2097 = vunpack.c.l.b16 %v178
  %v2098 = vunpack.c.h.b16 %v178
  %v2099 = vunpack.c.l.b16 %v179
  %v2100 = vunpack.c.l.b16 %v180
  %v2101 = vunpack.c.h.b16 %v180
  %v2102 = vunpack.c.l.b16 %v181
  %v2103 = vunpack.c.h.b16 %v181
  %v2104 = vunpack.c.l.b16 %v182
  %v2105 = vunpack.c.l.b16 %v183
  %v2106 = vunpack.c.h.b16 %v183
  %v2107 = vunpack.c.l.b16 %v184
  %v2108 = vunpack.c.h.b16 %v184
  %v2109 = vunpack.c.l.b16 %v185
  %v2110 = vunpack.c.l.b16 %v186
  %v2111 = vunpack.c.h.b16 %v186
  %v2112 = vunpack.c.l.b16 %v187
  %v2113 = vunpack.c.h.b16 %v187
  %v2114 = vunpack.c.l.b16 %v188
  %v2115 = vunpack.c.l.b16 %v189
  %v2116 = vunpack.c.h.b16 %v189
  %v2117 = vunpack.c.l.b16 %v190
  %v2118 = vunpack.c.h.b16 %v190
  %v2119 = vunpack.c.l.b16 %v191
  %v2120 = vunpack.c.l.b16 %v192
  %v2121 = vunpack.c.h.b16 %v192
  %v2122 = vunpack.c.l.b16 %v193
  %v2123 = vunpack.c.h.b16 %v193
  %v2124 = vunpack.c.l.b16 %v194
  %v2125 = vunpack.c.l.b16 %v195
  %v2126 = vunpack.c.h.b16 %v195
  %v2127 = vunpack.c.l.b16 %v196
  %v2128 = vunpack.c.h.b16 %v196
  %v2129 = vunpack.c.l.b16 %v197
  %v2130 = vunpack.c.l.b16 %v198
  %v2131 = vunpack.c.h.b16 %v198
  %v2132 = vunpack.c.l.b16 %v199
  %v2133 = vunpack.c.h.b16 %v199
  %v2134 = vunpack.c.l.b16 %v200
  %v2135 = vunpack.c.l.b16 %v201
  %v2136 = vunpack.c.h.b16 %v201
  %v2137 = vunpack.c.l.b16 %v202
  %v2138 = vunpack.c.h.b16 %v202
  %v2139 = vunpack.c.l.b16 %v203
  %v2140 = vunpack.c.l.b16 %v204
  %v2141 = vunpack.c.h.b16 %v204
  %v2142 = vunpack.c.l.b16 %v205
  %v2143 = vunpack.c.h.b16 %v205
  %v2144 = vunpack.c.l.b16 %v206
  %v2145 = vunpack.c.l.b16 %v207
  %v2146 = vunpack.c.h.b16 %v207
  %v2147 = vunpack.c.l.b16 %v208
  %v2148 = vunpack.c.h.b16 %v208
  %v2149 = vunpack.c.l.b16 %v209
  %v2150 = vunpack.c.l.b16 %v210
  %v2151 = vunpack.c.h.b16 %v210
  %v2152 = vunpack.c.l.b16 %v211
  %v2153 = vunpack.c.h.b16 %v211
  %v2154 = vunpack.c.l.b16 %v212
  %v2155 = vunpack.c.l.b16 %v213
  %v2156 = vunpack.c.h.b16 %v213
  %v2157 = vunpack.c.l.b16 %v214
  %v2158 = vunpack.c.h.b16 %v214
  %v2159 = vunpack.c.l.b16 %v215
  %v2160 = vunpack.c.l.b16 %v216
  %v2161 = vunpack.c.h.b16 %v216
  %v2162 = vunpack.c.l.b16 %v217
  %v2163 = vunpack.c.h.b16 %v217
  %v2164 = vunpack.c.l.b16 %v218
  %v2165 = vunpack.c.l.b16 %v219
  %v2166 = vunpack.c.h.b16 %v219
  %v2167 = vunpack.c.l.b16 %v220
  %v2168 = vunpack.c.h.b16 %v220
  %v2169 = vunpack.c.l.b16 %v221
  %v2170 = vunpack.c.l.b16 %v222
  %v2171 = vunpack.c.h.b16 %v222
  %v2172 = vunpack.c.l.b16 %v223
  %v2173 = vunpack.c.h.b16 %v223
  %v2174 = vunpack.c.l.b16 %v224
  %v2175 = vunpack.c.l.b16 %v225
  %v2176 = vunpack.c.h.b16 %v225
  %v2177 = vunpack.c.l.b16 %v226
  %v2178 = vunpack.c.h.b16 %v226
  %v2179 = vunpack.c.l.b16 %v227
  %v2180 = vunpack.c.l.b16 %v228
  %v2181 = vunpack.c.h.b16 %v228
  %v2182 = vunpack.c.l.b16 %v229
  %v2183 = vunpack.c.h.b16 %v229
  %v2184 = vunpack.c.l.b16 %v230
  %v2185 = vunpack.c.l.b16 %v231
  %v2186 = vunpack.c.h.b16 %v231
  %v2187 = vunpack.c.l.b16 %v232
  %v2188 = vunpack.c.h.b16 %v232
  %v2189 = vunpack.c.l.b16 %v233
  %v2190 = vunpack.c.l.b16 %v234
  %v2191 = vunpack.c.h.b16 %v234
  %v2192 = vunpack.c.l.b16 %v235
  %v2193 = vunpack.c.h.b16 %v235
  %v2194 = vunpack.c.l.b16 %v236
  %v2195 = vunpack.c.l.b16 %v237
  %v2196 = vunpack.c.h.b16 %v237
  %v2197 = vunpack.c.l.b16 %v238
  %v2198 = vunpack.c.h.b16 %v238
  %v2199 = vunpack.c.l.b16 %v239
  %v2200 = vunpack.c.l.b16 %v240
  %v2201 = vunpack.c.h.b16 %v240
  %v2202 = vunpack.c.l.b16 %v241
  %v2203 = vunpack.c.h.b16 %v241
  %v2204 = vunpack.c.l.b16 %v242
  %v2205 = vunpack.c.l.b16 %v243
  %v2206 = vunpack.c.h.b16 %v243
  %v2207 = vunpack.c.l.b16 %v244
  %v2208 = vunpack.c.h.b16 %v244
  %v2209 = vunpack.c.l.b16 %v245
  %v2210 = vunpack.c.l.b16 %v246
  %v2211 = vunpack.c.h.b16 %v246
  %v2212 = vunpack.c.l.b16 %v247
  %v2213 = vunpack.c.h.b16 %v247
  %v2214 = vunpack.c.l.b16 %v248
  %v2215 = vunpack.c.l.b16 %v249
  %v2216 = vunpack.c.h.b16 %v249
  %v2217 = vunpack.c.l.b16 %v250
  %v2218 = vunpack.c.h.b16 %v250
  %v2219 = vunpack.c.l.b16 %v251
  %v2220 = vunpack.c.l.b16 %v252
  %v2221 = vunpack.c.h.b16 %v252
  %v2222 = vunpack.c.l.b16 %v253
  %v2223 = vunpack.c.h.b16 %v253
  %v2224 = vunpack.c.l.b16 %v254
  %v2225 = vunpack.c.l.b16 %v255
  %v2226 = vunpack.c.h.b16 %v255
  %v2227 = vunpack.c.l.b16 %v256
  %v2228 = vunpack.c.h.b16 %v256
  %v2229 = vunpack.c.l.b16 %v257
  %v2230 = vunpack.c.l.b16 %v258
  %v2231 = vunpack.c.h.b16 %v258
  %v2232 = vunpack.c.l.b16 %v259
  %v2233 = vunpack.c.h.b16 %v259
  %v2234 = vunpack.c.l.b16 %v260
  %v2235 = vunpack.c.l.b16 %v261
  %v2236 = vunpack.c.h.b16 %v261
  %v2237 = vunpack.c.l.b16 %v262
  %v2238 = vunpack.c.h.b16 %v262
  %v2239 = vunpack.c.l.b16 %v263
  %v2240 = vunpack.c.l.b16 %v264
  %v2241 = vunpack.c.h.b16 %v264
  %v2242 = vunpack.c.l.b16 %v265
  %v2243 = vunpack.c.h.b16 %v265
  %v2244 = vunpack.c.l.b16 %v266
  %v2245 = vunpack.c.l.b16 %v267
  %v2246 = vunpack.c.h.b16 %v267
  %v2247 = vunpack.c.l.b16 %v268
  %v2248 = vunpack.c.h.b16 %v268
  %v2249 = vunpack.c.l.b16 %v269
  %v2250 = vunpack.c.l.b16 %v270
  %v2251 = vunpack.c.h.b16 %v270
  %v2252 = vunpack.c.l.b16 %v271
  %v2253 = vunpack.c.h.b16 %v271
  %v2254 = vunpack.c.l.b16 %v272
  %v2255 = vunpack.c.l.b16 %v273
  %v2256 = vunpack.c.h.b16 %v273
  %v2257 = vunpack.c.l.b16 %v274
  %v2258 = vunpack.c.h.b16 %v274
  %v2259 = vunpack.c.l.b16 %v275
  %v2260 = vunpack.c.l.b16 %v276
  %v2261 = vunpack.c.h.b16 %v276
  %v2262 = vunpack.c.l.b16 %v277
  %v2263 = vunpack.c.h.b16 %v277
  %v2264 = vunpack.c.l.b16 %v278
  %v2265 = vunpack.c.l.b16 %v279
  %v2266 = vunpack.c.h.b16 %v279
  %v2267 = vunpack.c.l.b16 %v280
  %v2268 = vunpack.c.h.b16 %v280
  %v2269 = vunpack.c.l.b16 %v281
  %v2270 = vunpack.c.l.b16 %v282
  %v2271 = vunpack.c.h.b16 %v282
  %v2272 = vunpack.c.l.b16 %v283
  %v2273 = vunpack.c.h.b16 %v283
  %v2274 = vunpack.c.l.b16 %v284
  %v2275 = vunpack.c.l.b16 %v285
  %v2276 = vunpack.c.h.b16 %v285
  %v2277 = vunpack.c.l.b16 %v286
  %v2278 = vunpack.c.h.b16 %v286
  %v2279 = vunpack.c.l.b16 %v287
  %v2280 = vunpack.c.l.b16 %v288
  %v2281 = vunpack.c.h.b16 %v288
  %v2282 = vunpack.c.l.b16 %v289
  %v2283 = vunpack.c.h.b16 %v289
  %v2284 = vunpack.c.l.b16 %v290
  %v2285 = vunpack.c.l.b16 %v291
  %v2286 = vunpack.c.h.b16 %v291
  %v2287 = vunpack.c.l.b16 %v292
  %v2288 = vunpack.c.h.b16 %v292
  %v2289 = vunpack.c.l.b16 %v293
  %v2290 = vunpack.c.l.b16 %v294
  %v2291 = vunpack.c.h.b16 %v294
  %v2292 = vunpack.c.l.b16 %v295
  %v2293 = vunpack.c.h.b16 %v295
  %v2294 = vunpack.c.l.b16 %v296
  %v2295 = vunpack.c.l.b16 %v297
  %v2296 = vunpack.c.h.b16 %v297
  %v2297 = vunpack.c.l.b16 %v298
  %v2298 = vunpack.c.h.b16 %v298
  %v2299 = vunpack.c.l.b16 %v299
  %v2300 = vunpack.c.l.b16 %v300
  %v2301 = vunpack.c.h.b16 %v300
  %v2302 = vunpack.c.l.b16 %v301
  %v2303 = vunpack.c.h.b16 %v301
  %v2304 = vunpack.c.l.b16 %v302
  %v2305 = vunpack.c.l.b16 %v303
  %v2306 = vunpack.c.h.b16 %v303
  %v2307 = vunpack.c.l.b16 %v304
  %v2308 = vunpack.c.h.b16 %v304
  %v2309 = vunpack.c.l.b16 %v305
  %v2310 = vunpack.c.l.b16 %v306
  %v2311 = vunpack.c.h.b16 %v306
  %v2312 = vunpack.c.l.b16 %v307
  %v2313 = vunpack.c.h.b16 %v307
  %v2314 = vunpack.c.l.b16 %v308
  %v2315 = vunpack.c.l.b16 %v309
  %v2316 = vunpack.c.h.b16 %v309
  %v2317 = vunpack.c.l.b16 %v310
  %v2318 = vunpack.c.h.b16 %v310
  %v2319 = vunpack.c.l.b16 %v311
  %v2320 = vunpack.c.l.b16 %v312
  %v2321 = vunpack.c.h.b16 %v312
  %v2322 = vunpack.c.l.b16 %v313
  %v2323 = vunpack.c.h.b16 %v313
  %v2324 = vunpack.c.l.b16 %v314
  %v2325 = vunpack.c.l.b16 %v315
  %v2326 = vunpack.c.h.b16 %v315
  %v2327 = vunpack.c.l.b16 %v316
  %v2328 = vunpack.c.h.b16 %v316
  %v2329 = vunpack.c.l.b16 %v317
  %v2330 = vunpack.c.l.b16 %v318
  %v2331 = vunpack.c.h.b16 %v318
  %v2332 = vunpack.c.l.b16 %v319
  %v2333 = vunpack.c.h.b16 %v319
  %v2334 = vunpack.c.l.b16 %v320
  %v2335 = vunpack.c.l.b16 %v321
  %v2336 = vunpack.c.h.b16 %v321
  %v2337 = vunpack.c.l.b16 %v322
  %v2338 = vunpack.c.h.b16 %v322
  %v2339 = vunpack.c.l.b16 %v323
  %v2340 = vunpack.c.l.b16 %v324
  %v2341 = vunpack.c.h.b16 %v324
  %v2342 = vunpack.c.l.b16 %v325
  %v2343 = vunpack.c.h.b16 %v325
  %v2344 = vunpack.c.l.b16 %v326
  %v2345 = vunpack.c.l.b16 %v327
  %v2346 = vunpack.c.h.b16 %v327
  %v2347 = vunpack.c.l.b16 %v328
  %v2348 = vunpack.c.h.b16 %v328
  %v2349 = vunpack.c.l.b16 %v329
  %v2350 = vunpack.c.l.b16 %v330
  %v2351 = vunpack.c.h.b16 %v330
  %v2352 = vunpack.c.l.b16 %v331
  %v2353 = vunpack.c.h.b16 %v331
  %v2354 = vunpack.c.l.b16 %v332
  %v2355 = vunpack.c.l.b16 %v333
  %v2356 = vunpack.c.h.b16 %v333
  %v2357 = vunpack.c.l.b16 %v334
  %v2358 = vunpack.c.h.b16 %v334
  %v2359 = vunpack.c.l.b16 %v335
  %v2360 = vunpack.c.l.b16 %v336
  %v2361 = vunpack.c.h.b16 %v336
  %v2362 = vunpack.c.l.b16 %v337
  %v2363 = vunpack.c.h.b16 %v337
  %v2364 = vunpack.c.l.b16 %v338
  %v2365 = vunpack.c.l.b16 %v339
  %v2366 = vunpack.c.h.b16 %v339
  %v2367 = vunpack.c.l.b16 %v340
  %v2368 = vunpack.c.h.b16 %v340
  %v2369 = vunpack.c.l.b16 %v341
  %v2370 = vunpack.c.l.b16 %v342
  %v2371 = vunpack.c.h.b16 %v342
  %v2372 = vunpack.c.l.b16 %v343
  %v2373 = vunpack.c.h.b16 %v343
  %v2374 = vunpack.c.l.b16 %v344
  %v2375 = vunpack.c.l.b16 %v345
  %v2376 = vunpack.c.h.b16 %v345
  %v2377 = vunpack.c.l.b16 %v346
  %v2378 = vunpack.c.h.b16 %v346
  %v2379 = vunpack.c.l.b16 %v347
  %v2380 = vunpack.c.l.b16 %v348
  %v2381 = vunpack.c.h.b16 %v348
  %v2382 = vunpack.c.l.b16 %v349
  %v2383 = vunpack.c.h.b16 %v349
  %v2384 = vunpack.c.l.b16 %v350
  %v2385 = vunpack.c.l.b16 %v351
  %v2386 = vunpack.c.h.b16 %v351
  %v2387 = vunpack.c.l.b16 %v352
  %v2388 = vunpack.c.h.b16 %v352
  %v2389 = vunpack.c.l.b16 %v353
  %v2390 = vunpack.c.l.b16 %v354
  %v2391 = vunpack.c.h.b16 %v354
  %v2392 = vunpack.c.l.b16 %v355
  %v2393 = vunpack.c.h.b16 %v355
  %v2394 = vunpack.c.l.b16 %v356
  %v2395 = vunpack.c.l.b16 %v357
  %v2396 = vunpack.c.h.b16 %v357
  %v2397 = vunpack.c.l.b16 %v358
  %v2398 = vunpack.c.h.b16 %v358
  %v2399 = vunpack.c.l.b16 %v359
  %v2400 = vunpack.c.l.b16 %v360
  %v2401 = vunpack.c.h.b16 %v360
  %v2402 = vunpack.c.l.b16 %v361
  %v2403 = vunpack.c.h.b16 %v361
  %v2404 = vunpack.c.l.b16 %v362
  %v2405 = vunpack.c.l.b16 %v363
  %v2406 = vunpack.c.h.b16 %v363
  %v2407 = vunpack.c.l.b16 %v364
  %v2408 = vunpack.c.h.b16 %v364
  %v2409 = vunpack.c.l.b16 %v365
  %v2410 = vunpack.c.l.b16 %v366
  %v2411 = vunpack.c.h.b16 %v366
  %v2412 = vunpack.c.l.b16 %v367
  %v2413 = vunpack.c.h.b16 %v367
  %v2414 = vunpack.c.l.b16 %v368
  %v2415 = vunpack.c.l.b16 %v369
  %v2416 = vunpack.c.h.b16 %v369
  %v2417 = vunpack.c.l.b16 %v370
  %v2418 = vunpack.c.h.b16 %v370
  %v2419 = vunpack.c.l.b16 %v371
  %v2420 = vunpack.c.l.b16 %v372
  %v2421 = vunpack.c.h.b16 %v372
  %v2422 = vunpack.c.l.b16 %v373
  %v2423 = vunpack.c.h.b16 %v373
  %v2424 = vunpack.c.l.b16 %v374
  %v2425 = vunpack.c.l.b16 %v375
  %v2426 = vunpack.c.h.b16 %v375
  %v2427 = vunpack.c.l.b16 %v376
  %v2428 = vunpack.c.h.b16 %v376
  %v2429 = vunpack.c.l.b16 %v377
  %v2430 = vunpack.c.l.b16 %v378
  %v2431 = vunpack.c.h.b16 %v378
  %v2432 = vunpack.c.l.b16 %v379
  %v2433 = vunpack.c.h.b16 %v379
  %v2434 = vunpack.c.l.b16 %v380
  %v2435 = vunpack.c.l.b16 %v381
  %v2436 = vunpack.c.h.b16 %v381
  %v2437 = vunpack.c.l.b16 %v382
  %v2438 = vunpack.c.h.b16 %v382
  %v2439 = vunpack.c.l.b16 %v383
  %v2440 = vunpack.c.l.b16 %v384
  %v2441 = vunpack.c.h.b16 %v384
  %v2442 = vunpack.c.l.b16 %v385
  %v2443 = vunpack.c.h.b16 %v385
  %v2444 = vunpack.c.l.b16 %v386
  %v2445 = vunpack.c.l.b16 %v387
  %v2446 = vunpack.c.h.b16 %v387
  %v2447 = vunpack.c.l.b16 %v388
  %v2448 = vunpack.c.h.b16 %v388
  %v2449 = vunpack.c.l.b16 %v389
  %v2450 = vunpack.c.l.b16 %v390
  %v2451 = vunpack.c.h.b16 %v390
  %v2452 = vunpack.c.l.b16 %v391
  %v2453 = vunpack.c.h.b16 %v391
  %v2454 = vunpack.c.l.b16 %v392
  %v2455 = vunpack.c.l.b16 %v393
  %v2456 = vunpack.c.h.b16 %v393
  %v2457 = vunpack.c.l.b16 %v394
  %v2458 = vunpack.c.h.b16 %v394
  %v2459 = vunpack.c.l.b16 %v395
  %v2460 = vunpack.c.l.b16 %v396
  %v2461 = vunpack.c.h.b16 %v396
  %v2462 = vunpack.c.l.b16 %v397
  %v2463 = vunpack.c.h.b16 %v397
  %v2464 = vunpack.c.l.b16 %v398
  %v2465 = vunpack.c.l.b16 %v399
  %v2466 = vunpack.c.h.b16 %v399
  %v2467 = vunpack.c.l.b16 %v400
  %v2468 = vunpack.c.h.b16 %v400
  %v2469 = vunpack.c.l.b16 %v401
  %v2470 = vunpack.c.l.b16 %v402
  %v2471 = vunpack.c.h.b16 %v402
  %v2472 = vunpack.c.l.b16 %v403
  %v2473 = vunpack.c.h.b16 %v403
  %v2474 = vunpack.c.l.b16 %v404
  %v2475 = vunpack.c.l.b16 %v405
  %v2476 = vunpack.c.h.b16 %v405
  %v2477 = vunpack.c.l.b16 %v406
  %v2478 = vunpack.c.h.b16 %v406
  %v2479 = vunpack.c.l.b16 %v407
  %v2480 = vunpack.c.l.b16 %v408
  %v2481 = vunpack.c.h.b16 %v408
  %v2482 = vunpack.c.l.b16 %v409
  %v2483 = vunpack.c.h.b16 %v409
  %v2484 = vunpack.c.l.b16 %v410
  %v2485 = vunpack.c.l.b16 %v411
  %v2486 = vunpack.c.h.b16 %v411
  %v2487 = vunpack.c.l.b16 %v412
  %v2488 = vunpack.c.h.b16 %v412
  %v2489 = vunpack.c.l.b16 %v413
  %v2490 = vunpack.c.l.b16 %v414
  %v2491 = vunpack.c.h.b16 %v414
  %v2492 = vunpack.c.l.b16 %v415
  %v2493 = vunpack.c.h.b16 %v415
  %v2494 = vunpack.c.l.b16 %v416
  %v2495 = vunpack.c.l.b16 %v417
  %v2496 = vunpack.c.h.b16 %v417
  %v2497 = vunpack.c.l.b16 %v418
  %v2498 = vunpack.c.h.b16 %v418
  %v2499 = vunpack.c.l.b16 %v419
  %v2500 = vunpack.c.l.b16 %v420
  %v2501 = vunpack.c.h.b16 %v420
  %v2502 = vunpack.c.l.b16 %v421
  %v2503 = vunpack.c.h.b16 %v421
  %v2504 = vunpack.c.l.b16 %v422
  %v2505 = vunpack.c.l.b16 %v423
  %v2506 = vunpack.c.h.b16 %v423
  %v2507 = vunpack.c.l.b16 %v424
  %v2508 = vunpack.c.h.b16 %v424
  %v2509 = vunpack.c.l.b16 %v425
  %v2510 = vunpack.c.l.b16 %v426
  %v2511 = vunpack.c.h.b16 %v426
  %v2512 = vunpack.c.l.b16 %v427
  %v2513 = vunpack.c.h.b16 %v427
  %v2514 = vunpack.c.l.b16 %v428
  %v2515 = vunpack.c.l.b16 %v429
  %v2516 = vunpack.c.h.b16 %v429
  %v2517 = vunpack.c.l.b16 %v430
  %v2518 = vunpack.c.h.b16 %v430
  %v2519 = vunpack.c.l.b16 %v431
  %v2520 = vunpack.c.l.b16 %v432
  %v2521 = vunpack.c.h.b16 %v432
  %v2522 = vunpack.c.l.b16 %v433
  %v2523 = vunpack.c.h.b16 %v433
  %v2524 = vunpack.c.l.b16 %v434
  %v2525 = vunpack.c.l.b16 %v435
  %v2526 = vunpack.c.h.b16 %v435
  %v2527 = vunpack.c.l.b16 %v436
  %v2528 = vunpack.c.h.b16 %v436
  %v2529 = vunpack.c.l.b16 %v437
  %v2530 = vunpack.c.l.b16 %v438
  %v2531 = vunpack.c.h.b16 %v438
  %v2532 = vunpack.c.l.b16 %v439
  %v2533 = vunpack.c.h.b16 %v439
  %v2534 = vunpack.c.l.b16 %v440
  %v2535 = vunpack.c.l.b16 %v441
  %v2536 = vunpack.c.h.b16 %v441
  %v2537 = vunpack.c.l.b16 %v442
  %v2538 = vunpack.c.h.b16 %v442
  %v2539 = vunpack.c.l.b16 %v443
  %v2540 = vunpack.c.l.b16 %v444
  %v2541 = vunpack.c.h.b16 %v444
  %v2542 = vunpack.c.l.b16 %v445
  %v2543 = vunpack.c.h.b16 %v445
  %v2544 = vunpack.c.l.b16 %v446
  %v2545 = vunpack.c.l.b16 %v447
  %v2546 = vunpack.c.h.b16 %v447
  %v2547 = vunpack.c.l.b16 %v448
  %v2548 = vunpack.c.h.b16 %v448
  %v2549 = vunpack.c.l.b16 %v449
  %v2550 = vunpack.c.l.b16 %v450
  %v2551 = vunpack.c.h.b16 %v450
  %v2552 = vunpack.c.l.b16 %v451
  %v2553 = vunpack.c.h.b16 %v451
  %v2554 = vunpack.c.l.b16 %v452
  %v2555 = vunpack.c.l.b16 %v453
  %v2556 = vunpack.c.h.b16 %v453
  %v2557 = vunpack.c.l.b16 %v454
  %v2558 = vunpack.c.h.b16 %v454
  %v2559 = vunpack.c.l.b16 %v455
  %v2560 = vunpack.c.l.b16 %v456
  %v2561 = vunpack.c.h.b16 %v456
  %v2562 = vunpack.c.l.b16 %v457
  %v2563 = vunpack.c.h.b16 %v457
  %v2564 = vunpack.c.l.b16 %v458
  %v2565 = vunpack.c.l.b16 %v459
  %v2566 = vunpack.c.h.b16 %v459
  %v2567 = vunpack.c.l.b16 %v460
  %v2568 = vunpack.c.h.b16 %v460
  %v2569 = vunpack.c.l.b16 %v461
  %v2570 = vunpack.c.l.b16 %v462
  %v2571 = vunpack.c.h.b16 %v462
  %v2572 = vunpack.c.l.b16 %v463
  %v2573 = vunpack.c.h.b16 %v463
  %v2574 = vunpack.c.l.b16 %v464
  %v2575 = vunpack.c.l.b16 %v465
  %v2576 = vunpack.c.h.b16 %v465
  %v2577 = vunpack.c.l.b16 %v466
  %v2578 = vunpack.c.h.b16 %v466
  %v2579 = vunpack.c.l.b16 %v467
  %v2580 = vunpack.c.l.b16 %v468
  %v2581 = vunpack.c.h.b16 %v468
  %v2582 = vunpack.c.l.b16 %v469
  %v2583 = vunpack.c.h.b16 %v469
  %v2584 = vunpack.c.l.b16 %v470
  %v2585 = vunpack.c.l.b16 %v471
  %v2586 = vunpack.c.h.b16 %v471
  %v2587 = vunpack.c.l.b16 %v472
  %v2588 = vunpack.c.h.b16 %v472
  %v2589 = vunpack.c.l.b16 %v473
  %v2590 = vunpack.c.l.b16 %v474
  %v2591 = vunpack.c.h.b16 %v474
  %v2592 = vunpack.c.l.b16 %v475
  %v2593 = vunpack.c.h.b16 %v475
  %v2594 = vunpack.c.l.b16 %v476
  %v2595 = vunpack.c.l.b16 %v477
  %v2596 = vunpack.c.h.b16 %v477
  %v2597 = vunpack.c.l.b16 %v478
  %v2598 = vunpack.c.h.b16 %v478
  %v2599 = vunpack.c.l.b16 %v479
  %v2600 = vunpack.c.l.b16 %v480
  %v2601 = vunpack.c.h.b16 %v480
  %v2602 = vunpack.c.l.b16 %v481
  %v2603 = vunpack.c.h.b16 %v481
  %v2604 = vunpack.c.l.b16 %v482
  %v2605 = vunpack.c.l.b16 %v483
  %v2606 = vunpack.c.h.b16 %v483
  %v2607 = vunpack.c.l.b16 %v484
  %v2608 = vunpack.c.h.b16 %v484
  %v2609 = vunpack.c.l.b16 %v485
  %v2610 = vunpack.c.l.b16 %v486
  %v2611 = vunpack.c.h.b16 %v486
  %v2612 = vunpack.c.l.b16 %v487
  %v2613 = vunpack.c.h.b16 %v487
  %v2614 = vunpack.c.l.b16 %v488
  %v2615 = vunpack.c.l.b16 %v489
  %v2616 = vunpack.c.h.b16 %v489
  %v2617 = vunpack.c.l.b16 %v490
  %v2618 = vunpack.c.h.b16 %v490
  %v2619 = vunpack.c.l.b16 %v491
  %v2620 = vunpack.c.l.b16 %v492
  %v2621 = vunpack.c.h.b16 %v492
  %v2622 = vunpack.c.l.b16 %v493
  %v2623 = vunpack.c.h.b16 %v493
  %v2624 = vunpack.c.l.b16 %v494
  %v2625 = vunpack.c.l.b16 %v495
  %v2626 = vunpack.c.h.b16 %v495
  %v2627 = vunpack.c.l.b16 %v496
  %v2628 = vunpack.c.h.b16 %v496
  %v2629 = vunpack.c.l.b16 %v497
  %v2630 = vunpack.c.l.b16 %v498
  %v2631 = vunpack.c.h.b16 %v498
  %v2632 = vunpack.c.l.b16 %v499
  %v2633 = vunpack.c.h.b16 %v499
  %v2634 = vunpack.c.l.b16 %v500
  %v2635 = vunpack.c.l.b16 %v501
  %v2636 = vunpack.c.h.b16 %v501
  %v2637 = vunpack.c.l.b16 %v502
  %v2638 = vunpack.c.h.b16 %v502
  %v2639 = vunpack.c.l.b16 %v503
  %v2640 = vunpack.c.l.b16 %v504
  %v2641 = vunpack.c.h.b16 %v504
  %v2642 = vunpack.c.l.b16 %v505
  %v2643 = vunpack.c.h.b16 %v505
  %v2644 = vunpack.c.l.b16 %v506
  %v2645 = vunpack.c.l.b16 %v507
  %v2646 = vunpack.c.h.b16 %v507
  %v2647 = vunpack.c.l.b16 %v508
  %v2648 = vunpack.c.h.b16 %v508
  %v2649 = vunpack.c.l.b16 %v509
  %v2650 = vunpack.c.l.b16 %v510
  %v2651 = vunpack.c.h.b16 %v510
  %v2652 = vunpack.c.l.b16 %v511
  %v2653 = vunpack.c.h.b16 %v511
  %v2654 = vunpack.c.l.b16 %v512
  %v2655 = vunpack.c.l.b16 %v513
  %v2656 = vunpack.c.h.b16 %v513
  %v2657 = vunpack.c.l.b16 %v514
  %v2658 = vunpack.c.h.b16 %v514
  %v2659 = vunpack.c.l.b16 %v515
  %v2660 = vunpack.c.l.b16 %v516
  %v2661 = vunpack.c.h.b16 %v516
  %v2662 = vunpack.c.l.b16 %v517
  %v2663 = vunpack.c.h.b16 %v517
  %v2664 = vunpack.c.l.b16 %v518
  %v2665 = vunpack.c.l.b16 %v519
  %v2666 = vunpack.c.h.b16 %v519
  %v2667 = vunpack.c.l.b16 %v520
  %v2668 = vunpack.c.h.b16 %v520
  %v2669 = vunpack.c.l.b16 %v521
  %v2670 = vunpack.c.l.b16 %v522
  %v2671 = vunpack.c.h.b16 %v522
  %v2672 = vunpack.c.l.b16 %v523
  %v2673 = vunpack.c.h.b16 %v523
  %v2674 = vunpack.c.l.b16 %v524
  %v2675 = vunpack.c.l.b16 %v525
  %v2676 = vunpack.c.h.b16 %v525
  %v2677 = vunpack.c.l.b16 %v526
  %v2678 = vunpack.c.h.b16 %v526
  %v2679 = vunpack.c.l.b16 %v527
  %v2680 = vunpack.c.l.b16 %v528
  %v2681 = vunpack.c.h.b16 %v528
  %v2682 = vunpack.c.l.b16 %v529
  %v2683 = vunpack.c.h.b16 %v529
  %v2684 = vunpack.c.l.b16 %v530
  %v2685 = vunpack.c.l.b16 %v531
  %v2686 = vunpack.c.h.b16 %v531
  %v2687 = vunpack.c.l.b16 %v532
  %v2688 = vunpack.c.h.b16 %v532
  %v2689 = vunpack.c.l.b16 %v533
  %v2690 = vunpack.c.l.b16 %v534
  %v2691 = vunpack.c.h.b16 %v534
  %v2692 = vunpack.c.l.b16 %v535
  %v2693 = vunpack.c.h.b16 %v535
  %v2694 = vunpack.c.l.b16 %v536
  %v2695 = vunpack.c.l.b16 %v537
  %v2696 = vunpack.c.h.b16 %v537
  %v2697 = vunpack.c.l.b16 %v538
  %v2698 = vunpack.c.h.b16 %v538
  %v2699 = vunpack.c.l.b16 %v539
  %v2700 = vunpack.c.l.b16 %v540
  %v2701 = vunpack.c.h.b16 %v540
  %v2702 = vunpack.c.l.b16 %v541
  %v2703 = vunpack.c.h.b16 %v541
  %v2704 = vunpack.c.l.b16 %v542
  %v2705 = vunpack.c.l.b16 %v543
  %v2706 = vunpack.c.h.b16 %v543
  %v2707 = vunpack.c.l.b16 %v544
  %v2708 = vunpack.c.h.b16 %v544
  %v2709 = vunpack.c.l.b16 %v545
  %v2710 = vunpack.c.l.b16 %v546
  %v2711 = vunpack.c.h.b16 %v546
  %v2712 = vunpack.c.l.b16 %v547
  %v2713 = vunpack.c.h.b16 %v547
  %v2714 = vunpack.c.l.b16 %v548
  %v2715 = vunpack.c.l.b16 %v549
  %v2716 = vunpack.c.h.b16 %v549
  %v2717 = vunpack.c.l.b16 %v550
  %v2718 = vunpack.c.h.b16 %v550
  %v2719 = vunpack.c.l.b16 %v551
  %v2720 = vunpack.c.l.b16 %v552
  %v2721 = vunpack.c.h.b16 %v552
  %v2722 = vunpack.c.l.b16 %v553
  %v2723 = vunpack.c.h.b16 %v553
  %v2724 = vunpack.c.l.b16 %v554
  %v2725 = vunpack.c.l.b16 %v555
  %v2726 = vunpack.c.h.b16 %v555
  %v2727 = vunpack.c.l.b16 %v556
  %v2728 = vunpack.c.h.b16 %v556
  %v2729 = vunpack.c.l.b16 %v557
  %v2730 = vunpack.c.l.b16 %v558
  %v2731 = vunpack.c.h.b16 %v558
  %v2732 = vunpack.c.l.b16 %v559
  %v2733 = vunpack.c.h.b16 %v559
  %v2734 = vunpack.c.l.b16 %v560
  %v2735 = vunpack.c.l.b16 %v561
  %v2736 = vunpack.c.h.b16 %v561
  %v2737 = vunpack.c.l.b16 %v562
  %v2738 = vunpack.c.h.b16 %v562
  %v2739 = vunpack.c.l.b16 %v563
  %v2740 = vunpack.c.l.b16 %v564
  %v2741 = vunpack.c.h.b16 %v564
  %v2742 = vunpack.c.l.b16 %v565
  %v2743 = vunpack.c.h.b16 %v565
  %v2744 = vunpack.c.l.b16 %v566
  %v2745 = vunpack.c.l.b16 %v567
  %v2746 = vunpack.c.h.b16 %v567
  %v2747 = vunpack.c.l.b16 %v568
  %v2748 = vunpack.c.h.b16 %v568
  %v2749 = vunpack.c.l.b16 %v569
  %v2750 = vunpack.c.l.b16 %v570
  %v2751 = vunpack.c.h.b16 %v570
  %v2752 = vunpack.c.l.b16 %v571
  %v2753 = vunpack.c.h.b16 %v571
  %v2754 = vunpack.c.l.b16 %v572
  %v2755 = vunpack.c.l.b16 %v573
  %v2756 = vunpack.c.h.b16 %v573
  %v2757 = vunpack.c.l.b16 %v574
  %v2758 = vunpack.c.h.b16 %v574
  %v2759 = vunpack.c.l.b16 %v575
  %v2760 = vunpack.c.l.b16 %v576
  %v2761 = vunpack.c.h.b16 %v576
  %v2762 = vunpack.c.l.b16 %v577
  %v2763 = vunpack.c.h.b16 %v577
  %v2764 = vunpack.c.l.b16 %v578
  %v2765 = vunpack.c.l.b16 %v579
  %v2766 = vunpack.c.h.b16 %v579
  %v2767 = vunpack.c.l.b16 %v580
  %v2768 = vunpack.c.h.b16 %v580
  %v2769 = vunpack.c.l.b16 %v581
  %v2770 = vunpack.c.l.b16 %v582
  %v2771 = vunpack.c.h.b16 %v582
  %v2772 = vunpack.c.l.b16 %v583
  %v2773 = vunpack.c.h.b16 %v583
  %v2774 = vunpack.c.l.b16 %v584
  %v2775 = vunpack.c.l.b16 %v585
  %v2776 = vunpack.c.h.b16 %v585
  %v2777 = vunpack.c.l.b16 %v586
  %v2778 = vunpack.c.h.b16 %v586
  %v2779 = vunpack.c.l.b16 %v587
  %v2780 = vunpack.c.l.b16 %v588
  %v2781 = vunpack.c.h.b16 %v588
  %v2782 = vunpack.c.l.b16 %v589
  %v2783 = vunpack.c.h.b16 %v589
  %v2784 = vunpack.c.l.b16 %v590
  %v2785 = vunpack.c.l.b16 %v591
  %v2786 = vunpack.c.h.b16 %v591
  %v2787 = vunpack.c.l.b16 %v592
  %v2788 = vunpack.c.h.b16 %v592
  %v2789 = vunpack.c.l.b16 %v593
  %v2790 = vunpack.c.l.b16 %v594
  %v2791 = vunpack.c.h.b16 %v594
  %v2792 = vunpack.c.l.b16 %v595
  %v2793 = vunpack.c.h.b16 %v595
  %v2794 = vunpack.c.l.b16 %v596
  %v2795 = vunpack.c.l.b16 %v597
  %v2796 = vunpack.c.h.b16 %v597
  %v2797 = vunpack.c.l.b16 %v598
  %v2798 = vunpack.c.h.b16 %v598
  %v2799 = vunpack.c.l.b16 %v599
  %v2800 = vunpack.c.l.b16 %v600
  %v2801 = vunpack.c.h.b16 %v600
  %v2802 = vunpack.c.l.b16 %v601
  %v2803 = vunpack.c.h.b16 %v601
  %v2804 = vunpack.c.l.b16 %v602
  %v2805 = vunpack.c.l.b16 %v603
  %v2806 = vunpack.c.h.b16 %v603
  %v2807 = vunpack.c.l.b16 %v604
  %v2808 = vunpack.c.h.b16 %v604
  %v2809 = vunpack.c.l.b16 %v605
  %v2810 = vunpack.c.l.b16 %v606
  %v2811 = vunpack.c.h.b16 %v606
  %v2812 = vunpack.c.l.b16 %v607
  %v2813 = vunpack.c.h.b16 %v607
  %v2814 = vunpack.c.l.b16 %v608
  %v2815 = vunpack.c.l.b16 %v609
  %v2816 = vunpack.c.h.b16 %v609
  %v2817 = vunpack.c.l.b16 %v610
  %v2818 = vunpack.c.h.b16 %v610
  %v2819 = vunpack.c.l.b16 %v611
  %v2820 = vunpack.c.l.b16 %v612
  %v2821 = vunpack.c.h.b16 %v612
  %v2822 = vunpack.c.l.b16 %v613
  %v2823 = vunpack.c.h.b16 %v613
  %v2824 = vunpack.c.l.b16 %v614
  %v2825 = vunpack.c.l.b16 %v615
  %v2826 = vunpack.c.h.b16 %v615
  %v2827 = vunpack.c.l.b16 %v616
  %v2828 = vunpack.c.h.b16 %v616
  %v2829 = vunpack.c.l.b16 %v617
  %v2830 = vunpack.c.l.b16 %v618
  %v2831 = vunpack.c.h.b16 %v618
  %v2832 = vunpack.c.l.b16 %v619
  %v2833 = vunpack.c.h.b16 %v619
  %v2834 = vunpack.c.l.b16 %v620
  %v2835 = vunpack.c.l.b16 %v621
  %v2836 = vunpack.c.h.b16 %v621
  %v2837 = vunpack.c.l.b16 %v622
  %v2838 = vunpack.c.h.b16 %v622
  %v2839 = vunpack.c.l.b16 %v623
  %v2840 = vunpack.c.l.b16 %v624
  %v2841 = vunpack.c.h.b16 %v624
  %v2842 = vunpack.c.l.b16 %v625
  %v2843 = vunpack.c.h.b16 %v625
  %v2844 = vunpack.c.l.b16 %v626
  %v2845 = vunpack.c.l.b16 %v627
  %v2846 = vunpack.c.h.b16 %v627
  %v2847 = vunpack.c.l.b16 %v628
  %v2848 = vunpack.c.h.b16 %v628
  %v2849 = vunpack.c.l.b16 %v629
  %v2850 = vunpack.c.l.b16 %v630
  %v2851 = vunpack.c.h.b16 %v630
  %v2852 = vunpack.c.l.b16 %v631
  %v2853 = vunpack.c.h.b16 %v631
  %v2854 = vunpack.c.l.b16 %v632
  %v2855 = vunpack.c.l.b16 %v633
  %v2856 = vunpack.c.h.b16 %v633
  %v2857 = vunpack.c.l.b16 %v634
  %v2858 = vunpack.c.h.b16 %v634
  %v2859 = vunpack.c.l.b16 %v635
  %v2860 = vunpack.c.l.b16 %v636
  %v2861 = vunpack.c.h.b16 %v636
  %v2862 = vunpack.c.l.b16 %v637
  %v2863 = vunpack.c.h.b16 %v637
  %v2864 = vunpack.c.l.b16 %v638
  %v2865 = vunpack.c.l.b16 %v639
  %v2866 = vunpack.c.h.b16 %v639
  %v2867 = vunpack.c.l.b16 %v640
  %v2868 = vunpack.c.h.b16 %v640
  %v2869 = vunpack.c.l.b16 %v641
  %v2870 = vunpack.c.l.b16 %v642
  %v2871 = vunpack.c.h.b16 %v642
  %v2872 = vunpack.c.l.b16 %v643
  %v2873 = vunpack.c.h.b16 %v643
  %v2874 = vunpack.c.l.b16 %v644
  %v2875 = vunpack.c.l.b16 %v645
  %v2876 = vunpack.c.h.b16 %v645
  %v2877 = vunpack.c.l.b16 %v646
  %v2878 = vunpack.c.h.b16 %v646
  %v2879 = vunpack.c.l.b16 %v647
  %v2880 = vunpack.c.l.b16 %v648
  %v2881 = vunpack.c.h.b16 %v648
  %v2882 = vunpack.c.l.b16 %v649
  %v2883 = vunpack.c.h.b16 %v649
  %v2884 = vunpack.c.l.b16 %v650
  %v2885 = vunpack.c.l.b16 %v651
  %v2886 = vunpack.c.h.b16 %v651
  %v2887 = vunpack.c.l.b16 %v652
  %v2888 = vunpack.c.h.b16 %v652
  %v2889 = vunpack.c.l.b16 %v653
  %v2890 = vunpack.c.l.b16 %v654
  %v2891 = vunpack.c.h.b16 %v654
  %v2892 = vunpack.c.l.b16 %v655
  %v2893 = vunpack.c.h.b16 %v655
  %v2894 = vunpack.c.l.b16 %v656
  %v2895 = vunpack.c.l.b16 %v657
  %v2896 = vunpack.c.h.b16 %v657
  %v2897 = vunpack.c.l.b16 %v658
  %v2898 = vunpack.c.h.b16 %v658
  %v2899 = vunpack.c.l.b16 %v659
  %v2900 = vunpack.c.l.b16 %v660
  %v2901 = vunpack.c.h.b16 %v660
  %v2902 = vunpack.c.l.b16 %v661
  %v2903 = vunpack.c.h.b16 %v661
  %v2904 = vunpack.c.l.b16 %v662
  %v2905 = vunpack.c.l.b16 %v663
  %v2906 = vunpack.c.h.b16 %v663
  %v2907 = vunpack.c.l.b16 %v664
  %v2908 = vunpack.c.h.b16 %v664
  %v2909 = vunpack.c.l.b16 %v665
  %v2910 = vunpack.c.l.b16 %v666
  %v2911 = vunpack.c.h.b16 %v666
  %v2912 = vunpack.c.l.b16 %v667
  %v2913 = vunpack.c.h.b16 %v667
  %v2914 = vunpack.c.l.b16 %v668
  %v2915 = vunpack.c.l.b16 %v669
  %v2916 = vunpack.c.h.b16 %v669
  %v2917 = vunpack.c.l.b16 %v670
  %v2918 = vunpack.c.h.b16 %v670
  %v2919 = vunpack.c.l.b16 %v671
  %v2920 = vunpack.c.l.b16 %v672
  %v2921 = vunpack.c.h.b16 %v672
  %v2922 = vunpack.c.l.b16 %v673
  %v2923 = vunpack.c.h.b16 %v673
  %v2924 = vunpack.c.l.b16 %v674
  %v2925 = vunpack.c.l.b16 %v675
  %v2926 = vunpack.c.h.b16 %v675
  %v2927 = vunpack.c.l.b16 %v676
  %v2928 = vunpack.c.h.b16 %v676
  %v2929 = vunpack.c.l.b16 %v677
  %v2930 = vunpack.c.l.b16 %v678
  %v2931 = vunpack.c.h.b16 %v678
  %v2932 = vunpack.c.l.b16 %v679
  %v2933 = vunpack.c.h.b16 %v679
  %v2934 = vunpack.c.l.b16 %v680
  %v2935 = vunpack.c.l.b16 %v681
  %v2936 = vunpack.c.h.b16 %v681
  %v2937 = vunpack.c.l.b16 %v682
  %v2938 = vunpack.c.h.b16 %v682
  %v2939 = vunpack.c.l.b16 %v683
  %v2940 = vunpack.c.l.b16 %v684
  %v2941 = vunpack.c.h.b16 %v684
  %v2942 = vunpack.c.l.b16 %v685
  %v2943 = vunpack.c.h.b16 %v685
  %v2944 = vunpack.c.l.b16 %v686
  %v2945 = vunpack.c.l.b16 %v687
  %v2946 = vunpack.c.h.b16 %v687
  %v2947 = vunpack.c.l.b16 %v688
  %v2948 = vunpack.c.h.b16 %v688
  %v2949 = vunpack.c.l.b16 %v689
  %v2950 = vunpack.c.l.b16 %v690
  %v2951 = vunpack.c.h.b16 %v690
  %v2952 = vunpack.c.l.b16 %v691
  %v2953 = vunpack.c.h.b16 %v691
  %v2954 = vunpack.c.l.b16 %v692
  %v2955 = vunpack.c.l.b16 %v693
  %v2956 = vunpack.c.h.b16 %v693
  %v2957 = vunpack.c.l.b16 %v694
  %v2958 = vunpack.c.h.b16 %v694
  %v2959 = vunpack.c.l.b16 %v695
  %v2960 = vunpack.c.l.b16 %v696
  %v2961 = vunpack.c.h.b16 %v696
  %v2962 = vunpack.c.l.b16 %v697
  %v2963 = vunpack.c.h.b16 %v697
  %v2964 = vunpack.c.l.b16 %v698
  %v2965 = vunpack.c.l.b16 %v699
  %v2966 = vunpack.c.h.b16 %v699
  %v2967 = vunpack.c.l.b16 %v700
  %v2968 = vunpack.c.h.b16 %v700
  %v2969 = vunpack.c.l.b16 %v701
  %v2970 = vunpack.c.l.b16 %v702
  %v2971 = vunpack.c.h.b16 %v702
  %v2972 = vunpack.c.l.b16 %v703
  %v2973 = vunpack.c.h.b16 %v703
  %v2974 = vunpack.c.l.b16 %v704
  %v2975 = vunpack.c.l.b16 %v705
  %v2976 = vunpack.c.h.b16 %v705
  %v2977 = vunpack.c.l.b16 %v706
  %v2978 = vunpack.c.h.b16 %v706
  %v2979 = vunpack.c.l.b16 %v707
  %v2980 = vunpack.c.l.b16 %v708
  %v2981 = vunpack.c.h.b16 %v708
  %v2982 = vunpack.c.l.b16 %v709
  %v2983 = vunpack.c.h.b16 %v709
  %v2984 = vunpack.c.l.b16 %v710
  %v2985 = vunpack.c.l.b16 %v711
  %v2986 = vunpack.c.h.b16 %v711
  %v2987 = vunpack.c.l.b16 %v712
  %v2988 = vunpack.c.h.b16 %v712
  %v2989 = vunpack.c.l.b16 %v713
  %v2990 = vunpack.c.l.b16 %v714
  %v2991 = vunpack.c.h.b16 %v714
  %v2992 = vunpack.c.l.b16 %v715
  %v2993 = vunpack.c.h.b16 %v715
  %v2994 = vunpack.c.l.b16 %v716
  %v2995 = vunpack.c.l.b16 %v717
  %v2996 = vunpack.c.h.b16 %v717
  %v2997 = vunpack.c.l.b16 %v718
  %v2998 = vunpack.c.h.b16 %v718
  %v2999 = vunpack.c.l.b16 %v719
  %v3000 = vunpack.c.l.b16 %v720
  %v3001 = vunpack.c.h.b16 %v720
  %v3002 = vunpack.c.l.b16 %v721
  %v3003 = vunpack.c.h.b16 %v721
  %v3004 = vunpack.c.l.b16 %v722
  %v3005 = vunpack.c.l.b16 %v723
  %v3006 = vunpack.c.h.b16 %v723
  %v3007 = vunpack.c.l.b16 %v724
  %v3008 = vunpack.c.h.b16 %v724
  %v3009 = vunpack.c.l.b16 %v725
  %v3010 = vunpack.c.l.b16 %v726
  %v3011 = vunpack.c.h.b16 %v726
  %v3012 = vunpack.c.l.b16 %v727
  %v3013 = vunpack.c.h.b16 %v727
  %v3014 = vunpack.c.l.b16 %v728
  %v3015 = vunpack.c.l.b16 %v729
  %v3016 = vunpack.c.h.b16 %v729
  %v3017 = vunpack.c.l.b16 %v730
  %v3018 = vunpack.c.h.b16 %v730
  %v3019 = vunpack.c.l.b16 %v731
  %v3020 = vunpack.c.l.b16 %v732
  %v3021 = vunpack.c.h.b16 %v732
  %v3022 = vunpack.c.l.b16 %v733
  %v3023 = vunpack.c.h.b16 %v733
  %v3024 = vunpack.c.l.b16 %v734
  %v3025 = vunpack.c.l.b16 %v735
  %v3026 = vunpack.c.h.b16 %v735
  %v3027 = vunpack.c.l.b16 %v736
  %v3028 = vunpack.c.h.b16 %v736
  %v3029 = vunpack.c.l.b16 %v737
  %v3030 = vunpack.c.l.b16 %v738
  %v3031 = vunpack.c.h.b16 %v738
  %v3032 = vunpack.c.l.b16 %v739
  %v3033 = vunpack.c.h.b16 %v739
  %v3034 = vunpack.c.l.b16 %v740
  %v3035 = vunpack.c.l.b16 %v741
  %v3036 = vunpack.c.h.b16 %v741
  %v3037 = vunpack.c.l.b16 %v742
  %v3038 = vunpack.c.h.b16 %v742
  %v3039 = vunpack.c.l.b16 %v743
  %v3040 = vunpack.c.l.b16 %v744
  %v3041 = vunpack.c.h.b16 %v744
  %v3042 = vunpack.c.l.b16 %v745
  %v3043 = vunpack.c.h.b16 %v745
  %v3044 = vunpack.c.l.b16 %v746
  %v3045 = vunpack.c.l.b16 %v747
  %v3046 = vunpack.c.h.b16 %v747
  %v3047 = vunpack.c.l.b16 %v748
  %v3048 = vunpack.c.h.b16 %v748
  %v3049 = vunpack.c.l.b16 %v749
  %v3050 = vunpack.c.l.b16 %v750
  %v3051 = vunpack.c.h.b16 %v750
  %v3052 = vunpack.c.l.b16 %v751
  %v3053 = vunpack.c.h.b16 %v751
  %v3054 = vunpack.c.l.b16 %v752
  %v3055 = vunpack.c.l.b16 %v753
  %v3056 = vunpack.c.h.b16 %v753
  %v3057 = vunpack.c.l.b16 %v754
  %v3058 = vunpack.c.h.b16 %v754
  %v3059 = vunpack.c.l.b16 %v755
  %v3060 = vunpack.c.l.b16 %v756
  %v3061 = vunpack.c.h.b16 %v756
  %v3062 = vunpack.c.l.b16 %v757
  %v3063 = vunpack.c.h.b16 %v757
  %v3064 = vunpack.c.l.b16 %v758
  %v3065 = vunpack.c.l.b16 %v759
  %v3066 = vunpack.c.h.b16 %v759
  %v3067 = vunpack.c.l.b16 %v760
  %v3068 = vunpack.c.h.b16 %v760
  %v3069 = vunpack.c.l.b16 %v761
  %v3070 = vunpack.c.l.b16 %v762
  %v3071 = vunpack.c.h.b16 %v762
  %v3072 = vunpack.c.l.b16 %v763
  %v3073 = vunpack.c.h.b16 %v763
  %v3074 = vunpack.c.l.b16 %v764
  %v3075 = vunpack.c.l.b16 %v765
  %v3076 = vunpack.c.h.b16 %v765
  %v3077 = vunpack.c.l.b16 %v766
  %v3078 = vunpack.c.h.b16 %v766
  %v3079 = vunpack.c.l.b16 %v767
  %v3080 = vunpack.c.l.b16 %v768
  %v3081 = vunpack.c.h.b16 %v768
  %v3082 = vunpack.c.l.b16 %v769
  %v3083 = vunpack.c.h.b16 %v769
  %v3084 = vunpack.c.l.b16 %v770
  %v3085 = vunpack.c.l.b16 %v771
  %v3086 = vunpack.c.h.b16 %v771
  %v3087 = vunpack.c.l.b16 %v772
  %v3088 = vunpack.c.h.b16 %v772
  %v3089 = vunpack.c.l.b16 %v773
  %v3090 = vunpack.c.l.b16 %v774
  %v3091 = vunpack.c.h.b16 %v774
  %v3092 = vunpack.c.l.b16 %v775
  %v3093 = vunpack.c.h.b16 %v775
  %v3094 = vunpack.c.l.b16 %v776
  %v3095 = vunpack.c.l.b16 %v777
  %v3096 = vunpack.c.h.b16 %v777
  %v3097 = vunpack.c.l.b16 %v778
  %v3098 = vunpack.c.h.b16 %v778
  %v3099 = vunpack.c.l.b16 %v779
  %v3100 = vunpack.c.l.b16 %v780
  %v3101 = vunpack.c.h.b16 %v780
  %v3102 = vunpack.c.l.b16 %v781
  %v3103 = vunpack.c.h.b16 %v781
  %v3104 = vunpack.c.l.b16 %v782
  %v3105 = vunpack.c.l.b16 %v783
  %v3106 = vunpack.c.h.b16 %v783
  %v3107 = vunpack.c.l.b16 %v784
  %v3108 = vunpack.c.h.b16 %v784
  %v3109 = vunpack.c.l.b16 %v785
  %v3110 = vunpack.c.l.b16 %v786
  %v3111 = vunpack.c.h.b16 %v786
  %v3112 = vunpack.c.l.b16 %v787
  %v3113 = vunpack.c.h.b16 %v787
  %v3114 = vunpack.c.l.b16 %v788
  %v3115 = vunpack.c.l.b16 %v789
  %v3116 = vunpack.c.h.b16 %v789
  %v3117 = vunpack.c.l.b16 %v790
  %v3118 = vunpack.c.h.b16 %v790
  %v3119 = vunpack.c.l.b16 %v791
  %v3120 = vunpack.c.l.b16 %v792
  %v3121 = vunpack.c.h.b16 %v792
  %v3122 = vunpack.c.l.b16 %v793
  %v3123 = vunpack.c.h.b16 %v793
  %v3124 = vunpack.c.l.b16 %v794
  %v3125 = vunpack.c.l.b16 %v795
  %v3126 = vunpack.c.h.b16 %v795
  %v3127 = vunpack.c.l.b16 %v796
  %v3128 = vunpack.c.h.b16 %v796
  %v3129 = vunpack.c.l.b16 %v797
  %v3130 = vunpack.c.l.b16 %v798
  %v3131 = vunpack.c.h.b16 %v798
  %v3132 = vunpack.c.l.b16 %v799
  %v3133 = vunpack.c.h.b16 %v799
  %v3134 = vunpack.c.l.b16 %v800
  %v3135 = vunpack.c.l.b16 %v801
  %v3136 = vunpack.c.h.b16 %v801
  %v3137 = vunpack.c.l.b16 %v802
  %v3138 = vunpack.c.h.b16 %v802
  %v3139 = vunpack.c.l.b16 %v803
  %v3140 = vunpack.c.l.b16 %v804
  %v3141 = vunpack.c.h.b16 %v804
  %v3142 = vunpack.c.l.b16 %v805
  %v3143 = vunpack.c.h.b16 %v805
  %v3144 = vunpack.c.l.b16 %v806
  %v3145 = vunpack.c.l.b16 %v807
  %v3146 = vunpack.c.h.b16 %v807
  %v3147 = vunpack.c.l.b16 %v808
  %v3148 = vunpack.c.h.b16 %v808
  %v3149 = vunpack.c.l.b16 %v809
  %v3150 = vunpack.c.l.b16 %v810
  %v3151 = vunpack.c.h.b16 %v810
  %v3152 = vunpack.c.l.b16 %v811
  %v3153 = vunpack.c.h.b16 %v811
  %v3154 = vunpack.c.l.b16 %v812
  %v3155 = vunpack.c.l.b16 %v813
  %v3156 = vunpack.c.h.b16 %v813
  %v3157 = vunpack.c.l.b16 %v814
  %v3158 = vunpack.c.h.b16 %v814
  %v3159 = vunpack.c.l.b16 %v815
  %v3160 = vunpack.c.l.b16 %v816
  %v3161 = vunpack.c.h.b16 %v816
  %v3162 = vunpack.c.l.b16 %v817
  %v3163 = vunpack.c.h.b16 %v817
  %v3164 = vunpack.c.l.b16 %v818
  %v3165 = vunpack.c.l.b16 %v819
  %v3166 = vunpack.c.h.b16 %v819
  %v3167 = vunpack.c.l.b16 %v820
  %v3168 = vunpack.c.h.b16 %v820
  %v3169 = vunpack.c.l.b16 %v821
  %v3170 = vunpack.c.l.b16 %v822
  %v3171 = vunpack.c.h.b16 %v822
  %v3172 = vunpack.c.l.b16 %v823
  %v3173 = vunpack.c.h.b16 %v823
  %v3174 = vunpack.c.l.b16 %v824
  %v3175 = vunpack.c.l.b16 %v825
  %v3176 = vunpack.c.h.b16 %v825
  %v3177 = vunpack.c.l.b16 %v826
  %v3178 = vunpack.c.h.b16 %v826
  %v3179 = vunpack.c.l.b16 %v827
  %v3180 = vunpack.c.l.b16 %v828
  %v3181 = vunpack.c.h.b16 %v828
  %v3182 = vunpack.c.l.b16 %v829
  %v3183 = vunpack.c.h.b16 %v829
  %v3184 = vunpack.c.l.b16 %v830
  %v3185 = vunpack.c.l.b16 %v831
  %v3186 = vunpack.c.h.b16 %v831
  %v3187 = vunpack.c.l.b16 %v832
  %v3188 = vunpack.c.h.b16 %v832
  %v3189 = vunpack.c.l.b16 %v833
  %v3190 = vunpack.c.l.b16 %v834
  %v3191 = vunpack.c.h.b16 %v834
  %v3192 = vunpack.c.l.b16 %v835
  %v3193 = vunpack.c.h.b16 %v835
  %v3194 = vunpack.c.l.b16 %v836
  %v3195 = vunpack.c.l.b16 %v837
  %v3196 = vunpack.c.h.b16 %v837
  %v3197 = vunpack.c.l.b16 %v838
  %v3198 = vunpack.c.h.b16 %v838
  %v3199 = vunpack.c.l.b16 %v839
  %v3200 = vunpack.c.l.b16 %v840
  %v3201 = vunpack.c.h.b16 %v840
  %v3202 = vunpack.c.l.b16 %v841
  %v3203 = vunpack.c.h.b16 %v841
  %v3204 = vunpack.c.l.b16 %v842
  %v3205 = vunpack.c.l.b16 %v843
  %v3206 = vunpack.c.h.b16 %v843
  %v3207 = vunpack.c.l.b16 %v844
  %v3208 = vunpack.c.h.b16 %v844
  %v3209 = vunpack.c.l.b16 %v845
  %v3210 = vunpack.c.l.b16 %v846
  %v3211 = vunpack.c.h.b16 %v846
  %v3212 = vunpack.c.l.b16 %v847
  %v3213 = vunpack.c.h.b16 %v847
  %v3214 = vunpack.c.l.b16 %v848
  %v3215 = vunpack.c.l.b16 %v849
  %v3216 = vunpack.c.h.b16 %v849
  %v3217 = vunpack.c.l.b16 %v850
  %v3218 = vunpack.c.h.b16 %v850
  %v3219 = vunpack.c.l.b16 %v851
  %v3220 = vunpack.c.l.b16 %v852
  %v3221 = vunpack.c.h.b16 %v852
  %v3222 = vunpack.c.l.b16 %v853
  %v3223 = vunpack.c.h.b16 %v853
  %v3224 = vunpack.c.l.b16 %v854
  %v3225 = vunpack.c.l.b16 %v855
  %v3226 = vunpack.c.h.b16 %v855
  %v3227 = vunpack.c.l.b16 %v856
  %v3228 = vunpack.c.h.b16 %v856
  %v3229 = vunpack.c.l.b16 %v857
  %v3230 = vunpack.c.l.b16 %v858
  %v3231 = vunpack.c.h.b16 %v858
  %v3232 = vunpack.c.l.b16 %v859
  %v3233 = vunpack.c.h.b16 %v859
  %v3234 = vunpack.c.l.b16 %v860
  %v3235 = vunpack.c.l.b16 %v861
  %v3236 = vunpack.c.h.b16 %v861
  %v3237 = vunpack.c.l.b16 %v862
  %v3238 = vunpack.c.h.b16 %v862
  %v3239 = vunpack.c.l.b16 %v863
  %v3240 = vunpack.c.l.b16 %v864
  %v3241 = vunpack.c.h.b16 %v864
  %v3242 = vunpack.c.l.b16 %v865
  %v3243 = vunpack.c.h.b16 %v865
  %v3244 = vunpack.c.l.b16 %v866
  %v3245 = vunpack.c.l.b16 %v867
  %v3246 = vunpack.c.h.b16 %v867
  %v3247 = vunpack.c.l.b16 %v868
  %v3248 = vunpack.c.h.b16 %v868
  %v3249 = vunpack.c.l.b16 %v869
  %v3250 = vunpack.c.l.b16 %v870
  %v3251 = vunpack.c.h.b16 %v870
  %v3252 = vunpack.c.l.b16 %v871
  %v3253 = vunpack.c.h.b16 %v871
  %v3254 = vunpack.c.l.b16 %v872
  %v3255 = vunpack.c.l.b16 %v873
  %v3256 = vunpack.c.h.b16 %v873
  %v3257 = vunpack.c.l.b16 %v874
  %v3258 = vunpack.c.h.b16 %v874
  %v3259 = vunpack.c.l.b16 %v875
  %v3260 = vunpack.c.l.b16 %v876
  %v3261 = vunpack.c.h.b16 %v876
  %v3262 = vunpack.c.l.b16 %v877
  %v3263 = vunpack.c.h.b16 %v877
  %v3264 = vunpack.c.l.b16 %v878
  %v3265 = vunpack.c.l.b16 %v879
  %v3266 = vunpack.c.h.b16 %v879
  %v3267 = vunpack.c.l.b16 %v880
  %v3268 = vunpack.c.h.b16 %v880
  %v3269 = vunpack.c.l.b16 %v881
  %v3270 = vunpack.c.l.b16 %v882
  %v3271 = vunpack.c.h.b16 %v882
  %v3272 = vunpack.c.l.b16 %v883
  %v3273 = vunpack.c.h.b16 %v883
  %v3274 = vunpack.c.l.b16 %v884
  %v3275 = vunpack.c.l.b16 %v885
  %v3276 = vunpack.c.h.b16 %v885
  %v3277 = vunpack.c.l.b16 %v886
  %v3278 = vunpack.c.h.b16 %v886
  %v3279 = vunpack.c.l.b16 %v887
  %v3280 = vunpack.c.l.b16 %v888
  %v3281 = vunpack.c.h.b16 %v888
  %v3282 = vunpack.c.l.b16 %v889
  %v3283 = vunpack.c.h.b16 %v889
  %v3284 = vunpack.c.l.b16 %v890
  %v3285 = vunpack.c.l.b16 %v891
  %v3286 = vunpack.c.h.b16 %v891
  %v3287 = vunpack.c.l.b16 %v892
  %v3288 = vunpack.c.h.b16 %v892
  %v3289 = vunpack.c.l.b16 %v893
  %v3290 = vunpack.c.l.b16 %v894
  %v3291 = vunpack.c.h.b16 %v894
  %v3292 = vunpack.c.l.b16 %v895
  %v3293 = vunpack.c.h.b16 %v895
  %v3294 = vunpack.c.l.b16 %v896
  %v3295 = vunpack.c.l.b16 %v897
  %v3296 = vunpack.c.h.b16 %v897
  %v3297 = vunpack.c.l.b16 %v898
  %v3298 = vunpack.c.h.b16 %v898
  %v3299 = vunpack.c.l.b16 %v899
  %v3300 = vunpack.c.l.b16 %v900
  %v3301 = vunpack.c.h.b16 %v900
  %v3302 = vunpack.c.l.b16 %v901
  %v3303 = vunpack.c.h.b16 %v901
  %v3304 = vunpack.c.l.b16 %v902
  %v3305 = vunpack.c.l.b16 %v903
  %v3306 = vunpack.c.h.b16 %v903
  %v3307 = vunpack.c.l.b16 %v904
  %v3308 = vunpack.c.h.b16 %v904
  %v3309 = vunpack.c.l.b16 %v905
  %v3310 = vunpack.c.l.b16 %v906
  %v3311 = vunpack.c.h.b16 %v906
  %v3312 = vunpack.c.l.b16 %v907
  %v3313 = vunpack.c.h.b16 %v907
  %v3314 = vunpack.c.l.b16 %v908
  %v3315 = vpack.c.b16 %v1880, %v1875
  %v3316 = vpack.c.b16 %v1881, %v1876
  %v3317 = vpack.c.b16 %v1882, %v1877
  %v3318 = vpack.c.b16 %v1883, %v1878
  %v3319 = vpack.c.b16 %v1884, %v1879
  %v3320 = vpack.c.b16 %v1890, %v1885
  %v3321 = vpack.c.b16 %v1891, %v1886
  %v3322 = vpack.c.b16 %v1892, %v1887
  %v3323 = vpack.c.b16 %v1893, %v1888
  %v3324 = vpack.c.b16 %v1894, %v1889
  %v3325 = vpack.c.b16 %v1900, %v1895
  %v3326 = vpack.c.b16 %v1901, %v1896
  %v3327 = vpack.c.b16 %v1902, %v1897
  %v3328 = vpack.c.b16 %v1903, %v1898
  %v3329 = vpack.c.b16 %v1904, %v1899
  %v3330 = vpack.c.b16 %v1910, %v1905
  %v3331 = vpack.c.b16 %v1911, %v1906
  %v3332 = vpack.c.b16 %v1912, %v1907
  %v3333 = vpack.c.b16 %v1913, %v1908
  %v3334 = vpack.c.b16 %v1914, %v1909
  %v3335 = vpack.c.b16 %v1920, %v1915
  %v3336 = vpack.c.b16 %v1921, %v1916
  %v3337 = vpack.c.b16 %v1922, %v1917
  %v3338 = vpack.c.b16 %v1923, %v1918
  %v3339 = vpack.c.b16 %v1924, %v1919
  %v3340 = vpack.c.b16 %v1930, %v1925
  %v3341 = vpack.c.b16 %v1931, %v1926
  %v3342 = vpack.c.b16 %v1932, %v1927
  %v3343 = vpack.c.b16 %v1933, %v1928
  %v3344 = vpack.c.b16 %v1934, %v1929
  %v3345 = vpack.c.b16 %v1940, %v1935
  %v3346 = vpack.c.b16 %v1941, %v1936
  %v3347 = vpack.c.b16 %v1942, %v1937
  %v3348 = vpack.c.b16 %v1943, %v1938
  %v3349 = vpack.c.b16 %v1944, %v1939
  %v3350 = vpack.c.b16 %v1950, %v1945
  %v3351 = vpack.c.b16 %v1951, %v1946
  %v3352 = vpack.c.b16 %v1952, %v1947
  %v3353 = vpack.c.b16 %v1953, %v1948
  %v3354 = vpack.c.b16 %v1954, %v1949
  %v3355 = vpack.c.b16 %v1960, %v1955
  %v3356 = vpack.c.b16 %v1961, %v1956
  %v3357 = vpack.c.b16 %v1962, %v1957
  %v3358 = vpack.c.b16 %v1963, %v1958
  %v3359 = vpack.c.b16 %v1964, %v1959
  %v3360 = vpack.c.b16 %v1970, %v1965
  %v3361 = vpack.c.b16 %v1971, %v1966
  %v3362 = vpack.c.b16 %v1972, %v1967
  %v3363 = vpack.c.b16 %v1973, %v1968
  %v3364 = vpack.c.b16 %v1974, %v1969
  %v3365 = vpack.c.b16 %v1980, %v1975
  %v3366 = vpack.c.b16 %v1981, %v1976
  %v3367 = vpack.c.b16 %v1982, %v1977
  %v3368 = vpack.c.b16 %v1983, %v1978
  %v3369 = vpack.c.b16 %v1984, %v1979
  %v3370 = vpack.c.b16 %v1990, %v1985
  %v3371 = vpack.c.b16 %v1991, %v1986
  %v3372 = vpack.c.b16 %v1992, %v1987
  %v3373 = vpack.c.b16 %v1993, %v1988
  %v3374 = vpack.c.b16 %v1994, %v1989
  %v3375 = vpack.c.b16 %v2000, %v1995
  %v3376 = vpack.c.b16 %v2001, %v1996
  %v3377 = vpack.c.b16 %v2002, %v1997
  %v3378 = vpack.c.b16 %v2003, %v1998
  %v3379 = vpack.c.b16 %v2004, %v1999
  %v3380 = vpack.c.b16 %v2010, %v2005
  %v3381 = vpack.c.b16 %v2011, %v2006
  %v3382 = vpack.c.b16 %v2012, %v2007
  %v3383 = vpack.c.b16 %v2013, %v2008
  %v3384 = vpack.c.b16 %v2014, %v2009
  %v3385 = vpack.c.b16 %v2020, %v2015
  %v3386 = vpack.c.b16 %v2021, %v2016
  %v3387 = vpack.c.b16 %v2022, %v2017
  %v3388 = vpack.c.b16 %v2023, %v2018
  %v3389 = vpack.c.b16 %v2024, %v2019
  %v3390 = vpack.c.b16 %v2030, %v2025
  %v3391 = vpack.c.b16 %v2031, %v2026
  %v3392 = vpack.c.b16 %v2032, %v2027
  %v3393 = vpack.c.b16 %v2033, %v2028
  %v3394 = vpack.c.b16 %v2034, %v2029
  %v3395 = vpack.c.b16 %v2040, %v2035
  %v3396 = vpack.c.b16 %v2041, %v2036
  %v3397 = vpack.c.b16 %v2042, %v2037
  %v3398 = vpack.c.b16 %v2043, %v2038
  %v3399 = vpack.c.b16 %v2044, %v2039
  %v3400 = vpack.c.b16 %v2050, %v2045
  %v3401 = vpack.c.b16 %v2051, %v2046
  %v3402 = vpack.c.b16 %v2052, %v2047
  %v3403 = vpack.c.b16 %v2053, %v2048
  %v3404 = vpack.c.b16 %v2054, %v2049
  %v3405 = vpack.c.b16 %v2060, %v2055
  %v3406 = vpack.c.b16 %v2061, %v2056
  %v3407 = vpack.c.b16 %v2062, %v2057
  %v3408 = vpack.c.b16 %v2063, %v2058
  %v3409 = vpack.c.b16 %v2064, %v2059
  %v3410 = vpack.c.b16 %v2070, %v2065
  %v3411 = vpack.c.b16 %v2071, %v2066
  %v3412 = vpack.c.b16 %v2072, %v2067
  %v3413 = vpack.c.b16 %v2073, %v2068
  %v3414 = vpack.c.b16 %v2074, %v2069
  %v3415 = vpack.c.b16 %v2080, %v2075
  %v3416 = vpack.c.b16 %v2081, %v2076
  %v3417 = vpack.c.b16 %v2082, %v2077
  %v3418 = vpack.c.b16 %v2083, %v2078
  %v3419 = vpack.c.b16 %v2084, %v2079
  %v3420 = vpack.c.b16 %v2090, %v2085
  %v3421 = vpack.c.b16 %v2091, %v2086
  %v3422 = vpack.c.b16 %v2092, %v2087
  %v3423 = vpack.c.b16 %v2093, %v2088
  %v3424 = vpack.c.b16 %v2094, %v2089
  %v3425 = vpack.c.b16 %v2100, %v2095
  %v3426 = vpack.c.b16 %v2101, %v2096
  %v3427 = vpack.c.b16 %v2102, %v2097
  %v3428 = vpack.c.b16 %v2103, %v2098
  %v3429 = vpack.c.b16 %v2104, %v2099
  %v3430 = vpack.c.b16 %v2110, %v2105
  %v3431 = vpack.c.b16 %v2111, %v2106
  %v3432 = vpack.c.b16 %v2112, %v2107
  %v3433 = vpack.c.b16 %v2113, %v2108
  %v3434 = vpack.c.b16 %v2114, %v2109
  %v3435 = vpack.c.b16 %v2120, %v2115
  %v3436 = vpack.c.b16 %v2121, %v2116
  %v3437 = vpack.c.b16 %v2122, %v2117
  %v3438 = vpack.c.b16 %v2123, %v2118
  %v3439 = vpack.c.b16 %v2124, %v2119
  %v3440 = vpack.c.b16 %v2130, %v2125
  %v3441 = vpack.c.b16 %v2131, %v2126
  %v3442 = vpack.c.b16 %v2132, %v2127
  %v3443 = vpack.c.b16 %v2133, %v2128
  %v3444 = vpack.c.b16 %v2134, %v2129
  %v3445 = vpack.c.b16 %v2140, %v2135
  %v3446 = vpack.c.b16 %v2141, %v2136
  %v3447 = vpack.c.b16 %v2142, %v2137
  %v3448 = vpack.c.b16 %v2143, %v2138
  %v3449 = vpack.c.b16 %v2144, %v2139
  %v3450 = vpack.c.b16 %v2150, %v2145
  %v3451 = vpack.c.b16 %v2151, %v2146
  %v3452 = vpack.c.b16 %v2152, %v2147
  %v3453 = vpack.c.b16 %v2153, %v2148
  %v3454 = vpack.c.b16 %v2154, %v2149
  %v3455 = vpack.c.b16 %v2160, %v2155
  %v3456 = vpack.c.b16 %v2161, %v2156
  %v3457 = vpack.c.b16 %v2162, %v2157
  %v3458 = vpack.c.b16 %v2163, %v2158
  %v3459 = vpack.c.b16 %v2164, %v2159
  %v3460 = vpack.c.b16 %v2170, %v2165
  %v3461 = vpack.c.b16 %v2171, %v2166
  %v3462 = vpack.c.b16 %v2172, %v2167
  %v3463 = vpack.c.b16 %v2173, %v2168
  %v3464 = vpack.c.b16 %v2174, %v2169
  %v3465 = vpack.c.b16 %v2180, %v2175
  %v3466 = vpack.c.b16 %v2181, %v2176
  %v3467 = vpack.c.b16 %v2182, %v2177
  %v3468 = vpack.c.b16 %v2183, %v2178
  %v3469 = vpack.c.b16 %v2184, %v2179
  %v3470 = vpack.c.b16 %v2190, %v2185
  %v3471 = vpack.c.b16 %v2191, %v2186
  %v3472 = vpack.c.b16 %v2192, %v2187
  %v3473 = vpack.c.b16 %v2193, %v2188
  %v3474 = vpack.c.b16 %v2194, %v2189
  %v3475 = vpack.c.b16 %v2200, %v2195
  %v3476 = vpack.c.b16 %v2201, %v2196
  %v3477 = vpack.c.b16 %v2202, %v2197
  %v3478 = vpack.c.b16 %v2203, %v2198
  %v3479 = vpack.c.b16 %v2204, %v2199
  %v3480 = vpack.c.b16 %v2210, %v2205
  %v3481 = vpack.c.b16 %v2211, %v2206
  %v3482 = vpack.c.b16 %v2212, %v2207
  %v3483 = vpack.c.b16 %v2213, %v2208
  %v3484 = vpack.c.b16 %v2214, %v2209
  %v3485 = vpack.c.b16 %v2220, %v2215
  %v3486 = vpack.c.b16 %v2221, %v2216
  %v3487 = vpack.c.b16 %v2222, %v2217
  %v3488 = vpack.c.b16 %v2223, %v2218
  %v3489 = vpack.c.b16 %v2224, %v2219
  %v3490 = vpack.c.b16 %v2230, %v2225
  %v3491 = vpack.c.b16 %v2231, %v2226
  %v3492 = vpack.c.b16 %v2232, %v2227
  %v3493 = vpack.c.b16 %v2233, %v2228
  %v3494 = vpack.c.b16 %v2234, %v2229
  %v3495 = vpack.c.b16 %v2240, %v2235
  %v3496 = vpack.c.b16 %v2241, %v2236
  %v3497 = vpack.c.b16 %v2242, %v2237
  %v3498 = vpack.c.b16 %v2243, %v2238
  %v3499 = vpack.c.b16 %v2244, %v2239
  %v3500 = vpack.c.b16 %v2250, %v2245
  %v3501 = vpack.c.b16 %v2251, %v2246
  %v3502 = vpack.c.b16 %v2252, %v2247
  %v3503 = vpack.c.b16 %v2253, %v2248
  %v3504 = vpack.c.b16 %v2254, %v2249
  %v3505 = vpack.c.b16 %v2260, %v2255
  %v3506 = vpack.c.b16 %v2261, %v2256
  %v3507 = vpack.c.b16 %v2262, %v2257
  %v3508 = vpack.c.b16 %v2263, %v2258
  %v3509 = vpack.c.b16 %v2264, %v2259
  %v3510 = vpack.c.b16 %v2270, %v2265
  %v3511 = vpack.c.b16 %v2271, %v2266
  %v3512 = vpack.c.b16 %v2272, %v2267
  %v3513 = vpack.c.b16 %v2273, %v2268
  %v3514 = vpack.c.b16 %v2274, %v2269
  %v3515 = vpack.c.b16 %v2280, %v2275
  %v3516 = vpack.c.b16 %v2281, %v2276
  %v3517 = vpack.c.b16 %v2282, %v2277
  %v3518 = vpack.c.b16 %v2283, %v2278
  %v3519 = vpack.c.b16 %v2284, %v2279
  %v3520 = vpack.c.b16 %v2290, %v2285
  %v3521 = vpack.c.b16 %v2291, %v2286
  %v3522 = vpack.c.b16 %v2292, %v2287
  %v3523 = vpack.c.b16 %v2293, %v2288
  %v3524 = vpack.c.b16 %v2294, %v2289
  %v3525 = vpack.c.b16 %v2300, %v2295
  %v3526 = vpack.c.b16 %v2301, %v2296
  %v3527 = vpack.c.b16 %v2302, %v2297
  %v3528 = vpack.c.b16 %v2303, %v2298
  %v3529 = vpack.c.b16 %v2304, %v2299
  %v3530 = vpack.c.b16 %v2310, %v2305
  %v3531 = vpack.c.b16 %v2311, %v2306
  %v3532 = vpack.c.b16 %v2312, %v2307
  %v3533 = vpack.c.b16 %v2313, %v2308
  %v3534 = vpack.c.b16 %v2314, %v2309
  %v3535 = vpack.c.b16 %v2320, %v2315
  %v3536 = vpack.c.b16 %v2321, %v2316
  %v3537 = vpack.c.b16 %v2322, %v2317
  %v3538 = vpack.c.b16 %v2323, %v2318
  %v3539 = vpack.c.b16 %v2324, %v2319
  %v3540 = vpack.c.b16 %v2330, %v2325
  %v3541 = vpack.c.b16 %v2331, %v2326
  %v3542 = vpack.c.b16 %v2332, %v2327
  %v3543 = vpack.c.b16 %v2333, %v2328
  %v3544 = vpack.c.b16 %v2334, %v2329
  %v3545 = vpack.c.b16 %v2340, %v2335
  %v3546 = vpack.c.b16 %v2341, %v2336
  %v3547 = vpack.c.b16 %v2342, %v2337
  %v3548 = vpack.c.b16 %v2343, %v2338
  %v3549 = vpack.c.b16 %v2344, %v2339
  %v3550 = vpack.c.b16 %v2350, %v2345
  %v3551 = vpack.c.b16 %v2351, %v2346
  %v3552 = vpack.c.b16 %v2352, %v2347
  %v3553 = vpack.c.b16 %v2353, %v2348
  %v3554 = vpack.c.b16 %v2354, %v2349
  %v3555 = vpack.c.b16 %v2360, %v2355
  %v3556 = vpack.c.b16 %v2361, %v2356
  %v3557 = vpack.c.b16 %v2362, %v2357
  %v3558 = vpack.c.b16 %v2363, %v2358
  %v3559 = vpack.c.b16 %v2364, %v2359
  %v3560 = vpack.c.b16 %v2370, %v2365
  %v3561 = vpack.c.b16 %v2371, %v2366
  %v3562 = vpack.c.b16 %v2372, %v2367
  %v3563 = vpack.c.b16 %v2373, %v2368
  %v3564 = vpack.c.b16 %v2374, %v2369
  %v3565 = vpack.c.b16 %v2380, %v2375
  %v3566 = vpack.c.b16 %v2381, %v2376
  %v3567 = vpack.c.b16 %v2382, %v2377
  %v3568 = vpack.c.b16 %v2383, %v2378
  %v3569 = vpack.c.b16 %v2384, %v2379
  %v3570 = vpack.c.b16 %v2390, %v2385
  %v3571 = vpack.c.b16 %v2391, %v2386
  %v3572 = vpack.c.b16 %v2392, %v2387
  %v3573 = vpack.c.b16 %v2393, %v2388
  %v3574 = vpack.c.b16 %v2394, %v2389
  %v3575 = vpack.c.b16 %v2400, %v2395
  %v3576 = vpack.c.b16 %v2401, %v2396
  %v3577 = vpack.c.b16 %v2402, %v2397
  %v3578 = vpack.c.b16 %v2403, %v2398
  %v3579 = vpack.c.b16 %v2404, %v2399
  %v3580 = vpack.c.b16 %v2410, %v2405
  %v3581 = vpack.c.b16 %v2411, %v2406
  %v3582 = vpack.c.b16 %v2412, %v2407
  %v3583 = vpack.c.b16 %v2413, %v2408
  %v3584 = vpack.c.b16 %v2414, %v2409
  %v3585 = vpack.c.b16 %v2420, %v2415
  %v3586 = vpack.c.b16 %v2421, %v2416
  %v3587 = vpack.c.b16 %v2422, %v2417
  %v3588 = vpack.c.b16 %v2423, %v2418
  %v3589 = vpack.c.b16 %v2424, %v2419
  %v3590 = vpack.c.b16 %v2430, %v2425
  %v3591 = vpack.c.b16 %v2431, %v2426
  %v3592 = vpack.c.b16 %v2432, %v2427
  %v3593 = vpack.c.b16 %v2433, %v2428
  %v3594 = vpack.c.b16 %v2434, %v2429
  %v3595 = vpack.c.b16 %v2440, %v2435
  %v3596 = vpack.c.b16 %v2441, %v2436
  %v3597 = vpack.c.b16 %v2442, %v2437
  %v3598 = vpack.c.b16 %v2443, %v2438
  %v3599 = vpack.c.b16 %v2444, %v2439
  %v3600 = vpack.c.b16 %v2450, %v2445
  %v3601 = vpack.c.b16 %v2451, %v2446
  %v3602 = vpack.c.b16 %v2452, %v2447
  %v3603 = vpack.c.b16 %v2453, %v2448
  %v3604 = vpack.c.b16 %v2454, %v2449
  %v3605 = vpack.c.b16 %v2460, %v2455
  %v3606 = vpack.c.b16 %v2461, %v2456
  %v3607 = vpack.c.b16 %v2462, %v2457
  %v3608 = vpack.c.b16 %v2463, %v2458
  %v3609 = vpack.c.b16 %v2464, %v2459
  %v3610 = vpack.c.b16 %v2470, %v2465
  %v3611 = vpack.c.b16 %v2471, %v2466
  %v3612 = vpack.c.b16 %v2472, %v2467
  %v3613 = vpack.c.b16 %v2473, %v2468
  %v3614 = vpack.c.b16 %v2474, %v2469
  %v3615 = vpack.c.b16 %v2480, %v2475
  %v3616 = vpack.c.b16 %v2481, %v2476
  %v3617 = vpack.c.b16 %v2482, %v2477
  %v3618 = vpack.c.b16 %v2483, %v2478
  %v3619 = vpack.c.b16 %v2484, %v2479
  %v3620 = vpack.c.b16 %v2490, %v2485
  %v3621 = vpack.c.b16 %v2491, %v2486
  %v3622 = vpack.c.b16 %v2492, %v2487
  %v3623 = vpack.c.b16 %v2493, %v2488
  %v3624 = vpack.c.b16 %v2494, %v2489
  %v3625 = vpack.c.b16 %v2500, %v2495
  %v3626 = vpack.c.b16 %v2501, %v2496
  %v3627 = vpack.c.b16 %v2502, %v2497
  %v3628 = vpack.c.b16 %v2503, %v2498
  %v3629 = vpack.c.b16 %v2504, %v2499
  %v3630 = vpack.c.b16 %v2510, %v2505
  %v3631 = vpack.c.b16 %v2511, %v2506
  %v3632 = vpack.c.b16 %v2512, %v2507
  %v3633 = vpack.c.b16 %v2513, %v2508
  %v3634 = vpack.c.b16 %v2514, %v2509
  %v3635 = vpack.c.b16 %v2520, %v2515
  %v3636 = vpack.c.b16 %v2521, %v2516
  %v3637 = vpack.c.b16 %v2522, %v2517
  %v3638 = vpack.c.b16 %v2523, %v2518
  %v3639 = vpack.c.b16 %v2524, %v2519
  %v3640 = vpack.c.b16 %v2530, %v2525
  %v3641 = vpack.c.b16 %v2531, %v2526
  %v3642 = vpack.c.b16 %v2532, %v2527
  %v3643 = vpack.c.b16 %v2533, %v2528
  %v3644 = vpack.c.b16 %v2534, %v2529
  %v3645 = vpack.c.b16 %v2540, %v2535
  %v3646 = vpack.c.b16 %v2541, %v2536
  %v3647 = vpack.c.b16 %v2542, %v2537
  %v3648 = vpack.c.b16 %v2543, %v2538
  %v3649 = vpack.c.b16 %v2544, %v2539
  %v3650 = vpack.c.b16 %v2550, %v2545
  %v3651 = vpack.c.b16 %v2551, %v2546
  %v3652 = vpack.c.b16 %v2552, %v2547
  %v3653 = vpack.c.b16 %v2553, %v2548
  %v3654 = vpack.c.b16 %v2554, %v2549
  %v3655 = vpack.c.b16 %v2560, %v2555
  %v3656 = vpack.c.b16 %v2561, %v2556
  %v3657 = vpack.c.b16 %v2562, %v2557
  %v3658 = vpack.c.b16 %v2563, %v2558
  %v3659 = vpack.c.b16 %v2564, %v2559
  %v3660 = vpack.c.b16 %v2570, %v2565
  %v3661 = vpack.c.b16 %v2571, %v2566
  %v3662 = vpack.c.b16 %v2572, %v2567
  %v3663 = vpack.c.b16 %v2573, %v2568
  %v3664 = vpack.c.b16 %v2574, %v2569
  %v3665 = vpack.c.b16 %v2580, %v2575
  %v3666 = vpack.c.b16 %v2581, %v2576
  %v3667 = vpack.c.b16 %v2582, %v2577
  %v3668 = vpack.c.b16 %v2583, %v2578
  %v3669 = vpack.c.b16 %v2584, %v2579
  %v3670 = vpack.c.b16 %v2590, %v2585
  %v3671 = vpack.c.b16 %v2591, %v2586
  %v3672 = vpack.c.b16 %v2592, %v2587
  %v3673 = vpack.c.b16 %v2593, %v2588
  %v3674 = vpack.c.b16 %v2594, %v2589
  %v3675 = vpack.c.b16 %v2600, %v2595
  %v3676 = vpack.c.b16 %v2601, %v2596
  %v3677 = vpack.c.b16 %v2602, %v2597
  %v3678 = vpack.c.b16 %v2603, %v2598
  %v3679 = vpack.c.b16 %v2604, %v2599
  %v3680 = vpack.c.b16 %v2610, %v2605
  %v3681 = vpack.c.b16 %v2611, %v2606
  %v3682 = vpack.c.b16 %v2612, %v2607
  %v3683 = vpack.c.b16 %v2613, %v2608
  %v3684 = vpack.c.b16 %v2614, %v2609
  %v3685 = vpack.c.b16 %v2620, %v2615
  %v3686 = vpack.c.b16 %v2621, %v2616
  %v3687 = vpack.c.b16 %v2622, %v2617
  %v3688 = vpack.c.b16 %v2623, %v2618
  %v3689 = vpack.c.b16 %v2624, %v2619
  %v3690 = vpack.c.b16 %v2630, %v2625
  %v3691 = vpack.c.b16 %v2631, %v2626
  %v3692 = vpack.c.b16 %v2632, %v2627
  %v3693 = vpack.c.b16 %v2633, %v2628
  %v3694 = vpack.c.b16 %v2634, %v2629
  %v3695 = vpack.c.b16 %v2640, %v2635
  %v3696 = vpack.c.b16 %v2641, %v2636
  %v3697 = vpack.c.b16 %v2642, %v2637
  %v3698 = vpack.c.b16 %v2643, %v2638
  %v3699 = vpack.c.b16 %v2644, %v2639
  %v3700 = vpack.c.b16 %v2650, %v2645
  %v3701 = vpack.c.b16 %v2651, %v2646
  %v3702 = vpack.c.b16 %v2652, %v2647
  %v3703 = vpack.c.b16 %v2653, %v2648
  %v3704 = vpack.c.b16 %v2654, %v2649
  %v3705 = vpack.c.b16 %v2660, %v2655
  %v3706 = vpack.c.b16 %v2661, %v2656
  %v3707 = vpack.c.b16 %v2662, %v2657
  %v3708 = vpack.c.b16 %v2663, %v2658
  %v3709 = vpack.c.b16 %v2664, %v2659
  %v3710 = vpack.c.b16 %v2670, %v2665
  %v3711 = vpack.c.b16 %v2671, %v2666
  %v3712 = vpack.c.b16 %v2672, %v2667
  %v3713 = vpack.c.b16 %v2673, %v2668
  %v3714 = vpack.c.b16 %v2674, %v2669
  %v3715 = vpack.c.b16 %v2680, %v2675
  %v3716 = vpack.c.b16 %v2681, %v2676
  %v3717 = vpack.c.b16 %v2682, %v2677
  %v3718 = vpack.c.b16 %v2683, %v2678
  %v3719 = vpack.c.b16 %v2684, %v2679
  %v3720 = vpack.c.b16 %v2690, %v2685
  %v3721 = vpack.c.b16 %v2691, %v2686
  %v3722 = vpack.c.b16 %v2692, %v2687
  %v3723 = vpack.c.b16 %v2693, %v2688
  %v3724 = vpack.c.b16 %v2694, %v2689
  %v3725 = vpack.c.b16 %v2700, %v2695
  %v3726 = vpack.c.b16 %v2701, %v2696
  %v3727 = vpack.c.b16 %v2702, %v2697
  %v3728 = vpack.c.b16 %v2703, %v2698
  %v3729 = vpack.c.b16 %v2704, %v2699
  %v3730 = vpack.c.b16 %v2710, %v2705
  %v3731 = vpack.c.b16 %v2711, %v2706
  %v3732 = vpack.c.b16 %v2712, %v2707
  %v3733 = vpack.c.b16 %v2713, %v2708
  %v3734 = vpack.c.b16 %v2714, %v2709
  %v3735 = vpack.c.b16 %v2720, %v2715
  %v3736 = vpack.c.b16 %v2721, %v2716
  %v3737 = vpack.c.b16 %v2722, %v2717
  %v3738 = vpack.c.b16 %v2723, %v2718
  %v3739 = vpack.c.b16 %v2724, %v2719
  %v3740 = vpack.c.b16 %v2730, %v2725
  %v3741 = vpack.c.b16 %v2731, %v2726
  %v3742 = vpack.c.b16 %v2732, %v2727
  %v3743 = vpack.c.b16 %v2733, %v2728
  %v3744 = vpack.c.b16 %v2734, %v2729
  %v3745 = vpack.c.b16 %v2740, %v2735
  %v3746 = vpack.c.b16 %v2741, %v2736
  %v3747 = vpack.c.b16 %v2742, %v2737
  %v3748 = vpack.c.b16 %v2743, %v2738
  %v3749 = vpack.c.b16 %v2744, %v2739
  %v3750 = vpack.c.b16 %v2750, %v2745
  %v3751 = vpack.c.b16 %v2751, %v2746
  %v3752 = vpack.c.b16 %v2752, %v2747
  %v3753 = vpack.c.b16 %v2753, %v2748
  %v3754 = vpack.c.b16 %v2754, %v2749
  %v3755 = vpack.c.b16 %v2760, %v2755
  %v3756 = vpack.c.b16 %v2761, %v2756
  %v3757 = vpack.c.b16 %v2762, %v2757
  %v3758 = vpack.c.b16 %v2763, %v2758
  %v3759 = vpack.c.b16 %v2764, %v2759
  %v3760 = vpack.c.b16 %v2770, %v2765
  %v3761 = vpack.c.b16 %v2771, %v2766
  %v3762 = vpack.c.b16 %v2772, %v2767
  %v3763 = vpack.c.b16 %v2773, %v2768
  %v3764 = vpack.c.b16 %v2774, %v2769
  %v3765 = vpack.c.b16 %v2780, %v2775
  %v3766 = vpack.c.b16 %v2781, %v2776
  %v3767 = vpack.c.b16 %v2782, %v2777
  %v3768 = vpack.c.b16 %v2783, %v2778
  %v3769 = vpack.c.b16 %v2784, %v2779
  %v3770 = vpack.c.b16 %v2790, %v2785
  %v3771 = vpack.c.b16 %v2791, %v2786
  %v3772 = vpack.c.b16 %v2792, %v2787
  %v3773 = vpack.c.b16 %v2793, %v2788
  %v3774 = vpack.c.b16 %v2794, %v2789
  %v3775 = vpack.c.b16 %v2800, %v2795
  %v3776 = vpack.c.b16 %v2801, %v2796
  %v3777 = vpack.c.b16 %v2802, %v2797
  %v3778 = vpack.c.b16 %v2803, %v2798
  %v3779 = vpack.c.b16 %v2804, %v2799
  %v3780 = vpack.c.b16 %v2810, %v2805
  %v3781 = vpack.c.b16 %v2811, %v2806
  %v3782 = vpack.c.b16 %v2812, %v2807
  %v3783 = vpack.c.b16 %v2813, %v2808
  %v3784 = vpack.c.b16 %v2814, %v2809
  %v3785 = vpack.c.b16 %v2820, %v2815
  %v3786 = vpack.c.b16 %v2821, %v2816
  %v3787 = vpack.c.b16 %v2822, %v2817
  %v3788 = vpack.c.b16 %v2823, %v2818
  %v3789 = vpack.c.b16 %v2824, %v2819
  %v3790 = vpack.c.b16 %v2830, %v2825
  %v3791 = vpack.c.b16 %v2831, %v2826
  %v3792 = vpack.c.b16 %v2832, %v2827
  %v3793 = vpack.c.b16 %v2833, %v2828
  %v3794 = vpack.c.b16 %v2834, %v2829
  %v3795 = vpack.c.b16 %v2840, %v2835
  %v3796 = vpack.c.b16 %v2841, %v2836
  %v3797 = vpack.c.b16 %v2842, %v2837
  %v3798 = vpack.c.b16 %v2843, %v2838
  %v3799 = vpack.c.b16 %v2844, %v2839
  %v3800 = vpack.c.b16 %v2850, %v2845
  %v3801 = vpack.c.b16 %v2851, %v2846
  %v3802 = vpack.c.b16 %v2852, %v2847
  %v3803 = vpack.c.b16 %v2853, %v2848
  %v3804 = vpack.c.b16 %v2854, %v2849
  %v3805 = vpack.c.b16 %v2860, %v2855
  %v3806 = vpack.c.b16 %v2861, %v2856
  %v3807 = vpack.c.b16 %v2862, %v2857
  %v3808 = vpack.c.b16 %v2863, %v2858
  %v3809 = vpack.c.b16 %v2864, %v2859
  %v3810 = vpack.c.b16 %v2870, %v2865
  %v3811 = vpack.c.b16 %v2871, %v2866
  %v3812 = vpack.c.b16 %v2872, %v2867
  %v3813 = vpack.c.b16 %v2873, %v2868
  %v3814 = vpack.c.b16 %v2874, %v2869
  %v3815 = vpack.c.b16 %v2880, %v2875
  %v3816 = vpack.c.b16 %v2881, %v2876
  %v3817 = vpack.c.b16 %v2882, %v2877
  %v3818 = vpack.c.b16 %v2883, %v2878
  %v3819 = vpack.c.b16 %v2884, %v2879
  %v3820 = vpack.c.b16 %v2890, %v2885
  %v3821 = vpack.c.b16 %v2891, %v2886
  %v3822 = vpack.c.b16 %v2892, %v2887
  %v3823 = vpack.c.b16 %v2893, %v2888
  %v3824 = vpack.c.b16 %v2894, %v2889
  %v3825 = vpack.c.b16 %v2900, %v2895
  %v3826 = vpack.c.b16 %v2901, %v2896
  %v3827 = vpack.c.b16 %v2902, %v2897
  %v3828 = vpack.c.b16 %v2903, %v2898
  %v3829 = vpack.c.b16 %v2904, %v2899
  %v3830 = vpack.c.b16 %v2910, %v2905
  %v3831 = vpack.c.b16 %v2911, %v2906
  %v3832 = vpack.c.b16 %v2912, %v2907
  %v3833 = vpack.c.b16 %v2913, %v2908
  %v3834 = vpack.c.b16 %v2914, %v2909
  %v3835 = vpack.c.b16 %v2920, %v2915
  %v3836 = vpack.c.b16 %v2921, %v2916
  %v3837 = vpack.c.b16 %v2922, %v2917
  %v3838 = vpack.c.b16 %v2923, %v2918
  %v3839 = vpack.c.b16 %v2924, %v2919
  %v3840 = vpack.c.b16 %v2930, %v2925
  %v3841 = vpack.c.b16 %v2931, %v2926
  %v3842 = vpack.c.b16 %v2932, %v2927
  %v3843 = vpack.c.b16 %v2933, %v2928
  %v3844 = vpack.c.b16 %v2934, %v2929
  %v3845 = vpack.c.b16 %v2940, %v2935
  %v3846 = vpack.c.b16 %v2941, %v2936
  %v3847 = vpack.c.b16 %v2942, %v2937
  %v3848 = vpack.c.b16 %v2943, %v2938
  %v3849 = vpack.c.b16 %v2944, %v2939
  %v3850 = vpack.c.b16 %v2950, %v2945
  %v3851 = vpack.c.b16 %v2951, %v2946
  %v3852 = vpack.c.b16 %v2952, %v2947
  %v3853 = vpack.c.b16 %v2953, %v2948
  %v3854 = vpack.c.b16 %v2954, %v2949
  %v3855 = vpack.c.b16 %v2960, %v2955
  %v3856 = vpack.c.b16 %v2961, %v2956
  %v3857 = vpack.c.b16 %v2962, %v2957
  %v3858 = vpack.c.b16 %v2963, %v2958
  %v3859 = vpack.c.b16 %v2964, %v2959
  %v3860 = vpack.c.b16 %v2970, %v2965
  %v3861 = vpack.c.b16 %v2971, %v2966
  %v3862 = vpack.c.b16 %v2972, %v2967
  %v3863 = vpack.c.b16 %v2973, %v2968
  %v3864 = vpack.c.b16 %v2974, %v2969
  %v3865 = vpack.c.b16 %v2980, %v2975
  %v3866 = vpack.c.b16 %v2981, %v2976
  %v3867 = vpack.c.b16 %v2982, %v2977
  %v3868 = vpack.c.b16 %v2983, %v2978
  %v3869 = vpack.c.b16 %v2984, %v2979
  %v3870 = vpack.c.b16 %v2990, %v2985
  %v3871 = vpack.c.b16 %v2991, %v2986
  %v3872 = vpack.c.b16 %v2992, %v2987
  %v3873 = vpack.c.b16 %v2993, %v2988
  %v3874 = vpack.c.b16 %v2994, %v2989
  %v3875 = vpack.c.b16 %v3000, %v2995
  %v3876 = vpack.c.b16 %v3001, %v2996
  %v3877 = vpack.c.b16 %v3002, %v2997
  %v3878 = vpack.c.b16 %v3003, %v2998
  %v3879 = vpack.c.b16 %v3004, %v2999
  %v3880 = vpack.c.b16 %v3010, %v3005
  %v3881 = vpack.c.b16 %v3011, %v3006
  %v3882 = vpack.c.b16 %v3012, %v3007
  %v3883 = vpack.c.b16 %v3013, %v3008
  %v3884 = vpack.c.b16 %v3014, %v3009
  %v3885 = vpack.c.b16 %v3020, %v3015
  %v3886 = vpack.c.b16 %v3021, %v3016
  %v3887 = vpack.c.b16 %v3022, %v3017
  %v3888 = vpack.c.b16 %v3023, %v3018
  %v3889 = vpack.c.b16 %v3024, %v3019
  %v3890 = vpack.c.b16 %v3030, %v3025
  %v3891 = vpack.c.b16 %v3031, %v3026
  %v3892 = vpack.c.b16 %v3032, %v3027
  %v3893 = vpack.c.b16 %v3033, %v3028
  %v3894 = vpack.c.b16 %v3034, %v3029
  %v3895 = vpack.c.b16 %v3040, %v3035
  %v3896 = vpack.c.b16 %v3041, %v3036
  %v3897 = vpack.c.b16 %v3042, %v3037
  %v3898 = vpack.c.b16 %v3043, %v3038
  %v3899 = vpack.c.b16 %v3044, %v3039
  %v3900 = vpack.c.b16 %v3050, %v3045
  %v3901 = vpack.c.b16 %v3051, %v3046
  %v3902 = vpack.c.b16 %v3052, %v3047
  %v3903 = vpack.c.b16 %v3053, %v3048
  %v3904 = vpack.c.b16 %v3054, %v3049
  %v3905 = vpack.c.b16 %v3060, %v3055
  %v3906 = vpack.c.b16 %v3061, %v3056
  %v3907 = vpack.c.b16 %v3062, %v3057
  %v3908 = vpack.c.b16 %v3063, %v3058
  %v3909 = vpack.c.b16 %v3064, %v3059
  %v3910 = vpack.c.b16 %v3070, %v3065
  %v3911 = vpack.c.b16 %v3071, %v3066
  %v3912 = vpack.c.b16 %v3072, %v3067
  %v3913 = vpack.c.b16 %v3073, %v3068
  %v3914 = vpack.c.b16 %v3074, %v3069
  %v3915 = vpack.c.b16 %v3080, %v3075
  %v3916 = vpack.c.b16 %v3081, %v3076
  %v3917 = vpack.c.b16 %v3082, %v3077
  %v3918 = vpack.c.b16 %v3083, %v3078
  %v3919 = vpack.c.b16 %v3084, %v3079
  %v3920 = vpack.c.b16 %v3090, %v3085
  %v3921 = vpack.c.b16 %v3091, %v3086
  %v3922 = vpack.c.b16 %v3092, %v3087
  %v3923 = vpack.c.b16 %v3093, %v3088
  %v3924 = vpack.c.b16 %v3094, %v3089
  %v3925 = vpack.c.b16 %v3100, %v3095
  %v3926 = vpack.c.b16 %v3101, %v3096
  %v3927 = vpack.c.b16 %v3102, %v3097
  %v3928 = vpack.c.b16 %v3103, %v3098
  %v3929 = vpack.c.b16 %v3104, %v3099
  %v3930 = vpack.c.b16 %v3110, %v3105
  %v3931 = vpack.c.b16 %v3111, %v3106
  %v3932 = vpack.c.b16 %v3112, %v3107
  %v3933 = vpack.c.b16 %v3113, %v3108
  %v3934 = vpack.c.b16 %v3114, %v3109
  %v3935 = vpack.c.b16 %v3120, %v3115
  %v3936 = vpack.c.b16 %v3121, %v3116
  %v3937 = vpack.c.b16 %v3122, %v3117
  %v3938 = vpack.c.b16 %v3123, %v3118
  %v3939 = vpack.c.b16 %v3124, %v3119
  %v3940 = vpack.c.b16 %v3130, %v3125
  %v3941 = vpack.c.b16 %v3131, %v3126
  %v3942 = vpack.c.b16 %v3132, %v3127
  %v3943 = vpack.c.b16 %v3133, %v3128
  %v3944 = vpack.c.b16 %v3134, %v3129
  %v3945 = vpack.c.b16 %v3140, %v3135
  %v3946 = vpack.c.b16 %v3141, %v3136
  %v3947 = vpack.c.b16 %v3142, %v3137
  %v3948 = vpack.c.b16 %v3143, %v3138
  %v3949 = vpack.c.b16 %v3144, %v3139
  %v3950 = vpack.c.b16 %v3150, %v3145
  %v3951 = vpack.c.b16 %v3151, %v3146
  %v3952 = vpack.c.b16 %v3152, %v3147
  %v3953 = vpack.c.b16 %v3153, %v3148
  %v3954 = vpack.c.b16 %v3154, %v3149
  %v3955 = vpack.c.b16 %v3160, %v3155
  %v3956 = vpack.c.b16 %v3161, %v3156
  %v3957 = vpack.c.b16 %v3162, %v3157
  %v3958 = vpack.c.b16 %v3163, %v3158
  %v3959 = vpack.c.b16 %v3164, %v3159
  %v3960 = vpack.c.b16 %v3170, %v3165
  %v3961 = vpack.c.b16 %v3171, %v3166
  %v3962 = vpack.c.b16 %v3172, %v3167
  %v3963 = vpack.c.b16 %v3173, %v3168
  %v3964 = vpack.c.b16 %v3174, %v3169
  %v3965 = vpack.c.b16 %v3180, %v3175
  %v3966 = vpack.c.b16 %v3181, %v3176
  %v3967 = vpack.c.b16 %v3182, %v3177
  %v3968 = vpack.c.b16 %v3183, %v3178
  %v3969 = vpack.c.b16 %v3184, %v3179
  %v3970 = vpack.c.b16 %v3190, %v3185
  %v3971 = vpack.c.b16 %v3191, %v3186
  %v3972 = vpack.c.b16 %v3192, %v3187
  %v3973 = vpack.c.b16 %v3193, %v3188
  %v3974 = vpack.c.b16 %v3194, %v3189
  %v3975 = vpack.c.b16 %v3200, %v3195
  %v3976 = vpack.c.b16 %v3201, %v3196
  %v3977 = vpack.c.b16 %v3202, %v3197
  %v3978 = vpack.c.b16 %v3203, %v3198
  %v3979 = vpack.c.b16 %v3204, %v3199
  %v3980 = vpack.c.b16 %v3210, %v3205
  %v3981 = vpack.c.b16 %v3211, %v3206
  %v3982 = vpack.c.b16 %v3212, %v3207
  %v3983 = vpack.c.b16 %v3213, %v3208
  %v3984 = vpack.c.b16 %v3214, %v3209
  %v3985 = vpack.c.b16 %v3220, %v3215
  %v3986 = vpack.c.b16 %v3221, %v3216
  %v3987 = vpack.c.b16 %v3222, %v3217
  %v3988 = vpack.c.b16 %v3223, %v3218
  %v3989 = vpack.c.b16 %v3224, %v3219
  %v3990 = vpack.c.b16 %v3230, %v3225
  %v3991 = vpack.c.b16 %v3231, %v3226
  %v3992 = vpack.c.b16 %v3232, %v3227
  %v3993 = vpack.c.b16 %v3233, %v3228
  %v3994 = vpack.c.b16 %v3234, %v3229
  %v3995 = vpack.c.b16 %v3240, %v3235
  %v3996 = vpack.c.b16 %v3241, %v3236
  %v3997 = vpack.c.b16 %v3242, %v3237
  %v3998 = vpack.c.b16 %v3243, %v3238
  %v3999 = vpack.c.b16 %v3244, %v3239
  %v4000 = vpack.c.b16 %v3250, %v3245
  %v4001 = vpack.c.b16 %v3251, %v3246
  %v4002 = vpack.c.b16 %v3252, %v3247
  %v4003 = vpack.c.b16 %v3253, %v3248
  %v4004 = vpack.c.b16 %v3254, %v3249
  %v4005 = vpack.c.b16 %v3260, %v3255
  %v4006 = vpack.c.b16 %v3261, %v3256
  %v4007 = vpack.c.b16 %v3262, %v3257
  %v4008 = vpack.c.b16 %v3263, %v3258
  %v4009 = vpack.c.b16 %v3264, %v3259
  %v4010 = vpack.c.b16 %v3270, %v3265
  %v4011 = vpack.c.b16 %v3271, %v3266
  %v4012 = vpack.c.b16 %v3272, %v3267
  %v4013 = vpack.c.b16 %v3273, %v3268
  %v4014 = vpack.c.b16 %v3274, %v3269
  %v4015 = vpack.c.b16 %v3280, %v3275
  %v4016 = vpack.c.b16 %v3281, %v3276
  %v4017 = vpack.c.b16 %v3282, %v3277
  %v4018 = vpack.c.b16 %v3283, %v3278
  %v4019 = vpack.c.b16 %v3284, %v3279
  %v4020 = vpack.c.b16 %v3290, %v3285
  %v4021 = vpack.c.b16 %v3291, %v3286
  %v4022 = vpack.c.b16 %v3292, %v3287
  %v4023 = vpack.c.b16 %v3293, %v3288
  %v4024 = vpack.c.b16 %v3294, %v3289
  %v4025 = vpack.c.b16 %v3300, %v3295
  %v4026 = vpack.c.b16 %v3301, %v3296
  %v4027 = vpack.c.b16 %v3302, %v3297
  %v4028 = vpack.c.b16 %v3303, %v3298
  %v4029 = vpack.c.b16 %v3304, %v3299
  %v4030 = vpack.c.b16 %v3310, %v3305
  %v4031 = vpack.c.b16 %v3311, %v3306
  %v4032 = vpack.c.b16 %v3312, %v3307
  %v4033 = vpack.c.b16 %v3313, %v3308
  %v4034 = vpack.c.b16 %v3314, %v3309
  %4755 = vmatpush.bf16.msra.mxu0 %v3350
  %4756 = vmatpush.bf16.msra.mxu0 %v3345
  %4757 = vmatpush.bf16.msra.mxu0 %v3340
  %4758 = vmatpush.bf16.msra.mxu0 %v3335
  %4759 = vmatpush.bf16.msra.mxu0 %v3330
  %4760 = vmatpush.bf16.msra.mxu0 %v3325
  %4761 = vmatpush.bf16.msra.mxu0 %v3320
  %4762 = vmatpush.bf16.msra.mxu0 %v3315
  %4763 = vmatmul.bf16.gmra.mxu0 %v975
  %v4764 = vpop.f32.mrf.mxu0
  %v4765 = vadd.f32 %v911, %v4764
  %v4766 = vpop.f32.mrf.mxu0
  %v4767 = vadd.f32 %v911, %v4766
  %4768 = vdwg.mxu0
  %4769 = vmatpush.bf16.msra.mxu0 %v3390
  %4770 = vmatpush.bf16.msra.mxu0 %v3385
  %4771 = vmatpush.bf16.msra.mxu0 %v3380
  %4772 = vmatpush.bf16.msra.mxu0 %v3375
  %4773 = vmatpush.bf16.msra.mxu0 %v3370
  %4774 = vmatpush.bf16.msra.mxu0 %v3365
  %4775 = vmatpush.bf16.msra.mxu0 %v3360
  %4776 = vmatpush.bf16.msra.mxu0 %v3355
  %4777 = vmatmul.bf16.gmra.mxu0 %v976
  %v4778 = vpop.f32.mrf.mxu0
  %v4779 = vadd.f32 %v4765, %v4778
  %v4780 = vpop.f32.mrf.mxu0
  %v4781 = vadd.f32 %v4767, %v4780
  %4782 = vdwg.mxu0
  %4783 = vmatpush.bf16.msra.mxu0 %v3430
  %4784 = vmatpush.bf16.msra.mxu0 %v3425
  %4785 = vmatpush.bf16.msra.mxu0 %v3420
  %4786 = vmatpush.bf16.msra.mxu0 %v3415
  %4787 = vmatpush.bf16.msra.mxu0 %v3410
  %4788 = vmatpush.bf16.msra.mxu0 %v3405
  %4789 = vmatpush.bf16.msra.mxu0 %v3400
  %4790 = vmatpush.bf16.msra.mxu0 %v3395
  %4791 = vmatmul.bf16.gmra.mxu0 %v977
  %v4792 = vpop.f32.mrf.mxu0
  %v4793 = vadd.f32 %v4779, %v4792
  %v4794 = vpop.f32.mrf.mxu0
  %v4795 = vadd.f32 %v4781, %v4794
  %4796 = vdwg.mxu0
  %4797 = vmatpush.bf16.msra.mxu0 %v3470
  %4798 = vmatpush.bf16.msra.mxu0 %v3465
  %4799 = vmatpush.bf16.msra.mxu0 %v3460
  %4800 = vmatpush.bf16.msra.mxu0 %v3455
  %4801 = vmatpush.bf16.msra.mxu0 %v3450
  %4802 = vmatpush.bf16.msra.mxu0 %v3445
  %4803 = vmatpush.bf16.msra.mxu0 %v3440
  %4804 = vmatpush.bf16.msra.mxu0 %v3435
  %4805 = vmatmul.bf16.gmra.mxu0 %v978
  %v4806 = vpop.f32.mrf.mxu0
  %v4807 = vadd.f32 %v4793, %v4806
  %v4808 = vpop.f32.mrf.mxu0
  %v4809 = vadd.f32 %v4795, %v4808
  %4810 = vdwg.mxu0
  %4811 = vmatpush.bf16.msra.mxu0 %v3510
  %4812 = vmatpush.bf16.msra.mxu0 %v3505
  %4813 = vmatpush.bf16.msra.mxu0 %v3500
  %4814 = vmatpush.bf16.msra.mxu0 %v3495
  %4815 = vmatpush.bf16.msra.mxu0 %v3490
  %4816 = vmatpush.bf16.msra.mxu0 %v3485
  %4817 = vmatpush.bf16.msra.mxu0 %v3480
  %4818 = vmatpush.bf16.msra.mxu0 %v3475
  %4819 = vmatmul.bf16.gmra.mxu0 %v979
  %v4820 = vpop.f32.mrf.mxu0
  %v4821 = vadd.f32 %v4807, %v4820
  %v4822 = vpop.f32.mrf.mxu0
  %v4823 = vadd.f32 %v4809, %v4822
  %4824 = vdwg.mxu0
  %4825 = vmatpush.bf16.msra.mxu0 %v3550
  %4826 = vmatpush.bf16.msra.mxu0 %v3545
  %4827 = vmatpush.bf16.msra.mxu0 %v3540
  %4828 = vmatpush.bf16.msra.mxu0 %v3535
  %4829 = vmatpush.bf16.msra.mxu0 %v3530
  %4830 = vmatpush.bf16.msra.mxu0 %v3525
  %4831 = vmatpush.bf16.msra.mxu0 %v3520
  %4832 = vmatpush.bf16.msra.mxu0 %v3515
  %4833 = vmatmul.bf16.gmra.mxu0 %v980
  %v4834 = vpop.f32.mrf.mxu0
  %v4835 = vadd.f32 %v4821, %v4834
  %v4836 = vpop.f32.mrf.mxu0
  %v4837 = vadd.f32 %v4823, %v4836
  %4838 = vdwg.mxu0
  %4839 = vmatpush.bf16.msra.mxu0 %v3590
  %4840 = vmatpush.bf16.msra.mxu0 %v3585
  %4841 = vmatpush.bf16.msra.mxu0 %v3580
  %4842 = vmatpush.bf16.msra.mxu0 %v3575
  %4843 = vmatpush.bf16.msra.mxu0 %v3570
  %4844 = vmatpush.bf16.msra.mxu0 %v3565
  %4845 = vmatpush.bf16.msra.mxu0 %v3560
  %4846 = vmatpush.bf16.msra.mxu0 %v3555
  %4847 = vmatmul.bf16.gmra.mxu0 %v981
  %v4848 = vpop.f32.mrf.mxu0
  %v4849 = vadd.f32 %v4835, %v4848
  %v4850 = vpop.f32.mrf.mxu0
  %v4851 = vadd.f32 %v4837, %v4850
  %4852 = vdwg.mxu0
  %4853 = vmatpush.bf16.msra.mxu0 %v3630
  %4854 = vmatpush.bf16.msra.mxu0 %v3625
  %4855 = vmatpush.bf16.msra.mxu0 %v3620
  %4856 = vmatpush.bf16.msra.mxu0 %v3615
  %4857 = vmatpush.bf16.msra.mxu0 %v3610
  %4858 = vmatpush.bf16.msra.mxu0 %v3605
  %4859 = vmatpush.bf16.msra.mxu0 %v3600
  %4860 = vmatpush.bf16.msra.mxu0 %v3595
  %4861 = vmatmul.bf16.gmra.mxu0 %v982
  %v4862 = vpop.f32.mrf.mxu0
  %v4863 = vadd.f32 %v4849, %v4862
  %v4864 = vpop.f32.mrf.mxu0
  %v4865 = vadd.f32 %v4851, %v4864
  %4866 = vdwg.mxu0
  %4867 = vmatpush.bf16.msra.mxu0 %v3670
  %4868 = vmatpush.bf16.msra.mxu0 %v3665
  %4869 = vmatpush.bf16.msra.mxu0 %v3660
  %4870 = vmatpush.bf16.msra.mxu0 %v3655
  %4871 = vmatpush.bf16.msra.mxu0 %v3650
  %4872 = vmatpush.bf16.msra.mxu0 %v3645
  %4873 = vmatpush.bf16.msra.mxu0 %v3640
  %4874 = vmatpush.bf16.msra.mxu0 %v3635
  %4875 = vmatmul.bf16.gmra.mxu0 %v983
  %v4876 = vpop.f32.mrf.mxu0
  %v4877 = vadd.f32 %v4863, %v4876
  %v4878 = vpop.f32.mrf.mxu0
  %v4879 = vadd.f32 %v4865, %v4878
  %4880 = vdwg.mxu0
  %4881 = vmatpush.bf16.msra.mxu0 %v3710
  %4882 = vmatpush.bf16.msra.mxu0 %v3705
  %4883 = vmatpush.bf16.msra.mxu0 %v3700
  %4884 = vmatpush.bf16.msra.mxu0 %v3695
  %4885 = vmatpush.bf16.msra.mxu0 %v3690
  %4886 = vmatpush.bf16.msra.mxu0 %v3685
  %4887 = vmatpush.bf16.msra.mxu0 %v3680
  %4888 = vmatpush.bf16.msra.mxu0 %v3675
  %4889 = vmatmul.bf16.gmra.mxu0 %v984
  %v4890 = vpop.f32.mrf.mxu0
  %v4891 = vadd.f32 %v4877, %v4890
  %v4892 = vpop.f32.mrf.mxu0
  %v4893 = vadd.f32 %v4879, %v4892
  %4894 = vdwg.mxu0
  %4895 = vmatpush.bf16.msra.mxu0 %v3750
  %4896 = vmatpush.bf16.msra.mxu0 %v3745
  %4897 = vmatpush.bf16.msra.mxu0 %v3740
  %4898 = vmatpush.bf16.msra.mxu0 %v3735
  %4899 = vmatpush.bf16.msra.mxu0 %v3730
  %4900 = vmatpush.bf16.msra.mxu0 %v3725
  %4901 = vmatpush.bf16.msra.mxu0 %v3720
  %4902 = vmatpush.bf16.msra.mxu0 %v3715
  %4903 = vmatmul.bf16.gmra.mxu0 %v985
  %v4904 = vpop.f32.mrf.mxu0
  %v4905 = vadd.f32 %v4891, %v4904
  %v4906 = vpop.f32.mrf.mxu0
  %v4907 = vadd.f32 %v4893, %v4906
  %4908 = vdwg.mxu0
  %4909 = vmatpush.bf16.msra.mxu0 %v3790
  %4910 = vmatpush.bf16.msra.mxu0 %v3785
  %4911 = vmatpush.bf16.msra.mxu0 %v3780
  %4912 = vmatpush.bf16.msra.mxu0 %v3775
  %4913 = vmatpush.bf16.msra.mxu0 %v3770
  %4914 = vmatpush.bf16.msra.mxu0 %v3765
  %4915 = vmatpush.bf16.msra.mxu0 %v3760
  %4916 = vmatpush.bf16.msra.mxu0 %v3755
  %4917 = vmatmul.bf16.gmra.mxu0 %v986
  %v4918 = vpop.f32.mrf.mxu0
  %v4919 = vadd.f32 %v4905, %v4918
  %v4920 = vpop.f32.mrf.mxu0
  %v4921 = vadd.f32 %v4907, %v4920
  %4922 = vdwg.mxu0
  %4923 = vmatpush.bf16.msra.mxu0 %v3830
  %4924 = vmatpush.bf16.msra.mxu0 %v3825
  %4925 = vmatpush.bf16.msra.mxu0 %v3820
  %4926 = vmatpush.bf16.msra.mxu0 %v3815
  %4927 = vmatpush.bf16.msra.mxu0 %v3810
  %4928 = vmatpush.bf16.msra.mxu0 %v3805
  %4929 = vmatpush.bf16.msra.mxu0 %v3800
  %4930 = vmatpush.bf16.msra.mxu0 %v3795
  %4931 = vmatmul.bf16.gmra.mxu0 %v987
  %v4932 = vpop.f32.mrf.mxu0
  %v4933 = vadd.f32 %v4919, %v4932
  %v4934 = vpop.f32.mrf.mxu0
  %v4935 = vadd.f32 %v4921, %v4934
  %4936 = vdwg.mxu0
  %4937 = vmatpush.bf16.msra.mxu0 %v3870
  %4938 = vmatpush.bf16.msra.mxu0 %v3865
  %4939 = vmatpush.bf16.msra.mxu0 %v3860
  %4940 = vmatpush.bf16.msra.mxu0 %v3855
  %4941 = vmatpush.bf16.msra.mxu0 %v3850
  %4942 = vmatpush.bf16.msra.mxu0 %v3845
  %4943 = vmatpush.bf16.msra.mxu0 %v3840
  %4944 = vmatpush.bf16.msra.mxu0 %v3835
  %4945 = vmatmul.bf16.gmra.mxu0 %v988
  %v4946 = vpop.f32.mrf.mxu0
  %v4947 = vadd.f32 %v4933, %v4946
  %v4948 = vpop.f32.mrf.mxu0
  %v4949 = vadd.f32 %v4935, %v4948
  %4950 = vdwg.mxu0
  %4951 = vmatpush.bf16.msra.mxu0 %v3910
  %4952 = vmatpush.bf16.msra.mxu0 %v3905
  %4953 = vmatpush.bf16.msra.mxu0 %v3900
  %4954 = vmatpush.bf16.msra.mxu0 %v3895
  %4955 = vmatpush.bf16.msra.mxu0 %v3890
  %4956 = vmatpush.bf16.msra.mxu0 %v3885
  %4957 = vmatpush.bf16.msra.mxu0 %v3880
  %4958 = vmatpush.bf16.msra.mxu0 %v3875
  %4959 = vmatmul.bf16.gmra.mxu0 %v989
  %v4960 = vpop.f32.mrf.mxu0
  %v4961 = vadd.f32 %v4947, %v4960
  %v4962 = vpop.f32.mrf.mxu0
  %v4963 = vadd.f32 %v4949, %v4962
  %4964 = vdwg.mxu0
  %4965 = vmatpush.bf16.msra.mxu0 %v3950
  %4966 = vmatpush.bf16.msra.mxu0 %v3945
  %4967 = vmatpush.bf16.msra.mxu0 %v3940
  %4968 = vmatpush.bf16.msra.mxu0 %v3935
  %4969 = vmatpush.bf16.msra.mxu0 %v3930
  %4970 = vmatpush.bf16.msra.mxu0 %v3925
  %4971 = vmatpush.bf16.msra.mxu0 %v3920
  %4972 = vmatpush.bf16.msra.mxu0 %v3915
  %4973 = vmatmul.bf16.gmra.mxu0 %v990
  %v4974 = vpop.f32.mrf.mxu0
  %v4975 = vadd.f32 %v4961, %v4974
  %v4976 = vpop.f32.mrf.mxu0
  %v4977 = vadd.f32 %v4963, %v4976
  %4978 = vdwg.mxu0
  %4979 = vmatpush.bf16.msra.mxu0 %v3990
  %4980 = vmatpush.bf16.msra.mxu0 %v3985
  %4981 = vmatpush.bf16.msra.mxu0 %v3980
  %4982 = vmatpush.bf16.msra.mxu0 %v3975
  %4983 = vmatpush.bf16.msra.mxu0 %v3970
  %4984 = vmatpush.bf16.msra.mxu0 %v3965
  %4985 = vmatpush.bf16.msra.mxu0 %v3960
  %4986 = vmatpush.bf16.msra.mxu0 %v3955
  %4987 = vmatmul.bf16.gmra.mxu0 %v991
  %v4988 = vpop.f32.mrf.mxu0
  %v4989 = vadd.f32 %v4975, %v4988
  %v4990 = vpop.f32.mrf.mxu0
  %v4991 = vadd.f32 %v4977, %v4990
  %4992 = vdwg.mxu0
  %4993 = vmatpush.bf16.msra.mxu0 %v4030
  %4994 = vmatpush.bf16.msra.mxu0 %v4025
  %4995 = vmatpush.bf16.msra.mxu0 %v4020
  %4996 = vmatpush.bf16.msra.mxu0 %v4015
  %4997 = vmatpush.bf16.msra.mxu0 %v4010
  %4998 = vmatpush.bf16.msra.mxu0 %v4005
  %4999 = vmatpush.bf16.msra.mxu0 %v4000
  %5000 = vmatpush.bf16.msra.mxu0 %v3995
  %5001 = vmatmul.bf16.gmra.mxu0 %v992
  %v5002 = vpop.f32.mrf.mxu0
  %v5003 = vadd.f32 %v4989, %v5002
  %v5004 = vpop.f32.mrf.mxu0
  %v5005 = vadd.f32 %v4991, %v5004
  %5006 = vdwg.mxu0
  %5007 = vmatpush.bf16.msra.mxu0 %v3351
  %5008 = vmatpush.bf16.msra.mxu0 %v3346
  %5009 = vmatpush.bf16.msra.mxu0 %v3341
  %5010 = vmatpush.bf16.msra.mxu0 %v3336
  %5011 = vmatpush.bf16.msra.mxu0 %v3331
  %5012 = vmatpush.bf16.msra.mxu0 %v3326
  %5013 = vmatpush.bf16.msra.mxu0 %v3321
  %5014 = vmatpush.bf16.msra.mxu0 %v3316
  %5015 = vmatmul.bf16.gmra.mxu0 %v975
  %v5016 = vpop.f32.mrf.mxu0
  %v5017 = vadd.f32 %v912, %v5016
  %v5018 = vpop.f32.mrf.mxu0
  %v5019 = vadd.f32 %v912, %v5018
  %5020 = vdwg.mxu0
  %5021 = vmatpush.bf16.msra.mxu0 %v3391
  %5022 = vmatpush.bf16.msra.mxu0 %v3386
  %5023 = vmatpush.bf16.msra.mxu0 %v3381
  %5024 = vmatpush.bf16.msra.mxu0 %v3376
  %5025 = vmatpush.bf16.msra.mxu0 %v3371
  %5026 = vmatpush.bf16.msra.mxu0 %v3366
  %5027 = vmatpush.bf16.msra.mxu0 %v3361
  %5028 = vmatpush.bf16.msra.mxu0 %v3356
  %5029 = vmatmul.bf16.gmra.mxu0 %v976
  %v5030 = vpop.f32.mrf.mxu0
  %v5031 = vadd.f32 %v5017, %v5030
  %v5032 = vpop.f32.mrf.mxu0
  %v5033 = vadd.f32 %v5019, %v5032
  %5034 = vdwg.mxu0
  %5035 = vmatpush.bf16.msra.mxu0 %v3431
  %5036 = vmatpush.bf16.msra.mxu0 %v3426
  %5037 = vmatpush.bf16.msra.mxu0 %v3421
  %5038 = vmatpush.bf16.msra.mxu0 %v3416
  %5039 = vmatpush.bf16.msra.mxu0 %v3411
  %5040 = vmatpush.bf16.msra.mxu0 %v3406
  %5041 = vmatpush.bf16.msra.mxu0 %v3401
  %5042 = vmatpush.bf16.msra.mxu0 %v3396
  %5043 = vmatmul.bf16.gmra.mxu0 %v977
  %v5044 = vpop.f32.mrf.mxu0
  %v5045 = vadd.f32 %v5031, %v5044
  %v5046 = vpop.f32.mrf.mxu0
  %v5047 = vadd.f32 %v5033, %v5046
  %5048 = vdwg.mxu0
  %5049 = vmatpush.bf16.msra.mxu0 %v3471
  %5050 = vmatpush.bf16.msra.mxu0 %v3466
  %5051 = vmatpush.bf16.msra.mxu0 %v3461
  %5052 = vmatpush.bf16.msra.mxu0 %v3456
  %5053 = vmatpush.bf16.msra.mxu0 %v3451
  %5054 = vmatpush.bf16.msra.mxu0 %v3446
  %5055 = vmatpush.bf16.msra.mxu0 %v3441
  %5056 = vmatpush.bf16.msra.mxu0 %v3436
  %5057 = vmatmul.bf16.gmra.mxu0 %v978
  %v5058 = vpop.f32.mrf.mxu0
  %v5059 = vadd.f32 %v5045, %v5058
  %v5060 = vpop.f32.mrf.mxu0
  %v5061 = vadd.f32 %v5047, %v5060
  %5062 = vdwg.mxu0
  %5063 = vmatpush.bf16.msra.mxu0 %v3511
  %5064 = vmatpush.bf16.msra.mxu0 %v3506
  %5065 = vmatpush.bf16.msra.mxu0 %v3501
  %5066 = vmatpush.bf16.msra.mxu0 %v3496
  %5067 = vmatpush.bf16.msra.mxu0 %v3491
  %5068 = vmatpush.bf16.msra.mxu0 %v3486
  %5069 = vmatpush.bf16.msra.mxu0 %v3481
  %5070 = vmatpush.bf16.msra.mxu0 %v3476
  %5071 = vmatmul.bf16.gmra.mxu0 %v979
  %v5072 = vpop.f32.mrf.mxu0
  %v5073 = vadd.f32 %v5059, %v5072
  %v5074 = vpop.f32.mrf.mxu0
  %v5075 = vadd.f32 %v5061, %v5074
  %5076 = vdwg.mxu0
  %5077 = vmatpush.bf16.msra.mxu0 %v3551
  %5078 = vmatpush.bf16.msra.mxu0 %v3546
  %5079 = vmatpush.bf16.msra.mxu0 %v3541
  %5080 = vmatpush.bf16.msra.mxu0 %v3536
  %5081 = vmatpush.bf16.msra.mxu0 %v3531
  %5082 = vmatpush.bf16.msra.mxu0 %v3526
  %5083 = vmatpush.bf16.msra.mxu0 %v3521
  %5084 = vmatpush.bf16.msra.mxu0 %v3516
  %5085 = vmatmul.bf16.gmra.mxu0 %v980
  %v5086 = vpop.f32.mrf.mxu0
  %v5087 = vadd.f32 %v5073, %v5086
  %v5088 = vpop.f32.mrf.mxu0
  %v5089 = vadd.f32 %v5075, %v5088
  %5090 = vdwg.mxu0
  %5091 = vmatpush.bf16.msra.mxu0 %v3591
  %5092 = vmatpush.bf16.msra.mxu0 %v3586
  %5093 = vmatpush.bf16.msra.mxu0 %v3581
  %5094 = vmatpush.bf16.msra.mxu0 %v3576
  %5095 = vmatpush.bf16.msra.mxu0 %v3571
  %5096 = vmatpush.bf16.msra.mxu0 %v3566
  %5097 = vmatpush.bf16.msra.mxu0 %v3561
  %5098 = vmatpush.bf16.msra.mxu0 %v3556
  %5099 = vmatmul.bf16.gmra.mxu0 %v981
  %v5100 = vpop.f32.mrf.mxu0
  %v5101 = vadd.f32 %v5087, %v5100
  %v5102 = vpop.f32.mrf.mxu0
  %v5103 = vadd.f32 %v5089, %v5102
  %5104 = vdwg.mxu0
  %5105 = vmatpush.bf16.msra.mxu0 %v3631
  %5106 = vmatpush.bf16.msra.mxu0 %v3626
  %5107 = vmatpush.bf16.msra.mxu0 %v3621
  %5108 = vmatpush.bf16.msra.mxu0 %v3616
  %5109 = vmatpush.bf16.msra.mxu0 %v3611
  %5110 = vmatpush.bf16.msra.mxu0 %v3606
  %5111 = vmatpush.bf16.msra.mxu0 %v3601
  %5112 = vmatpush.bf16.msra.mxu0 %v3596
  %5113 = vmatmul.bf16.gmra.mxu0 %v982
  %v5114 = vpop.f32.mrf.mxu0
  %v5115 = vadd.f32 %v5101, %v5114
  %v5116 = vpop.f32.mrf.mxu0
  %v5117 = vadd.f32 %v5103, %v5116
  %5118 = vdwg.mxu0
  %5119 = vmatpush.bf16.msra.mxu0 %v3671
  %5120 = vmatpush.bf16.msra.mxu0 %v3666
  %5121 = vmatpush.bf16.msra.mxu0 %v3661
  %5122 = vmatpush.bf16.msra.mxu0 %v3656
  %5123 = vmatpush.bf16.msra.mxu0 %v3651
  %5124 = vmatpush.bf16.msra.mxu0 %v3646
  %5125 = vmatpush.bf16.msra.mxu0 %v3641
  %5126 = vmatpush.bf16.msra.mxu0 %v3636
  %5127 = vmatmul.bf16.gmra.mxu0 %v983
  %v5128 = vpop.f32.mrf.mxu0
  %v5129 = vadd.f32 %v5115, %v5128
  %v5130 = vpop.f32.mrf.mxu0
  %v5131 = vadd.f32 %v5117, %v5130
  %5132 = vdwg.mxu0
  %5133 = vmatpush.bf16.msra.mxu0 %v3711
  %5134 = vmatpush.bf16.msra.mxu0 %v3706
  %5135 = vmatpush.bf16.msra.mxu0 %v3701
  %5136 = vmatpush.bf16.msra.mxu0 %v3696
  %5137 = vmatpush.bf16.msra.mxu0 %v3691
  %5138 = vmatpush.bf16.msra.mxu0 %v3686
  %5139 = vmatpush.bf16.msra.mxu0 %v3681
  %5140 = vmatpush.bf16.msra.mxu0 %v3676
  %5141 = vmatmul.bf16.gmra.mxu0 %v984
  %v5142 = vpop.f32.mrf.mxu0
  %v5143 = vadd.f32 %v5129, %v5142
  %v5144 = vpop.f32.mrf.mxu0
  %v5145 = vadd.f32 %v5131, %v5144
  %5146 = vdwg.mxu0
  %5147 = vmatpush.bf16.msra.mxu0 %v3751
  %5148 = vmatpush.bf16.msra.mxu0 %v3746
  %5149 = vmatpush.bf16.msra.mxu0 %v3741
  %5150 = vmatpush.bf16.msra.mxu0 %v3736
  %5151 = vmatpush.bf16.msra.mxu0 %v3731
  %5152 = vmatpush.bf16.msra.mxu0 %v3726
  %5153 = vmatpush.bf16.msra.mxu0 %v3721
  %5154 = vmatpush.bf16.msra.mxu0 %v3716
  %5155 = vmatmul.bf16.gmra.mxu0 %v985
  %v5156 = vpop.f32.mrf.mxu0
  %v5157 = vadd.f32 %v5143, %v5156
  %v5158 = vpop.f32.mrf.mxu0
  %v5159 = vadd.f32 %v5145, %v5158
  %5160 = vdwg.mxu0
  %5161 = vmatpush.bf16.msra.mxu0 %v3791
  %5162 = vmatpush.bf16.msra.mxu0 %v3786
  %5163 = vmatpush.bf16.msra.mxu0 %v3781
  %5164 = vmatpush.bf16.msra.mxu0 %v3776
  %5165 = vmatpush.bf16.msra.mxu0 %v3771
  %5166 = vmatpush.bf16.msra.mxu0 %v3766
  %5167 = vmatpush.bf16.msra.mxu0 %v3761
  %5168 = vmatpush.bf16.msra.mxu0 %v3756
  %5169 = vmatmul.bf16.gmra.mxu0 %v986
  %v5170 = vpop.f32.mrf.mxu0
  %v5171 = vadd.f32 %v5157, %v5170
  %v5172 = vpop.f32.mrf.mxu0
  %v5173 = vadd.f32 %v5159, %v5172
  %5174 = vdwg.mxu0
  %5175 = vmatpush.bf16.msra.mxu0 %v3831
  %5176 = vmatpush.bf16.msra.mxu0 %v3826
  %5177 = vmatpush.bf16.msra.mxu0 %v3821
  %5178 = vmatpush.bf16.msra.mxu0 %v3816
  %5179 = vmatpush.bf16.msra.mxu0 %v3811
  %5180 = vmatpush.bf16.msra.mxu0 %v3806
  %5181 = vmatpush.bf16.msra.mxu0 %v3801
  %5182 = vmatpush.bf16.msra.mxu0 %v3796
  %5183 = vmatmul.bf16.gmra.mxu0 %v987
  %v5184 = vpop.f32.mrf.mxu0
  %v5185 = vadd.f32 %v5171, %v5184
  %v5186 = vpop.f32.mrf.mxu0
  %v5187 = vadd.f32 %v5173, %v5186
  %5188 = vdwg.mxu0
  %5189 = vmatpush.bf16.msra.mxu0 %v3871
  %5190 = vmatpush.bf16.msra.mxu0 %v3866
  %5191 = vmatpush.bf16.msra.mxu0 %v3861
  %5192 = vmatpush.bf16.msra.mxu0 %v3856
  %5193 = vmatpush.bf16.msra.mxu0 %v3851
  %5194 = vmatpush.bf16.msra.mxu0 %v3846
  %5195 = vmatpush.bf16.msra.mxu0 %v3841
  %5196 = vmatpush.bf16.msra.mxu0 %v3836
  %5197 = vmatmul.bf16.gmra.mxu0 %v988
  %v5198 = vpop.f32.mrf.mxu0
  %v5199 = vadd.f32 %v5185, %v5198
  %v5200 = vpop.f32.mrf.mxu0
  %v5201 = vadd.f32 %v5187, %v5200
  %5202 = vdwg.mxu0
  %5203 = vmatpush.bf16.msra.mxu0 %v3911
  %5204 = vmatpush.bf16.msra.mxu0 %v3906
  %5205 = vmatpush.bf16.msra.mxu0 %v3901
  %5206 = vmatpush.bf16.msra.mxu0 %v3896
  %5207 = vmatpush.bf16.msra.mxu0 %v3891
  %5208 = vmatpush.bf16.msra.mxu0 %v3886
  %5209 = vmatpush.bf16.msra.mxu0 %v3881
  %5210 = vmatpush.bf16.msra.mxu0 %v3876
  %5211 = vmatmul.bf16.gmra.mxu0 %v989
  %v5212 = vpop.f32.mrf.mxu0
  %v5213 = vadd.f32 %v5199, %v5212
  %v5214 = vpop.f32.mrf.mxu0
  %v5215 = vadd.f32 %v5201, %v5214
  %5216 = vdwg.mxu0
  %5217 = vmatpush.bf16.msra.mxu0 %v3951
  %5218 = vmatpush.bf16.msra.mxu0 %v3946
  %5219 = vmatpush.bf16.msra.mxu0 %v3941
  %5220 = vmatpush.bf16.msra.mxu0 %v3936
  %5221 = vmatpush.bf16.msra.mxu0 %v3931
  %5222 = vmatpush.bf16.msra.mxu0 %v3926
  %5223 = vmatpush.bf16.msra.mxu0 %v3921
  %5224 = vmatpush.bf16.msra.mxu0 %v3916
  %5225 = vmatmul.bf16.gmra.mxu0 %v990
  %v5226 = vpop.f32.mrf.mxu0
  %v5227 = vadd.f32 %v5213, %v5226
  %v5228 = vpop.f32.mrf.mxu0
  %v5229 = vadd.f32 %v5215, %v5228
  %5230 = vdwg.mxu0
  %5231 = vmatpush.bf16.msra.mxu0 %v3991
  %5232 = vmatpush.bf16.msra.mxu0 %v3986
  %5233 = vmatpush.bf16.msra.mxu0 %v3981
  %5234 = vmatpush.bf16.msra.mxu0 %v3976
  %5235 = vmatpush.bf16.msra.mxu0 %v3971
  %5236 = vmatpush.bf16.msra.mxu0 %v3966
  %5237 = vmatpush.bf16.msra.mxu0 %v3961
  %5238 = vmatpush.bf16.msra.mxu0 %v3956
  %5239 = vmatmul.bf16.gmra.mxu0 %v991
  %v5240 = vpop.f32.mrf.mxu0
  %v5241 = vadd.f32 %v5227, %v5240
  %v5242 = vpop.f32.mrf.mxu0
  %v5243 = vadd.f32 %v5229, %v5242
  %5244 = vdwg.mxu0
  %5245 = vmatpush.bf16.msra.mxu0 %v4031
  %5246 = vmatpush.bf16.msra.mxu0 %v4026
  %5247 = vmatpush.bf16.msra.mxu0 %v4021
  %5248 = vmatpush.bf16.msra.mxu0 %v4016
  %5249 = vmatpush.bf16.msra.mxu0 %v4011
  %5250 = vmatpush.bf16.msra.mxu0 %v4006
  %5251 = vmatpush.bf16.msra.mxu0 %v4001
  %5252 = vmatpush.bf16.msra.mxu0 %v3996
  %5253 = vmatmul.bf16.gmra.mxu0 %v992
  %v5254 = vpop.f32.mrf.mxu0
  %v5255 = vadd.f32 %v5241, %v5254
  %v5256 = vpop.f32.mrf.mxu0
  %v5257 = vadd.f32 %v5243, %v5256
  %5258 = vdwg.mxu0
  %5259 = vmatpush.bf16.msra.mxu0 %v3352
  %5260 = vmatpush.bf16.msra.mxu0 %v3347
  %5261 = vmatpush.bf16.msra.mxu0 %v3342
  %5262 = vmatpush.bf16.msra.mxu0 %v3337
  %5263 = vmatpush.bf16.msra.mxu0 %v3332
  %5264 = vmatpush.bf16.msra.mxu0 %v3327
  %5265 = vmatpush.bf16.msra.mxu0 %v3322
  %5266 = vmatpush.bf16.msra.mxu0 %v3317
  %5267 = vmatmul.bf16.gmra.mxu0 %v975
  %v5268 = vpop.f32.mrf.mxu0
  %v5269 = vadd.f32 %v913, %v5268
  %v5270 = vpop.f32.mrf.mxu0
  %v5271 = vadd.f32 %v913, %v5270
  %5272 = vdwg.mxu0
  %5273 = vmatpush.bf16.msra.mxu0 %v3392
  %5274 = vmatpush.bf16.msra.mxu0 %v3387
  %5275 = vmatpush.bf16.msra.mxu0 %v3382
  %5276 = vmatpush.bf16.msra.mxu0 %v3377
  %5277 = vmatpush.bf16.msra.mxu0 %v3372
  %5278 = vmatpush.bf16.msra.mxu0 %v3367
  %5279 = vmatpush.bf16.msra.mxu0 %v3362
  %5280 = vmatpush.bf16.msra.mxu0 %v3357
  %5281 = vmatmul.bf16.gmra.mxu0 %v976
  %v5282 = vpop.f32.mrf.mxu0
  %v5283 = vadd.f32 %v5269, %v5282
  %v5284 = vpop.f32.mrf.mxu0
  %v5285 = vadd.f32 %v5271, %v5284
  %5286 = vdwg.mxu0
  %5287 = vmatpush.bf16.msra.mxu0 %v3432
  %5288 = vmatpush.bf16.msra.mxu0 %v3427
  %5289 = vmatpush.bf16.msra.mxu0 %v3422
  %5290 = vmatpush.bf16.msra.mxu0 %v3417
  %5291 = vmatpush.bf16.msra.mxu0 %v3412
  %5292 = vmatpush.bf16.msra.mxu0 %v3407
  %5293 = vmatpush.bf16.msra.mxu0 %v3402
  %5294 = vmatpush.bf16.msra.mxu0 %v3397
  %5295 = vmatmul.bf16.gmra.mxu0 %v977
  %v5296 = vpop.f32.mrf.mxu0
  %v5297 = vadd.f32 %v5283, %v5296
  %v5298 = vpop.f32.mrf.mxu0
  %v5299 = vadd.f32 %v5285, %v5298
  %5300 = vdwg.mxu0
  %5301 = vmatpush.bf16.msra.mxu0 %v3472
  %5302 = vmatpush.bf16.msra.mxu0 %v3467
  %5303 = vmatpush.bf16.msra.mxu0 %v3462
  %5304 = vmatpush.bf16.msra.mxu0 %v3457
  %5305 = vmatpush.bf16.msra.mxu0 %v3452
  %5306 = vmatpush.bf16.msra.mxu0 %v3447
  %5307 = vmatpush.bf16.msra.mxu0 %v3442
  %5308 = vmatpush.bf16.msra.mxu0 %v3437
  %5309 = vmatmul.bf16.gmra.mxu0 %v978
  %v5310 = vpop.f32.mrf.mxu0
  %v5311 = vadd.f32 %v5297, %v5310
  %v5312 = vpop.f32.mrf.mxu0
  %v5313 = vadd.f32 %v5299, %v5312
  %5314 = vdwg.mxu0
  %5315 = vmatpush.bf16.msra.mxu0 %v3512
  %5316 = vmatpush.bf16.msra.mxu0 %v3507
  %5317 = vmatpush.bf16.msra.mxu0 %v3502
  %5318 = vmatpush.bf16.msra.mxu0 %v3497
  %5319 = vmatpush.bf16.msra.mxu0 %v3492
  %5320 = vmatpush.bf16.msra.mxu0 %v3487
  %5321 = vmatpush.bf16.msra.mxu0 %v3482
  %5322 = vmatpush.bf16.msra.mxu0 %v3477
  %5323 = vmatmul.bf16.gmra.mxu0 %v979
  %v5324 = vpop.f32.mrf.mxu0
  %v5325 = vadd.f32 %v5311, %v5324
  %v5326 = vpop.f32.mrf.mxu0
  %v5327 = vadd.f32 %v5313, %v5326
  %5328 = vdwg.mxu0
  %5329 = vmatpush.bf16.msra.mxu0 %v3552
  %5330 = vmatpush.bf16.msra.mxu0 %v3547
  %5331 = vmatpush.bf16.msra.mxu0 %v3542
  %5332 = vmatpush.bf16.msra.mxu0 %v3537
  %5333 = vmatpush.bf16.msra.mxu0 %v3532
  %5334 = vmatpush.bf16.msra.mxu0 %v3527
  %5335 = vmatpush.bf16.msra.mxu0 %v3522
  %5336 = vmatpush.bf16.msra.mxu0 %v3517
  %5337 = vmatmul.bf16.gmra.mxu0 %v980
  %v5338 = vpop.f32.mrf.mxu0
  %v5339 = vadd.f32 %v5325, %v5338
  %v5340 = vpop.f32.mrf.mxu0
  %v5341 = vadd.f32 %v5327, %v5340
  %5342 = vdwg.mxu0
  %5343 = vmatpush.bf16.msra.mxu0 %v3592
  %5344 = vmatpush.bf16.msra.mxu0 %v3587
  %5345 = vmatpush.bf16.msra.mxu0 %v3582
  %5346 = vmatpush.bf16.msra.mxu0 %v3577
  %5347 = vmatpush.bf16.msra.mxu0 %v3572
  %5348 = vmatpush.bf16.msra.mxu0 %v3567
  %5349 = vmatpush.bf16.msra.mxu0 %v3562
  %5350 = vmatpush.bf16.msra.mxu0 %v3557
  %5351 = vmatmul.bf16.gmra.mxu0 %v981
  %v5352 = vpop.f32.mrf.mxu0
  %v5353 = vadd.f32 %v5339, %v5352
  %v5354 = vpop.f32.mrf.mxu0
  %v5355 = vadd.f32 %v5341, %v5354
  %5356 = vdwg.mxu0
  %5357 = vmatpush.bf16.msra.mxu0 %v3632
  %5358 = vmatpush.bf16.msra.mxu0 %v3627
  %5359 = vmatpush.bf16.msra.mxu0 %v3622
  %5360 = vmatpush.bf16.msra.mxu0 %v3617
  %5361 = vmatpush.bf16.msra.mxu0 %v3612
  %5362 = vmatpush.bf16.msra.mxu0 %v3607
  %5363 = vmatpush.bf16.msra.mxu0 %v3602
  %5364 = vmatpush.bf16.msra.mxu0 %v3597
  %5365 = vmatmul.bf16.gmra.mxu0 %v982
  %v5366 = vpop.f32.mrf.mxu0
  %v5367 = vadd.f32 %v5353, %v5366
  %v5368 = vpop.f32.mrf.mxu0
  %v5369 = vadd.f32 %v5355, %v5368
  %5370 = vdwg.mxu0
  %5371 = vmatpush.bf16.msra.mxu0 %v3672
  %5372 = vmatpush.bf16.msra.mxu0 %v3667
  %5373 = vmatpush.bf16.msra.mxu0 %v3662
  %5374 = vmatpush.bf16.msra.mxu0 %v3657
  %5375 = vmatpush.bf16.msra.mxu0 %v3652
  %5376 = vmatpush.bf16.msra.mxu0 %v3647
  %5377 = vmatpush.bf16.msra.mxu0 %v3642
  %5378 = vmatpush.bf16.msra.mxu0 %v3637
  %5379 = vmatmul.bf16.gmra.mxu0 %v983
  %v5380 = vpop.f32.mrf.mxu0
  %v5381 = vadd.f32 %v5367, %v5380
  %v5382 = vpop.f32.mrf.mxu0
  %v5383 = vadd.f32 %v5369, %v5382
  %5384 = vdwg.mxu0
  %5385 = vmatpush.bf16.msra.mxu0 %v3712
  %5386 = vmatpush.bf16.msra.mxu0 %v3707
  %5387 = vmatpush.bf16.msra.mxu0 %v3702
  %5388 = vmatpush.bf16.msra.mxu0 %v3697
  %5389 = vmatpush.bf16.msra.mxu0 %v3692
  %5390 = vmatpush.bf16.msra.mxu0 %v3687
  %5391 = vmatpush.bf16.msra.mxu0 %v3682
  %5392 = vmatpush.bf16.msra.mxu0 %v3677
  %5393 = vmatmul.bf16.gmra.mxu0 %v984
  %v5394 = vpop.f32.mrf.mxu0
  %v5395 = vadd.f32 %v5381, %v5394
  %v5396 = vpop.f32.mrf.mxu0
  %v5397 = vadd.f32 %v5383, %v5396
  %5398 = vdwg.mxu0
  %5399 = vmatpush.bf16.msra.mxu0 %v3752
  %5400 = vmatpush.bf16.msra.mxu0 %v3747
  %5401 = vmatpush.bf16.msra.mxu0 %v3742
  %5402 = vmatpush.bf16.msra.mxu0 %v3737
  %5403 = vmatpush.bf16.msra.mxu0 %v3732
  %5404 = vmatpush.bf16.msra.mxu0 %v3727
  %5405 = vmatpush.bf16.msra.mxu0 %v3722
  %5406 = vmatpush.bf16.msra.mxu0 %v3717
  %5407 = vmatmul.bf16.gmra.mxu0 %v985
  %v5408 = vpop.f32.mrf.mxu0
  %v5409 = vadd.f32 %v5395, %v5408
  %v5410 = vpop.f32.mrf.mxu0
  %v5411 = vadd.f32 %v5397, %v5410
  %5412 = vdwg.mxu0
  %5413 = vmatpush.bf16.msra.mxu0 %v3792
  %5414 = vmatpush.bf16.msra.mxu0 %v3787
  %5415 = vmatpush.bf16.msra.mxu0 %v3782
  %5416 = vmatpush.bf16.msra.mxu0 %v3777
  %5417 = vmatpush.bf16.msra.mxu0 %v3772
  %5418 = vmatpush.bf16.msra.mxu0 %v3767
  %5419 = vmatpush.bf16.msra.mxu0 %v3762
  %5420 = vmatpush.bf16.msra.mxu0 %v3757
  %5421 = vmatmul.bf16.gmra.mxu0 %v986
  %v5422 = vpop.f32.mrf.mxu0
  %v5423 = vadd.f32 %v5409, %v5422
  %v5424 = vpop.f32.mrf.mxu0
  %v5425 = vadd.f32 %v5411, %v5424
  %5426 = vdwg.mxu0
  %5427 = vmatpush.bf16.msra.mxu0 %v3832
  %5428 = vmatpush.bf16.msra.mxu0 %v3827
  %5429 = vmatpush.bf16.msra.mxu0 %v3822
  %5430 = vmatpush.bf16.msra.mxu0 %v3817
  %5431 = vmatpush.bf16.msra.mxu0 %v3812
  %5432 = vmatpush.bf16.msra.mxu0 %v3807
  %5433 = vmatpush.bf16.msra.mxu0 %v3802
  %5434 = vmatpush.bf16.msra.mxu0 %v3797
  %5435 = vmatmul.bf16.gmra.mxu0 %v987
  %v5436 = vpop.f32.mrf.mxu0
  %v5437 = vadd.f32 %v5423, %v5436
  %v5438 = vpop.f32.mrf.mxu0
  %v5439 = vadd.f32 %v5425, %v5438
  %5440 = vdwg.mxu0
  %5441 = vmatpush.bf16.msra.mxu0 %v3872
  %5442 = vmatpush.bf16.msra.mxu0 %v3867
  %5443 = vmatpush.bf16.msra.mxu0 %v3862
  %5444 = vmatpush.bf16.msra.mxu0 %v3857
  %5445 = vmatpush.bf16.msra.mxu0 %v3852
  %5446 = vmatpush.bf16.msra.mxu0 %v3847
  %5447 = vmatpush.bf16.msra.mxu0 %v3842
  %5448 = vmatpush.bf16.msra.mxu0 %v3837
  %5449 = vmatmul.bf16.gmra.mxu0 %v988
  %v5450 = vpop.f32.mrf.mxu0
  %v5451 = vadd.f32 %v5437, %v5450
  %v5452 = vpop.f32.mrf.mxu0
  %v5453 = vadd.f32 %v5439, %v5452
  %5454 = vdwg.mxu0
  %5455 = vmatpush.bf16.msra.mxu0 %v3912
  %5456 = vmatpush.bf16.msra.mxu0 %v3907
  %5457 = vmatpush.bf16.msra.mxu0 %v3902
  %5458 = vmatpush.bf16.msra.mxu0 %v3897
  %5459 = vmatpush.bf16.msra.mxu0 %v3892
  %5460 = vmatpush.bf16.msra.mxu0 %v3887
  %5461 = vmatpush.bf16.msra.mxu0 %v3882
  %5462 = vmatpush.bf16.msra.mxu0 %v3877
  %5463 = vmatmul.bf16.gmra.mxu0 %v989
  %v5464 = vpop.f32.mrf.mxu0
  %v5465 = vadd.f32 %v5451, %v5464
  %v5466 = vpop.f32.mrf.mxu0
  %v5467 = vadd.f32 %v5453, %v5466
  %5468 = vdwg.mxu0
  %5469 = vmatpush.bf16.msra.mxu0 %v3952
  %5470 = vmatpush.bf16.msra.mxu0 %v3947
  %5471 = vmatpush.bf16.msra.mxu0 %v3942
  %5472 = vmatpush.bf16.msra.mxu0 %v3937
  %5473 = vmatpush.bf16.msra.mxu0 %v3932
  %5474 = vmatpush.bf16.msra.mxu0 %v3927
  %5475 = vmatpush.bf16.msra.mxu0 %v3922
  %5476 = vmatpush.bf16.msra.mxu0 %v3917
  %5477 = vmatmul.bf16.gmra.mxu0 %v990
  %v5478 = vpop.f32.mrf.mxu0
  %v5479 = vadd.f32 %v5465, %v5478
  %v5480 = vpop.f32.mrf.mxu0
  %v5481 = vadd.f32 %v5467, %v5480
  %5482 = vdwg.mxu0
  %5483 = vmatpush.bf16.msra.mxu0 %v3992
  %5484 = vmatpush.bf16.msra.mxu0 %v3987
  %5485 = vmatpush.bf16.msra.mxu0 %v3982
  %5486 = vmatpush.bf16.msra.mxu0 %v3977
  %5487 = vmatpush.bf16.msra.mxu0 %v3972
  %5488 = vmatpush.bf16.msra.mxu0 %v3967
  %5489 = vmatpush.bf16.msra.mxu0 %v3962
  %5490 = vmatpush.bf16.msra.mxu0 %v3957
  %5491 = vmatmul.bf16.gmra.mxu0 %v991
  %v5492 = vpop.f32.mrf.mxu0
  %v5493 = vadd.f32 %v5479, %v5492
  %v5494 = vpop.f32.mrf.mxu0
  %v5495 = vadd.f32 %v5481, %v5494
  %5496 = vdwg.mxu0
  %5497 = vmatpush.bf16.msra.mxu0 %v4032
  %5498 = vmatpush.bf16.msra.mxu0 %v4027
  %5499 = vmatpush.bf16.msra.mxu0 %v4022
  %5500 = vmatpush.bf16.msra.mxu0 %v4017
  %5501 = vmatpush.bf16.msra.mxu0 %v4012
  %5502 = vmatpush.bf16.msra.mxu0 %v4007
  %5503 = vmatpush.bf16.msra.mxu0 %v4002
  %5504 = vmatpush.bf16.msra.mxu0 %v3997
  %5505 = vmatmul.bf16.gmra.mxu0 %v992
  %v5506 = vpop.f32.mrf.mxu0
  %v5507 = vadd.f32 %v5493, %v5506
  %v5508 = vpop.f32.mrf.mxu0
  %v5509 = vadd.f32 %v5495, %v5508
  %5510 = vdwg.mxu0
  %5511 = vmatpush.bf16.msra.mxu0 %v3353
  %5512 = vmatpush.bf16.msra.mxu0 %v3348
  %5513 = vmatpush.bf16.msra.mxu0 %v3343
  %5514 = vmatpush.bf16.msra.mxu0 %v3338
  %5515 = vmatpush.bf16.msra.mxu0 %v3333
  %5516 = vmatpush.bf16.msra.mxu0 %v3328
  %5517 = vmatpush.bf16.msra.mxu0 %v3323
  %5518 = vmatpush.bf16.msra.mxu0 %v3318
  %5519 = vmatmul.bf16.gmra.mxu0 %v975
  %v5520 = vpop.f32.mrf.mxu0
  %v5521 = vadd.f32 %v914, %v5520
  %v5522 = vpop.f32.mrf.mxu0
  %v5523 = vadd.f32 %v914, %v5522
  %5524 = vdwg.mxu0
  %5525 = vmatpush.bf16.msra.mxu0 %v3393
  %5526 = vmatpush.bf16.msra.mxu0 %v3388
  %5527 = vmatpush.bf16.msra.mxu0 %v3383
  %5528 = vmatpush.bf16.msra.mxu0 %v3378
  %5529 = vmatpush.bf16.msra.mxu0 %v3373
  %5530 = vmatpush.bf16.msra.mxu0 %v3368
  %5531 = vmatpush.bf16.msra.mxu0 %v3363
  %5532 = vmatpush.bf16.msra.mxu0 %v3358
  %5533 = vmatmul.bf16.gmra.mxu0 %v976
  %v5534 = vpop.f32.mrf.mxu0
  %v5535 = vadd.f32 %v5521, %v5534
  %v5536 = vpop.f32.mrf.mxu0
  %v5537 = vadd.f32 %v5523, %v5536
  %5538 = vdwg.mxu0
  %5539 = vmatpush.bf16.msra.mxu0 %v3433
  %5540 = vmatpush.bf16.msra.mxu0 %v3428
  %5541 = vmatpush.bf16.msra.mxu0 %v3423
  %5542 = vmatpush.bf16.msra.mxu0 %v3418
  %5543 = vmatpush.bf16.msra.mxu0 %v3413
  %5544 = vmatpush.bf16.msra.mxu0 %v3408
  %5545 = vmatpush.bf16.msra.mxu0 %v3403
  %5546 = vmatpush.bf16.msra.mxu0 %v3398
  %5547 = vmatmul.bf16.gmra.mxu0 %v977
  %v5548 = vpop.f32.mrf.mxu0
  %v5549 = vadd.f32 %v5535, %v5548
  %v5550 = vpop.f32.mrf.mxu0
  %v5551 = vadd.f32 %v5537, %v5550
  %5552 = vdwg.mxu0
  %5553 = vmatpush.bf16.msra.mxu0 %v3473
  %5554 = vmatpush.bf16.msra.mxu0 %v3468
  %5555 = vmatpush.bf16.msra.mxu0 %v3463
  %5556 = vmatpush.bf16.msra.mxu0 %v3458
  %5557 = vmatpush.bf16.msra.mxu0 %v3453
  %5558 = vmatpush.bf16.msra.mxu0 %v3448
  %5559 = vmatpush.bf16.msra.mxu0 %v3443
  %5560 = vmatpush.bf16.msra.mxu0 %v3438
  %5561 = vmatmul.bf16.gmra.mxu0 %v978
  %v5562 = vpop.f32.mrf.mxu0
  %v5563 = vadd.f32 %v5549, %v5562
  %v5564 = vpop.f32.mrf.mxu0
  %v5565 = vadd.f32 %v5551, %v5564
  %5566 = vdwg.mxu0
  %5567 = vmatpush.bf16.msra.mxu0 %v3513
  %5568 = vmatpush.bf16.msra.mxu0 %v3508
  %5569 = vmatpush.bf16.msra.mxu0 %v3503
  %5570 = vmatpush.bf16.msra.mxu0 %v3498
  %5571 = vmatpush.bf16.msra.mxu0 %v3493
  %5572 = vmatpush.bf16.msra.mxu0 %v3488
  %5573 = vmatpush.bf16.msra.mxu0 %v3483
  %5574 = vmatpush.bf16.msra.mxu0 %v3478
  %5575 = vmatmul.bf16.gmra.mxu0 %v979
  %v5576 = vpop.f32.mrf.mxu0
  %v5577 = vadd.f32 %v5563, %v5576
  %v5578 = vpop.f32.mrf.mxu0
  %v5579 = vadd.f32 %v5565, %v5578
  %5580 = vdwg.mxu0
  %5581 = vmatpush.bf16.msra.mxu0 %v3553
  %5582 = vmatpush.bf16.msra.mxu0 %v3548
  %5583 = vmatpush.bf16.msra.mxu0 %v3543
  %5584 = vmatpush.bf16.msra.mxu0 %v3538
  %5585 = vmatpush.bf16.msra.mxu0 %v3533
  %5586 = vmatpush.bf16.msra.mxu0 %v3528
  %5587 = vmatpush.bf16.msra.mxu0 %v3523
  %5588 = vmatpush.bf16.msra.mxu0 %v3518
  %5589 = vmatmul.bf16.gmra.mxu0 %v980
  %v5590 = vpop.f32.mrf.mxu0
  %v5591 = vadd.f32 %v5577, %v5590
  %v5592 = vpop.f32.mrf.mxu0
  %v5593 = vadd.f32 %v5579, %v5592
  %5594 = vdwg.mxu0
  %5595 = vmatpush.bf16.msra.mxu0 %v3593
  %5596 = vmatpush.bf16.msra.mxu0 %v3588
  %5597 = vmatpush.bf16.msra.mxu0 %v3583
  %5598 = vmatpush.bf16.msra.mxu0 %v3578
  %5599 = vmatpush.bf16.msra.mxu0 %v3573
  %5600 = vmatpush.bf16.msra.mxu0 %v3568
  %5601 = vmatpush.bf16.msra.mxu0 %v3563
  %5602 = vmatpush.bf16.msra.mxu0 %v3558
  %5603 = vmatmul.bf16.gmra.mxu0 %v981
  %v5604 = vpop.f32.mrf.mxu0
  %v5605 = vadd.f32 %v5591, %v5604
  %v5606 = vpop.f32.mrf.mxu0
  %v5607 = vadd.f32 %v5593, %v5606
  %5608 = vdwg.mxu0
  %5609 = vmatpush.bf16.msra.mxu0 %v3633
  %5610 = vmatpush.bf16.msra.mxu0 %v3628
  %5611 = vmatpush.bf16.msra.mxu0 %v3623
  %5612 = vmatpush.bf16.msra.mxu0 %v3618
  %5613 = vmatpush.bf16.msra.mxu0 %v3613
  %5614 = vmatpush.bf16.msra.mxu0 %v3608
  %5615 = vmatpush.bf16.msra.mxu0 %v3603
  %5616 = vmatpush.bf16.msra.mxu0 %v3598
  %5617 = vmatmul.bf16.gmra.mxu0 %v982
  %v5618 = vpop.f32.mrf.mxu0
  %v5619 = vadd.f32 %v5605, %v5618
  %v5620 = vpop.f32.mrf.mxu0
  %v5621 = vadd.f32 %v5607, %v5620
  %5622 = vdwg.mxu0
  %5623 = vmatpush.bf16.msra.mxu0 %v3673
  %5624 = vmatpush.bf16.msra.mxu0 %v3668
  %5625 = vmatpush.bf16.msra.mxu0 %v3663
  %5626 = vmatpush.bf16.msra.mxu0 %v3658
  %5627 = vmatpush.bf16.msra.mxu0 %v3653
  %5628 = vmatpush.bf16.msra.mxu0 %v3648
  %5629 = vmatpush.bf16.msra.mxu0 %v3643
  %5630 = vmatpush.bf16.msra.mxu0 %v3638
  %5631 = vmatmul.bf16.gmra.mxu0 %v983
  %v5632 = vpop.f32.mrf.mxu0
  %v5633 = vadd.f32 %v5619, %v5632
  %v5634 = vpop.f32.mrf.mxu0
  %v5635 = vadd.f32 %v5621, %v5634
  %5636 = vdwg.mxu0
  %5637 = vmatpush.bf16.msra.mxu0 %v3713
  %5638 = vmatpush.bf16.msra.mxu0 %v3708
  %5639 = vmatpush.bf16.msra.mxu0 %v3703
  %5640 = vmatpush.bf16.msra.mxu0 %v3698
  %5641 = vmatpush.bf16.msra.mxu0 %v3693
  %5642 = vmatpush.bf16.msra.mxu0 %v3688
  %5643 = vmatpush.bf16.msra.mxu0 %v3683
  %5644 = vmatpush.bf16.msra.mxu0 %v3678
  %5645 = vmatmul.bf16.gmra.mxu0 %v984
  %v5646 = vpop.f32.mrf.mxu0
  %v5647 = vadd.f32 %v5633, %v5646
  %v5648 = vpop.f32.mrf.mxu0
  %v5649 = vadd.f32 %v5635, %v5648
  %5650 = vdwg.mxu0
  %5651 = vmatpush.bf16.msra.mxu0 %v3753
  %5652 = vmatpush.bf16.msra.mxu0 %v3748
  %5653 = vmatpush.bf16.msra.mxu0 %v3743
  %5654 = vmatpush.bf16.msra.mxu0 %v3738
  %5655 = vmatpush.bf16.msra.mxu0 %v3733
  %5656 = vmatpush.bf16.msra.mxu0 %v3728
  %5657 = vmatpush.bf16.msra.mxu0 %v3723
  %5658 = vmatpush.bf16.msra.mxu0 %v3718
  %5659 = vmatmul.bf16.gmra.mxu0 %v985
  %v5660 = vpop.f32.mrf.mxu0
  %v5661 = vadd.f32 %v5647, %v5660
  %v5662 = vpop.f32.mrf.mxu0
  %v5663 = vadd.f32 %v5649, %v5662
  %5664 = vdwg.mxu0
  %5665 = vmatpush.bf16.msra.mxu0 %v3793
  %5666 = vmatpush.bf16.msra.mxu0 %v3788
  %5667 = vmatpush.bf16.msra.mxu0 %v3783
  %5668 = vmatpush.bf16.msra.mxu0 %v3778
  %5669 = vmatpush.bf16.msra.mxu0 %v3773
  %5670 = vmatpush.bf16.msra.mxu0 %v3768
  %5671 = vmatpush.bf16.msra.mxu0 %v3763
  %5672 = vmatpush.bf16.msra.mxu0 %v3758
  %5673 = vmatmul.bf16.gmra.mxu0 %v986
  %v5674 = vpop.f32.mrf.mxu0
  %v5675 = vadd.f32 %v5661, %v5674
  %v5676 = vpop.f32.mrf.mxu0
  %v5677 = vadd.f32 %v5663, %v5676
  %5678 = vdwg.mxu0
  %5679 = vmatpush.bf16.msra.mxu0 %v3833
  %5680 = vmatpush.bf16.msra.mxu0 %v3828
  %5681 = vmatpush.bf16.msra.mxu0 %v3823
  %5682 = vmatpush.bf16.msra.mxu0 %v3818
  %5683 = vmatpush.bf16.msra.mxu0 %v3813
  %5684 = vmatpush.bf16.msra.mxu0 %v3808
  %5685 = vmatpush.bf16.msra.mxu0 %v3803
  %5686 = vmatpush.bf16.msra.mxu0 %v3798
  %5687 = vmatmul.bf16.gmra.mxu0 %v987
  %v5688 = vpop.f32.mrf.mxu0
  %v5689 = vadd.f32 %v5675, %v5688
  %v5690 = vpop.f32.mrf.mxu0
  %v5691 = vadd.f32 %v5677, %v5690
  %5692 = vdwg.mxu0
  %5693 = vmatpush.bf16.msra.mxu0 %v3873
  %5694 = vmatpush.bf16.msra.mxu0 %v3868
  %5695 = vmatpush.bf16.msra.mxu0 %v3863
  %5696 = vmatpush.bf16.msra.mxu0 %v3858
  %5697 = vmatpush.bf16.msra.mxu0 %v3853
  %5698 = vmatpush.bf16.msra.mxu0 %v3848
  %5699 = vmatpush.bf16.msra.mxu0 %v3843
  %5700 = vmatpush.bf16.msra.mxu0 %v3838
  %5701 = vmatmul.bf16.gmra.mxu0 %v988
  %v5702 = vpop.f32.mrf.mxu0
  %v5703 = vadd.f32 %v5689, %v5702
  %v5704 = vpop.f32.mrf.mxu0
  %v5705 = vadd.f32 %v5691, %v5704
  %5706 = vdwg.mxu0
  %5707 = vmatpush.bf16.msra.mxu0 %v3913
  %5708 = vmatpush.bf16.msra.mxu0 %v3908
  %5709 = vmatpush.bf16.msra.mxu0 %v3903
  %5710 = vmatpush.bf16.msra.mxu0 %v3898
  %5711 = vmatpush.bf16.msra.mxu0 %v3893
  %5712 = vmatpush.bf16.msra.mxu0 %v3888
  %5713 = vmatpush.bf16.msra.mxu0 %v3883
  %5714 = vmatpush.bf16.msra.mxu0 %v3878
  %5715 = vmatmul.bf16.gmra.mxu0 %v989
  %v5716 = vpop.f32.mrf.mxu0
  %v5717 = vadd.f32 %v5703, %v5716
  %v5718 = vpop.f32.mrf.mxu0
  %v5719 = vadd.f32 %v5705, %v5718
  %5720 = vdwg.mxu0
  %5721 = vmatpush.bf16.msra.mxu0 %v3953
  %5722 = vmatpush.bf16.msra.mxu0 %v3948
  %5723 = vmatpush.bf16.msra.mxu0 %v3943
  %5724 = vmatpush.bf16.msra.mxu0 %v3938
  %5725 = vmatpush.bf16.msra.mxu0 %v3933
  %5726 = vmatpush.bf16.msra.mxu0 %v3928
  %5727 = vmatpush.bf16.msra.mxu0 %v3923
  %5728 = vmatpush.bf16.msra.mxu0 %v3918
  %5729 = vmatmul.bf16.gmra.mxu0 %v990
  %v5730 = vpop.f32.mrf.mxu0
  %v5731 = vadd.f32 %v5717, %v5730
  %v5732 = vpop.f32.mrf.mxu0
  %v5733 = vadd.f32 %v5719, %v5732
  %5734 = vdwg.mxu0
  %5735 = vmatpush.bf16.msra.mxu0 %v3993
  %5736 = vmatpush.bf16.msra.mxu0 %v3988
  %5737 = vmatpush.bf16.msra.mxu0 %v3983
  %5738 = vmatpush.bf16.msra.mxu0 %v3978
  %5739 = vmatpush.bf16.msra.mxu0 %v3973
  %5740 = vmatpush.bf16.msra.mxu0 %v3968
  %5741 = vmatpush.bf16.msra.mxu0 %v3963
  %5742 = vmatpush.bf16.msra.mxu0 %v3958
  %5743 = vmatmul.bf16.gmra.mxu0 %v991
  %v5744 = vpop.f32.mrf.mxu0
  %v5745 = vadd.f32 %v5731, %v5744
  %v5746 = vpop.f32.mrf.mxu0
  %v5747 = vadd.f32 %v5733, %v5746
  %5748 = vdwg.mxu0
  %5749 = vmatpush.bf16.msra.mxu0 %v4033
  %5750 = vmatpush.bf16.msra.mxu0 %v4028
  %5751 = vmatpush.bf16.msra.mxu0 %v4023
  %5752 = vmatpush.bf16.msra.mxu0 %v4018
  %5753 = vmatpush.bf16.msra.mxu0 %v4013
  %5754 = vmatpush.bf16.msra.mxu0 %v4008
  %5755 = vmatpush.bf16.msra.mxu0 %v4003
  %5756 = vmatpush.bf16.msra.mxu0 %v3998
  %5757 = vmatmul.bf16.gmra.mxu0 %v992
  %v5758 = vpop.f32.mrf.mxu0
  %v5759 = vadd.f32 %v5745, %v5758
  %v5760 = vpop.f32.mrf.mxu0
  %v5761 = vadd.f32 %v5747, %v5760
  %5762 = vdwg.mxu0
  %5763 = vmatpush.bf16.msra.mxu0 %v3354
  %5764 = vmatpush.bf16.msra.mxu0 %v3349
  %5765 = vmatpush.bf16.msra.mxu0 %v3344
  %5766 = vmatpush.bf16.msra.mxu0 %v3339
  %5767 = vmatpush.bf16.msra.mxu0 %v3334
  %5768 = vmatpush.bf16.msra.mxu0 %v3329
  %5769 = vmatpush.bf16.msra.mxu0 %v3324
  %5770 = vmatpush.bf16.msra.mxu0 %v3319
  %5771 = vmatmul.bf16.gmra.mxu0 %v975
  %v5772 = vpop.f32.mrf.mxu0
  %v5773 = vadd.f32 %v915, %v5772
  %v5774 = vpop.f32.mrf.mxu0
  %v5775 = vadd.f32 %v915, %v5774
  %5776 = vdwg.mxu0
  %5777 = vmatpush.bf16.msra.mxu0 %v3394
  %5778 = vmatpush.bf16.msra.mxu0 %v3389
  %5779 = vmatpush.bf16.msra.mxu0 %v3384
  %5780 = vmatpush.bf16.msra.mxu0 %v3379
  %5781 = vmatpush.bf16.msra.mxu0 %v3374
  %5782 = vmatpush.bf16.msra.mxu0 %v3369
  %5783 = vmatpush.bf16.msra.mxu0 %v3364
  %5784 = vmatpush.bf16.msra.mxu0 %v3359
  %5785 = vmatmul.bf16.gmra.mxu0 %v976
  %v5786 = vpop.f32.mrf.mxu0
  %v5787 = vadd.f32 %v5773, %v5786
  %v5788 = vpop.f32.mrf.mxu0
  %v5789 = vadd.f32 %v5775, %v5788
  %5790 = vdwg.mxu0
  %5791 = vmatpush.bf16.msra.mxu0 %v3434
  %5792 = vmatpush.bf16.msra.mxu0 %v3429
  %5793 = vmatpush.bf16.msra.mxu0 %v3424
  %5794 = vmatpush.bf16.msra.mxu0 %v3419
  %5795 = vmatpush.bf16.msra.mxu0 %v3414
  %5796 = vmatpush.bf16.msra.mxu0 %v3409
  %5797 = vmatpush.bf16.msra.mxu0 %v3404
  %5798 = vmatpush.bf16.msra.mxu0 %v3399
  %5799 = vmatmul.bf16.gmra.mxu0 %v977
  %v5800 = vpop.f32.mrf.mxu0
  %v5801 = vadd.f32 %v5787, %v5800
  %v5802 = vpop.f32.mrf.mxu0
  %v5803 = vadd.f32 %v5789, %v5802
  %5804 = vdwg.mxu0
  %5805 = vmatpush.bf16.msra.mxu0 %v3474
  %5806 = vmatpush.bf16.msra.mxu0 %v3469
  %5807 = vmatpush.bf16.msra.mxu0 %v3464
  %5808 = vmatpush.bf16.msra.mxu0 %v3459
  %5809 = vmatpush.bf16.msra.mxu0 %v3454
  %5810 = vmatpush.bf16.msra.mxu0 %v3449
  %5811 = vmatpush.bf16.msra.mxu0 %v3444
  %5812 = vmatpush.bf16.msra.mxu0 %v3439
  %5813 = vmatmul.bf16.gmra.mxu0 %v978
  %v5814 = vpop.f32.mrf.mxu0
  %v5815 = vadd.f32 %v5801, %v5814
  %v5816 = vpop.f32.mrf.mxu0
  %v5817 = vadd.f32 %v5803, %v5816
  %5818 = vdwg.mxu0
  %5819 = vmatpush.bf16.msra.mxu0 %v3514
  %5820 = vmatpush.bf16.msra.mxu0 %v3509
  %5821 = vmatpush.bf16.msra.mxu0 %v3504
  %5822 = vmatpush.bf16.msra.mxu0 %v3499
  %5823 = vmatpush.bf16.msra.mxu0 %v3494
  %5824 = vmatpush.bf16.msra.mxu0 %v3489
  %5825 = vmatpush.bf16.msra.mxu0 %v3484
  %5826 = vmatpush.bf16.msra.mxu0 %v3479
  %5827 = vmatmul.bf16.gmra.mxu0 %v979
  %v5828 = vpop.f32.mrf.mxu0
  %v5829 = vadd.f32 %v5815, %v5828
  %v5830 = vpop.f32.mrf.mxu0
  %v5831 = vadd.f32 %v5817, %v5830
  %5832 = vdwg.mxu0
  %5833 = vmatpush.bf16.msra.mxu0 %v3554
  %5834 = vmatpush.bf16.msra.mxu0 %v3549
  %5835 = vmatpush.bf16.msra.mxu0 %v3544
  %5836 = vmatpush.bf16.msra.mxu0 %v3539
  %5837 = vmatpush.bf16.msra.mxu0 %v3534
  %5838 = vmatpush.bf16.msra.mxu0 %v3529
  %5839 = vmatpush.bf16.msra.mxu0 %v3524
  %5840 = vmatpush.bf16.msra.mxu0 %v3519
  %5841 = vmatmul.bf16.gmra.mxu0 %v980
  %v5842 = vpop.f32.mrf.mxu0
  %v5843 = vadd.f32 %v5829, %v5842
  %v5844 = vpop.f32.mrf.mxu0
  %v5845 = vadd.f32 %v5831, %v5844
  %5846 = vdwg.mxu0
  %5847 = vmatpush.bf16.msra.mxu0 %v3594
  %5848 = vmatpush.bf16.msra.mxu0 %v3589
  %5849 = vmatpush.bf16.msra.mxu0 %v3584
  %5850 = vmatpush.bf16.msra.mxu0 %v3579
  %5851 = vmatpush.bf16.msra.mxu0 %v3574
  %5852 = vmatpush.bf16.msra.mxu0 %v3569
  %5853 = vmatpush.bf16.msra.mxu0 %v3564
  %5854 = vmatpush.bf16.msra.mxu0 %v3559
  %5855 = vmatmul.bf16.gmra.mxu0 %v981
  %v5856 = vpop.f32.mrf.mxu0
  %v5857 = vadd.f32 %v5843, %v5856
  %v5858 = vpop.f32.mrf.mxu0
  %v5859 = vadd.f32 %v5845, %v5858
  %5860 = vdwg.mxu0
  %5861 = vmatpush.bf16.msra.mxu0 %v3634
  %5862 = vmatpush.bf16.msra.mxu0 %v3629
  %5863 = vmatpush.bf16.msra.mxu0 %v3624
  %5864 = vmatpush.bf16.msra.mxu0 %v3619
  %5865 = vmatpush.bf16.msra.mxu0 %v3614
  %5866 = vmatpush.bf16.msra.mxu0 %v3609
  %5867 = vmatpush.bf16.msra.mxu0 %v3604
  %5868 = vmatpush.bf16.msra.mxu0 %v3599
  %5869 = vmatmul.bf16.gmra.mxu0 %v982
  %v5870 = vpop.f32.mrf.mxu0
  %v5871 = vadd.f32 %v5857, %v5870
  %v5872 = vpop.f32.mrf.mxu0
  %v5873 = vadd.f32 %v5859, %v5872
  %5874 = vdwg.mxu0
  %5875 = vmatpush.bf16.msra.mxu0 %v3674
  %5876 = vmatpush.bf16.msra.mxu0 %v3669
  %5877 = vmatpush.bf16.msra.mxu0 %v3664
  %5878 = vmatpush.bf16.msra.mxu0 %v3659
  %5879 = vmatpush.bf16.msra.mxu0 %v3654
  %5880 = vmatpush.bf16.msra.mxu0 %v3649
  %5881 = vmatpush.bf16.msra.mxu0 %v3644
  %5882 = vmatpush.bf16.msra.mxu0 %v3639
  %5883 = vmatmul.bf16.gmra.mxu0 %v983
  %v5884 = vpop.f32.mrf.mxu0
  %v5885 = vadd.f32 %v5871, %v5884
  %v5886 = vpop.f32.mrf.mxu0
  %v5887 = vadd.f32 %v5873, %v5886
  %5888 = vdwg.mxu0
  %5889 = vmatpush.bf16.msra.mxu0 %v3714
  %5890 = vmatpush.bf16.msra.mxu0 %v3709
  %5891 = vmatpush.bf16.msra.mxu0 %v3704
  %5892 = vmatpush.bf16.msra.mxu0 %v3699
  %5893 = vmatpush.bf16.msra.mxu0 %v3694
  %5894 = vmatpush.bf16.msra.mxu0 %v3689
  %5895 = vmatpush.bf16.msra.mxu0 %v3684
  %5896 = vmatpush.bf16.msra.mxu0 %v3679
  %5897 = vmatmul.bf16.gmra.mxu0 %v984
  %v5898 = vpop.f32.mrf.mxu0
  %v5899 = vadd.f32 %v5885, %v5898
  %v5900 = vpop.f32.mrf.mxu0
  %v5901 = vadd.f32 %v5887, %v5900
  %5902 = vdwg.mxu0
  %5903 = vmatpush.bf16.msra.mxu0 %v3754
  %5904 = vmatpush.bf16.msra.mxu0 %v3749
  %5905 = vmatpush.bf16.msra.mxu0 %v3744
  %5906 = vmatpush.bf16.msra.mxu0 %v3739
  %5907 = vmatpush.bf16.msra.mxu0 %v3734
  %5908 = vmatpush.bf16.msra.mxu0 %v3729
  %5909 = vmatpush.bf16.msra.mxu0 %v3724
  %5910 = vmatpush.bf16.msra.mxu0 %v3719
  %5911 = vmatmul.bf16.gmra.mxu0 %v985
  %v5912 = vpop.f32.mrf.mxu0
  %v5913 = vadd.f32 %v5899, %v5912
  %v5914 = vpop.f32.mrf.mxu0
  %v5915 = vadd.f32 %v5901, %v5914
  %5916 = vdwg.mxu0
  %5917 = vmatpush.bf16.msra.mxu0 %v3794
  %5918 = vmatpush.bf16.msra.mxu0 %v3789
  %5919 = vmatpush.bf16.msra.mxu0 %v3784
  %5920 = vmatpush.bf16.msra.mxu0 %v3779
  %5921 = vmatpush.bf16.msra.mxu0 %v3774
  %5922 = vmatpush.bf16.msra.mxu0 %v3769
  %5923 = vmatpush.bf16.msra.mxu0 %v3764
  %5924 = vmatpush.bf16.msra.mxu0 %v3759
  %5925 = vmatmul.bf16.gmra.mxu0 %v986
  %v5926 = vpop.f32.mrf.mxu0
  %v5927 = vadd.f32 %v5913, %v5926
  %v5928 = vpop.f32.mrf.mxu0
  %v5929 = vadd.f32 %v5915, %v5928
  %5930 = vdwg.mxu0
  %5931 = vmatpush.bf16.msra.mxu0 %v3834
  %5932 = vmatpush.bf16.msra.mxu0 %v3829
  %5933 = vmatpush.bf16.msra.mxu0 %v3824
  %5934 = vmatpush.bf16.msra.mxu0 %v3819
  %5935 = vmatpush.bf16.msra.mxu0 %v3814
  %5936 = vmatpush.bf16.msra.mxu0 %v3809
  %5937 = vmatpush.bf16.msra.mxu0 %v3804
  %5938 = vmatpush.bf16.msra.mxu0 %v3799
  %5939 = vmatmul.bf16.gmra.mxu0 %v987
  %v5940 = vpop.f32.mrf.mxu0
  %v5941 = vadd.f32 %v5927, %v5940
  %v5942 = vpop.f32.mrf.mxu0
  %v5943 = vadd.f32 %v5929, %v5942
  %5944 = vdwg.mxu0
  %5945 = vmatpush.bf16.msra.mxu0 %v3874
  %5946 = vmatpush.bf16.msra.mxu0 %v3869
  %5947 = vmatpush.bf16.msra.mxu0 %v3864
  %5948 = vmatpush.bf16.msra.mxu0 %v3859
  %5949 = vmatpush.bf16.msra.mxu0 %v3854
  %5950 = vmatpush.bf16.msra.mxu0 %v3849
  %5951 = vmatpush.bf16.msra.mxu0 %v3844
  %5952 = vmatpush.bf16.msra.mxu0 %v3839
  %5953 = vmatmul.bf16.gmra.mxu0 %v988
  %v5954 = vpop.f32.mrf.mxu0
  %v5955 = vadd.f32 %v5941, %v5954
  %v5956 = vpop.f32.mrf.mxu0
  %v5957 = vadd.f32 %v5943, %v5956
  %5958 = vdwg.mxu0
  %5959 = vmatpush.bf16.msra.mxu0 %v3914
  %5960 = vmatpush.bf16.msra.mxu0 %v3909
  %5961 = vmatpush.bf16.msra.mxu0 %v3904
  %5962 = vmatpush.bf16.msra.mxu0 %v3899
  %5963 = vmatpush.bf16.msra.mxu0 %v3894
  %5964 = vmatpush.bf16.msra.mxu0 %v3889
  %5965 = vmatpush.bf16.msra.mxu0 %v3884
  %5966 = vmatpush.bf16.msra.mxu0 %v3879
  %5967 = vmatmul.bf16.gmra.mxu0 %v989
  %v5968 = vpop.f32.mrf.mxu0
  %v5969 = vadd.f32 %v5955, %v5968
  %v5970 = vpop.f32.mrf.mxu0
  %v5971 = vadd.f32 %v5957, %v5970
  %5972 = vdwg.mxu0
  %5973 = vmatpush.bf16.msra.mxu0 %v3954
  %5974 = vmatpush.bf16.msra.mxu0 %v3949
  %5975 = vmatpush.bf16.msra.mxu0 %v3944
  %5976 = vmatpush.bf16.msra.mxu0 %v3939
  %5977 = vmatpush.bf16.msra.mxu0 %v3934
  %5978 = vmatpush.bf16.msra.mxu0 %v3929
  %5979 = vmatpush.bf16.msra.mxu0 %v3924
  %5980 = vmatpush.bf16.msra.mxu0 %v3919
  %5981 = vmatmul.bf16.gmra.mxu0 %v990
  %v5982 = vpop.f32.mrf.mxu0
  %v5983 = vadd.f32 %v5969, %v5982
  %v5984 = vpop.f32.mrf.mxu0
  %v5985 = vadd.f32 %v5971, %v5984
  %5986 = vdwg.mxu0
  %5987 = vmatpush.bf16.msra.mxu0 %v3994
  %5988 = vmatpush.bf16.msra.mxu0 %v3989
  %5989 = vmatpush.bf16.msra.mxu0 %v3984
  %5990 = vmatpush.bf16.msra.mxu0 %v3979
  %5991 = vmatpush.bf16.msra.mxu0 %v3974
  %5992 = vmatpush.bf16.msra.mxu0 %v3969
  %5993 = vmatpush.bf16.msra.mxu0 %v3964
  %5994 = vmatpush.bf16.msra.mxu0 %v3959
  %5995 = vmatmul.bf16.gmra.mxu0 %v991
  %v5996 = vpop.f32.mrf.mxu0
  %v5997 = vadd.f32 %v5983, %v5996
  %v5998 = vpop.f32.mrf.mxu0
  %v5999 = vadd.f32 %v5985, %v5998
  %6000 = vdwg.mxu0
  %6001 = vmatpush.bf16.msra.mxu0 %v4034
  %6002 = vmatpush.bf16.msra.mxu0 %v4029
  %6003 = vmatpush.bf16.msra.mxu0 %v4024
  %6004 = vmatpush.bf16.msra.mxu0 %v4019
  %6005 = vmatpush.bf16.msra.mxu0 %v4014
  %6006 = vmatpush.bf16.msra.mxu0 %v4009
  %6007 = vmatpush.bf16.msra.mxu0 %v4004
  %6008 = vmatpush.bf16.msra.mxu0 %v3999
  %6009 = vmatmul.bf16.gmra.mxu0 %v992
  %v6010 = vpop.f32.mrf.mxu0
  %v6011 = vadd.f32 %v5997, %v6010
  %v6012 = vpop.f32.mrf.mxu0
  %v6013 = vadd.f32 %v5999, %v6012
  %6014 = vdwg.mxu0
  %v6015 = vpack.c.bf16 %v5005, %v5003
  %v6016 = vpack.c.bf16 %v5257, %v5255
  %v6017 = vpack.c.bf16 %v5509, %v5507
  %v6018 = vpack.c.bf16 %v5761, %v5759
  %v6019 = vpack.c.bf16 %v6013, %v6011
  %v6020 = vld [vmem:[%s3] sm:$0xf]
  %v6021 = vld [vmem:[%s3 + $0x4] sm:$0xf]
  %v6022 = vld [vmem:[%s3 + $0x8] sm:$0xf]
  %v6023 = vld [vmem:[%s3 + $0xc] sm:$0xf]
  %v6024 = vld [vmem:[%s3 + $0x10] sm:$0xf]
  %v6025 = vld [vmem:[%s3 + $0x14] sm:$0xf]
  %v6026 = vld [vmem:[%s3 + $0x18] sm:$0xf]
  %v6027 = vld [vmem:[%s3 + $0x1c] sm:$0xf]
  %v6028 = vld [vmem:[%s3 + $0x20] sm:$0xf]
  %v6029 = vld [vmem:[%s3 + $0x24] sm:$0xf]
  %v6030 = vld [vmem:[%s3 + $0x28] sm:$0xf]
  %v6031 = vld [vmem:[%s3 + $0x2c] sm:$0xf]
  %v6032 = vld [vmem:[%s3 + $0x30] sm:$0xf]
  %v6033 = vld [vmem:[%s3 + $0x34] sm:$0xf]
  %v6034 = vld [vmem:[%s3 + $0x38] sm:$0xf]
  %v6035 = vld [vmem:[%s3 + $0x3c] sm:$0xf]
  %v6036 = vld [vmem:[%s3 + $0x40] sm:$0xf]
  %v6037 = vld [vmem:[%s3 + $0x44] sm:$0xf]
  %v6038 = vld [vmem:[%s3 + $0x48] sm:$0xf]
  %v6039 = vld [vmem:[%s3 + $0x4c] sm:$0xf]
  %v6040 = vld [vmem:[%s3 + $0x50] sm:$0xf]
  %v6041 = vld [vmem:[%s3 + $0x54] sm:$0xf]
  %v6042 = vld [vmem:[%s3 + $0x58] sm:$0xf]
  %v6043 = vld [vmem:[%s3 + $0x5c] sm:$0xf]
  %v6044 = vld [vmem:[%s3 + $0x60] sm:$0xf]
  %v6045 = vld [vmem:[%s3 + $0x64] sm:$0xf]
  %v6046 = vld [vmem:[%s3 + $0x68] sm:$0xf]
  %v6047 = vld [vmem:[%s3 + $0x6c] sm:$0xf]
  %v6048 = vld [vmem:[%s3 + $0x70] sm:$0xf]
  %v6049 = vld [vmem:[%s3 + $0x74] sm:$0xf]
  %v6050 = vld [vmem:[%s3 + $0x78] sm:$0xf]
  %v6051 = vld [vmem:[%s3 + $0x7c] sm:$0xf]
  %v6052 = vld [vmem:[%s3 + $0x80] sm:$0xf]
  %v6053 = vld [vmem:[%s3 + $0x84] sm:$0xf]
  %v6054 = vld [vmem:[%s3 + $0x88] sm:$0xf]
  %v6055 = vld [vmem:[%s3 + $0x8c] sm:$0xf]
  %v6056 = vld [vmem:[%s3 + $0x90] sm:$0xf]
  %v6057 = vld [vmem:[%s3 + $0x94] sm:$0xf]
  %v6058 = vld [vmem:[%s3 + $0x98] sm:$0xf]
  %v6059 = vld [vmem:[%s3 + $0x9c] sm:$0xf]
  %v6060 = vld [vmem:[%s3 + $0xa0] sm:$0xf]
  %v6061 = vld [vmem:[%s3 + $0xa4] sm:$0xf]
  %v6062 = vld [vmem:[%s3 + $0xa8] sm:$0xf]
  %v6063 = vld [vmem:[%s3 + $0xac] sm:$0xf]
  %v6064 = vld [vmem:[%s3 + $0xb0] sm:$0xf]
  %v6065 = vld [vmem:[%s3 + $0xb4] sm:$0xf]
  %v6066 = vld [vmem:[%s3 + $0xb8] sm:$0xf]
  %v6067 = vld [vmem:[%s3 + $0xbc] sm:$0xf]
  %v6068 = vld [vmem:[%s3 + $0xc0] sm:$0xf]
  %v6069 = vld [vmem:[%s3 + $0xc4] sm:$0xf]
  %v6070 = vld [vmem:[%s3 + $0xc8] sm:$0xf]
  %v6071 = vld [vmem:[%s3 + $0xcc] sm:$0xf]
  %v6072 = vld [vmem:[%s3 + $0xd0] sm:$0xf]
  %v6073 = vld [vmem:[%s3 + $0xd4] sm:$0xf]
  %v6074 = vld [vmem:[%s3 + $0xd8] sm:$0xf]
  %v6075 = vld [vmem:[%s3 + $0xdc] sm:$0xf]
  %v6076 = vld [vmem:[%s3 + $0xe0] sm:$0xf]
  %v6077 = vld [vmem:[%s3 + $0xe4] sm:$0xf]
  %v6078 = vld [vmem:[%s3 + $0xe8] sm:$0xf]
  %v6079 = vld [vmem:[%s3 + $0xec] sm:$0xf]
  %v6080 = vld [vmem:[%s3 + $0xf0] sm:$0xf]
  %v6081 = vld [vmem:[%s3 + $0xf4] sm:$0xf]
  %v6082 = vld [vmem:[%s3 + $0xf8] sm:$0xf]
  %v6083 = vld [vmem:[%s3 + $0xfc] sm:$0xf]
  %v6084 = vld [vmem:[%s3 + $0x100] sm:$0xf]
  %v6085 = vld [vmem:[%s3 + $0x104] sm:$0xf]
  %v6086 = vld [vmem:[%s3 + $0x108] sm:$0xf]
  %v6087 = vld [vmem:[%s3 + $0x10c] sm:$0xf]
  %v6088 = vld [vmem:[%s3 + $0x110] sm:$0xf]
  %v6089 = vld [vmem:[%s3 + $0x114] sm:$0xf]
  %v6090 = vld [vmem:[%s3 + $0x118] sm:$0xf]
  %v6091 = vld [vmem:[%s3 + $0x11c] sm:$0xf]
  %v6092 = vld [vmem:[%s3 + $0x120] sm:$0xf]
  %v6093 = vld [vmem:[%s3 + $0x124] sm:$0xf]
  %v6094 = vld [vmem:[%s3 + $0x128] sm:$0xf]
  %v6095 = vld [vmem:[%s4] sm:$0x1]
  %v6097 = vperm.slane %v6095, 0
  %v6174 = vunpack.c.l.b16 %v6020
  %v6175 = vunpack.c.l.b16 %v6021
  %v6176 = vunpack.c.l.b16 %v6022
  %v6177 = vunpack.c.l.b16 %v6023
  %v6178 = vunpack.c.l.b16 %v6024
  %v6179 = vunpack.c.l.b16 %v6025
  %v6180 = vunpack.c.l.b16 %v6026
  %v6181 = vunpack.c.l.b16 %v6027
  %v6182 = vunpack.c.l.b16 %v6028
  %v6183 = vunpack.c.l.b16 %v6029
  %v6184 = vunpack.c.l.b16 %v6030
  %v6185 = vunpack.c.l.b16 %v6031
  %v6186 = vunpack.c.l.b16 %v6032
  %v6187 = vunpack.c.l.b16 %v6033
  %v6188 = vunpack.c.l.b16 %v6034
  %v6189 = vunpack.c.l.b16 %v6035
  %v6190 = vunpack.c.l.b16 %v6036
  %v6191 = vunpack.c.l.b16 %v6037
  %v6192 = vunpack.c.l.b16 %v6038
  %v6193 = vunpack.c.l.b16 %v6039
  %v6194 = vunpack.c.l.b16 %v6040
  %v6195 = vunpack.c.l.b16 %v6041
  %v6196 = vunpack.c.l.b16 %v6042
  %v6197 = vunpack.c.l.b16 %v6043
  %v6198 = vunpack.c.l.b16 %v6044
  %v6199 = vunpack.c.l.b16 %v6045
  %v6200 = vunpack.c.l.b16 %v6046
  %v6201 = vunpack.c.l.b16 %v6047
  %v6202 = vunpack.c.l.b16 %v6048
  %v6203 = vunpack.c.l.b16 %v6049
  %v6204 = vunpack.c.l.b16 %v6050
  %v6205 = vunpack.c.l.b16 %v6051
  %v6206 = vunpack.c.l.b16 %v6052
  %v6207 = vunpack.c.l.b16 %v6053
  %v6208 = vunpack.c.l.b16 %v6054
  %v6209 = vunpack.c.l.b16 %v6055
  %v6210 = vunpack.c.l.b16 %v6056
  %v6211 = vunpack.c.l.b16 %v6057
  %v6212 = vunpack.c.l.b16 %v6058
  %v6213 = vunpack.c.l.b16 %v6059
  %v6214 = vunpack.c.l.b16 %v6060
  %v6215 = vunpack.c.l.b16 %v6061
  %v6216 = vunpack.c.l.b16 %v6062
  %v6217 = vunpack.c.l.b16 %v6063
  %v6218 = vunpack.c.l.b16 %v6064
  %v6219 = vunpack.c.l.b16 %v6065
  %v6220 = vunpack.c.l.b16 %v6066
  %v6221 = vunpack.c.l.b16 %v6067
  %v6222 = vunpack.c.l.b16 %v6068
  %v6223 = vunpack.c.l.b16 %v6069
  %v6224 = vunpack.c.l.b16 %v6070
  %v6225 = vunpack.c.l.b16 %v6071
  %v6226 = vunpack.c.l.b16 %v6072
  %v6227 = vunpack.c.l.b16 %v6073
  %v6228 = vunpack.c.l.b16 %v6074
  %v6229 = vunpack.c.l.b16 %v6075
  %v6230 = vunpack.c.l.b16 %v6076
  %v6231 = vunpack.c.l.b16 %v6077
  %v6232 = vunpack.c.l.b16 %v6078
  %v6233 = vunpack.c.l.b16 %v6079
  %v6234 = vunpack.c.l.b16 %v6080
  %v6235 = vunpack.c.l.b16 %v6081
  %v6236 = vunpack.c.l.b16 %v6082
  %v6237 = vunpack.c.l.b16 %v6083
  %v6238 = vunpack.c.l.b16 %v6084
  %v6239 = vunpack.c.l.b16 %v6085
  %v6240 = vunpack.c.l.b16 %v6086
  %v6241 = vunpack.c.l.b16 %v6087
  %v6242 = vunpack.c.l.b16 %v6088
  %v6243 = vunpack.c.l.b16 %v6089
  %v6244 = vunpack.c.l.b16 %v6090
  %v6245 = vunpack.c.l.b16 %v6091
  %v6246 = vunpack.c.l.b16 %v6092
  %v6247 = vunpack.c.l.b16 %v6093
  %v6248 = vunpack.c.l.b16 %v6094
  %v6249 = vpack.c.b16 %v6175, %v6174
  %v6250 = vpack.c.b16 %v6177, %v6176
  %v6251 = vpack.c.b16 %v6179, %v6178
  %v6252 = vpack.c.b16 %v6181, %v6180
  %v6253 = vpack.c.b16 %v6183, %v6182
  %v6254 = vpack.c.b16 %v6185, %v6184
  %v6255 = vpack.c.b16 %v6187, %v6186
  %v6256 = vpack.c.b16 %v6189, %v6188
  %v6257 = vpack.c.b16 %v6191, %v6190
  %v6258 = vpack.c.b16 %v6193, %v6192
  %v6259 = vpack.c.b16 %v6195, %v6194
  %v6260 = vpack.c.b16 %v6197, %v6196
  %v6261 = vpack.c.b16 %v6199, %v6198
  %v6262 = vpack.c.b16 %v6201, %v6200
  %v6263 = vpack.c.b16 %v6203, %v6202
  %v6264 = vpack.c.b16 %v6205, %v6204
  %v6265 = vpack.c.b16 %v6207, %v6206
  %v6266 = vpack.c.b16 %v6209, %v6208
  %v6267 = vpack.c.b16 %v6211, %v6210
  %v6268 = vpack.c.b16 %v6213, %v6212
  %v6269 = vpack.c.b16 %v6215, %v6214
  %v6270 = vpack.c.b16 %v6217, %v6216
  %v6271 = vpack.c.b16 %v6219, %v6218
  %v6272 = vpack.c.b16 %v6221, %v6220
  %v6273 = vpack.c.b16 %v6223, %v6222
  %v6274 = vpack.c.b16 %v6225, %v6224
  %v6275 = vpack.c.b16 %v6227, %v6226
  %v6276 = vpack.c.b16 %v6229, %v6228
  %v6277 = vpack.c.b16 %v6231, %v6230
  %v6278 = vpack.c.b16 %v6233, %v6232
  %v6279 = vpack.c.b16 %v6235, %v6234
  %v6280 = vpack.c.b16 %v6237, %v6236
  %v6281 = vpack.c.b16 %v6239, %v6238
  %v6282 = vpack.c.b16 %v6241, %v6240
  %v6283 = vpack.c.b16 %v6243, %v6242
  %v6284 = vpack.c.b16 %v6245, %v6244
  %v6285 = vpack.c.b16 %v6247, %v6246
  %v6286 = vpack.c.b16 %v6248, %v6248
  %vm6324 = vcmask 719872
  %v6326 = vsel %vm6324, %v6019, 0
  %vm6328 = vcmask 1043456
  %v6330 = vsel %vm6328, %v6286, 0
  %6332 = vmatpush.bf16.msra.mxu0 %v6256
  %6333 = vmatpush.bf16.msra.mxu0 %v6255
  %6334 = vmatpush.bf16.msra.mxu0 %v6254
  %6335 = vmatpush.bf16.msra.mxu0 %v6253
  %6336 = vmatpush.bf16.msra.mxu0 %v6252
  %6337 = vmatpush.bf16.msra.mxu0 %v6251
  %6338 = vmatpush.bf16.msra.mxu0 %v6250
  %6339 = vmatpush.bf16.msra.mxu0 %v6249
  %6340 = vmatmul.bf16.gmra.mxu0 %v6015
  %v6341 = vpop.f32.mrf.mxu0
  %v6342 = vadd.f32 %v6097, %v6341
  %v6343 = vpop.f32.mrf.mxu0
  %v6344 = vadd.f32 %v6097, %v6343
  %6345 = vdwg.mxu0
  %6346 = vmatpush.bf16.msra.mxu0 %v6264
  %6347 = vmatpush.bf16.msra.mxu0 %v6263
  %6348 = vmatpush.bf16.msra.mxu0 %v6262
  %6349 = vmatpush.bf16.msra.mxu0 %v6261
  %6350 = vmatpush.bf16.msra.mxu0 %v6260
  %6351 = vmatpush.bf16.msra.mxu0 %v6259
  %6352 = vmatpush.bf16.msra.mxu0 %v6258
  %6353 = vmatpush.bf16.msra.mxu0 %v6257
  %6354 = vmatmul.bf16.gmra.mxu0 %v6016
  %v6355 = vpop.f32.mrf.mxu0
  %v6356 = vadd.f32 %v6342, %v6355
  %v6357 = vpop.f32.mrf.mxu0
  %v6358 = vadd.f32 %v6344, %v6357
  %6359 = vdwg.mxu0
  %6360 = vmatpush.bf16.msra.mxu0 %v6272
  %6361 = vmatpush.bf16.msra.mxu0 %v6271
  %6362 = vmatpush.bf16.msra.mxu0 %v6270
  %6363 = vmatpush.bf16.msra.mxu0 %v6269
  %6364 = vmatpush.bf16.msra.mxu0 %v6268
  %6365 = vmatpush.bf16.msra.mxu0 %v6267
  %6366 = vmatpush.bf16.msra.mxu0 %v6266
  %6367 = vmatpush.bf16.msra.mxu0 %v6265
  %6368 = vmatmul.bf16.gmra.mxu0 %v6017
  %v6369 = vpop.f32.mrf.mxu0
  %v6370 = vadd.f32 %v6356, %v6369
  %v6371 = vpop.f32.mrf.mxu0
  %v6372 = vadd.f32 %v6358, %v6371
  %6373 = vdwg.mxu0
  %6374 = vmatpush.bf16.msra.mxu0 %v6280
  %6375 = vmatpush.bf16.msra.mxu0 %v6279
  %6376 = vmatpush.bf16.msra.mxu0 %v6278
  %6377 = vmatpush.bf16.msra.mxu0 %v6277
  %6378 = vmatpush.bf16.msra.mxu0 %v6276
  %6379 = vmatpush.bf16.msra.mxu0 %v6275
  %6380 = vmatpush.bf16.msra.mxu0 %v6274
  %6381 = vmatpush.bf16.msra.mxu0 %v6273
  %6382 = vmatmul.bf16.gmra.mxu0 %v6018
  %v6383 = vpop.f32.mrf.mxu0
  %v6384 = vadd.f32 %v6370, %v6383
  %v6385 = vpop.f32.mrf.mxu0
  %v6386 = vadd.f32 %v6372, %v6385
  %6387 = vdwg.mxu0
  %6388 = vmatpush.bf16.msra.mxu0 0
  %6389 = vmatpush.bf16.msra.mxu0 0
  %6390 = vmatpush.bf16.msra.mxu0 %v6330
  %6391 = vmatpush.bf16.msra.mxu0 %v6285
  %6392 = vmatpush.bf16.msra.mxu0 %v6284
  %6393 = vmatpush.bf16.msra.mxu0 %v6283
  %6394 = vmatpush.bf16.msra.mxu0 %v6282
  %6395 = vmatpush.bf16.msra.mxu0 %v6281
  %6396 = vmatmul.bf16.gmra.mxu0 %v6326
  %v6397 = vpop.f32.mrf.mxu0
  %v6398 = vadd.f32 %v6384, %v6397
  %v6399 = vpop.f32.mrf.mxu0
  %v6400 = vadd.f32 %v6386, %v6399
  %6401 = vdwg.mxu0
  %v6402 = vpack.c.bf16 %v6400, %v6398
  %v6403 = vld [vmem:[%s5] sm:$0xf]
  %v6404 = vld [vmem:[%s5 + $0x4] sm:$0xf]
  %v6405 = vld [vmem:[%s5 + $0x8] sm:$0xf]
  %v6406 = vld [vmem:[%s5 + $0xc] sm:$0xf]
  %v6407 = vld [vmem:[%s5 + $0x10] sm:$0xf]
  %v6408 = vld [vmem:[%s5 + $0x14] sm:$0xf]
  %v6409 = vld [vmem:[%s5 + $0x18] sm:$0xf]
  %v6410 = vld [vmem:[%s5 + $0x1c] sm:$0xf]
  %v6411 = vld [vmem:[%s5 + $0x20] sm:$0xf]
  %v6412 = vld [vmem:[%s5 + $0x24] sm:$0xf]
  %v6413 = vld [vmem:[%s5 + $0x28] sm:$0xf]
  %v6414 = vld [vmem:[%s5 + $0x2c] sm:$0xf]
  %v6415 = vld [vmem:[%s5 + $0x30] sm:$0xf]
  %v6416 = vld [vmem:[%s5 + $0x34] sm:$0xf]
  %v6417 = vld [vmem:[%s5 + $0x38] sm:$0xf]
  %v6418 = vld [vmem:[%s6] sm:$0x1]
  %v6420 = vperm.slane %v6418, 0
  %v6437 = vunpack.c.l.b16 %v6403
  %v6438 = vunpack.c.l.b16 %v6404
  %v6439 = vunpack.c.l.b16 %v6405
  %v6440 = vunpack.c.l.b16 %v6406
  %v6441 = vunpack.c.l.b16 %v6407
  %v6442 = vunpack.c.l.b16 %v6408
  %v6443 = vunpack.c.l.b16 %v6409
  %v6444 = vunpack.c.l.b16 %v6410
  %v6445 = vunpack.c.l.b16 %v6411
  %v6446 = vunpack.c.l.b16 %v6412
  %v6447 = vunpack.c.l.b16 %v6413
  %v6448 = vunpack.c.l.b16 %v6414
  %v6449 = vunpack.c.l.b16 %v6415
  %v6450 = vunpack.c.l.b16 %v6416
  %v6451 = vunpack.c.l.b16 %v6417
  %v6452 = vpack.c.b16 %v6438, %v6437
  %v6453 = vpack.c.b16 %v6440, %v6439
  %v6454 = vpack.c.b16 %v6442, %v6441
  %v6455 = vpack.c.b16 %v6444, %v6443
  %v6456 = vpack.c.b16 %v6446, %v6445
  %v6457 = vpack.c.b16 %v6448, %v6447
  %v6458 = vpack.c.b16 %v6450, %v6449
  %v6459 = vpack.c.b16 %v6451, %v6451
  %vm6467 = vcmask 982016
  %v6469 = vsel %vm6467, %v6402, 0
  %v6472 = vsel %vm6328, %v6459, 0
  %6474 = vmatpush.bf16.msra.mxu0 %v6472
  %6475 = vmatpush.bf16.msra.mxu0 %v6458
  %6476 = vmatpush.bf16.msra.mxu0 %v6457
  %6477 = vmatpush.bf16.msra.mxu0 %v6456
  %6478 = vmatpush.bf16.msra.mxu0 %v6455
  %6479 = vmatpush.bf16.msra.mxu0 %v6454
  %6480 = vmatpush.bf16.msra.mxu0 %v6453
  %6481 = vmatpush.bf16.msra.mxu0 %v6452
  %6482 = vmatmul.bf16.gmra.mxu0 %v6469
  %v6483 = vpop.f32.mrf.mxu0
  %v6484 = vadd.f32 %v6420, %v6483
  %v6485 = vpop.f32.mrf.mxu0
  %v6486 = vadd.f32 %v6420, %v6485
  %6487 = vdwg.mxu0
  %vm6488 = vcmask 80896
  %6489 = vst.msk [vmem:[%s7] sm:$0xff] %vm6488, %v6484
  %6490 = vst.msk [vmem:[%s7 + $0x8] sm:$0xff] %vm6488, %v6486
  // Predicated region
  $region30: #{fashion_cnn_forward.5} parent=0 // pred_check
    _
  $region31: #{fashion_cnn_forward.5} parent=0 // pred_check_branch
    %6492 = sbr.rel (0) target = $region33
  $region32: #{fashion_cnn_forward.5} parent=0 // pred_region
    _
  $region33: #{fashion_cnn_forward.5} parent=0 // pred_fallthru
    _
  // Predicated region
  $region34: #{fashion_cnn_forward.5} parent=0 // pred_check
    _
  $region35: #{fashion_cnn_forward.5} parent=0 // pred_check_branch
    %6494 = sbr.rel (0) target = $region37
  $region36: #{fashion_cnn_forward.5} parent=0 // pred_region
    _
  $region37: #{fashion_cnn_forward.5} parent=0 // pred_fallthru
    _

</llo_original>
